<compile_context>
chip_gen: v5e
topology: v5e:2x2
jax: 0.10.0
libtpu: 0.0.40
codegen_flags: <defaults>
</compile_context>

<pallas_src>
import jax
import jax.numpy as jnp
from jax import lax
from jax.experimental import pallas as pl
from jax.experimental.pallas import tpu as pltpu

EPS = 1e-5   # torch.nn.BatchNorm2d default
LANE = 128


def _round_up(x, m):
    return ((x + m - 1) // m) * m


def _layer_layout(in_channels, growth_rate, c_pad, i):
    """Static per-layer tiling: live-K channel width and the aligned output slab."""
    cin = in_channels + i * growth_rate
    c_off = cin                                   # new features start here
    k_in = _round_up(cin, LANE)                   # live input lane groups
    out_w = LANE                                  # smallest aligned slab covering
    while True:                                   # [c_off, c_off + growth_rate)
        og_start = (c_off // out_w) * out_w
        if og_start + out_w >= c_off + growth_rate and og_start + out_w <= c_pad:
            break
        out_w += LANE
    return cin, c_off, k_in, og_start, out_w


def _vmem_limit_bytes():
    """~3/4 of physical VMEM (128 MiB on v5e/v6e, 64 MiB on v7x), capped."""
    try:
        cap = int(pltpu.get_tpu_info().vmem_capacity_bytes)
    except Exception:
        cap = 64 * 1024 * 1024
    return min(cap * 3 // 4, 100 * 1024 * 1024)


# ---------------------------------------------------------------------------
# Fused kernel: BN affine + ReLU + 3x3 conv (9 per-tap matmuls) + in-place
# channel append of the output lane-group slab + incremental BN statistics
# ---------------------------------------------------------------------------
def _make_fused_kernel(h, w, k_in, og_start, out_w):
    hw = h * w
    overlap = max(0, min(k_in, og_start + out_w) - og_start)

    def kernel(x_ref, scale_ref, shift_ref, w_ref, b_ref,
               o_ref, sum_ref, ssq_ref, pad_ref):
        # ---- BatchNorm affine + ReLU on the live input channel groups (f32) ----
        x = x_ref[0].astype(jnp.float32)                       # (h, w, k_in)
        act = jnp.maximum(x * scale_ref[...] + shift_ref[...], 0.0)

        # ---- halo-padded activation (padding=1): rezero only the 1-wide border,
        #      the interior is fully overwritten.  Rezeroed every grid step (not
        #      just step 0) so per-core scratch stays correct when the "parallel"
        #      batch axis is sharded across TensorCores. -------------------------
        zrow = jnp.zeros((1, w + 2, k_in), pad_ref.dtype)
        zcol = jnp.zeros((h + 2, 1, k_in), pad_ref.dtype)
        pad_ref[0:1, :, :] = zrow
        pad_ref[h + 1:h + 2, :, :] = zrow
        pad_ref[:, 0:1, :] = zcol
        pad_ref[:, w + 1:w + 2, :] = zcol
        pad_ref[1:h + 1, 1:w + 1, :] = act

        # ---- 3x3 conv as 9 accumulated per-tap MXU matmuls (no im2col scratch),
        #      bf16 operands with f32 accumulation; K = k_in >= 128 per tap. -----
        acc = jnp.zeros((hw, out_w), jnp.float32)
        for kh in range(3):
            for kw in range(3):
                tap = kh * 3 + kw
                win = pad_ref[kh:kh + h, kw:kw + w, :]          # (h, w, k_in)
                lhs = win.reshape(hw, k_in).astype(jnp.bfloat16)
                acc = acc + jnp.dot(lhs,
                                    w_ref[tap * k_in:(tap + 1) * k_in, :],
                                    preferred_element_type=jnp.float32)
        conv = acc.reshape(h, w, out_w) + b_ref[...]

        # ---- in-place "concat": merged = existing slab + conv is exact because
        #      weight columns / bias are zero on pass-through channels and the
        #      not-yet-written channels of the buffer are zero. ------------------
        if overlap == out_w:
            exist = x[:, :, og_start:og_start + out_w]
        elif overlap > 0:
            exist = jnp.concatenate(
                [x[:, :, og_start:og_start + overlap],
                 jnp.zeros((h, w, out_w - overlap), jnp.float32)], axis=-1)
        else:
            exist = jnp.zeros((h, w, out_w), jnp.float32)
        merged = (exist + conv).astype(o_ref.dtype)
        o_ref[0] = merged

        # ---- incremental BN statistics: sums of the output slab only, computed
        #      from the stored bf16 values so the next layer's stats are exactly
        #      consistent with what it will read back. ---------------------------
        mf = merged.astype(jnp.float32)
        sum_ref[...] = jnp.sum(mf, axis=(0, 1))[None, None, :]
        ssq_ref[...] = jnp.sum(mf * mf, axis=(0, 1))[None, None, :]

    return kernel


def fused_bn_relu_conv(x_buf, scale, shift, w_col, b_pad, k_in, og_start, out_w):
    n, h, w, c_pad = x_buf.shape
    kernel = _make_fused_kernel(h, w, k_in, og_start, out_w)
    og_block = og_start // out_w        # og_start is a multiple of out_w
    return pl.pallas_call(
        kernel,
        out_shape=(jax.ShapeDtypeStruct((n, h, w, c_pad), x_buf.dtype),
                   jax.ShapeDtypeStruct((n, 1, out_w), jnp.float32),
                   jax.ShapeDtypeStruct((n, 1, out_w), jnp.float32)),
        grid_spec=pltpu.PrefetchScalarGridSpec(
            num_scalar_prefetch=0,
            grid=(n,),
            in_specs=[
                # live input channel groups only (lane-dense, multiple of 128)
                pl.BlockSpec((1, h, w, k_in), lambda i: (i, 0, 0, 0)),
                # constant-index small operands (weights are small after the
                # lane-group trim, so default double-buffering is cheap)
                pl.BlockSpec((1, k_in), lambda i: (0, 0)),
                pl.BlockSpec((1, k_in), lambda i: (0, 0)),
                pl.BlockSpec((9 * k_in, out_w), lambda i: (0, 0)),
                pl.BlockSpec((1, out_w), lambda i: (0, 0)),
            ],
            out_specs=(
                # write back ONLY the touched output lane-group slab; all other
                # channels are preserved via input_output_aliases (full out_shape).
                pl.BlockSpec((1, h, w, out_w), lambda i: (i, 0, 0, og_block)),
                pl.BlockSpec((1, 1, out_w), lambda i: (i, 0, 0)),
                pl.BlockSpec((1, 1, out_w), lambda i: (i, 0, 0)),
            ),
            scratch_shapes=[
                pltpu.VMEM((h + 2, w + 2, k_in), jnp.float32),   # halo-padded act
            ],
        ),
        input_output_aliases={0: 0},     # grow the feature buffer in place
        compiler_params=pltpu.CompilerParams(
            dimension_semantics=("parallel",),
            vmem_limit_bytes=_vmem_limit_bytes(),
        ),
    )(x_buf, scale, shift, w_col, b_pad)


# ---------------------------------------------------------------------------
# DenseBlock forward
# ---------------------------------------------------------------------------
def make_forward(in_channels, growth_rate, n_layers, c_pad):
    c_total = in_channels + n_layers * growth_rate
    layouts = [_layer_layout(in_channels, growth_rate, c_pad, i)
               for i in range(n_layers)]

    @jax.jit
    def forward(x_nchw, layer_params):
        n, _, h, w = x_nchw.shape
        x_nhwc = jnp.transpose(x_nchw, (0, 2, 3, 1))
        xb = x_nhwc.astype(jnp.bfloat16)            # bf16 feature buffer
        buf = jnp.pad(xb, ((0, 0), (0, 0), (0, 0), (0, c_pad - in_channels)))
        inv_count = 1.0 / float(n * h * w)

        # First-layer BN statistics in plain XLA on the unpadded input
        # (consistent with the bf16 values the kernel will read back).
        xf = xb.astype(jnp.float32)
        s = jnp.zeros((c_pad,), jnp.float32).at[:in_channels].set(
            jnp.sum(xf, axis=(0, 1, 2)))
        ss = jnp.zeros((c_pad,), jnp.float32).at[:in_channels].set(
            jnp.sum(xf * xf, axis=(0, 1, 2)))

        for i in range(n_layers):
            gamma_pad, beta_pad, w_col, b_pad = layer_params[i]
            _, _, k_in, og_start, out_w = layouts[i]
            mean = s[:k_in] * inv_count
            var = jnp.maximum(ss[:k_in] * inv_count - mean * mean, 0.0)  # biased
            scale = (gamma_pad * lax.rsqrt(var + EPS)).reshape(1, k_in)
            shift = beta_pad.reshape(1, k_in) - mean.reshape(1, k_in) * scale
            buf, slab_sum, slab_ssq = fused_bn_relu_conv(
                buf, scale, shift, w_col, b_pad, k_in, og_start, out_w)
            # incremental stats update: only the output slab changed
            s = s.at[og_start:og_start + out_w].set(
                jnp.sum(slab_sum[:, 0, :], axis=0))
            ss = ss.at[og_start:og_start + out_w].set(
                jnp.sum(slab_ssq[:, 0, :], axis=0))
        return jnp.transpose(buf[..., :c_total], (0, 3, 1, 2)).astype(jnp.float32)

    return forward


# ---------------------------------------------------------------------------
# Parameter construction / preparation
# ---------------------------------------------------------------------------
def init_params(key, in_channels, growth_rate, n_layers):
    params = []
    for i in range(n_layers):
        cin = in_channels + i * growth_rate
        key, k1, k2 = jax.random.split(key, 3)
        gamma = jnp.ones((cin,), jnp.float32)               # BN defaults
        beta = jnp.zeros((cin,), jnp.float32)
        w_oihw = 0.1 * jax.random.normal(k1, (growth_rate, cin, 3, 3), jnp.float32)
        b = 0.1 * jax.random.normal(k2, (growth_rate,), jnp.float32)
        params.append((gamma, beta, w_oihw, b))
    return params


def prep_params(params, in_channels, growth_rate, c_pad):
    """Per-layer lane-dense layout.

    BN affine padded to K_in = round_up(cin, 128); conv weights reshaped to an
    im2col-ordered (9*K_in, OUT_W) bf16 matrix with the layer's output channels
    pre-placed at their in-slab offset (OUT_W = aligned lane-group slab covering
    the new channels); bias at the same offset.
    """
    layers = []
    for i, (gamma, beta, w_oihw, b) in enumerate(params):
        cin, c_off, k_in, og_start, out_w = _layer_layout(
            in_channels, growth_rate, c_pad, i)
        growth = w_oihw.shape[0]
        lo = c_off - og_start
        gamma_pad = jnp.zeros((k_in,), jnp.float32).at[:cin].set(gamma)
        beta_pad = jnp.zeros((k_in,), jnp.float32).at[:cin].set(beta)
        w_hwio = jnp.transpose(w_oihw, (2, 3, 1, 0))        # (3, 3, cin, growth)
        w_full = jnp.zeros((3, 3, k_in, out_w), jnp.float32)
        w_full = w_full.at[:, :, :cin, lo:lo + growth].set(w_hwio)
        w_col = w_full.reshape(9 * k_in, out_w).astype(jnp.bfloat16)
        b_pad = jnp.zeros((1, out_w), jnp.float32).at[0, lo:lo + growth].set(b)
        layers.append((gamma_pad, beta_pad, w_col, b_pad))
    return tuple(layers)


# ---------------------------------------------------------------------------
# Pure-JAX reference (XLA conv) for correctness checking
# ---------------------------------------------------------------------------
def reference_forward(x_nchw, params):
    x = jnp.transpose(x_nchw, (0, 2, 3, 1)).astype(jnp.float32)
    for (gamma, beta, w_oihw, b) in params:
        mean = jnp.mean(x, axis=(0, 1, 2))
        var = jnp.mean((x - mean) ** 2, axis=(0, 1, 2))
        act = jnp.maximum((x - mean) * (gamma * lax.rsqrt(var + EPS)) + beta, 0.0)
        w_hwio = jnp.transpose(w_oihw, (2, 3, 1, 0))
        new = lax.conv_general_dilated(
            act, w_hwio, window_strides=(1, 1), padding="SAME",
            dimension_numbers=("NHWC", "HWIO", "NHWC")) + b
        x = jnp.concatenate([x, new], axis=-1)
    return jnp.transpose(x, (0, 3, 1, 2))


if __name__ == "__main__":
    key = jax.random.PRNGKey(0)
    k_x, k_p = jax.random.split(key)

    in_channels, growth_rate, n_layers = 4, 12, 2
    N, H, W = 2, 16, 16

    x = jax.random.normal(k_x, (N, in_channels, H, W), jnp.float32)
    params = init_params(k_p, in_channels, growth_rate, n_layers)

    c_total = in_channels + n_layers * growth_rate
    c_pad = _round_up(c_total, LANE)                      # lane-dense channels
    layer_params = prep_params(params, in_channels, growth_rate, c_pad)

    forward = make_forward(in_channels, growth_rate, n_layers, c_pad)
    out = jax.block_until_ready(forward(x, layer_params))

    assert out.shape == (N, c_total, H, W), out.shape
    ref = reference_forward(x, params)
    max_err = float(jnp.max(jnp.abs(out - ref)))
    assert jnp.allclose(out, ref, atol=5e-2, rtol=5e-2), max_err

    print("KERNEL_OK")
</pallas_src>

<mosaic_0001>
module attributes {stable_mosaic.version = 11 : i64} {
  func.func @kernel(%arg0: i32, %arg1: memref<1x16x16x128xbf16, #tpu.memory_space<vmem>>, %arg2: memref<1x128xf32, #tpu.memory_space<vmem>>, %arg3: memref<1x128xf32, #tpu.memory_space<vmem>>, %arg4: memref<1152x128xbf16, #tpu.memory_space<vmem>>, %arg5: memref<1x128xf32, #tpu.memory_space<vmem>>, %arg6: memref<1x16x16x128xbf16, #tpu.memory_space<vmem>>, %arg7: memref<1x1x128xf32, #tpu.memory_space<vmem>>, %arg8: memref<1x1x128xf32, #tpu.memory_space<vmem>>, %arg9: memref<18x18x128xf32, #tpu.memory_space<vmem>>) attributes {dimension_semantics = [#tpu.dimension_semantics<parallel>], iteration_bounds = array<i64: 2>, scalar_prefetch = 0 : i64, scratch_operands = 1 : i64, tpu.core_type = #tpu.core_type<tc>, window_params = [{transform_indices = @transform_0, window_bounds = array<i64: 1, 16, 16, 128>}, {pipeline_mode = #tpu.pipeline_mode<synchronous>, transform_indices = @transform_1, window_bounds = array<i64: 1, 128>}, {pipeline_mode = #tpu.pipeline_mode<synchronous>, transform_indices = @transform_2, window_bounds = array<i64: 1, 128>}, {pipeline_mode = #tpu.pipeline_mode<synchronous>, transform_indices = @transform_3, window_bounds = array<i64: 1152, 128>}, {pipeline_mode = #tpu.pipeline_mode<synchronous>, transform_indices = @transform_4, window_bounds = array<i64: 1, 128>}, {transform_indices = @transform_5, window_bounds = array<i64: 1, 16, 16, 128>}, {transform_indices = @transform_6, window_bounds = array<i64: 1, 1, 128>}, {transform_indices = @transform_7, window_bounds = array<i64: 1, 1, 128>}]} {
    %c0 = arith.constant 0 : index
    %c0_0 = arith.constant 0 : index
    %c0_1 = arith.constant 0 : index
    %c0_2 = arith.constant 0 : index
    %0 = vector.load %arg1[%c0, %c0_0, %c0_1, %c0_2] : memref<1x16x16x128xbf16, #tpu.memory_space<vmem>>, vector<1x16x16x128xbf16>
    %1 = vector.shape_cast %0 : vector<1x16x16x128xbf16> to vector<16x16x128xbf16>
    %2 = arith.extf %1 : vector<16x16x128xbf16> to vector<16x16x128xf32>
    %c0_3 = arith.constant 0 : index
    %c0_4 = arith.constant 0 : index
    %3 = vector.load %arg2[%c0_3, %c0_4] : memref<1x128xf32, #tpu.memory_space<vmem>>, vector<1x128xf32>
    %4 = vector.shape_cast %3 : vector<1x128xf32> to vector<1x1x128xf32>
    %5 = vector.broadcast %4 : vector<1x1x128xf32> to vector<16x16x128xf32>
    %6 = arith.mulf %2, %5 : vector<16x16x128xf32>
    %c0_5 = arith.constant 0 : index
    %c0_6 = arith.constant 0 : index
    %7 = vector.load %arg3[%c0_5, %c0_6] : memref<1x128xf32, #tpu.memory_space<vmem>>, vector<1x128xf32>
    %8 = vector.shape_cast %7 : vector<1x128xf32> to vector<1x1x128xf32>
    %9 = vector.broadcast %8 : vector<1x1x128xf32> to vector<16x16x128xf32>
    %10 = arith.addf %6, %9 : vector<16x16x128xf32>
    %cst = arith.constant 0.000000e+00 : f32
    %11 = vector.broadcast %cst : f32 to vector<16x16x128xf32>
    %12 = arith.maximumf %10, %11 : vector<16x16x128xf32>
    %cst_7 = arith.constant 0.000000e+00 : f32
    %13 = vector.broadcast %cst_7 : f32 to vector<1x18x128xf32>
    %cst_8 = arith.constant 0.000000e+00 : f32
    %14 = vector.broadcast %cst_8 : f32 to vector<18x1x128xf32>
    %c0_9 = arith.constant 0 : index
    %c0_10 = arith.constant 0 : index
    %c0_11 = arith.constant 0 : index
    %15 = vector.load %arg9[%c0_9, %c0_10, %c0_11] : memref<18x18x128xf32, #tpu.memory_space<vmem>>, vector<1x18x128xf32>
    tpu.vector_store %arg9[%c0_9, %c0_10, %c0_11], %13 {strides = array<i32>} : memref<18x18x128xf32, #tpu.memory_space<vmem>>, vector<1x18x128xf32>,
    %c17 = arith.constant 17 : index
    %c0_12 = arith.constant 0 : index
    %c0_13 = arith.constant 0 : index
    %16 = vector.load %arg9[%c17, %c0_12, %c0_13] : memref<18x18x128xf32, #tpu.memory_space<vmem>>, vector<1x18x128xf32>
    tpu.vector_store %arg9[%c17, %c0_12, %c0_13], %13 {strides = array<i32>} : memref<18x18x128xf32, #tpu.memory_space<vmem>>, vector<1x18x128xf32>,
    %c0_14 = arith.constant 0 : index
    %c0_15 = arith.constant 0 : index
    %c0_16 = arith.constant 0 : index
    %17 = vector.load %arg9[%c0_14, %c0_15, %c0_16] : memref<18x18x128xf32, #tpu.memory_space<vmem>>, vector<18x1x128xf32>
    tpu.vector_store %arg9[%c0_14, %c0_15, %c0_16], %14 {strides = array<i32>} : memref<18x18x128xf32, #tpu.memory_space<vmem>>, vector<18x1x128xf32>,
    %c0_17 = arith.constant 0 : index
    %c17_18 = arith.constant 17 : index
    %c0_19 = arith.constant 0 : index
    %18 = vector.load %arg9[%c0_17, %c17_18, %c0_19] : memref<18x18x128xf32, #tpu.memory_space<vmem>>, vector<18x1x128xf32>
    tpu.vector_store %arg9[%c0_17, %c17_18, %c0_19], %14 {strides = array<i32>} : memref<18x18x128xf32, #tpu.memory_space<vmem>>, vector<18x1x128xf32>,
    %c1 = arith.constant 1 : index
    %c1_20 = arith.constant 1 : index
    %c0_21 = arith.constant 0 : index
    %19 = vector.load %arg9[%c1, %c1_20, %c0_21] : memref<18x18x128xf32, #tpu.memory_space<vmem>>, vector<16x16x128xf32>
    tpu.vector_store %arg9[%c1, %c1_20, %c0_21], %12 {strides = array<i32>} : memref<18x18x128xf32, #tpu.memory_space<vmem>>, vector<16x16x128xf32>,
    %cst_22 = arith.constant 0.000000e+00 : f32
    %20 = vector.broadcast %cst_22 : f32 to vector<256x128xf32>
    %c0_23 = arith.constant 0 : index
    %c0_24 = arith.constant 0 : index
    %c0_25 = arith.constant 0 : index
    %21 = vector.load %arg9[%c0_23, %c0_24, %c0_25] : memref<18x18x128xf32, #tpu.memory_space<vmem>>, vector<16x16x128xf32>
    %22 = vector.shape_cast %21 : vector<16x16x128xf32> to vector<256x128xf32>
    %23 = arith.truncf %22 : vector<256x128xf32> to vector<256x128xbf16>
    %c0_26 = arith.constant 0 : index
    %c0_27 = arith.constant 0 : index
    %24 = vector.load %arg4[%c0_26, %c0_27] : memref<1152x128xbf16, #tpu.memory_space<vmem>>, vector<128x128xbf16>
    %cst_28 = arith.constant dense<0.000000e+00> : vector<256x128xf32>
    %25 = tpu.matmul %23, %24, %cst_28 {dimension_numbers = #tpu.dot_dimension_numbers<[1], [0], [0], [1], [0, 0, 1, 1], [], []>} : vector<256x128xbf16>, vector<128x128xbf16>, vector<256x128xf32> -> vector<256x128xf32>
    %26 = arith.addf %20, %25 : vector<256x128xf32>
    %c0_29 = arith.constant 0 : index
    %c1_30 = arith.constant 1 : index
    %c0_31 = arith.constant 0 : index
    %27 = vector.load %arg9[%c0_29, %c1_30, %c0_31] : memref<18x18x128xf32, #tpu.memory_space<vmem>>, vector<16x16x128xf32>
    %28 = vector.shape_cast %27 : vector<16x16x128xf32> to vector<256x128xf32>
    %29 = arith.truncf %28 : vector<256x128xf32> to vector<256x128xbf16>
    %c128 = arith.constant 128 : index
    %c0_32 = arith.constant 0 : index
    %30 = vector.load %arg4[%c128, %c0_32] : memref<1152x128xbf16, #tpu.memory_space<vmem>>, vector<128x128xbf16>
    %cst_33 = arith.constant dense<0.000000e+00> : vector<256x128xf32>
    %31 = tpu.matmul %29, %30, %cst_33 {dimension_numbers = #tpu.dot_dimension_numbers<[1], [0], [0], [1], [0, 0, 1, 1], [], []>} : vector<256x128xbf16>, vector<128x128xbf16>, vector<256x128xf32> -> vector<256x128xf32>
    %32 = arith.addf %26, %31 : vector<256x128xf32>
    %c0_34 = arith.constant 0 : index
    %c2 = arith.constant 2 : index
    %c0_35 = arith.constant 0 : index
    %33 = vector.load %arg9[%c0_34, %c2, %c0_35] : memref<18x18x128xf32, #tpu.memory_space<vmem>>, vector<16x16x128xf32>
    %34 = vector.shape_cast %33 : vector<16x16x128xf32> to vector<256x128xf32>
    %35 = arith.truncf %34 : vector<256x128xf32> to vector<256x128xbf16>
    %c256 = arith.constant 256 : index
    %c0_36 = arith.constant 0 : index
    %36 = vector.load %arg4[%c256, %c0_36] : memref<1152x128xbf16, #tpu.memory_space<vmem>>, vector<128x128xbf16>
    %cst_37 = arith.constant dense<0.000000e+00> : vector<256x128xf32>
    %37 = tpu.matmul %35, %36, %cst_37 {dimension_numbers = #tpu.dot_dimension_numbers<[1], [0], [0], [1], [0, 0, 1, 1], [], []>} : vector<256x128xbf16>, vector<128x128xbf16>, vector<256x128xf32> -> vector<256x128xf32>
    %38 = arith.addf %32, %37 : vector<256x128xf32>
    %c1_38 = arith.constant 1 : index
    %c0_39 = arith.constant 0 : index
    %c0_40 = arith.constant 0 : index
    %39 = vector.load %arg9[%c1_38, %c0_39, %c0_40] : memref<18x18x128xf32, #tpu.memory_space<vmem>>, vector<16x16x128xf32>
    %40 = vector.shape_cast %39 : vector<16x16x128xf32> to vector<256x128xf32>
    %41 = arith.truncf %40 : vector<256x128xf32> to vector<256x128xbf16>
    %c384 = arith.constant 384 : index
    %c0_41 = arith.constant 0 : index
    %42 = vector.load %arg4[%c384, %c0_41] : memref<1152x128xbf16, #tpu.memory_space<vmem>>, vector<128x128xbf16>
    %cst_42 = arith.constant dense<0.000000e+00> : vector<256x128xf32>
    %43 = tpu.matmul %41, %42, %cst_42 {dimension_numbers = #tpu.dot_dimension_numbers<[1], [0], [0], [1], [0, 0, 1, 1], [], []>} : vector<256x128xbf16>, vector<128x128xbf16>, vector<256x128xf32> -> vector<256x128xf32>
    %44 = arith.addf %38, %43 : vector<256x128xf32>
    %c1_43 = arith.constant 1 : index
    %c1_44 = arith.constant 1 : index
    %c0_45 = arith.constant 0 : index
    %45 = vector.load %arg9[%c1_43, %c1_44, %c0_45] : memref<18x18x128xf32, #tpu.memory_space<vmem>>, vector<16x16x128xf32>
    %46 = vector.shape_cast %45 : vector<16x16x128xf32> to vector<256x128xf32>
    %47 = arith.truncf %46 : vector<256x128xf32> to vector<256x128xbf16>
    %c512 = arith.constant 512 : index
    %c0_46 = arith.constant 0 : index
    %48 = vector.load %arg4[%c512, %c0_46] : memref<1152x128xbf16, #tpu.memory_space<vmem>>, vector<128x128xbf16>
    %cst_47 = arith.constant dense<0.000000e+00> : vector<256x128xf32>
    %49 = tpu.matmul %47, %48, %cst_47 {dimension_numbers = #tpu.dot_dimension_numbers<[1], [0], [0], [1], [0, 0, 1, 1], [], []>} : vector<256x128xbf16>, vector<128x128xbf16>, vector<256x128xf32> -> vector<256x128xf32>
    %50 = arith.addf %44, %49 : vector<256x128xf32>
    %c1_48 = arith.constant 1 : index
    %c2_49 = arith.constant 2 : index
    %c0_50 = arith.constant 0 : index
    %51 = vector.load %arg9[%c1_48, %c2_49, %c0_50] : memref<18x18x128xf32, #tpu.memory_space<vmem>>, vector<16x16x128xf32>
    %52 = vector.shape_cast %51 : vector<16x16x128xf32> to vector<256x128xf32>
    %53 = arith.truncf %52 : vector<256x128xf32> to vector<256x128xbf16>
    %c640 = arith.constant 640 : index
    %c0_51 = arith.constant 0 : index
    %54 = vector.load %arg4[%c640, %c0_51] : memref<1152x128xbf16, #tpu.memory_space<vmem>>, vector<128x128xbf16>
    %cst_52 = arith.constant dense<0.000000e+00> : vector<256x128xf32>
    %55 = tpu.matmul %53, %54, %cst_52 {dimension_numbers = #tpu.dot_dimension_numbers<[1], [0], [0], [1], [0, 0, 1, 1], [], []>} : vector<256x128xbf16>, vector<128x128xbf16>, vector<256x128xf32> -> vector<256x128xf32>
    %56 = arith.addf %50, %55 : vector<256x128xf32>
    %c2_53 = arith.constant 2 : index
    %c0_54 = arith.constant 0 : index
    %c0_55 = arith.constant 0 : index
    %57 = vector.load %arg9[%c2_53, %c0_54, %c0_55] : memref<18x18x128xf32, #tpu.memory_space<vmem>>, vector<16x16x128xf32>
    %58 = vector.shape_cast %57 : vector<16x16x128xf32> to vector<256x128xf32>
    %59 = arith.truncf %58 : vector<256x128xf32> to vector<256x128xbf16>
    %c768 = arith.constant 768 : index
    %c0_56 = arith.constant 0 : index
    %60 = vector.load %arg4[%c768, %c0_56] : memref<1152x128xbf16, #tpu.memory_space<vmem>>, vector<128x128xbf16>
    %cst_57 = arith.constant dense<0.000000e+00> : vector<256x128xf32>
    %61 = tpu.matmul %59, %60, %cst_57 {dimension_numbers = #tpu.dot_dimension_numbers<[1], [0], [0], [1], [0, 0, 1, 1], [], []>} : vector<256x128xbf16>, vector<128x128xbf16>, vector<256x128xf32> -> vector<256x128xf32>
    %62 = arith.addf %56, %61 : vector<256x128xf32>
    %c2_58 = arith.constant 2 : index
    %c1_59 = arith.constant 1 : index
    %c0_60 = arith.constant 0 : index
    %63 = vector.load %arg9[%c2_58, %c1_59, %c0_60] : memref<18x18x128xf32, #tpu.memory_space<vmem>>, vector<16x16x128xf32>
    %64 = vector.shape_cast %63 : vector<16x16x128xf32> to vector<256x128xf32>
    %65 = arith.truncf %64 : vector<256x128xf32> to vector<256x128xbf16>
    %c896 = arith.constant 896 : index
    %c0_61 = arith.constant 0 : index
    %66 = vector.load %arg4[%c896, %c0_61] : memref<1152x128xbf16, #tpu.memory_space<vmem>>, vector<128x128xbf16>
    %cst_62 = arith.constant dense<0.000000e+00> : vector<256x128xf32>
    %67 = tpu.matmul %65, %66, %cst_62 {dimension_numbers = #tpu.dot_dimension_numbers<[1], [0], [0], [1], [0, 0, 1, 1], [], []>} : vector<256x128xbf16>, vector<128x128xbf16>, vector<256x128xf32> -> vector<256x128xf32>
    %68 = arith.addf %62, %67 : vector<256x128xf32>
    %c2_63 = arith.constant 2 : index
    %c2_64 = arith.constant 2 : index
    %c0_65 = arith.constant 0 : index
    %69 = vector.load %arg9[%c2_63, %c2_64, %c0_65] : memref<18x18x128xf32, #tpu.memory_space<vmem>>, vector<16x16x128xf32>
    %70 = vector.shape_cast %69 : vector<16x16x128xf32> to vector<256x128xf32>
    %71 = arith.truncf %70 : vector<256x128xf32> to vector<256x128xbf16>
    %c1024 = arith.constant 1024 : index
    %c0_66 = arith.constant 0 : index
    %72 = vector.load %arg4[%c1024, %c0_66] : memref<1152x128xbf16, #tpu.memory_space<vmem>>, vector<128x128xbf16>
    %cst_67 = arith.constant dense<0.000000e+00> : vector<256x128xf32>
    %73 = tpu.matmul %71, %72, %cst_67 {dimension_numbers = #tpu.dot_dimension_numbers<[1], [0], [0], [1], [0, 0, 1, 1], [], []>} : vector<256x128xbf16>, vector<128x128xbf16>, vector<256x128xf32> -> vector<256x128xf32>
    %74 = arith.addf %68, %73 : vector<256x128xf32>
    %75 = vector.shape_cast %74 : vector<256x128xf32> to vector<16x16x128xf32>
    %c0_68 = arith.constant 0 : index
    %c0_69 = arith.constant 0 : index
    %76 = vector.load %arg5[%c0_68, %c0_69] : memref<1x128xf32, #tpu.memory_space<vmem>>, vector<1x128xf32>
    %77 = vector.shape_cast %76 : vector<1x128xf32> to vector<1x1x128xf32>
    %78 = vector.broadcast %77 : vector<1x1x128xf32> to vector<16x16x128xf32>
    %79 = arith.addf %75, %78 : vector<16x16x128xf32>
    %80 = arith.addf %2, %79 : vector<16x16x128xf32>
    %81 = arith.truncf %80 : vector<16x16x128xf32> to vector<16x16x128xbf16>
    %c0_70 = arith.constant 0 : index
    %c0_71 = arith.constant 0 : index
    %c0_72 = arith.constant 0 : index
    %c0_73 = arith.constant 0 : index
    %82 = vector.load %arg6[%c0_70, %c0_71, %c0_72, %c0_73] : memref<1x16x16x128xbf16, #tpu.memory_space<vmem>>, vector<1x16x16x128xbf16>
    %83 = vector.shape_cast %82 : vector<1x16x16x128xbf16> to vector<16x16x128xbf16>
    %84 = vector.shape_cast %81 : vector<16x16x128xbf16> to vector<1x16x16x128xbf16>
    tpu.vector_store %arg6[%c0_70, %c0_71, %c0_72, %c0_73], %84 {strides = array<i32>} : memref<1x16x16x128xbf16, #tpu.memory_space<vmem>>, vector<1x16x16x128xbf16>,
    %85 = arith.extf %81 : vector<16x16x128xbf16> to vector<16x16x128xf32>
    %cst_74 = arith.constant dense<0.000000e+00> : vector<128xf32>
    %86 = vector.multi_reduction <add>, %85, %cst_74 [0, 1] : vector<16x16x128xf32> to vector<128xf32>
    %87 = vector.shape_cast %86 : vector<128xf32> to vector<1x1x128xf32>
    %c0_75 = arith.constant 0 : index
    %c0_76 = arith.constant 0 : index
    %c0_77 = arith.constant 0 : index
    %88 = vector.load %arg7[%c0_75, %c0_76, %c0_77] : memref<1x1x128xf32, #tpu.memory_space<vmem>>, vector<1x1x128xf32>
    tpu.vector_store %arg7[%c0_75, %c0_76, %c0_77], %87 {strides = array<i32>} : memref<1x1x128xf32, #tpu.memory_space<vmem>>, vector<1x1x128xf32>,
    %89 = arith.mulf %85, %85 : vector<16x16x128xf32>
    %cst_78 = arith.constant dense<0.000000e+00> : vector<128xf32>
    %90 = vector.multi_reduction <add>, %89, %cst_78 [0, 1] : vector<16x16x128xf32> to vector<128xf32>
    %91 = vector.shape_cast %90 : vector<128xf32> to vector<1x1x128xf32>
    %c0_79 = arith.constant 0 : index
    %c0_80 = arith.constant 0 : index
    %c0_81 = arith.constant 0 : index
    %92 = vector.load %arg8[%c0_79, %c0_80, %c0_81] : memref<1x1x128xf32, #tpu.memory_space<vmem>>, vector<1x1x128xf32>
    tpu.vector_store %arg8[%c0_79, %c0_80, %c0_81], %91 {strides = array<i32>} : memref<1x1x128xf32, #tpu.memory_space<vmem>>, vector<1x1x128xf32>,
    return
  }
  func.func @transform_0(%arg0: i32) -> (i32, i32, i32, i32) {
    %c0_i32 = arith.constant 0 : i32
    %c0_i32_0 = arith.constant 0 : i32
    %c0_i32_1 = arith.constant 0 : i32
    %c0_i32_2 = arith.constant 0 : i32
    return %arg0, %c0_i32, %c0_i32_0, %c0_i32_1 : i32, i32, i32, i32
  }
  func.func @transform_1(%arg0: i32) -> (i32, i32) {
    %c0_i32 = arith.constant 0 : i32
    %c0_i32_0 = arith.constant 0 : i32
    %c0_i32_1 = arith.constant 0 : i32
    return %c0_i32, %c0_i32_0 : i32, i32
  }
  func.func @transform_2(%arg0: i32) -> (i32, i32) {
    %c0_i32 = arith.constant 0 : i32
    %c0_i32_0 = arith.constant 0 : i32
    %c0_i32_1 = arith.constant 0 : i32
    return %c0_i32, %c0_i32_0 : i32, i32
  }
  func.func @transform_3(%arg0: i32) -> (i32, i32) {
    %c0_i32 = arith.constant 0 : i32
    %c0_i32_0 = arith.constant 0 : i32
    %c0_i32_1 = arith.constant 0 : i32
    return %c0_i32, %c0_i32_0 : i32, i32
  }
  func.func @transform_4(%arg0: i32) -> (i32, i32) {
    %c0_i32 = arith.constant 0 : i32
    %c0_i32_0 = arith.constant 0 : i32
    %c0_i32_1 = arith.constant 0 : i32
    return %c0_i32, %c0_i32_0 : i32, i32
  }
  func.func @transform_5(%arg0: i32) -> (i32, i32, i32, i32) {
    %c0_i32 = arith.constant 0 : i32
    %c0_i32_0 = arith.constant 0 : i32
    %c0_i32_1 = arith.constant 0 : i32
    %c0_i32_2 = arith.constant 0 : i32
    return %arg0, %c0_i32, %c0_i32_0, %c0_i32_1 : i32, i32, i32, i32
  }
  func.func @transform_6(%arg0: i32) -> (i32, i32, i32) {
    %c0_i32 = arith.constant 0 : i32
    %c0_i32_0 = arith.constant 0 : i32
    %c0_i32_1 = arith.constant 0 : i32
    return %arg0, %c0_i32, %c0_i32_0 : i32, i32, i32
  }
  func.func @transform_7(%arg0: i32) -> (i32, i32, i32) {
    %c0_i32 = arith.constant 0 : i32
    %c0_i32_0 = arith.constant 0 : i32
    %c0_i32_1 = arith.constant 0 : i32
    return %arg0, %c0_i32, %c0_i32_0 : i32, i32, i32
  }
}

module attributes {stable_mosaic.version = 11 : i64} {
  func.func @kernel(%arg0: i32, %arg1: memref<1x16x16x128xbf16, #tpu.memory_space<vmem>>, %arg2: memref<1x128xf32, #tpu.memory_space<vmem>>, %arg3: memref<1x128xf32, #tpu.memory_space<vmem>>, %arg4: memref<1152x128xbf16, #tpu.memory_space<vmem>>, %arg5: memref<1x128xf32, #tpu.memory_space<vmem>>, %arg6: memref<1x16x16x128xbf16, #tpu.memory_space<vmem>>, %arg7: memref<1x1x128xf32, #tpu.memory_space<vmem>>, %arg8: memref<1x1x128xf32, #tpu.memory_space<vmem>>, %arg9: memref<18x18x128xf32, #tpu.memory_space<vmem>>) attributes {dimension_semantics = [#tpu.dimension_semantics<parallel>], iteration_bounds = array<i64: 2>, scalar_prefetch = 0 : i64, scratch_operands = 1 : i64, tpu.core_type = #tpu.core_type<tc>, window_params = [{transform_indices = @transform_0, window_bounds = array<i64: 1, 16, 16, 128>}, {pipeline_mode = #tpu.pipeline_mode<synchronous>, transform_indices = @transform_1, window_bounds = array<i64: 1, 128>}, {pipeline_mode = #tpu.pipeline_mode<synchronous>, transform_indices = @transform_2, window_bounds = array<i64: 1, 128>}, {pipeline_mode = #tpu.pipeline_mode<synchronous>, transform_indices = @transform_3, window_bounds = array<i64: 1152, 128>}, {pipeline_mode = #tpu.pipeline_mode<synchronous>, transform_indices = @transform_4, window_bounds = array<i64: 1, 128>}, {transform_indices = @transform_5, window_bounds = array<i64: 1, 16, 16, 128>}, {transform_indices = @transform_6, window_bounds = array<i64: 1, 1, 128>}, {transform_indices = @transform_7, window_bounds = array<i64: 1, 1, 128>}]} {
    %c0 = arith.constant 0 : index
    %c0_0 = arith.constant 0 : index
    %c0_1 = arith.constant 0 : index
    %c0_2 = arith.constant 0 : index
    %0 = vector.load %arg1[%c0, %c0_0, %c0_1, %c0_2] : memref<1x16x16x128xbf16, #tpu.memory_space<vmem>>, vector<1x16x16x128xbf16>
    %1 = vector.shape_cast %0 : vector<1x16x16x128xbf16> to vector<16x16x128xbf16>
    %2 = arith.extf %1 : vector<16x16x128xbf16> to vector<16x16x128xf32>
    %c0_3 = arith.constant 0 : index
    %c0_4 = arith.constant 0 : index
    %3 = vector.load %arg2[%c0_3, %c0_4] : memref<1x128xf32, #tpu.memory_space<vmem>>, vector<1x128xf32>
    %4 = vector.shape_cast %3 : vector<1x128xf32> to vector<1x1x128xf32>
    %5 = vector.broadcast %4 : vector<1x1x128xf32> to vector<16x16x128xf32>
    %6 = arith.mulf %2, %5 : vector<16x16x128xf32>
    %c0_5 = arith.constant 0 : index
    %c0_6 = arith.constant 0 : index
    %7 = vector.load %arg3[%c0_5, %c0_6] : memref<1x128xf32, #tpu.memory_space<vmem>>, vector<1x128xf32>
    %8 = vector.shape_cast %7 : vector<1x128xf32> to vector<1x1x128xf32>
    %9 = vector.broadcast %8 : vector<1x1x128xf32> to vector<16x16x128xf32>
    %10 = arith.addf %6, %9 : vector<16x16x128xf32>
    %cst = arith.constant 0.000000e+00 : f32
    %11 = vector.broadcast %cst : f32 to vector<16x16x128xf32>
    %12 = arith.maximumf %10, %11 : vector<16x16x128xf32>
    %cst_7 = arith.constant 0.000000e+00 : f32
    %13 = vector.broadcast %cst_7 : f32 to vector<1x18x128xf32>
    %cst_8 = arith.constant 0.000000e+00 : f32
    %14 = vector.broadcast %cst_8 : f32 to vector<18x1x128xf32>
    %c0_9 = arith.constant 0 : index
    %c0_10 = arith.constant 0 : index
    %c0_11 = arith.constant 0 : index
    %15 = vector.load %arg9[%c0_9, %c0_10, %c0_11] : memref<18x18x128xf32, #tpu.memory_space<vmem>>, vector<1x18x128xf32>
    tpu.vector_store %arg9[%c0_9, %c0_10, %c0_11], %13 {strides = array<i32>} : memref<18x18x128xf32, #tpu.memory_space<vmem>>, vector<1x18x128xf32>,
    %c17 = arith.constant 17 : index
    %c0_12 = arith.constant 0 : index
    %c0_13 = arith.constant 0 : index
    %16 = vector.load %arg9[%c17, %c0_12, %c0_13] : memref<18x18x128xf32, #tpu.memory_space<vmem>>, vector<1x18x128xf32>
    tpu.vector_store %arg9[%c17, %c0_12, %c0_13], %13 {strides = array<i32>} : memref<18x18x128xf32, #tpu.memory_space<vmem>>, vector<1x18x128xf32>,
    %c0_14 = arith.constant 0 : index
    %c0_15 = arith.constant 0 : index
    %c0_16 = arith.constant 0 : index
    %17 = vector.load %arg9[%c0_14, %c0_15, %c0_16] : memref<18x18x128xf32, #tpu.memory_space<vmem>>, vector<18x1x128xf32>
    tpu.vector_store %arg9[%c0_14, %c0_15, %c0_16], %14 {strides = array<i32>} : memref<18x18x128xf32, #tpu.memory_space<vmem>>, vector<18x1x128xf32>,
    %c0_17 = arith.constant 0 : index
    %c17_18 = arith.constant 17 : index
    %c0_19 = arith.constant 0 : index
    %18 = vector.load %arg9[%c0_17, %c17_18, %c0_19] : memref<18x18x128xf32, #tpu.memory_space<vmem>>, vector<18x1x128xf32>
    tpu.vector_store %arg9[%c0_17, %c17_18, %c0_19], %14 {strides = array<i32>} : memref<18x18x128xf32, #tpu.memory_space<vmem>>, vector<18x1x128xf32>,
    %c1 = arith.constant 1 : index
    %c1_20 = arith.constant 1 : index
    %c0_21 = arith.constant 0 : index
    %19 = vector.load %arg9[%c1, %c1_20, %c0_21] : memref<18x18x128xf32, #tpu.memory_space<vmem>>, vector<16x16x128xf32>
    tpu.vector_store %arg9[%c1, %c1_20, %c0_21], %12 {strides = array<i32>} : memref<18x18x128xf32, #tpu.memory_space<vmem>>, vector<16x16x128xf32>,
    %cst_22 = arith.constant 0.000000e+00 : f32
    %20 = vector.broadcast %cst_22 : f32 to vector<256x128xf32>
    %c0_23 = arith.constant 0 : index
    %c0_24 = arith.constant 0 : index
    %c0_25 = arith.constant 0 : index
    %21 = vector.load %arg9[%c0_23, %c0_24, %c0_25] : memref<18x18x128xf32, #tpu.memory_space<vmem>>, vector<16x16x128xf32>
    %22 = vector.shape_cast %21 : vector<16x16x128xf32> to vector<256x128xf32>
    %23 = arith.truncf %22 : vector<256x128xf32> to vector<256x128xbf16>
    %c0_26 = arith.constant 0 : index
    %c0_27 = arith.constant 0 : index
    %24 = vector.load %arg4[%c0_26, %c0_27] : memref<1152x128xbf16, #tpu.memory_space<vmem>>, vector<128x128xbf16>
    %cst_28 = arith.constant dense<0.000000e+00> : vector<256x128xf32>
    %25 = tpu.matmul %23, %24, %cst_28 {dimension_numbers = #tpu.dot_dimension_numbers<[1], [0], [0], [1], [0, 0, 1, 1], [], []>} : vector<256x128xbf16>, vector<128x128xbf16>, vector<256x128xf32> -> vector<256x128xf32>
    %26 = arith.addf %20, %25 : vector<256x128xf32>
    %c0_29 = arith.constant 0 : index
    %c1_30 = arith.constant 1 : index
    %c0_31 = arith.constant 0 : index
    %27 = vector.load %arg9[%c0_29, %c1_30, %c0_31] : memref<18x18x128xf32, #tpu.memory_space<vmem>>, vector<16x16x128xf32>
    %28 = vector.shape_cast %27 : vector<16x16x128xf32> to vector<256x128xf32>
    %29 = arith.truncf %28 : vector<256x128xf32> to vector<256x128xbf16>
    %c128 = arith.constant 128 : index
    %c0_32 = arith.constant 0 : index
    %30 = vector.load %arg4[%c128, %c0_32] : memref<1152x128xbf16, #tpu.memory_space<vmem>>, vector<128x128xbf16>
    %cst_33 = arith.constant dense<0.000000e+00> : vector<256x128xf32>
    %31 = tpu.matmul %29, %30, %cst_33 {dimension_numbers = #tpu.dot_dimension_numbers<[1], [0], [0], [1], [0, 0, 1, 1], [], []>} : vector<256x128xbf16>, vector<128x128xbf16>, vector<256x128xf32> -> vector<256x128xf32>
    %32 = arith.addf %26, %31 : vector<256x128xf32>
    %c0_34 = arith.constant 0 : index
    %c2 = arith.constant 2 : index
    %c0_35 = arith.constant 0 : index
    %33 = vector.load %arg9[%c0_34, %c2, %c0_35] : memref<18x18x128xf32, #tpu.memory_space<vmem>>, vector<16x16x128xf32>
    %34 = vector.shape_cast %33 : vector<16x16x128xf32> to vector<256x128xf32>
    %35 = arith.truncf %34 : vector<256x128xf32> to vector<256x128xbf16>
    %c256 = arith.constant 256 : index
    %c0_36 = arith.constant 0 : index
    %36 = vector.load %arg4[%c256, %c0_36] : memref<1152x128xbf16, #tpu.memory_space<vmem>>, vector<128x128xbf16>
    %cst_37 = arith.constant dense<0.000000e+00> : vector<256x128xf32>
    %37 = tpu.matmul %35, %36, %cst_37 {dimension_numbers = #tpu.dot_dimension_numbers<[1], [0], [0], [1], [0, 0, 1, 1], [], []>} : vector<256x128xbf16>, vector<128x128xbf16>, vector<256x128xf32> -> vector<256x128xf32>
    %38 = arith.addf %32, %37 : vector<256x128xf32>
    %c1_38 = arith.constant 1 : index
    %c0_39 = arith.constant 0 : index
    %c0_40 = arith.constant 0 : index
    %39 = vector.load %arg9[%c1_38, %c0_39, %c0_40] : memref<18x18x128xf32, #tpu.memory_space<vmem>>, vector<16x16x128xf32>
    %40 = vector.shape_cast %39 : vector<16x16x128xf32> to vector<256x128xf32>
    %41 = arith.truncf %40 : vector<256x128xf32> to vector<256x128xbf16>
    %c384 = arith.constant 384 : index
    %c0_41 = arith.constant 0 : index
    %42 = vector.load %arg4[%c384, %c0_41] : memref<1152x128xbf16, #tpu.memory_space<vmem>>, vector<128x128xbf16>
    %cst_42 = arith.constant dense<0.000000e+00> : vector<256x128xf32>
    %43 = tpu.matmul %41, %42, %cst_42 {dimension_numbers = #tpu.dot_dimension_numbers<[1], [0], [0], [1], [0, 0, 1, 1], [], []>} : vector<256x128xbf16>, vector<128x128xbf16>, vector<256x128xf32> -> vector<256x128xf32>
    %44 = arith.addf %38, %43 : vector<256x128xf32>
    %c1_43 = arith.constant 1 : index
    %c1_44 = arith.constant 1 : index
    %c0_45 = arith.constant 0 : index
    %45 = vector.load %arg9[%c1_43, %c1_44, %c0_45] : memref<18x18x128xf32, #tpu.memory_space<vmem>>, vector<16x16x128xf32>
    %46 = vector.shape_cast %45 : vector<16x16x128xf32> to vector<256x128xf32>
    %47 = arith.truncf %46 : vector<256x128xf32> to vector<256x128xbf16>
    %c512 = arith.constant 512 : index
    %c0_46 = arith.constant 0 : index
    %48 = vector.load %arg4[%c512, %c0_46] : memref<1152x128xbf16, #tpu.memory_space<vmem>>, vector<128x128xbf16>
    %cst_47 = arith.constant dense<0.000000e+00> : vector<256x128xf32>
    %49 = tpu.matmul %47, %48, %cst_47 {dimension_numbers = #tpu.dot_dimension_numbers<[1], [0], [0], [1], [0, 0, 1, 1], [], []>} : vector<256x128xbf16>, vector<128x128xbf16>, vector<256x128xf32> -> vector<256x128xf32>
    %50 = arith.addf %44, %49 : vector<256x128xf32>
    %c1_48 = arith.constant 1 : index
    %c2_49 = arith.constant 2 : index
    %c0_50 = arith.constant 0 : index
    %51 = vector.load %arg9[%c1_48, %c2_49, %c0_50] : memref<18x18x128xf32, #tpu.memory_space<vmem>>, vector<16x16x128xf32>
    %52 = vector.shape_cast %51 : vector<16x16x128xf32> to vector<256x128xf32>
    %53 = arith.truncf %52 : vector<256x128xf32> to vector<256x128xbf16>
    %c640 = arith.constant 640 : index
    %c0_51 = arith.constant 0 : index
    %54 = vector.load %arg4[%c640, %c0_51] : memref<1152x128xbf16, #tpu.memory_space<vmem>>, vector<128x128xbf16>
    %cst_52 = arith.constant dense<0.000000e+00> : vector<256x128xf32>
    %55 = tpu.matmul %53, %54, %cst_52 {dimension_numbers = #tpu.dot_dimension_numbers<[1], [0], [0], [1], [0, 0, 1, 1], [], []>} : vector<256x128xbf16>, vector<128x128xbf16>, vector<256x128xf32> -> vector<256x128xf32>
    %56 = arith.addf %50, %55 : vector<256x128xf32>
    %c2_53 = arith.constant 2 : index
    %c0_54 = arith.constant 0 : index
    %c0_55 = arith.constant 0 : index
    %57 = vector.load %arg9[%c2_53, %c0_54, %c0_55] : memref<18x18x128xf32, #tpu.memory_space<vmem>>, vector<16x16x128xf32>
    %58 = vector.shape_cast %57 : vector<16x16x128xf32> to vector<256x128xf32>
    %59 = arith.truncf %58 : vector<256x128xf32> to vector<256x128xbf16>
    %c768 = arith.constant 768 : index
    %c0_56 = arith.constant 0 : index
    %60 = vector.load %arg4[%c768, %c0_56] : memref<1152x128xbf16, #tpu.memory_space<vmem>>, vector<128x128xbf16>
    %cst_57 = arith.constant dense<0.000000e+00> : vector<256x128xf32>
    %61 = tpu.matmul %59, %60, %cst_57 {dimension_numbers = #tpu.dot_dimension_numbers<[1], [0], [0], [1], [0, 0, 1, 1], [], []>} : vector<256x128xbf16>, vector<128x128xbf16>, vector<256x128xf32> -> vector<256x128xf32>
    %62 = arith.addf %56, %61 : vector<256x128xf32>
    %c2_58 = arith.constant 2 : index
    %c1_59 = arith.constant 1 : index
    %c0_60 = arith.constant 0 : index
    %63 = vector.load %arg9[%c2_58, %c1_59, %c0_60] : memref<18x18x128xf32, #tpu.memory_space<vmem>>, vector<16x16x128xf32>
    %64 = vector.shape_cast %63 : vector<16x16x128xf32> to vector<256x128xf32>
    %65 = arith.truncf %64 : vector<256x128xf32> to vector<256x128xbf16>
    %c896 = arith.constant 896 : index
    %c0_61 = arith.constant 0 : index
    %66 = vector.load %arg4[%c896, %c0_61] : memref<1152x128xbf16, #tpu.memory_space<vmem>>, vector<128x128xbf16>
    %cst_62 = arith.constant dense<0.000000e+00> : vector<256x128xf32>
    %67 = tpu.matmul %65, %66, %cst_62 {dimension_numbers = #tpu.dot_dimension_numbers<[1], [0], [0], [1], [0, 0, 1, 1], [], []>} : vector<256x128xbf16>, vector<128x128xbf16>, vector<256x128xf32> -> vector<256x128xf32>
    %68 = arith.addf %62, %67 : vector<256x128xf32>
    %c2_63 = arith.constant 2 : index
    %c2_64 = arith.constant 2 : index
    %c0_65 = arith.constant 0 : index
    %69 = vector.load %arg9[%c2_63, %c2_64, %c0_65] : memref<18x18x128xf32, #tpu.memory_space<vmem>>, vector<16x16x128xf32>
    %70 = vector.shape_cast %69 : vector<16x16x128xf32> to vector<256x128xf32>
    %71 = arith.truncf %70 : vector<256x128xf32> to vector<256x128xbf16>
    %c1024 = arith.constant 1024 : index
    %c0_66 = arith.constant 0 : index
    %72 = vector.load %arg4[%c1024, %c0_66] : memref<1152x128xbf16, #tpu.memory_space<vmem>>, vector<128x128xbf16>
    %cst_67 = arith.constant dense<0.000000e+00> : vector<256x128xf32>
    %73 = tpu.matmul %71, %72, %cst_67 {dimension_numbers = #tpu.dot_dimension_numbers<[1], [0], [0], [1], [0, 0, 1, 1], [], []>} : vector<256x128xbf16>, vector<128x128xbf16>, vector<256x128xf32> -> vector<256x128xf32>
    %74 = arith.addf %68, %73 : vector<256x128xf32>
    %75 = vector.shape_cast %74 : vector<256x128xf32> to vector<16x16x128xf32>
    %c0_68 = arith.constant 0 : index
    %c0_69 = arith.constant 0 : index
    %76 = vector.load %arg5[%c0_68, %c0_69] : memref<1x128xf32, #tpu.memory_space<vmem>>, vector<1x128xf32>
    %77 = vector.shape_cast %76 : vector<1x128xf32> to vector<1x1x128xf32>
    %78 = vector.broadcast %77 : vector<1x1x128xf32> to vector<16x16x128xf32>
    %79 = arith.addf %75, %78 : vector<16x16x128xf32>
    %80 = arith.addf %2, %79 : vector<16x16x128xf32>
    %81 = arith.truncf %80 : vector<16x16x128xf32> to vector<16x16x128xbf16>
    %c0_70 = arith.constant 0 : index
    %c0_71 = arith.constant 0 : index
    %c0_72 = arith.constant 0 : index
    %c0_73 = arith.constant 0 : index
    %82 = vector.load %arg6[%c0_70, %c0_71, %c0_72, %c0_73] : memref<1x16x16x128xbf16, #tpu.memory_space<vmem>>, vector<1x16x16x128xbf16>
    %83 = vector.shape_cast %82 : vector<1x16x16x128xbf16> to vector<16x16x128xbf16>
    %84 = vector.shape_cast %81 : vector<16x16x128xbf16> to vector<1x16x16x128xbf16>
    tpu.vector_store %arg6[%c0_70, %c0_71, %c0_72, %c0_73], %84 {strides = array<i32>} : memref<1x16x16x128xbf16, #tpu.memory_space<vmem>>, vector<1x16x16x128xbf16>,
    %85 = arith.extf %81 : vector<16x16x128xbf16> to vector<16x16x128xf32>
    %cst_74 = arith.constant dense<0.000000e+00> : vector<128xf32>
    %86 = vector.multi_reduction <add>, %85, %cst_74 [0, 1] : vector<16x16x128xf32> to vector<128xf32>
    %87 = vector.shape_cast %86 : vector<128xf32> to vector<1x1x128xf32>
    %c0_75 = arith.constant 0 : index
    %c0_76 = arith.constant 0 : index
    %c0_77 = arith.constant 0 : index
    %88 = vector.load %arg7[%c0_75, %c0_76, %c0_77] : memref<1x1x128xf32, #tpu.memory_space<vmem>>, vector<1x1x128xf32>
    tpu.vector_store %arg7[%c0_75, %c0_76, %c0_77], %87 {strides = array<i32>} : memref<1x1x128xf32, #tpu.memory_space<vmem>>, vector<1x1x128xf32>,
    %89 = arith.mulf %85, %85 : vector<16x16x128xf32>
    %cst_78 = arith.constant dense<0.000000e+00> : vector<128xf32>
    %90 = vector.multi_reduction <add>, %89, %cst_78 [0, 1] : vector<16x16x128xf32> to vector<128xf32>
    %91 = vector.shape_cast %90 : vector<128xf32> to vector<1x1x128xf32>
    %c0_79 = arith.constant 0 : index
    %c0_80 = arith.constant 0 : index
    %c0_81 = arith.constant 0 : index
    %92 = vector.load %arg8[%c0_79, %c0_80, %c0_81] : memref<1x1x128xf32, #tpu.memory_space<vmem>>, vector<1x1x128xf32>
    tpu.vector_store %arg8[%c0_79, %c0_80, %c0_81], %91 {strides = array<i32>} : memref<1x1x128xf32, #tpu.memory_space<vmem>>, vector<1x1x128xf32>,
    return
  }
  func.func @transform_0(%arg0: i32) -> (i32, i32, i32, i32) {
    %c0_i32 = arith.constant 0 : i32
    %c0_i32_0 = arith.constant 0 : i32
    %c0_i32_1 = arith.constant 0 : i32
    %c0_i32_2 = arith.constant 0 : i32
    return %arg0, %c0_i32, %c0_i32_0, %c0_i32_1 : i32, i32, i32, i32
  }
  func.func @transform_1(%arg0: i32) -> (i32, i32) {
    %c0_i32 = arith.constant 0 : i32
    %c0_i32_0 = arith.constant 0 : i32
    %c0_i32_1 = arith.constant 0 : i32
    return %c0_i32, %c0_i32_0 : i32, i32
  }
  func.func @transform_2(%arg0: i32) -> (i32, i32) {
    %c0_i32 = arith.constant 0 : i32
    %c0_i32_0 = arith.constant 0 : i32
    %c0_i32_1 = arith.constant 0 : i32
    return %c0_i32, %c0_i32_0 : i32, i32
  }
  func.func @transform_3(%arg0: i32) -> (i32, i32) {
    %c0_i32 = arith.constant 0 : i32
    %c0_i32_0 = arith.constant 0 : i32
    %c0_i32_1 = arith.constant 0 : i32
    return %c0_i32, %c0_i32_0 : i32, i32
  }
  func.func @transform_4(%arg0: i32) -> (i32, i32) {
    %c0_i32 = arith.constant 0 : i32
    %c0_i32_0 = arith.constant 0 : i32
    %c0_i32_1 = arith.constant 0 : i32
    return %c0_i32, %c0_i32_0 : i32, i32
  }
  func.func @transform_5(%arg0: i32) -> (i32, i32, i32, i32) {
    %c0_i32 = arith.constant 0 : i32
    %c0_i32_0 = arith.constant 0 : i32
    %c0_i32_1 = arith.constant 0 : i32
    %c0_i32_2 = arith.constant 0 : i32
    return %arg0, %c0_i32, %c0_i32_0, %c0_i32_1 : i32, i32, i32, i32
  }
  func.func @transform_6(%arg0: i32) -> (i32, i32, i32) {
    %c0_i32 = arith.constant 0 : i32
    %c0_i32_0 = arith.constant 0 : i32
    %c0_i32_1 = arith.constant 0 : i32
    return %arg0, %c0_i32, %c0_i32_0 : i32, i32, i32
  }
  func.func @transform_7(%arg0: i32) -> (i32, i32, i32) {
    %c0_i32 = arith.constant 0 : i32
    %c0_i32_0 = arith.constant 0 : i32
    %c0_i32_1 = arith.constant 0 : i32
    return %arg0, %c0_i32, %c0_i32_0 : i32, i32, i32
  }
}

</mosaic_0001>

<llo_original>
// kernel: forward.3
$region0: #{forward.3}
  #allocation0 [shape = 'u32[]', space=smem, size = 0x4, offset = 0x4, fixed_abs, tag = 'smem constant byte address 0x4 - core index']
  #allocation1 [shape = 'u32[72,128]{1,0:T(1,128)}', space=vmem, size = 0x9000, scoped, tag = 'internal scratch']
  #allocation2 [shape = 'f32[18,18,128]{2,1,0:T(8,128)}', space=vmem, size = 0x36000, scoped, tag = 'scratch operand']
  %s0 = inlined_call_operand.vmem [shape: bf16[2,16,16,128], index: 0, kind: input, shape index: {}, may-alias: {0,5}]
  %s1 = inlined_call_operand.vmem [shape: f32[1,128], index: 1, kind: input, shape index: {}]
  %s2 = inlined_call_operand.vmem [shape: f32[1,128], index: 2, kind: input, shape index: {}]
  %s3 = inlined_call_operand.hbm [shape: bf16[1152,128], index: 3, kind: input, shape index: {}]
  %s4 = inlined_call_operand.vmem [shape: f32[1,128], index: 4, kind: input, shape index: {}]
  %s5 = inlined_call_operand.vmem [shape: bf16[2,16,16,128], index: 5, kind: output, shape index: {0}, may-alias: {0,5}]
  %s6 = inlined_call_operand.hbm [shape: f32[2,1,128], index: 6, kind: output, shape index: {1}]
  %s7 = inlined_call_operand.hbm [shape: f32[2,1,128], index: 7, kind: output, shape index: {2}]
  %8 = xla_tuple %s5, %s6, %s7
  %s9 = sld [smem:[#allocation0]]
  $region73: #{forward.3} parent=0
    _
  %s11 = ssub.s32 1, %s9
  %s12 = scalar_select 0, %s11, %s9
  $region1: #{forward.3} parent=0
    #allocation3 [shape = 'u8[294912]{0}', space=vmem, size = 0x48000, scoped, tag = 'input window, operand 3, single buffered']
    #allocation4 [shape = 's32[2]{0}', space=sflag, size = 0x8, scoped, tag = 'scoped memory for forward.3']
    #allocation5 [shape = 's32[2]{0}', space=sflag, size = 0x8, scoped, tag = 'scoped memory for forward.3']
    #allocation6 [shape = 'u8[1024]{0}', space=vmem, size = 0x400, scoped, tag = 'output window, operand 1']
    #allocation7 [shape = 'u8[1024]{0}', space=vmem, size = 0x400, scoped, tag = 'output window, operand 2']
    #allocation8 [shape = 's32[2]{0}', space=sflag, size = 0x8, scoped, tag = 'scoped memory for forward.3']
    %13 = vsyncpa [#allocation4], 0
    %14 = vsyncpa [#allocation5], 0
    %s15 = scalar_lea.sflag [#allocation5], 1
    %16 = vsyncpa %s15, 0
    %17 = vsyncpa [#allocation8], 0
    %s18 = scalar_lea.sflag [#allocation8], 1
    %19 = vsyncpa %s18, 0
    loop: start=0, step=1, limit=4
    $region2: #{forward.3} parent=1 // loop_pre_header
      _
    $region3: #{forward.3} parent=1 // loop_header
      %s21 = sphi 0, %s25
      %p22 = scmp.ge.s32.totalorder %s21, 4
      %s31 = sphi 0, %s33
      %s34 = sphi 0, %s31
      %s35 = sphi 0, %s34
      %s51 = sphi 0, %s35
      %s55 = sphi 0, %s55
      %s57 = sphi 0, %s55
      %s58 = sphi 0, %s57
      %s72 = sphi 0, %s58
      %s76 = sphi 0, %s76
      %s78 = sphi 0, %s76
      %s79 = sphi 0, %s78
      %s93 = sphi 0, %s79
      %s97 = sphi 0, %s97
      %s99 = sphi 0, %s97
      %s100 = sphi 0, %s99
      %s114 = sphi 0, %s100
      %s118 = sphi 0, %s118
      %s120 = sphi 0, %s118
      %s121 = sphi 0, %s120
      %s135 = sphi 0, %s121
      %s141 = sphi 0, %s143
      %s144 = sphi 0, %s141
      %s145 = sphi 0, %s144
      %s161 = sphi 0, %s145
      %s167 = sphi 0, %s169
      %s170 = sphi 0, %s167
      %s171 = sphi 0, %s170
      %s187 = sphi 0, %s171
      %s193 = sphi 0, %s195
      %s196 = sphi 0, %s193
      %s197 = sphi 0, %s196
      %s213 = sphi 0, %s197
    $region4: #{forward.3} parent=1 // loop_header_branch
      %24 = sbr.rel (%p22) target = $region8
    $region5: #{forward.3} parent=1 // loop_body
      %s26 = ssub.s32 %s21, 1
      %s27 = ssub.s32 %s21, 2
      %s28 = sadd.s32 %s21, 1
      %s29 = ssub.s32 %s21, %s28
      %p30 = scmp.eq.s32.totalorder %s29, 0
      %s32 = sadd.s32 %s31, 1
      %s33 = scalar_select %p30, %s31, %s32
      %p36 = pneg %p30
      %p37 = scmp.eq.s32.totalorder %s21, 1
      %p38 = por %p36, %p37
      %p39 = scmp.ne.s32.totalorder %s31, %s34
      %p40 = scmp.eq.s32.totalorder %s21, 0
      %p41 = por %p39, %p40
      %p42 = scmp.ne.s32.totalorder %s31, %s34
      %p43 = scmp.eq.s32.totalorder %s26, 1
      %p44 = por %p42, %p43
      %p45 = scmp.ne.s32.totalorder %s34, %s35
      %p46 = scmp.eq.s32.totalorder %s26, 0
      %p47 = por %p45, %p46
      %p48 = scmp.ne.s32.totalorder %s34, %s35
      %p49 = scmp.eq.s32.totalorder %s27, 1
      %p50 = por %p48, %p49
      %p52 = scmp.ne.s32.totalorder %s35, %s51
      %p53 = scmp.eq.s32.totalorder %s27, 0
      %p54 = por %p52, %p53
      %s56 = sadd.s32 %s55, 1
      %p59 = scmp.eq.s32.totalorder %s21, 1
      %p60 = scmp.ne.s32.totalorder %s55, %s57
      %p61 = scmp.eq.s32.totalorder %s21, 0
      %p62 = por %p60, %p61
      %p63 = scmp.ne.s32.totalorder %s55, %s57
      %p64 = scmp.eq.s32.totalorder %s26, 1
      %p65 = por %p63, %p64
      %p66 = scmp.ne.s32.totalorder %s57, %s58
      %p67 = scmp.eq.s32.totalorder %s26, 0
      %p68 = por %p66, %p67
      %p69 = scmp.ne.s32.totalorder %s57, %s58
      %p70 = scmp.eq.s32.totalorder %s27, 1
      %p71 = por %p69, %p70
      %p73 = scmp.ne.s32.totalorder %s58, %s72
      %p74 = scmp.eq.s32.totalorder %s27, 0
      %p75 = por %p73, %p74
      %s77 = sadd.s32 %s76, 1
      %p80 = scmp.eq.s32.totalorder %s21, 1
      %p81 = scmp.ne.s32.totalorder %s76, %s78
      %p82 = scmp.eq.s32.totalorder %s21, 0
      %p83 = por %p81, %p82
      %p84 = scmp.ne.s32.totalorder %s76, %s78
      %p85 = scmp.eq.s32.totalorder %s26, 1
      %p86 = por %p84, %p85
      %p87 = scmp.ne.s32.totalorder %s78, %s79
      %p88 = scmp.eq.s32.totalorder %s26, 0
      %p89 = por %p87, %p88
      %p90 = scmp.ne.s32.totalorder %s78, %s79
      %p91 = scmp.eq.s32.totalorder %s27, 1
      %p92 = por %p90, %p91
      %p94 = scmp.ne.s32.totalorder %s79, %s93
      %p95 = scmp.eq.s32.totalorder %s27, 0
      %p96 = por %p94, %p95
      %s98 = sadd.s32 %s97, 1
      %p101 = scmp.eq.s32.totalorder %s21, 1
      %p102 = scmp.ne.s32.totalorder %s97, %s99
      %p103 = scmp.eq.s32.totalorder %s21, 0
      %p104 = por %p102, %p103
      %p105 = scmp.ne.s32.totalorder %s97, %s99
      %p106 = scmp.eq.s32.totalorder %s26, 1
      %p107 = por %p105, %p106
      %p108 = scmp.ne.s32.totalorder %s99, %s100
      %p109 = scmp.eq.s32.totalorder %s26, 0
      %p110 = por %p108, %p109
      %p111 = scmp.ne.s32.totalorder %s99, %s100
      %p112 = scmp.eq.s32.totalorder %s27, 1
      %p113 = por %p111, %p112
      %p115 = scmp.ne.s32.totalorder %s100, %s114
      %p116 = scmp.eq.s32.totalorder %s27, 0
      %p117 = por %p115, %p116
      %s119 = sadd.s32 %s118, 1
      %p122 = scmp.eq.s32.totalorder %s21, 1
      %p123 = scmp.ne.s32.totalorder %s118, %s120
      %p124 = scmp.eq.s32.totalorder %s21, 0
      %p125 = por %p123, %p124
      %p126 = scmp.ne.s32.totalorder %s118, %s120
      %p127 = scmp.eq.s32.totalorder %s26, 1
      %p128 = por %p126, %p127
      %p129 = scmp.ne.s32.totalorder %s120, %s121
      %p130 = scmp.eq.s32.totalorder %s26, 0
      %p131 = por %p129, %p130
      %p132 = scmp.ne.s32.totalorder %s120, %s121
      %p133 = scmp.eq.s32.totalorder %s27, 1
      %p134 = por %p132, %p133
      %p136 = scmp.ne.s32.totalorder %s121, %s135
      %p137 = scmp.eq.s32.totalorder %s27, 0
      %p138 = por %p136, %p137
      %s139 = ssub.s32 %s21, %s28
      %p140 = scmp.eq.s32.totalorder %s139, 0
      %s142 = sadd.s32 %s141, 1
      %s143 = scalar_select %p140, %s141, %s142
      %p146 = pneg %p140
      %p147 = scmp.eq.s32.totalorder %s21, 1
      %p148 = por %p146, %p147
      %p149 = scmp.ne.s32.totalorder %s141, %s144
      %p150 = scmp.eq.s32.totalorder %s21, 0
      %p151 = por %p149, %p150
      %p152 = scmp.ne.s32.totalorder %s141, %s144
      %p153 = scmp.eq.s32.totalorder %s26, 1
      %p154 = por %p152, %p153
      %p155 = scmp.ne.s32.totalorder %s144, %s145
      %p156 = scmp.eq.s32.totalorder %s26, 0
      %p157 = por %p155, %p156
      %p158 = scmp.ne.s32.totalorder %s144, %s145
      %p159 = scmp.eq.s32.totalorder %s27, 1
      %p160 = por %p158, %p159
      %p162 = scmp.ne.s32.totalorder %s145, %s161
      %p163 = scmp.eq.s32.totalorder %s27, 0
      %p164 = por %p162, %p163
      %s165 = ssub.s32 %s21, %s28
      %p166 = scmp.eq.s32.totalorder %s165, 0
      %s168 = sadd.s32 %s167, 1
      %s169 = scalar_select %p166, %s167, %s168
      %p172 = pneg %p166
      %p173 = scmp.eq.s32.totalorder %s21, 1
      %p174 = por %p172, %p173
      %p175 = scmp.ne.s32.totalorder %s167, %s170
      %p176 = scmp.eq.s32.totalorder %s21, 0
      %p177 = por %p175, %p176
      %p178 = scmp.ne.s32.totalorder %s167, %s170
      %p179 = scmp.eq.s32.totalorder %s26, 1
      %p180 = por %p178, %p179
      %p181 = scmp.ne.s32.totalorder %s170, %s171
      %p182 = scmp.eq.s32.totalorder %s26, 0
      %p183 = por %p181, %p182
      %p184 = scmp.ne.s32.totalorder %s170, %s171
      %p185 = scmp.eq.s32.totalorder %s27, 1
      %p186 = por %p184, %p185
      %p188 = scmp.ne.s32.totalorder %s171, %s187
      %p189 = scmp.eq.s32.totalorder %s27, 0
      %p190 = por %p188, %p189
      %s191 = ssub.s32 %s21, %s28
      %p192 = scmp.eq.s32.totalorder %s191, 0
      %s194 = sadd.s32 %s193, 1
      %s195 = scalar_select %p192, %s193, %s194
      %p198 = pneg %p192
      %p199 = scmp.eq.s32.totalorder %s21, 1
      %p200 = por %p198, %p199
      %p201 = scmp.ne.s32.totalorder %s193, %s196
      %p202 = scmp.eq.s32.totalorder %s21, 0
      %p203 = por %p201, %p202
      %p204 = scmp.ne.s32.totalorder %s193, %s196
      %p205 = scmp.eq.s32.totalorder %s26, 1
      %p206 = por %p204, %p205
      %p207 = scmp.ne.s32.totalorder %s196, %s197
      %p208 = scmp.eq.s32.totalorder %s26, 0
      %p209 = por %p207, %p208
      %p210 = scmp.ne.s32.totalorder %s196, %s197
      %p211 = scmp.eq.s32.totalorder %s27, 1
      %p212 = por %p210, %p211
      %p214 = scmp.ne.s32.totalorder %s197, %s213
      %p215 = scmp.eq.s32.totalorder %s27, 0
      %p216 = por %p214, %p215
      %p217 = scmp.le.s32.totalorder 1, %s21
      %p218 = scmp.lt.s32.totalorder %s21, 3
      %p219 = pnand %p217, %p218
      %p220 = pneg %p219
      // Predicated region
      $region9: #{forward.3} parent=5 // pred_check
        _
      $region10: #{forward.3} parent=5 // pred_check_branch
        %222 = sbr.rel (%p219) target = $region12
      $region11: #{forward.3} parent=5 // pred_region
        %s223 = ssub.s32 %s21, 1
        // Predicated region
        $region13: #{forward.3} parent=11 // pred_check
          %p224 = pneg %p68
        $region14: #{forward.3} parent=11 // pred_check_branch
          %226 = sbr.rel (%p224) target = $region16
        $region15: #{forward.3} parent=11 // pred_region
          _
        $region16: #{forward.3} parent=11 // pred_fallthru
          _
        // Predicated region
        $region17: #{forward.3} parent=11 // pred_check
          %p227 = pneg %p89
        $region18: #{forward.3} parent=11 // pred_check_branch
          %229 = sbr.rel (%p227) target = $region20
        $region19: #{forward.3} parent=11 // pred_region
          _
        $region20: #{forward.3} parent=11 // pred_fallthru
          _
        // Predicated region
        $region21: #{forward.3} parent=11 // pred_check
          %p230 = pneg %p110
        $region22: #{forward.3} parent=11 // pred_check_branch
          %232 = sbr.rel (%p230) target = $region24
        $region23: #{forward.3} parent=11 // pred_region
          %234 = vsyncadd [#allocation4], 0
          %s235 = sshll.u32 %s3, 4
          %s236 = int_to_ptr.hbm [resolvable:$true] %s235
          %s237 = sshll.u32 [#allocation3], 4
          %s238 = int_to_ptr.vmem [resolvable:$true] %s237
          %243 = dma.hbm_to_vmem [thread:$0]  %s236, 9216, %s238, [#allocation4], 64, 64, 4
        $region24: #{forward.3} parent=11 // pred_fallthru
          _
        // Predicated region
        $region25: #{forward.3} parent=11 // pred_check
          %p244 = pneg %p131
        $region26: #{forward.3} parent=11 // pred_check_branch
          %246 = sbr.rel (%p244) target = $region28
        $region27: #{forward.3} parent=11 // pred_region
          _
        $region28: #{forward.3} parent=11 // pred_fallthru
          _
      $region12: #{forward.3} parent=5 // pred_fallthru
        _
      %p247 = scmp.lt.s32.totalorder %s21, 2
      // Predicated region
      $region29: #{forward.3} parent=5 // pred_check
        %p248 = pneg %p247
      $region30: #{forward.3} parent=5 // pred_check_branch
        %250 = sbr.rel (%p248) target = $region32
      $region31: #{forward.3} parent=5 // pred_region
        // Predicated region
        $region33: #{forward.3} parent=31 // pred_check
          %p251 = pneg %p41
        $region34: #{forward.3} parent=31 // pred_check_branch
          %253 = sbr.rel (%p251) target = $region36
        $region35: #{forward.3} parent=31 // pred_region
          %p254 = scmp.lt.s32.totalorder %s21, 1
          %s255 = scalar_select %p254, %s21, 1
          %s256 = smul.addr %s255, 32
          %s257 = smul.addr %s256, 4
          %s258 = scalar_lea.vmem %s0, %s257
        $region36: #{forward.3} parent=31 // pred_fallthru
          _
      $region32: #{forward.3} parent=5 // pred_fallthru
        _
      %p259 = scmp.le.s32.totalorder 1, %s21
      %p260 = scmp.lt.s32.totalorder %s21, 3
      %p261 = pnand %p259, %p260
      %p262 = pneg %p261
      // Predicated region
      $region37: #{forward.3} parent=5 // pred_check
        _
      $region38: #{forward.3} parent=5 // pred_check_branch
        %264 = sbr.rel (%p261) target = $region40
      $region39: #{forward.3} parent=5 // pred_region
        %s265 = ssub.s32 %s21, 1
        // Predicated region
        $region41: #{forward.3} parent=39 // pred_check
          %p266 = pneg %p110
        $region42: #{forward.3} parent=39 // pred_check_branch
          %268 = sbr.rel (%p266) target = $region44
        $region43: #{forward.3} parent=39 // pred_region
          %270 = dma.done [#allocation4], 9216
        $region44: #{forward.3} parent=39 // pred_fallthru
          _
        %p271 = scmp.lt.s32.totalorder %s26, 1
        %s272 = scalar_select %p271, %s26, 1
        %s273 = smul.addr %s272, 32
        %s274 = smul.addr %s273, 4
        %s275 = scalar_lea.vmem %s0, %s274
        %p276 = pneg %p47
        %p277 = pneg %p44
        %p278 = pneg %p68
        %p279 = pneg %p65
        %p280 = pneg %p89
        %p281 = pneg %p86
        %p282 = pneg %p110
        %p283 = pneg %p107
        %p284 = pneg %p131
        %p285 = pneg %p128
        %p286 = pneg %p157
        %p287 = pneg %p154
        %p288 = scmp.lt.s32.totalorder %s26, 1
        %s289 = scalar_select %p288, %s26, 1
        %s290 = smul.addr %s289, 32
        %s291 = smul.addr %s290, 4
        %s292 = scalar_lea.vmem %s5, %s291
        %p293 = pneg %p183
        %p294 = pneg %p180
        %s295 = sand.u32 %s170, 1
        %s296 = scalar_lea.sflag [#allocation5], %s295
        %s297 = sand.u32 %s170, 1
        %s298 = scalar_lea.vmem [#allocation6], %s297
        %p299 = pneg %p209
        %p300 = pneg %p206
        %s301 = sand.u32 %s196, 1
        %s302 = scalar_lea.sflag [#allocation8], %s301
        %s303 = sand.u32 %s196, 1
        %s304 = scalar_lea.vmem [#allocation7], %s303
        %p305 = scmp.lt.s32.totalorder %s26, 1
        %s306 = scalar_select %p305, %s26, 1
        %s307 = smul.addr %s306, 32
        %s308 = smul.addr %s307, 4
        %s309 = scalar_lea.vmem %s0, %s308
        %p310 = scmp.lt.s32.totalorder %s26, 1
        %s311 = scalar_select %p310, %s26, 1
        %s312 = smul.addr %s311, 32
        %s313 = smul.addr %s312, 4
        %s314 = scalar_lea.vmem %s5, %s313
        %v315 = vld [vmem:[%s309] sm:$0xf]
        %v316 = vld [vmem:[%s309 + $0x4] sm:$0xf]
        %v317 = vld [vmem:[%s309 + $0x8] sm:$0xf]
        %v318 = vld [vmem:[%s309 + $0xc] sm:$0xf]
        %v319 = vld [vmem:[%s309 + $0x10] sm:$0xf]
        %v320 = vld [vmem:[%s309 + $0x14] sm:$0xf]
        %v321 = vld [vmem:[%s309 + $0x18] sm:$0xf]
        %v322 = vld [vmem:[%s309 + $0x1c] sm:$0xf]
        %v323 = vld [vmem:[%s309 + $0x20] sm:$0xf]
        %v324 = vld [vmem:[%s309 + $0x24] sm:$0xf]
        %v325 = vld [vmem:[%s309 + $0x28] sm:$0xf]
        %v326 = vld [vmem:[%s309 + $0x2c] sm:$0xf]
        %v327 = vld [vmem:[%s309 + $0x30] sm:$0xf]
        %v328 = vld [vmem:[%s309 + $0x34] sm:$0xf]
        %v329 = vld [vmem:[%s309 + $0x38] sm:$0xf]
        %v330 = vld [vmem:[%s309 + $0x3c] sm:$0xf]
        %v331 = vld [vmem:[%s309 + $0x40] sm:$0xf]
        %v332 = vld [vmem:[%s309 + $0x44] sm:$0xf]
        %v333 = vld [vmem:[%s309 + $0x48] sm:$0xf]
        %v334 = vld [vmem:[%s309 + $0x4c] sm:$0xf]
        %v335 = vld [vmem:[%s309 + $0x50] sm:$0xf]
        %v336 = vld [vmem:[%s309 + $0x54] sm:$0xf]
        %v337 = vld [vmem:[%s309 + $0x58] sm:$0xf]
        %v338 = vld [vmem:[%s309 + $0x5c] sm:$0xf]
        %v339 = vld [vmem:[%s309 + $0x60] sm:$0xf]
        %v340 = vld [vmem:[%s309 + $0x64] sm:$0xf]
        %v341 = vld [vmem:[%s309 + $0x68] sm:$0xf]
        %v342 = vld [vmem:[%s309 + $0x6c] sm:$0xf]
        %v343 = vld [vmem:[%s309 + $0x70] sm:$0xf]
        %v344 = vld [vmem:[%s309 + $0x74] sm:$0xf]
        %v345 = vld [vmem:[%s309 + $0x78] sm:$0xf]
        %v346 = vld [vmem:[%s309 + $0x7c] sm:$0xf]
        %v347 = vunpack.c.l.bf16 %v315
        %v348 = vunpack.c.l.bf16 %v316
        %v349 = vunpack.c.l.bf16 %v317
        %v350 = vunpack.c.l.bf16 %v318
        %v351 = vunpack.c.l.bf16 %v319
        %v352 = vunpack.c.l.bf16 %v320
        %v353 = vunpack.c.l.bf16 %v321
        %v354 = vunpack.c.l.bf16 %v322
        %v355 = vunpack.c.l.bf16 %v323
        %v356 = vunpack.c.l.bf16 %v324
        %v357 = vunpack.c.l.bf16 %v325
        %v358 = vunpack.c.l.bf16 %v326
        %v359 = vunpack.c.l.bf16 %v327
        %v360 = vunpack.c.l.bf16 %v328
        %v361 = vunpack.c.l.bf16 %v329
        %v362 = vunpack.c.l.bf16 %v330
        %v363 = vunpack.c.l.bf16 %v331
        %v364 = vunpack.c.l.bf16 %v332
        %v365 = vunpack.c.l.bf16 %v333
        %v366 = vunpack.c.l.bf16 %v334
        %v367 = vunpack.c.l.bf16 %v335
        %v368 = vunpack.c.l.bf16 %v336
        %v369 = vunpack.c.l.bf16 %v337
        %v370 = vunpack.c.l.bf16 %v338
        %v371 = vunpack.c.l.bf16 %v339
        %v372 = vunpack.c.l.bf16 %v340
        %v373 = vunpack.c.l.bf16 %v341
        %v374 = vunpack.c.l.bf16 %v342
        %v375 = vunpack.c.l.bf16 %v343
        %v376 = vunpack.c.l.bf16 %v344
        %v377 = vunpack.c.l.bf16 %v345
        %v378 = vunpack.c.l.bf16 %v346
        %v379 = vld [vmem:[%s1] sm:$0x1]
        %v381 = vperm.slane %v379, 0
        %v383 = vmul.f32 %v347, %v381
        %v384 = vmul.f32 %v348, %v381
        %v385 = vmul.f32 %v349, %v381
        %v386 = vmul.f32 %v350, %v381
        %v387 = vmul.f32 %v351, %v381
        %v388 = vmul.f32 %v352, %v381
        %v389 = vmul.f32 %v353, %v381
        %v390 = vmul.f32 %v354, %v381
        %v391 = vmul.f32 %v355, %v381
        %v392 = vmul.f32 %v356, %v381
        %v393 = vmul.f32 %v357, %v381
        %v394 = vmul.f32 %v358, %v381
        %v395 = vmul.f32 %v359, %v381
        %v396 = vmul.f32 %v360, %v381
        %v397 = vmul.f32 %v361, %v381
        %v398 = vmul.f32 %v362, %v381
        %v399 = vmul.f32 %v363, %v381
        %v400 = vmul.f32 %v364, %v381
        %v401 = vmul.f32 %v365, %v381
        %v402 = vmul.f32 %v366, %v381
        %v403 = vmul.f32 %v367, %v381
        %v404 = vmul.f32 %v368, %v381
        %v405 = vmul.f32 %v369, %v381
        %v406 = vmul.f32 %v370, %v381
        %v407 = vmul.f32 %v371, %v381
        %v408 = vmul.f32 %v372, %v381
        %v409 = vmul.f32 %v373, %v381
        %v410 = vmul.f32 %v374, %v381
        %v411 = vmul.f32 %v375, %v381
        %v412 = vmul.f32 %v376, %v381
        %v413 = vmul.f32 %v377, %v381
        %v414 = vmul.f32 %v378, %v381
        %v415 = vld [vmem:[%s2] sm:$0x1]
        %v417 = vperm.slane %v415, 0
        %v419 = vadd.f32 %v383, %v417
        %v420 = vadd.f32 %v384, %v417
        %v421 = vadd.f32 %v385, %v417
        %v422 = vadd.f32 %v386, %v417
        %v423 = vadd.f32 %v387, %v417
        %v424 = vadd.f32 %v388, %v417
        %v425 = vadd.f32 %v389, %v417
        %v426 = vadd.f32 %v390, %v417
        %v427 = vadd.f32 %v391, %v417
        %v428 = vadd.f32 %v392, %v417
        %v429 = vadd.f32 %v393, %v417
        %v430 = vadd.f32 %v394, %v417
        %v431 = vadd.f32 %v395, %v417
        %v432 = vadd.f32 %v396, %v417
        %v433 = vadd.f32 %v397, %v417
        %v434 = vadd.f32 %v398, %v417
        %v435 = vadd.f32 %v399, %v417
        %v436 = vadd.f32 %v400, %v417
        %v437 = vadd.f32 %v401, %v417
        %v438 = vadd.f32 %v402, %v417
        %v439 = vadd.f32 %v403, %v417
        %v440 = vadd.f32 %v404, %v417
        %v441 = vadd.f32 %v405, %v417
        %v442 = vadd.f32 %v406, %v417
        %v443 = vadd.f32 %v407, %v417
        %v444 = vadd.f32 %v408, %v417
        %v445 = vadd.f32 %v409, %v417
        %v446 = vadd.f32 %v410, %v417
        %v447 = vadd.f32 %v411, %v417
        %v448 = vadd.f32 %v412, %v417
        %v449 = vadd.f32 %v413, %v417
        %v450 = vadd.f32 %v414, %v417
        %v451 = vmax.f32 %v419, 0.0
        %v452 = vmax.f32 %v420, 0.0
        %v453 = vmax.f32 %v421, 0.0
        %v454 = vmax.f32 %v422, 0.0
        %v455 = vmax.f32 %v423, 0.0
        %v456 = vmax.f32 %v424, 0.0
        %v457 = vmax.f32 %v425, 0.0
        %v458 = vmax.f32 %v426, 0.0
        %v459 = vmax.f32 %v427, 0.0
        %v460 = vmax.f32 %v428, 0.0
        %v461 = vmax.f32 %v429, 0.0
        %v462 = vmax.f32 %v430, 0.0
        %v463 = vmax.f32 %v431, 0.0
        %v464 = vmax.f32 %v432, 0.0
        %v465 = vmax.f32 %v433, 0.0
        %v466 = vmax.f32 %v434, 0.0
        %v467 = vmax.f32 %v435, 0.0
        %v468 = vmax.f32 %v436, 0.0
        %v469 = vmax.f32 %v437, 0.0
        %v470 = vmax.f32 %v438, 0.0
        %v471 = vmax.f32 %v439, 0.0
        %v472 = vmax.f32 %v440, 0.0
        %v473 = vmax.f32 %v441, 0.0
        %v474 = vmax.f32 %v442, 0.0
        %v475 = vmax.f32 %v443, 0.0
        %v476 = vmax.f32 %v444, 0.0
        %v477 = vmax.f32 %v445, 0.0
        %v478 = vmax.f32 %v446, 0.0
        %v479 = vmax.f32 %v447, 0.0
        %v480 = vmax.f32 %v448, 0.0
        %v481 = vmax.f32 %v449, 0.0
        %v482 = vmax.f32 %v450, 0.0
        %483 = vst [vmem:[#allocation2] sm:$0xff] 0.0
        %484 = vst [vmem:[#allocation2 + $0x8] sm:$0xff] 0.0
        %485 = vst [vmem:[#allocation2 + $0x10] sm:$0x3] 0.0
        %s486 = scalar_lea.vmem [#allocation2], 408
        %487 = vst [vmem:[%s486] sm:$0xff] 0.0
        %488 = vst [vmem:[%s486 + $0x8] sm:$0xff] 0.0
        %489 = vst [vmem:[%s486 + $0x10] sm:$0x3] 0.0
        %490 = vst [vmem:[#allocation2] sm:$0x1] 0.0
        %491 = vst [vmem:[#allocation2 + $0x18] sm:$0x1] 0.0
        %492 = vst [vmem:[#allocation2 + $0x30] sm:$0x1] 0.0
        %493 = vst [vmem:[#allocation2 + $0x48] sm:$0x1] 0.0
        %494 = vst [vmem:[#allocation2 + $0x60] sm:$0x1] 0.0
        %495 = vst [vmem:[#allocation2 + $0x78] sm:$0x1] 0.0
        %496 = vst [vmem:[#allocation2 + $0x90] sm:$0x1] 0.0
        %497 = vst [vmem:[#allocation2 + $0xa8] sm:$0x1] 0.0
        %498 = vst [vmem:[#allocation2 + $0xc0] sm:$0x1] 0.0
        %499 = vst [vmem:[#allocation2 + $0xd8] sm:$0x1] 0.0
        %500 = vst [vmem:[#allocation2 + $0xf0] sm:$0x1] 0.0
        %501 = vst [vmem:[#allocation2 + $0x108] sm:$0x1] 0.0
        %502 = vst [vmem:[#allocation2 + $0x120] sm:$0x1] 0.0
        %503 = vst [vmem:[#allocation2 + $0x138] sm:$0x1] 0.0
        %504 = vst [vmem:[#allocation2 + $0x150] sm:$0x1] 0.0
        %505 = vst [vmem:[#allocation2 + $0x168] sm:$0x1] 0.0
        %506 = vst [vmem:[#allocation2 + $0x180] sm:$0x1] 0.0
        %507 = vst [vmem:[#allocation2 + $0x198] sm:$0x1] 0.0
        %508 = vst [vmem:[#allocation2 + $0x11] sm:$0x1] 0.0
        %509 = vst [vmem:[#allocation2 + $0x29] sm:$0x1] 0.0
        %510 = vst [vmem:[#allocation2 + $0x41] sm:$0x1] 0.0
        %511 = vst [vmem:[#allocation2 + $0x59] sm:$0x1] 0.0
        %512 = vst [vmem:[#allocation2 + $0x71] sm:$0x1] 0.0
        %513 = vst [vmem:[#allocation2 + $0x89] sm:$0x1] 0.0
        %514 = vst [vmem:[#allocation2 + $0xa1] sm:$0x1] 0.0
        %515 = vst [vmem:[#allocation2 + $0xb9] sm:$0x1] 0.0
        %516 = vst [vmem:[#allocation2 + $0xd1] sm:$0x1] 0.0
        %517 = vst [vmem:[#allocation2 + $0xe9] sm:$0x1] 0.0
        %518 = vst [vmem:[#allocation2 + $0x101] sm:$0x1] 0.0
        %519 = vst [vmem:[#allocation2 + $0x119] sm:$0x1] 0.0
        %520 = vst [vmem:[#allocation2 + $0x131] sm:$0x1] 0.0
        %521 = vst [vmem:[#allocation2 + $0x149] sm:$0x1] 0.0
        %522 = vst [vmem:[#allocation2 + $0x161] sm:$0x1] 0.0
        %523 = vst [vmem:[#allocation2 + $0x179] sm:$0x1] 0.0
        %524 = vst [vmem:[#allocation2 + $0x191] sm:$0x1] 0.0
        %525 = vst [vmem:[#allocation2 + $0x1a9] sm:$0x1] 0.0
        %s526 = scalar_lea.vmem [#allocation2], 24
        %527 = vst [vmem:[%s526 + $0x1] sm:$0xff] %v451
        %528 = vst [vmem:[%s526 + $0x9] sm:$0xff] %v452
        %529 = vst [vmem:[%s526 + $0x19] sm:$0xff] %v453
        %530 = vst [vmem:[%s526 + $0x21] sm:$0xff] %v454
        %531 = vst [vmem:[%s526 + $0x31] sm:$0xff] %v455
        %532 = vst [vmem:[%s526 + $0x39] sm:$0xff] %v456
        %533 = vst [vmem:[%s526 + $0x49] sm:$0xff] %v457
        %534 = vst [vmem:[%s526 + $0x51] sm:$0xff] %v458
        %535 = vst [vmem:[%s526 + $0x61] sm:$0xff] %v459
        %536 = vst [vmem:[%s526 + $0x69] sm:$0xff] %v460
        %537 = vst [vmem:[%s526 + $0x79] sm:$0xff] %v461
        %538 = vst [vmem:[%s526 + $0x81] sm:$0xff] %v462
        %539 = vst [vmem:[%s526 + $0x91] sm:$0xff] %v463
        %540 = vst [vmem:[%s526 + $0x99] sm:$0xff] %v464
        %541 = vst [vmem:[%s526 + $0xa9] sm:$0xff] %v465
        %542 = vst [vmem:[%s526 + $0xb1] sm:$0xff] %v466
        %543 = vst [vmem:[%s526 + $0xc1] sm:$0xff] %v467
        %544 = vst [vmem:[%s526 + $0xc9] sm:$0xff] %v468
        %545 = vst [vmem:[%s526 + $0xd9] sm:$0xff] %v469
        %546 = vst [vmem:[%s526 + $0xe1] sm:$0xff] %v470
        %547 = vst [vmem:[%s526 + $0xf1] sm:$0xff] %v471
        %548 = vst [vmem:[%s526 + $0xf9] sm:$0xff] %v472
        %549 = vst [vmem:[%s526 + $0x109] sm:$0xff] %v473
        %550 = vst [vmem:[%s526 + $0x111] sm:$0xff] %v474
        %551 = vst [vmem:[%s526 + $0x121] sm:$0xff] %v475
        %552 = vst [vmem:[%s526 + $0x129] sm:$0xff] %v476
        %553 = vst [vmem:[%s526 + $0x139] sm:$0xff] %v477
        %554 = vst [vmem:[%s526 + $0x141] sm:$0xff] %v478
        %555 = vst [vmem:[%s526 + $0x151] sm:$0xff] %v479
        %556 = vst [vmem:[%s526 + $0x159] sm:$0xff] %v480
        %557 = vst [vmem:[%s526 + $0x169] sm:$0xff] %v481
        %558 = vst [vmem:[%s526 + $0x171] sm:$0xff] %v482
        %v559 = vld [vmem:[#allocation2] sm:$0xff]
        %v560 = vld [vmem:[#allocation2 + $0x8] sm:$0xff]
        %v561 = vld [vmem:[#allocation2 + $0x18] sm:$0xff]
        %v562 = vld [vmem:[#allocation2 + $0x20] sm:$0xff]
        %v563 = vld [vmem:[#allocation2 + $0x30] sm:$0xff]
        %v564 = vld [vmem:[#allocation2 + $0x38] sm:$0xff]
        %v565 = vld [vmem:[#allocation2 + $0x48] sm:$0xff]
        %v566 = vld [vmem:[#allocation2 + $0x50] sm:$0xff]
        %v567 = vld [vmem:[#allocation2 + $0x60] sm:$0xff]
        %v568 = vld [vmem:[#allocation2 + $0x68] sm:$0xff]
        %v569 = vld [vmem:[#allocation2 + $0x78] sm:$0xff]
        %v570 = vld [vmem:[#allocation2 + $0x80] sm:$0xff]
        %v571 = vld [vmem:[#allocation2 + $0x90] sm:$0xff]
        %v572 = vld [vmem:[#allocation2 + $0x98] sm:$0xff]
        %v573 = vld [vmem:[#allocation2 + $0xa8] sm:$0xff]
        %v574 = vld [vmem:[#allocation2 + $0xb0] sm:$0xff]
        %v575 = vld [vmem:[#allocation2 + $0xc0] sm:$0xff]
        %v576 = vld [vmem:[#allocation2 + $0xc8] sm:$0xff]
        %v577 = vld [vmem:[#allocation2 + $0xd8] sm:$0xff]
        %v578 = vld [vmem:[#allocation2 + $0xe0] sm:$0xff]
        %v579 = vld [vmem:[#allocation2 + $0xf0] sm:$0xff]
        %v580 = vld [vmem:[#allocation2 + $0xf8] sm:$0xff]
        %v581 = vld [vmem:[#allocation2 + $0x108] sm:$0xff]
        %v582 = vld [vmem:[#allocation2 + $0x110] sm:$0xff]
        %v583 = vld [vmem:[#allocation2 + $0x120] sm:$0xff]
        %v584 = vld [vmem:[#allocation2 + $0x128] sm:$0xff]
        %v585 = vld [vmem:[#allocation2 + $0x138] sm:$0xff]
        %v586 = vld [vmem:[#allocation2 + $0x140] sm:$0xff]
        %v587 = vld [vmem:[#allocation2 + $0x150] sm:$0xff]
        %v588 = vld [vmem:[#allocation2 + $0x158] sm:$0xff]
        %v589 = vld [vmem:[#allocation2 + $0x168] sm:$0xff]
        %v590 = vld [vmem:[#allocation2 + $0x170] sm:$0xff]
        %v591 = vpack.c.bf16 %v560, %v559
        %v592 = vpack.c.bf16 %v562, %v561
        %v593 = vpack.c.bf16 %v564, %v563
        %v594 = vpack.c.bf16 %v566, %v565
        %v595 = vpack.c.bf16 %v568, %v567
        %v596 = vpack.c.bf16 %v570, %v569
        %v597 = vpack.c.bf16 %v572, %v571
        %v598 = vpack.c.bf16 %v574, %v573
        %v599 = vpack.c.bf16 %v576, %v575
        %v600 = vpack.c.bf16 %v578, %v577
        %v601 = vpack.c.bf16 %v580, %v579
        %v602 = vpack.c.bf16 %v582, %v581
        %v603 = vpack.c.bf16 %v584, %v583
        %v604 = vpack.c.bf16 %v586, %v585
        %v605 = vpack.c.bf16 %v588, %v587
        %v606 = vpack.c.bf16 %v590, %v589
        %v607 = vld [vmem:[#allocation3] sm:$0xf]
        %v608 = vld [vmem:[#allocation3 + $0x4] sm:$0xf]
        %v609 = vld [vmem:[#allocation3 + $0x8] sm:$0xf]
        %v610 = vld [vmem:[#allocation3 + $0xc] sm:$0xf]
        %v611 = vld [vmem:[#allocation3 + $0x10] sm:$0xf]
        %v612 = vld [vmem:[#allocation3 + $0x14] sm:$0xf]
        %v613 = vld [vmem:[#allocation3 + $0x18] sm:$0xf]
        %v614 = vld [vmem:[#allocation3 + $0x1c] sm:$0xf]
        %v615 = vld [vmem:[#allocation3 + $0x20] sm:$0xf]
        %v616 = vld [vmem:[#allocation3 + $0x24] sm:$0xf]
        %v617 = vld [vmem:[#allocation3 + $0x28] sm:$0xf]
        %v618 = vld [vmem:[#allocation3 + $0x2c] sm:$0xf]
        %v619 = vld [vmem:[#allocation3 + $0x30] sm:$0xf]
        %v620 = vld [vmem:[#allocation3 + $0x34] sm:$0xf]
        %v621 = vld [vmem:[#allocation3 + $0x38] sm:$0xf]
        %v622 = vld [vmem:[#allocation3 + $0x3c] sm:$0xf]
        %v623 = vld [vmem:[#allocation2 + $0x1] sm:$0xff]
        %v624 = vld [vmem:[#allocation2 + $0x9] sm:$0xff]
        %v625 = vld [vmem:[#allocation2 + $0x19] sm:$0xff]
        %v626 = vld [vmem:[#allocation2 + $0x21] sm:$0xff]
        %v627 = vld [vmem:[#allocation2 + $0x31] sm:$0xff]
        %v628 = vld [vmem:[#allocation2 + $0x39] sm:$0xff]
        %v629 = vld [vmem:[#allocation2 + $0x49] sm:$0xff]
        %v630 = vld [vmem:[#allocation2 + $0x51] sm:$0xff]
        %v631 = vld [vmem:[#allocation2 + $0x61] sm:$0xff]
        %v632 = vld [vmem:[#allocation2 + $0x69] sm:$0xff]
        %v633 = vld [vmem:[#allocation2 + $0x79] sm:$0xff]
        %v634 = vld [vmem:[#allocation2 + $0x81] sm:$0xff]
        %v635 = vld [vmem:[#allocation2 + $0x91] sm:$0xff]
        %v636 = vld [vmem:[#allocation2 + $0x99] sm:$0xff]
        %v637 = vld [vmem:[#allocation2 + $0xa9] sm:$0xff]
        %v638 = vld [vmem:[#allocation2 + $0xb1] sm:$0xff]
        %v639 = vld [vmem:[#allocation2 + $0xc1] sm:$0xff]
        %v640 = vld [vmem:[#allocation2 + $0xc9] sm:$0xff]
        %v641 = vld [vmem:[#allocation2 + $0xd9] sm:$0xff]
        %v642 = vld [vmem:[#allocation2 + $0xe1] sm:$0xff]
        %v643 = vld [vmem:[#allocation2 + $0xf1] sm:$0xff]
        %v644 = vld [vmem:[#allocation2 + $0xf9] sm:$0xff]
        %v645 = vld [vmem:[#allocation2 + $0x109] sm:$0xff]
        %v646 = vld [vmem:[#allocation2 + $0x111] sm:$0xff]
        %v647 = vld [vmem:[#allocation2 + $0x121] sm:$0xff]
        %v648 = vld [vmem:[#allocation2 + $0x129] sm:$0xff]
        %v649 = vld [vmem:[#allocation2 + $0x139] sm:$0xff]
        %v650 = vld [vmem:[#allocation2 + $0x141] sm:$0xff]
        %v651 = vld [vmem:[#allocation2 + $0x151] sm:$0xff]
        %v652 = vld [vmem:[#allocation2 + $0x159] sm:$0xff]
        %v653 = vld [vmem:[#allocation2 + $0x169] sm:$0xff]
        %v654 = vld [vmem:[#allocation2 + $0x171] sm:$0xff]
        %v655 = vpack.c.bf16 %v624, %v623
        %v656 = vpack.c.bf16 %v626, %v625
        %v657 = vpack.c.bf16 %v628, %v627
        %v658 = vpack.c.bf16 %v630, %v629
        %v659 = vpack.c.bf16 %v632, %v631
        %v660 = vpack.c.bf16 %v634, %v633
        %v661 = vpack.c.bf16 %v636, %v635
        %v662 = vpack.c.bf16 %v638, %v637
        %v663 = vpack.c.bf16 %v640, %v639
        %v664 = vpack.c.bf16 %v642, %v641
        %v665 = vpack.c.bf16 %v644, %v643
        %v666 = vpack.c.bf16 %v646, %v645
        %v667 = vpack.c.bf16 %v648, %v647
        %v668 = vpack.c.bf16 %v650, %v649
        %v669 = vpack.c.bf16 %v652, %v651
        %v670 = vpack.c.bf16 %v654, %v653
        %v671 = vld [vmem:[#allocation3 + $0x40] sm:$0xf]
        %v672 = vld [vmem:[#allocation3 + $0x44] sm:$0xf]
        %v673 = vld [vmem:[#allocation3 + $0x48] sm:$0xf]
        %v674 = vld [vmem:[#allocation3 + $0x4c] sm:$0xf]
        %v675 = vld [vmem:[#allocation3 + $0x50] sm:$0xf]
        %v676 = vld [vmem:[#allocation3 + $0x54] sm:$0xf]
        %v677 = vld [vmem:[#allocation3 + $0x58] sm:$0xf]
        %v678 = vld [vmem:[#allocation3 + $0x5c] sm:$0xf]
        %v679 = vld [vmem:[#allocation3 + $0x60] sm:$0xf]
        %v680 = vld [vmem:[#allocation3 + $0x64] sm:$0xf]
        %v681 = vld [vmem:[#allocation3 + $0x68] sm:$0xf]
        %v682 = vld [vmem:[#allocation3 + $0x6c] sm:$0xf]
        %v683 = vld [vmem:[#allocation3 + $0x70] sm:$0xf]
        %v684 = vld [vmem:[#allocation3 + $0x74] sm:$0xf]
        %v685 = vld [vmem:[#allocation3 + $0x78] sm:$0xf]
        %v686 = vld [vmem:[#allocation3 + $0x7c] sm:$0xf]
        %v703 = vunpack.c.l.b16 %v671
        %v704 = vunpack.c.l.b16 %v672
        %v705 = vunpack.c.l.b16 %v673
        %v706 = vunpack.c.l.b16 %v674
        %v707 = vunpack.c.l.b16 %v675
        %v708 = vunpack.c.l.b16 %v676
        %v709 = vunpack.c.l.b16 %v677
        %v710 = vunpack.c.l.b16 %v678
        %v711 = vunpack.c.l.b16 %v679
        %v712 = vunpack.c.l.b16 %v680
        %v713 = vunpack.c.l.b16 %v681
        %v714 = vunpack.c.l.b16 %v682
        %v715 = vunpack.c.l.b16 %v683
        %v716 = vunpack.c.l.b16 %v684
        %v717 = vunpack.c.l.b16 %v685
        %v718 = vunpack.c.l.b16 %v686
        %v719 = vpack.c.b16 %v704, %v703
        %v720 = vpack.c.b16 %v706, %v705
        %v721 = vpack.c.b16 %v708, %v707
        %v722 = vpack.c.b16 %v710, %v709
        %v723 = vpack.c.b16 %v712, %v711
        %v724 = vpack.c.b16 %v714, %v713
        %v725 = vpack.c.b16 %v716, %v715
        %v726 = vpack.c.b16 %v718, %v717
        %735 = vmatpush.bf16.msra.mxu0 %v726
        %736 = vmatpush.bf16.msra.mxu0 %v725
        %737 = vmatpush.bf16.msra.mxu0 %v724
        %738 = vmatpush.bf16.msra.mxu0 %v723
        %739 = vmatpush.bf16.msra.mxu0 %v722
        %740 = vmatpush.bf16.msra.mxu0 %v721
        %741 = vmatpush.bf16.msra.mxu0 %v720
        %742 = vmatpush.bf16.msra.mxu0 %v719
        %743 = vmatmul.bf16.gmra.mxu0 %v655
        %v744 = vpop.f32.mrf.mxu0
        %v745 = vadd.f32 0.0, %v744
        %v746 = vpop.f32.mrf.mxu0
        %v747 = vadd.f32 0.0, %v746
        %748 = vmatmul.bf16.gmra.mxu0 %v656
        %v749 = vpop.f32.mrf.mxu0
        %v750 = vadd.f32 0.0, %v749
        %v751 = vpop.f32.mrf.mxu0
        %v752 = vadd.f32 0.0, %v751
        %753 = vmatmul.bf16.gmra.mxu0 %v657
        %v754 = vpop.f32.mrf.mxu0
        %v755 = vadd.f32 0.0, %v754
        %v756 = vpop.f32.mrf.mxu0
        %v757 = vadd.f32 0.0, %v756
        %758 = vmatmul.bf16.gmra.mxu0 %v658
        %v759 = vpop.f32.mrf.mxu0
        %v760 = vadd.f32 0.0, %v759
        %v761 = vpop.f32.mrf.mxu0
        %v762 = vadd.f32 0.0, %v761
        %763 = vmatmul.bf16.gmra.mxu0 %v659
        %v764 = vpop.f32.mrf.mxu0
        %v765 = vadd.f32 0.0, %v764
        %v766 = vpop.f32.mrf.mxu0
        %v767 = vadd.f32 0.0, %v766
        %768 = vmatmul.bf16.gmra.mxu0 %v660
        %v769 = vpop.f32.mrf.mxu0
        %v770 = vadd.f32 0.0, %v769
        %v771 = vpop.f32.mrf.mxu0
        %v772 = vadd.f32 0.0, %v771
        %773 = vmatmul.bf16.gmra.mxu0 %v661
        %v774 = vpop.f32.mrf.mxu0
        %v775 = vadd.f32 0.0, %v774
        %v776 = vpop.f32.mrf.mxu0
        %v777 = vadd.f32 0.0, %v776
        %778 = vmatmul.bf16.gmra.mxu0 %v662
        %v779 = vpop.f32.mrf.mxu0
        %v780 = vadd.f32 0.0, %v779
        %v781 = vpop.f32.mrf.mxu0
        %v782 = vadd.f32 0.0, %v781
        %783 = vmatmul.bf16.gmra.mxu0 %v663
        %v784 = vpop.f32.mrf.mxu0
        %v785 = vadd.f32 0.0, %v784
        %v786 = vpop.f32.mrf.mxu0
        %v787 = vadd.f32 0.0, %v786
        %788 = vmatmul.bf16.gmra.mxu0 %v664
        %v789 = vpop.f32.mrf.mxu0
        %v790 = vadd.f32 0.0, %v789
        %v791 = vpop.f32.mrf.mxu0
        %v792 = vadd.f32 0.0, %v791
        %793 = vmatmul.bf16.gmra.mxu0 %v665
        %v794 = vpop.f32.mrf.mxu0
        %v795 = vadd.f32 0.0, %v794
        %v796 = vpop.f32.mrf.mxu0
        %v797 = vadd.f32 0.0, %v796
        %798 = vmatmul.bf16.gmra.mxu0 %v666
        %v799 = vpop.f32.mrf.mxu0
        %v800 = vadd.f32 0.0, %v799
        %v801 = vpop.f32.mrf.mxu0
        %v802 = vadd.f32 0.0, %v801
        %803 = vmatmul.bf16.gmra.mxu0 %v667
        %v804 = vpop.f32.mrf.mxu0
        %v805 = vadd.f32 0.0, %v804
        %v806 = vpop.f32.mrf.mxu0
        %v807 = vadd.f32 0.0, %v806
        %808 = vmatmul.bf16.gmra.mxu0 %v668
        %v809 = vpop.f32.mrf.mxu0
        %v810 = vadd.f32 0.0, %v809
        %v811 = vpop.f32.mrf.mxu0
        %v812 = vadd.f32 0.0, %v811
        %813 = vmatmul.bf16.gmra.mxu0 %v669
        %v814 = vpop.f32.mrf.mxu0
        %v815 = vadd.f32 0.0, %v814
        %v816 = vpop.f32.mrf.mxu0
        %v817 = vadd.f32 0.0, %v816
        %818 = vmatmul.bf16.gmra.mxu0 %v670
        %v819 = vpop.f32.mrf.mxu0
        %v820 = vadd.f32 0.0, %v819
        %v821 = vpop.f32.mrf.mxu0
        %v822 = vadd.f32 0.0, %v821
        %823 = vdwg.mxu0
        %v840 = vunpack.c.l.b16 %v607
        %v841 = vunpack.c.l.b16 %v608
        %v842 = vunpack.c.l.b16 %v609
        %v843 = vunpack.c.l.b16 %v610
        %v844 = vunpack.c.l.b16 %v611
        %v845 = vunpack.c.l.b16 %v612
        %v846 = vunpack.c.l.b16 %v613
        %v847 = vunpack.c.l.b16 %v614
        %v848 = vunpack.c.l.b16 %v615
        %v849 = vunpack.c.l.b16 %v616
        %v850 = vunpack.c.l.b16 %v617
        %v851 = vunpack.c.l.b16 %v618
        %v852 = vunpack.c.l.b16 %v619
        %v853 = vunpack.c.l.b16 %v620
        %v854 = vunpack.c.l.b16 %v621
        %v855 = vunpack.c.l.b16 %v622
        %v856 = vpack.c.b16 %v841, %v840
        %v857 = vpack.c.b16 %v843, %v842
        %v858 = vpack.c.b16 %v845, %v844
        %v859 = vpack.c.b16 %v847, %v846
        %v860 = vpack.c.b16 %v849, %v848
        %v861 = vpack.c.b16 %v851, %v850
        %v862 = vpack.c.b16 %v853, %v852
        %v863 = vpack.c.b16 %v855, %v854
        %872 = vmatpush.bf16.msra.mxu0 %v863
        %873 = vmatpush.bf16.msra.mxu0 %v862
        %874 = vmatpush.bf16.msra.mxu0 %v861
        %875 = vmatpush.bf16.msra.mxu0 %v860
        %876 = vmatpush.bf16.msra.mxu0 %v859
        %877 = vmatpush.bf16.msra.mxu0 %v858
        %878 = vmatpush.bf16.msra.mxu0 %v857
        %879 = vmatpush.bf16.msra.mxu0 %v856
        %880 = vmatmul.bf16.gmra.mxu0 %v591
        %v881 = vpop.f32.mrf.mxu0
        %v882 = vadd.f32 %v745, %v881
        %v883 = vpop.f32.mrf.mxu0
        %v884 = vadd.f32 %v747, %v883
        %885 = vmatmul.bf16.gmra.mxu0 %v592
        %v886 = vpop.f32.mrf.mxu0
        %v887 = vadd.f32 %v750, %v886
        %v888 = vpop.f32.mrf.mxu0
        %v889 = vadd.f32 %v752, %v888
        %890 = vmatmul.bf16.gmra.mxu0 %v593
        %v891 = vpop.f32.mrf.mxu0
        %v892 = vadd.f32 %v755, %v891
        %v893 = vpop.f32.mrf.mxu0
        %v894 = vadd.f32 %v757, %v893
        %895 = vmatmul.bf16.gmra.mxu0 %v594
        %v896 = vpop.f32.mrf.mxu0
        %v897 = vadd.f32 %v760, %v896
        %v898 = vpop.f32.mrf.mxu0
        %v899 = vadd.f32 %v762, %v898
        %900 = vmatmul.bf16.gmra.mxu0 %v595
        %v901 = vpop.f32.mrf.mxu0
        %v902 = vadd.f32 %v765, %v901
        %v903 = vpop.f32.mrf.mxu0
        %v904 = vadd.f32 %v767, %v903
        %905 = vmatmul.bf16.gmra.mxu0 %v596
        %v906 = vpop.f32.mrf.mxu0
        %v907 = vadd.f32 %v770, %v906
        %v908 = vpop.f32.mrf.mxu0
        %v909 = vadd.f32 %v772, %v908
        %910 = vmatmul.bf16.gmra.mxu0 %v597
        %v911 = vpop.f32.mrf.mxu0
        %v912 = vadd.f32 %v775, %v911
        %v913 = vpop.f32.mrf.mxu0
        %v914 = vadd.f32 %v777, %v913
        %915 = vmatmul.bf16.gmra.mxu0 %v598
        %v916 = vpop.f32.mrf.mxu0
        %v917 = vadd.f32 %v780, %v916
        %v918 = vpop.f32.mrf.mxu0
        %v919 = vadd.f32 %v782, %v918
        %920 = vmatmul.bf16.gmra.mxu0 %v599
        %v921 = vpop.f32.mrf.mxu0
        %v922 = vadd.f32 %v785, %v921
        %v923 = vpop.f32.mrf.mxu0
        %v924 = vadd.f32 %v787, %v923
        %925 = vmatmul.bf16.gmra.mxu0 %v600
        %v926 = vpop.f32.mrf.mxu0
        %v927 = vadd.f32 %v790, %v926
        %v928 = vpop.f32.mrf.mxu0
        %v929 = vadd.f32 %v792, %v928
        %930 = vmatmul.bf16.gmra.mxu0 %v601
        %v931 = vpop.f32.mrf.mxu0
        %v932 = vadd.f32 %v795, %v931
        %v933 = vpop.f32.mrf.mxu0
        %v934 = vadd.f32 %v797, %v933
        %935 = vmatmul.bf16.gmra.mxu0 %v602
        %v936 = vpop.f32.mrf.mxu0
        %v937 = vadd.f32 %v800, %v936
        %v938 = vpop.f32.mrf.mxu0
        %v939 = vadd.f32 %v802, %v938
        %940 = vmatmul.bf16.gmra.mxu0 %v603
        %v941 = vpop.f32.mrf.mxu0
        %v942 = vadd.f32 %v805, %v941
        %v943 = vpop.f32.mrf.mxu0
        %v944 = vadd.f32 %v807, %v943
        %945 = vmatmul.bf16.gmra.mxu0 %v604
        %v946 = vpop.f32.mrf.mxu0
        %v947 = vadd.f32 %v810, %v946
        %v948 = vpop.f32.mrf.mxu0
        %v949 = vadd.f32 %v812, %v948
        %950 = vmatmul.bf16.gmra.mxu0 %v605
        %v951 = vpop.f32.mrf.mxu0
        %v952 = vadd.f32 %v815, %v951
        %v953 = vpop.f32.mrf.mxu0
        %v954 = vadd.f32 %v817, %v953
        %955 = vmatmul.bf16.gmra.mxu0 %v606
        %v956 = vpop.f32.mrf.mxu0
        %v957 = vadd.f32 %v820, %v956
        %v958 = vpop.f32.mrf.mxu0
        %v959 = vadd.f32 %v822, %v958
        %960 = vdwg.mxu0
        %v961 = vld [vmem:[#allocation2 + $0x2] sm:$0xff]
        %v962 = vld [vmem:[#allocation2 + $0xa] sm:$0xff]
        %v963 = vld [vmem:[#allocation2 + $0x1a] sm:$0xff]
        %v964 = vld [vmem:[#allocation2 + $0x22] sm:$0xff]
        %v965 = vld [vmem:[#allocation2 + $0x32] sm:$0xff]
        %v966 = vld [vmem:[#allocation2 + $0x3a] sm:$0xff]
        %v967 = vld [vmem:[#allocation2 + $0x4a] sm:$0xff]
        %v968 = vld [vmem:[#allocation2 + $0x52] sm:$0xff]
        %v969 = vld [vmem:[#allocation2 + $0x62] sm:$0xff]
        %v970 = vld [vmem:[#allocation2 + $0x6a] sm:$0xff]
        %v971 = vld [vmem:[#allocation2 + $0x7a] sm:$0xff]
        %v972 = vld [vmem:[#allocation2 + $0x82] sm:$0xff]
        %v973 = vld [vmem:[#allocation2 + $0x92] sm:$0xff]
        %v974 = vld [vmem:[#allocation2 + $0x9a] sm:$0xff]
        %v975 = vld [vmem:[#allocation2 + $0xaa] sm:$0xff]
        %v976 = vld [vmem:[#allocation2 + $0xb2] sm:$0xff]
        %v977 = vld [vmem:[#allocation2 + $0xc2] sm:$0xff]
        %v978 = vld [vmem:[#allocation2 + $0xca] sm:$0xff]
        %v979 = vld [vmem:[#allocation2 + $0xda] sm:$0xff]
        %v980 = vld [vmem:[#allocation2 + $0xe2] sm:$0xff]
        %v981 = vld [vmem:[#allocation2 + $0xf2] sm:$0xff]
        %v982 = vld [vmem:[#allocation2 + $0xfa] sm:$0xff]
        %v983 = vld [vmem:[#allocation2 + $0x10a] sm:$0xff]
        %v984 = vld [vmem:[#allocation2 + $0x112] sm:$0xff]
        %v985 = vld [vmem:[#allocation2 + $0x122] sm:$0xff]
        %v986 = vld [vmem:[#allocation2 + $0x12a] sm:$0xff]
        %v987 = vld [vmem:[#allocation2 + $0x13a] sm:$0xff]
        %v988 = vld [vmem:[#allocation2 + $0x142] sm:$0xff]
        %v989 = vld [vmem:[#allocation2 + $0x152] sm:$0xff]
        %v990 = vld [vmem:[#allocation2 + $0x15a] sm:$0xff]
        %v991 = vld [vmem:[#allocation2 + $0x16a] sm:$0xff]
        %v992 = vld [vmem:[#allocation2 + $0x172] sm:$0xff]
        %v993 = vpack.c.bf16 %v962, %v961
        %v994 = vpack.c.bf16 %v964, %v963
        %v995 = vpack.c.bf16 %v966, %v965
        %v996 = vpack.c.bf16 %v968, %v967
        %v997 = vpack.c.bf16 %v970, %v969
        %v998 = vpack.c.bf16 %v972, %v971
        %v999 = vpack.c.bf16 %v974, %v973
        %v1000 = vpack.c.bf16 %v976, %v975
        %v1001 = vpack.c.bf16 %v978, %v977
        %v1002 = vpack.c.bf16 %v980, %v979
        %v1003 = vpack.c.bf16 %v982, %v981
        %v1004 = vpack.c.bf16 %v984, %v983
        %v1005 = vpack.c.bf16 %v986, %v985
        %v1006 = vpack.c.bf16 %v988, %v987
        %v1007 = vpack.c.bf16 %v990, %v989
        %v1008 = vpack.c.bf16 %v992, %v991
        %v1009 = vld [vmem:[#allocation3 + $0x80] sm:$0xf]
        %v1010 = vld [vmem:[#allocation3 + $0x84] sm:$0xf]
        %v1011 = vld [vmem:[#allocation3 + $0x88] sm:$0xf]
        %v1012 = vld [vmem:[#allocation3 + $0x8c] sm:$0xf]
        %v1013 = vld [vmem:[#allocation3 + $0x90] sm:$0xf]
        %v1014 = vld [vmem:[#allocation3 + $0x94] sm:$0xf]
        %v1015 = vld [vmem:[#allocation3 + $0x98] sm:$0xf]
        %v1016 = vld [vmem:[#allocation3 + $0x9c] sm:$0xf]
        %v1017 = vld [vmem:[#allocation3 + $0xa0] sm:$0xf]
        %v1018 = vld [vmem:[#allocation3 + $0xa4] sm:$0xf]
        %v1019 = vld [vmem:[#allocation3 + $0xa8] sm:$0xf]
        %v1020 = vld [vmem:[#allocation3 + $0xac] sm:$0xf]
        %v1021 = vld [vmem:[#allocation3 + $0xb0] sm:$0xf]
        %v1022 = vld [vmem:[#allocation3 + $0xb4] sm:$0xf]
        %v1023 = vld [vmem:[#allocation3 + $0xb8] sm:$0xf]
        %v1024 = vld [vmem:[#allocation3 + $0xbc] sm:$0xf]
        %v1041 = vunpack.c.l.b16 %v1009
        %v1042 = vunpack.c.l.b16 %v1010
        %v1043 = vunpack.c.l.b16 %v1011
        %v1044 = vunpack.c.l.b16 %v1012
        %v1045 = vunpack.c.l.b16 %v1013
        %v1046 = vunpack.c.l.b16 %v1014
        %v1047 = vunpack.c.l.b16 %v1015
        %v1048 = vunpack.c.l.b16 %v1016
        %v1049 = vunpack.c.l.b16 %v1017
        %v1050 = vunpack.c.l.b16 %v1018
        %v1051 = vunpack.c.l.b16 %v1019
        %v1052 = vunpack.c.l.b16 %v1020
        %v1053 = vunpack.c.l.b16 %v1021
        %v1054 = vunpack.c.l.b16 %v1022
        %v1055 = vunpack.c.l.b16 %v1023
        %v1056 = vunpack.c.l.b16 %v1024
        %v1057 = vpack.c.b16 %v1042, %v1041
        %v1058 = vpack.c.b16 %v1044, %v1043
        %v1059 = vpack.c.b16 %v1046, %v1045
        %v1060 = vpack.c.b16 %v1048, %v1047
        %v1061 = vpack.c.b16 %v1050, %v1049
        %v1062 = vpack.c.b16 %v1052, %v1051
        %v1063 = vpack.c.b16 %v1054, %v1053
        %v1064 = vpack.c.b16 %v1056, %v1055
        %1073 = vmatpush.bf16.msra.mxu0 %v1064
        %1074 = vmatpush.bf16.msra.mxu0 %v1063
        %1075 = vmatpush.bf16.msra.mxu0 %v1062
        %1076 = vmatpush.bf16.msra.mxu0 %v1061
        %1077 = vmatpush.bf16.msra.mxu0 %v1060
        %1078 = vmatpush.bf16.msra.mxu0 %v1059
        %1079 = vmatpush.bf16.msra.mxu0 %v1058
        %1080 = vmatpush.bf16.msra.mxu0 %v1057
        %1081 = vmatmul.bf16.gmra.mxu0 %v993
        %v1082 = vpop.f32.mrf.mxu0
        %v1083 = vadd.f32 0.0, %v1082
        %v1084 = vpop.f32.mrf.mxu0
        %v1085 = vadd.f32 0.0, %v1084
        %1086 = vmatmul.bf16.gmra.mxu0 %v994
        %v1087 = vpop.f32.mrf.mxu0
        %v1088 = vadd.f32 0.0, %v1087
        %v1089 = vpop.f32.mrf.mxu0
        %v1090 = vadd.f32 0.0, %v1089
        %1091 = vmatmul.bf16.gmra.mxu0 %v995
        %v1092 = vpop.f32.mrf.mxu0
        %v1093 = vadd.f32 0.0, %v1092
        %v1094 = vpop.f32.mrf.mxu0
        %v1095 = vadd.f32 0.0, %v1094
        %1096 = vmatmul.bf16.gmra.mxu0 %v996
        %v1097 = vpop.f32.mrf.mxu0
        %v1098 = vadd.f32 0.0, %v1097
        %v1099 = vpop.f32.mrf.mxu0
        %v1100 = vadd.f32 0.0, %v1099
        %1101 = vmatmul.bf16.gmra.mxu0 %v997
        %v1102 = vpop.f32.mrf.mxu0
        %v1103 = vadd.f32 0.0, %v1102
        %v1104 = vpop.f32.mrf.mxu0
        %v1105 = vadd.f32 0.0, %v1104
        %1106 = vmatmul.bf16.gmra.mxu0 %v998
        %v1107 = vpop.f32.mrf.mxu0
        %v1108 = vadd.f32 0.0, %v1107
        %v1109 = vpop.f32.mrf.mxu0
        %v1110 = vadd.f32 0.0, %v1109
        %1111 = vmatmul.bf16.gmra.mxu0 %v999
        %v1112 = vpop.f32.mrf.mxu0
        %v1113 = vadd.f32 0.0, %v1112
        %v1114 = vpop.f32.mrf.mxu0
        %v1115 = vadd.f32 0.0, %v1114
        %1116 = vmatmul.bf16.gmra.mxu0 %v1000
        %v1117 = vpop.f32.mrf.mxu0
        %v1118 = vadd.f32 0.0, %v1117
        %v1119 = vpop.f32.mrf.mxu0
        %v1120 = vadd.f32 0.0, %v1119
        %1121 = vmatmul.bf16.gmra.mxu0 %v1001
        %v1122 = vpop.f32.mrf.mxu0
        %v1123 = vadd.f32 0.0, %v1122
        %v1124 = vpop.f32.mrf.mxu0
        %v1125 = vadd.f32 0.0, %v1124
        %1126 = vmatmul.bf16.gmra.mxu0 %v1002
        %v1127 = vpop.f32.mrf.mxu0
        %v1128 = vadd.f32 0.0, %v1127
        %v1129 = vpop.f32.mrf.mxu0
        %v1130 = vadd.f32 0.0, %v1129
        %1131 = vmatmul.bf16.gmra.mxu0 %v1003
        %v1132 = vpop.f32.mrf.mxu0
        %v1133 = vadd.f32 0.0, %v1132
        %v1134 = vpop.f32.mrf.mxu0
        %v1135 = vadd.f32 0.0, %v1134
        %1136 = vmatmul.bf16.gmra.mxu0 %v1004
        %v1137 = vpop.f32.mrf.mxu0
        %v1138 = vadd.f32 0.0, %v1137
        %v1139 = vpop.f32.mrf.mxu0
        %v1140 = vadd.f32 0.0, %v1139
        %1141 = vmatmul.bf16.gmra.mxu0 %v1005
        %v1142 = vpop.f32.mrf.mxu0
        %v1143 = vadd.f32 0.0, %v1142
        %v1144 = vpop.f32.mrf.mxu0
        %v1145 = vadd.f32 0.0, %v1144
        %1146 = vmatmul.bf16.gmra.mxu0 %v1006
        %v1147 = vpop.f32.mrf.mxu0
        %v1148 = vadd.f32 0.0, %v1147
        %v1149 = vpop.f32.mrf.mxu0
        %v1150 = vadd.f32 0.0, %v1149
        %1151 = vmatmul.bf16.gmra.mxu0 %v1007
        %v1152 = vpop.f32.mrf.mxu0
        %v1153 = vadd.f32 0.0, %v1152
        %v1154 = vpop.f32.mrf.mxu0
        %v1155 = vadd.f32 0.0, %v1154
        %1156 = vmatmul.bf16.gmra.mxu0 %v1008
        %v1157 = vpop.f32.mrf.mxu0
        %v1158 = vadd.f32 0.0, %v1157
        %v1159 = vpop.f32.mrf.mxu0
        %v1160 = vadd.f32 0.0, %v1159
        %1161 = vdwg.mxu0
        %v1162 = vadd.f32 %v882, %v1083
        %v1163 = vadd.f32 %v884, %v1085
        %v1164 = vadd.f32 %v887, %v1088
        %v1165 = vadd.f32 %v889, %v1090
        %v1166 = vadd.f32 %v892, %v1093
        %v1167 = vadd.f32 %v894, %v1095
        %v1168 = vadd.f32 %v897, %v1098
        %v1169 = vadd.f32 %v899, %v1100
        %v1170 = vadd.f32 %v902, %v1103
        %v1171 = vadd.f32 %v904, %v1105
        %v1172 = vadd.f32 %v907, %v1108
        %v1173 = vadd.f32 %v909, %v1110
        %v1174 = vadd.f32 %v912, %v1113
        %v1175 = vadd.f32 %v914, %v1115
        %v1176 = vadd.f32 %v917, %v1118
        %v1177 = vadd.f32 %v919, %v1120
        %v1178 = vadd.f32 %v922, %v1123
        %v1179 = vadd.f32 %v924, %v1125
        %v1180 = vadd.f32 %v927, %v1128
        %v1181 = vadd.f32 %v929, %v1130
        %v1182 = vadd.f32 %v932, %v1133
        %v1183 = vadd.f32 %v934, %v1135
        %v1184 = vadd.f32 %v937, %v1138
        %v1185 = vadd.f32 %v939, %v1140
        %v1186 = vadd.f32 %v942, %v1143
        %v1187 = vadd.f32 %v944, %v1145
        %v1188 = vadd.f32 %v947, %v1148
        %v1189 = vadd.f32 %v949, %v1150
        %v1190 = vadd.f32 %v952, %v1153
        %v1191 = vadd.f32 %v954, %v1155
        %v1192 = vadd.f32 %v957, %v1158
        %v1193 = vadd.f32 %v959, %v1160
        %v1194 = vld [vmem:[%s526] sm:$0xff]
        %v1195 = vld [vmem:[%s526 + $0x8] sm:$0xff]
        %v1196 = vld [vmem:[%s526 + $0x18] sm:$0xff]
        %v1197 = vld [vmem:[%s526 + $0x20] sm:$0xff]
        %v1198 = vld [vmem:[%s526 + $0x30] sm:$0xff]
        %v1199 = vld [vmem:[%s526 + $0x38] sm:$0xff]
        %v1200 = vld [vmem:[%s526 + $0x48] sm:$0xff]
        %v1201 = vld [vmem:[%s526 + $0x50] sm:$0xff]
        %v1202 = vld [vmem:[%s526 + $0x60] sm:$0xff]
        %v1203 = vld [vmem:[%s526 + $0x68] sm:$0xff]
        %v1204 = vld [vmem:[%s526 + $0x78] sm:$0xff]
        %v1205 = vld [vmem:[%s526 + $0x80] sm:$0xff]
        %v1206 = vld [vmem:[%s526 + $0x90] sm:$0xff]
        %v1207 = vld [vmem:[%s526 + $0x98] sm:$0xff]
        %v1208 = vld [vmem:[%s526 + $0xa8] sm:$0xff]
        %v1209 = vld [vmem:[%s526 + $0xb0] sm:$0xff]
        %v1210 = vld [vmem:[%s526 + $0xc0] sm:$0xff]
        %v1211 = vld [vmem:[%s526 + $0xc8] sm:$0xff]
        %v1212 = vld [vmem:[%s526 + $0xd8] sm:$0xff]
        %v1213 = vld [vmem:[%s526 + $0xe0] sm:$0xff]
        %v1214 = vld [vmem:[%s526 + $0xf0] sm:$0xff]
        %v1215 = vld [vmem:[%s526 + $0xf8] sm:$0xff]
        %v1216 = vld [vmem:[%s526 + $0x108] sm:$0xff]
        %v1217 = vld [vmem:[%s526 + $0x110] sm:$0xff]
        %v1218 = vld [vmem:[%s526 + $0x120] sm:$0xff]
        %v1219 = vld [vmem:[%s526 + $0x128] sm:$0xff]
        %v1220 = vld [vmem:[%s526 + $0x138] sm:$0xff]
        %v1221 = vld [vmem:[%s526 + $0x140] sm:$0xff]
        %v1222 = vld [vmem:[%s526 + $0x150] sm:$0xff]
        %v1223 = vld [vmem:[%s526 + $0x158] sm:$0xff]
        %v1224 = vld [vmem:[%s526 + $0x168] sm:$0xff]
        %v1225 = vld [vmem:[%s526 + $0x170] sm:$0xff]
        %v1226 = vpack.c.bf16 %v1195, %v1194
        %v1227 = vpack.c.bf16 %v1197, %v1196
        %v1228 = vpack.c.bf16 %v1199, %v1198
        %v1229 = vpack.c.bf16 %v1201, %v1200
        %v1230 = vpack.c.bf16 %v1203, %v1202
        %v1231 = vpack.c.bf16 %v1205, %v1204
        %v1232 = vpack.c.bf16 %v1207, %v1206
        %v1233 = vpack.c.bf16 %v1209, %v1208
        %v1234 = vpack.c.bf16 %v1211, %v1210
        %v1235 = vpack.c.bf16 %v1213, %v1212
        %v1236 = vpack.c.bf16 %v1215, %v1214
        %v1237 = vpack.c.bf16 %v1217, %v1216
        %v1238 = vpack.c.bf16 %v1219, %v1218
        %v1239 = vpack.c.bf16 %v1221, %v1220
        %v1240 = vpack.c.bf16 %v1223, %v1222
        %v1241 = vpack.c.bf16 %v1225, %v1224
        %v1242 = vld [vmem:[#allocation3 + $0xc0] sm:$0xf]
        %v1243 = vld [vmem:[#allocation3 + $0xc4] sm:$0xf]
        %v1244 = vld [vmem:[#allocation3 + $0xc8] sm:$0xf]
        %v1245 = vld [vmem:[#allocation3 + $0xcc] sm:$0xf]
        %v1246 = vld [vmem:[#allocation3 + $0xd0] sm:$0xf]
        %v1247 = vld [vmem:[#allocation3 + $0xd4] sm:$0xf]
        %v1248 = vld [vmem:[#allocation3 + $0xd8] sm:$0xf]
        %v1249 = vld [vmem:[#allocation3 + $0xdc] sm:$0xf]
        %v1250 = vld [vmem:[#allocation3 + $0xe0] sm:$0xf]
        %v1251 = vld [vmem:[#allocation3 + $0xe4] sm:$0xf]
        %v1252 = vld [vmem:[#allocation3 + $0xe8] sm:$0xf]
        %v1253 = vld [vmem:[#allocation3 + $0xec] sm:$0xf]
        %v1254 = vld [vmem:[#allocation3 + $0xf0] sm:$0xf]
        %v1255 = vld [vmem:[#allocation3 + $0xf4] sm:$0xf]
        %v1256 = vld [vmem:[#allocation3 + $0xf8] sm:$0xf]
        %v1257 = vld [vmem:[#allocation3 + $0xfc] sm:$0xf]
        %v1274 = vunpack.c.l.b16 %v1242
        %v1275 = vunpack.c.l.b16 %v1243
        %v1276 = vunpack.c.l.b16 %v1244
        %v1277 = vunpack.c.l.b16 %v1245
        %v1278 = vunpack.c.l.b16 %v1246
        %v1279 = vunpack.c.l.b16 %v1247
        %v1280 = vunpack.c.l.b16 %v1248
        %v1281 = vunpack.c.l.b16 %v1249
        %v1282 = vunpack.c.l.b16 %v1250
        %v1283 = vunpack.c.l.b16 %v1251
        %v1284 = vunpack.c.l.b16 %v1252
        %v1285 = vunpack.c.l.b16 %v1253
        %v1286 = vunpack.c.l.b16 %v1254
        %v1287 = vunpack.c.l.b16 %v1255
        %v1288 = vunpack.c.l.b16 %v1256
        %v1289 = vunpack.c.l.b16 %v1257
        %v1290 = vpack.c.b16 %v1275, %v1274
        %v1291 = vpack.c.b16 %v1277, %v1276
        %v1292 = vpack.c.b16 %v1279, %v1278
        %v1293 = vpack.c.b16 %v1281, %v1280
        %v1294 = vpack.c.b16 %v1283, %v1282
        %v1295 = vpack.c.b16 %v1285, %v1284
        %v1296 = vpack.c.b16 %v1287, %v1286
        %v1297 = vpack.c.b16 %v1289, %v1288
        %1306 = vmatpush.bf16.msra.mxu0 %v1297
        %1307 = vmatpush.bf16.msra.mxu0 %v1296
        %1308 = vmatpush.bf16.msra.mxu0 %v1295
        %1309 = vmatpush.bf16.msra.mxu0 %v1294
        %1310 = vmatpush.bf16.msra.mxu0 %v1293
        %1311 = vmatpush.bf16.msra.mxu0 %v1292
        %1312 = vmatpush.bf16.msra.mxu0 %v1291
        %1313 = vmatpush.bf16.msra.mxu0 %v1290
        %1314 = vmatmul.bf16.gmra.mxu0 %v1226
        %v1315 = vpop.f32.mrf.mxu0
        %v1316 = vadd.f32 0.0, %v1315
        %v1317 = vpop.f32.mrf.mxu0
        %v1318 = vadd.f32 0.0, %v1317
        %1319 = vmatmul.bf16.gmra.mxu0 %v1227
        %v1320 = vpop.f32.mrf.mxu0
        %v1321 = vadd.f32 0.0, %v1320
        %v1322 = vpop.f32.mrf.mxu0
        %v1323 = vadd.f32 0.0, %v1322
        %1324 = vmatmul.bf16.gmra.mxu0 %v1228
        %v1325 = vpop.f32.mrf.mxu0
        %v1326 = vadd.f32 0.0, %v1325
        %v1327 = vpop.f32.mrf.mxu0
        %v1328 = vadd.f32 0.0, %v1327
        %1329 = vmatmul.bf16.gmra.mxu0 %v1229
        %v1330 = vpop.f32.mrf.mxu0
        %v1331 = vadd.f32 0.0, %v1330
        %v1332 = vpop.f32.mrf.mxu0
        %v1333 = vadd.f32 0.0, %v1332
        %1334 = vmatmul.bf16.gmra.mxu0 %v1230
        %v1335 = vpop.f32.mrf.mxu0
        %v1336 = vadd.f32 0.0, %v1335
        %v1337 = vpop.f32.mrf.mxu0
        %v1338 = vadd.f32 0.0, %v1337
        %1339 = vmatmul.bf16.gmra.mxu0 %v1231
        %v1340 = vpop.f32.mrf.mxu0
        %v1341 = vadd.f32 0.0, %v1340
        %v1342 = vpop.f32.mrf.mxu0
        %v1343 = vadd.f32 0.0, %v1342
        %1344 = vmatmul.bf16.gmra.mxu0 %v1232
        %v1345 = vpop.f32.mrf.mxu0
        %v1346 = vadd.f32 0.0, %v1345
        %v1347 = vpop.f32.mrf.mxu0
        %v1348 = vadd.f32 0.0, %v1347
        %1349 = vmatmul.bf16.gmra.mxu0 %v1233
        %v1350 = vpop.f32.mrf.mxu0
        %v1351 = vadd.f32 0.0, %v1350
        %v1352 = vpop.f32.mrf.mxu0
        %v1353 = vadd.f32 0.0, %v1352
        %1354 = vmatmul.bf16.gmra.mxu0 %v1234
        %v1355 = vpop.f32.mrf.mxu0
        %v1356 = vadd.f32 0.0, %v1355
        %v1357 = vpop.f32.mrf.mxu0
        %v1358 = vadd.f32 0.0, %v1357
        %1359 = vmatmul.bf16.gmra.mxu0 %v1235
        %v1360 = vpop.f32.mrf.mxu0
        %v1361 = vadd.f32 0.0, %v1360
        %v1362 = vpop.f32.mrf.mxu0
        %v1363 = vadd.f32 0.0, %v1362
        %1364 = vmatmul.bf16.gmra.mxu0 %v1236
        %v1365 = vpop.f32.mrf.mxu0
        %v1366 = vadd.f32 0.0, %v1365
        %v1367 = vpop.f32.mrf.mxu0
        %v1368 = vadd.f32 0.0, %v1367
        %1369 = vmatmul.bf16.gmra.mxu0 %v1237
        %v1370 = vpop.f32.mrf.mxu0
        %v1371 = vadd.f32 0.0, %v1370
        %v1372 = vpop.f32.mrf.mxu0
        %v1373 = vadd.f32 0.0, %v1372
        %1374 = vmatmul.bf16.gmra.mxu0 %v1238
        %v1375 = vpop.f32.mrf.mxu0
        %v1376 = vadd.f32 0.0, %v1375
        %v1377 = vpop.f32.mrf.mxu0
        %v1378 = vadd.f32 0.0, %v1377
        %1379 = vmatmul.bf16.gmra.mxu0 %v1239
        %v1380 = vpop.f32.mrf.mxu0
        %v1381 = vadd.f32 0.0, %v1380
        %v1382 = vpop.f32.mrf.mxu0
        %v1383 = vadd.f32 0.0, %v1382
        %1384 = vmatmul.bf16.gmra.mxu0 %v1240
        %v1385 = vpop.f32.mrf.mxu0
        %v1386 = vadd.f32 0.0, %v1385
        %v1387 = vpop.f32.mrf.mxu0
        %v1388 = vadd.f32 0.0, %v1387
        %1389 = vmatmul.bf16.gmra.mxu0 %v1241
        %v1390 = vpop.f32.mrf.mxu0
        %v1391 = vadd.f32 0.0, %v1390
        %v1392 = vpop.f32.mrf.mxu0
        %v1393 = vadd.f32 0.0, %v1392
        %1394 = vdwg.mxu0
        %v1395 = vadd.f32 %v1162, %v1316
        %v1396 = vadd.f32 %v1163, %v1318
        %v1397 = vadd.f32 %v1164, %v1321
        %v1398 = vadd.f32 %v1165, %v1323
        %v1399 = vadd.f32 %v1166, %v1326
        %v1400 = vadd.f32 %v1167, %v1328
        %v1401 = vadd.f32 %v1168, %v1331
        %v1402 = vadd.f32 %v1169, %v1333
        %v1403 = vadd.f32 %v1170, %v1336
        %v1404 = vadd.f32 %v1171, %v1338
        %v1405 = vadd.f32 %v1172, %v1341
        %v1406 = vadd.f32 %v1173, %v1343
        %v1407 = vadd.f32 %v1174, %v1346
        %v1408 = vadd.f32 %v1175, %v1348
        %v1409 = vadd.f32 %v1176, %v1351
        %v1410 = vadd.f32 %v1177, %v1353
        %v1411 = vadd.f32 %v1178, %v1356
        %v1412 = vadd.f32 %v1179, %v1358
        %v1413 = vadd.f32 %v1180, %v1361
        %v1414 = vadd.f32 %v1181, %v1363
        %v1415 = vadd.f32 %v1182, %v1366
        %v1416 = vadd.f32 %v1183, %v1368
        %v1417 = vadd.f32 %v1184, %v1371
        %v1418 = vadd.f32 %v1185, %v1373
        %v1419 = vadd.f32 %v1186, %v1376
        %v1420 = vadd.f32 %v1187, %v1378
        %v1421 = vadd.f32 %v1188, %v1381
        %v1422 = vadd.f32 %v1189, %v1383
        %v1423 = vadd.f32 %v1190, %v1386
        %v1424 = vadd.f32 %v1191, %v1388
        %v1425 = vadd.f32 %v1192, %v1391
        %v1426 = vadd.f32 %v1193, %v1393
        %v1427 = vld [vmem:[%s526 + $0x1] sm:$0xff]
        %v1428 = vld [vmem:[%s526 + $0x9] sm:$0xff]
        %v1429 = vld [vmem:[%s526 + $0x19] sm:$0xff]
        %v1430 = vld [vmem:[%s526 + $0x21] sm:$0xff]
        %v1431 = vld [vmem:[%s526 + $0x31] sm:$0xff]
        %v1432 = vld [vmem:[%s526 + $0x39] sm:$0xff]
        %v1433 = vld [vmem:[%s526 + $0x49] sm:$0xff]
        %v1434 = vld [vmem:[%s526 + $0x51] sm:$0xff]
        %v1435 = vld [vmem:[%s526 + $0x61] sm:$0xff]
        %v1436 = vld [vmem:[%s526 + $0x69] sm:$0xff]
        %v1437 = vld [vmem:[%s526 + $0x79] sm:$0xff]
        %v1438 = vld [vmem:[%s526 + $0x81] sm:$0xff]
        %v1439 = vld [vmem:[%s526 + $0x91] sm:$0xff]
        %v1440 = vld [vmem:[%s526 + $0x99] sm:$0xff]
        %v1441 = vld [vmem:[%s526 + $0xa9] sm:$0xff]
        %v1442 = vld [vmem:[%s526 + $0xb1] sm:$0xff]
        %v1443 = vld [vmem:[%s526 + $0xc1] sm:$0xff]
        %v1444 = vld [vmem:[%s526 + $0xc9] sm:$0xff]
        %v1445 = vld [vmem:[%s526 + $0xd9] sm:$0xff]
        %v1446 = vld [vmem:[%s526 + $0xe1] sm:$0xff]
        %v1447 = vld [vmem:[%s526 + $0xf1] sm:$0xff]
        %v1448 = vld [vmem:[%s526 + $0xf9] sm:$0xff]
        %v1449 = vld [vmem:[%s526 + $0x109] sm:$0xff]
        %v1450 = vld [vmem:[%s526 + $0x111] sm:$0xff]
        %v1451 = vld [vmem:[%s526 + $0x121] sm:$0xff]
        %v1452 = vld [vmem:[%s526 + $0x129] sm:$0xff]
        %v1453 = vld [vmem:[%s526 + $0x139] sm:$0xff]
        %v1454 = vld [vmem:[%s526 + $0x141] sm:$0xff]
        %v1455 = vld [vmem:[%s526 + $0x151] sm:$0xff]
        %v1456 = vld [vmem:[%s526 + $0x159] sm:$0xff]
        %v1457 = vld [vmem:[%s526 + $0x169] sm:$0xff]
        %v1458 = vld [vmem:[%s526 + $0x171] sm:$0xff]
        %v1459 = vpack.c.bf16 %v1428, %v1427
        %v1460 = vpack.c.bf16 %v1430, %v1429
        %v1461 = vpack.c.bf16 %v1432, %v1431
        %v1462 = vpack.c.bf16 %v1434, %v1433
        %v1463 = vpack.c.bf16 %v1436, %v1435
        %v1464 = vpack.c.bf16 %v1438, %v1437
        %v1465 = vpack.c.bf16 %v1440, %v1439
        %v1466 = vpack.c.bf16 %v1442, %v1441
        %v1467 = vpack.c.bf16 %v1444, %v1443
        %v1468 = vpack.c.bf16 %v1446, %v1445
        %v1469 = vpack.c.bf16 %v1448, %v1447
        %v1470 = vpack.c.bf16 %v1450, %v1449
        %v1471 = vpack.c.bf16 %v1452, %v1451
        %v1472 = vpack.c.bf16 %v1454, %v1453
        %v1473 = vpack.c.bf16 %v1456, %v1455
        %v1474 = vpack.c.bf16 %v1458, %v1457
        %v1475 = vld [vmem:[#allocation3 + $0x100] sm:$0xf]
        %v1476 = vld [vmem:[#allocation3 + $0x104] sm:$0xf]
        %v1477 = vld [vmem:[#allocation3 + $0x108] sm:$0xf]
        %v1478 = vld [vmem:[#allocation3 + $0x10c] sm:$0xf]
        %v1479 = vld [vmem:[#allocation3 + $0x110] sm:$0xf]
        %v1480 = vld [vmem:[#allocation3 + $0x114] sm:$0xf]
        %v1481 = vld [vmem:[#allocation3 + $0x118] sm:$0xf]
        %v1482 = vld [vmem:[#allocation3 + $0x11c] sm:$0xf]
        %v1483 = vld [vmem:[#allocation3 + $0x120] sm:$0xf]
        %v1484 = vld [vmem:[#allocation3 + $0x124] sm:$0xf]
        %v1485 = vld [vmem:[#allocation3 + $0x128] sm:$0xf]
        %v1486 = vld [vmem:[#allocation3 + $0x12c] sm:$0xf]
        %v1487 = vld [vmem:[#allocation3 + $0x130] sm:$0xf]
        %v1488 = vld [vmem:[#allocation3 + $0x134] sm:$0xf]
        %v1489 = vld [vmem:[#allocation3 + $0x138] sm:$0xf]
        %v1490 = vld [vmem:[#allocation3 + $0x13c] sm:$0xf]
        %v1507 = vunpack.c.l.b16 %v1475
        %v1508 = vunpack.c.l.b16 %v1476
        %v1509 = vunpack.c.l.b16 %v1477
        %v1510 = vunpack.c.l.b16 %v1478
        %v1511 = vunpack.c.l.b16 %v1479
        %v1512 = vunpack.c.l.b16 %v1480
        %v1513 = vunpack.c.l.b16 %v1481
        %v1514 = vunpack.c.l.b16 %v1482
        %v1515 = vunpack.c.l.b16 %v1483
        %v1516 = vunpack.c.l.b16 %v1484
        %v1517 = vunpack.c.l.b16 %v1485
        %v1518 = vunpack.c.l.b16 %v1486
        %v1519 = vunpack.c.l.b16 %v1487
        %v1520 = vunpack.c.l.b16 %v1488
        %v1521 = vunpack.c.l.b16 %v1489
        %v1522 = vunpack.c.l.b16 %v1490
        %v1523 = vpack.c.b16 %v1508, %v1507
        %v1524 = vpack.c.b16 %v1510, %v1509
        %v1525 = vpack.c.b16 %v1512, %v1511
        %v1526 = vpack.c.b16 %v1514, %v1513
        %v1527 = vpack.c.b16 %v1516, %v1515
        %v1528 = vpack.c.b16 %v1518, %v1517
        %v1529 = vpack.c.b16 %v1520, %v1519
        %v1530 = vpack.c.b16 %v1522, %v1521
        %1539 = vmatpush.bf16.msra.mxu0 %v1530
        %1540 = vmatpush.bf16.msra.mxu0 %v1529
        %1541 = vmatpush.bf16.msra.mxu0 %v1528
        %1542 = vmatpush.bf16.msra.mxu0 %v1527
        %1543 = vmatpush.bf16.msra.mxu0 %v1526
        %1544 = vmatpush.bf16.msra.mxu0 %v1525
        %1545 = vmatpush.bf16.msra.mxu0 %v1524
        %1546 = vmatpush.bf16.msra.mxu0 %v1523
        %1547 = vmatmul.bf16.gmra.mxu0 %v1459
        %v1548 = vpop.f32.mrf.mxu0
        %v1549 = vadd.f32 0.0, %v1548
        %v1550 = vpop.f32.mrf.mxu0
        %v1551 = vadd.f32 0.0, %v1550
        %1552 = vmatmul.bf16.gmra.mxu0 %v1460
        %v1553 = vpop.f32.mrf.mxu0
        %v1554 = vadd.f32 0.0, %v1553
        %v1555 = vpop.f32.mrf.mxu0
        %v1556 = vadd.f32 0.0, %v1555
        %1557 = vmatmul.bf16.gmra.mxu0 %v1461
        %v1558 = vpop.f32.mrf.mxu0
        %v1559 = vadd.f32 0.0, %v1558
        %v1560 = vpop.f32.mrf.mxu0
        %v1561 = vadd.f32 0.0, %v1560
        %1562 = vmatmul.bf16.gmra.mxu0 %v1462
        %v1563 = vpop.f32.mrf.mxu0
        %v1564 = vadd.f32 0.0, %v1563
        %v1565 = vpop.f32.mrf.mxu0
        %v1566 = vadd.f32 0.0, %v1565
        %1567 = vmatmul.bf16.gmra.mxu0 %v1463
        %v1568 = vpop.f32.mrf.mxu0
        %v1569 = vadd.f32 0.0, %v1568
        %v1570 = vpop.f32.mrf.mxu0
        %v1571 = vadd.f32 0.0, %v1570
        %1572 = vmatmul.bf16.gmra.mxu0 %v1464
        %v1573 = vpop.f32.mrf.mxu0
        %v1574 = vadd.f32 0.0, %v1573
        %v1575 = vpop.f32.mrf.mxu0
        %v1576 = vadd.f32 0.0, %v1575
        %1577 = vmatmul.bf16.gmra.mxu0 %v1465
        %v1578 = vpop.f32.mrf.mxu0
        %v1579 = vadd.f32 0.0, %v1578
        %v1580 = vpop.f32.mrf.mxu0
        %v1581 = vadd.f32 0.0, %v1580
        %1582 = vmatmul.bf16.gmra.mxu0 %v1466
        %v1583 = vpop.f32.mrf.mxu0
        %v1584 = vadd.f32 0.0, %v1583
        %v1585 = vpop.f32.mrf.mxu0
        %v1586 = vadd.f32 0.0, %v1585
        %1587 = vmatmul.bf16.gmra.mxu0 %v1467
        %v1588 = vpop.f32.mrf.mxu0
        %v1589 = vadd.f32 0.0, %v1588
        %v1590 = vpop.f32.mrf.mxu0
        %v1591 = vadd.f32 0.0, %v1590
        %1592 = vmatmul.bf16.gmra.mxu0 %v1468
        %v1593 = vpop.f32.mrf.mxu0
        %v1594 = vadd.f32 0.0, %v1593
        %v1595 = vpop.f32.mrf.mxu0
        %v1596 = vadd.f32 0.0, %v1595
        %1597 = vmatmul.bf16.gmra.mxu0 %v1469
        %v1598 = vpop.f32.mrf.mxu0
        %v1599 = vadd.f32 0.0, %v1598
        %v1600 = vpop.f32.mrf.mxu0
        %v1601 = vadd.f32 0.0, %v1600
        %1602 = vmatmul.bf16.gmra.mxu0 %v1470
        %v1603 = vpop.f32.mrf.mxu0
        %v1604 = vadd.f32 0.0, %v1603
        %v1605 = vpop.f32.mrf.mxu0
        %v1606 = vadd.f32 0.0, %v1605
        %1607 = vmatmul.bf16.gmra.mxu0 %v1471
        %v1608 = vpop.f32.mrf.mxu0
        %v1609 = vadd.f32 0.0, %v1608
        %v1610 = vpop.f32.mrf.mxu0
        %v1611 = vadd.f32 0.0, %v1610
        %1612 = vmatmul.bf16.gmra.mxu0 %v1472
        %v1613 = vpop.f32.mrf.mxu0
        %v1614 = vadd.f32 0.0, %v1613
        %v1615 = vpop.f32.mrf.mxu0
        %v1616 = vadd.f32 0.0, %v1615
        %1617 = vmatmul.bf16.gmra.mxu0 %v1473
        %v1618 = vpop.f32.mrf.mxu0
        %v1619 = vadd.f32 0.0, %v1618
        %v1620 = vpop.f32.mrf.mxu0
        %v1621 = vadd.f32 0.0, %v1620
        %1622 = vmatmul.bf16.gmra.mxu0 %v1474
        %v1623 = vpop.f32.mrf.mxu0
        %v1624 = vadd.f32 0.0, %v1623
        %v1625 = vpop.f32.mrf.mxu0
        %v1626 = vadd.f32 0.0, %v1625
        %1627 = vdwg.mxu0
        %v1628 = vadd.f32 %v1395, %v1549
        %v1629 = vadd.f32 %v1396, %v1551
        %v1630 = vadd.f32 %v1397, %v1554
        %v1631 = vadd.f32 %v1398, %v1556
        %v1632 = vadd.f32 %v1399, %v1559
        %v1633 = vadd.f32 %v1400, %v1561
        %v1634 = vadd.f32 %v1401, %v1564
        %v1635 = vadd.f32 %v1402, %v1566
        %v1636 = vadd.f32 %v1403, %v1569
        %v1637 = vadd.f32 %v1404, %v1571
        %v1638 = vadd.f32 %v1405, %v1574
        %v1639 = vadd.f32 %v1406, %v1576
        %v1640 = vadd.f32 %v1407, %v1579
        %v1641 = vadd.f32 %v1408, %v1581
        %v1642 = vadd.f32 %v1409, %v1584
        %v1643 = vadd.f32 %v1410, %v1586
        %v1644 = vadd.f32 %v1411, %v1589
        %v1645 = vadd.f32 %v1412, %v1591
        %v1646 = vadd.f32 %v1413, %v1594
        %v1647 = vadd.f32 %v1414, %v1596
        %v1648 = vadd.f32 %v1415, %v1599
        %v1649 = vadd.f32 %v1416, %v1601
        %v1650 = vadd.f32 %v1417, %v1604
        %v1651 = vadd.f32 %v1418, %v1606
        %v1652 = vadd.f32 %v1419, %v1609
        %v1653 = vadd.f32 %v1420, %v1611
        %v1654 = vadd.f32 %v1421, %v1614
        %v1655 = vadd.f32 %v1422, %v1616
        %v1656 = vadd.f32 %v1423, %v1619
        %v1657 = vadd.f32 %v1424, %v1621
        %v1658 = vadd.f32 %v1425, %v1624
        %v1659 = vadd.f32 %v1426, %v1626
        %v1660 = vld [vmem:[%s526 + $0x2] sm:$0xff]
        %v1661 = vld [vmem:[%s526 + $0xa] sm:$0xff]
        %v1662 = vld [vmem:[%s526 + $0x1a] sm:$0xff]
        %v1663 = vld [vmem:[%s526 + $0x22] sm:$0xff]
        %v1664 = vld [vmem:[%s526 + $0x32] sm:$0xff]
        %v1665 = vld [vmem:[%s526 + $0x3a] sm:$0xff]
        %v1666 = vld [vmem:[%s526 + $0x4a] sm:$0xff]
        %v1667 = vld [vmem:[%s526 + $0x52] sm:$0xff]
        %v1668 = vld [vmem:[%s526 + $0x62] sm:$0xff]
        %v1669 = vld [vmem:[%s526 + $0x6a] sm:$0xff]
        %v1670 = vld [vmem:[%s526 + $0x7a] sm:$0xff]
        %v1671 = vld [vmem:[%s526 + $0x82] sm:$0xff]
        %v1672 = vld [vmem:[%s526 + $0x92] sm:$0xff]
        %v1673 = vld [vmem:[%s526 + $0x9a] sm:$0xff]
        %v1674 = vld [vmem:[%s526 + $0xaa] sm:$0xff]
        %v1675 = vld [vmem:[%s526 + $0xb2] sm:$0xff]
        %v1676 = vld [vmem:[%s526 + $0xc2] sm:$0xff]
        %v1677 = vld [vmem:[%s526 + $0xca] sm:$0xff]
        %v1678 = vld [vmem:[%s526 + $0xda] sm:$0xff]
        %v1679 = vld [vmem:[%s526 + $0xe2] sm:$0xff]
        %v1680 = vld [vmem:[%s526 + $0xf2] sm:$0xff]
        %v1681 = vld [vmem:[%s526 + $0xfa] sm:$0xff]
        %v1682 = vld [vmem:[%s526 + $0x10a] sm:$0xff]
        %v1683 = vld [vmem:[%s526 + $0x112] sm:$0xff]
        %v1684 = vld [vmem:[%s526 + $0x122] sm:$0xff]
        %v1685 = vld [vmem:[%s526 + $0x12a] sm:$0xff]
        %v1686 = vld [vmem:[%s526 + $0x13a] sm:$0xff]
        %v1687 = vld [vmem:[%s526 + $0x142] sm:$0xff]
        %v1688 = vld [vmem:[%s526 + $0x152] sm:$0xff]
        %v1689 = vld [vmem:[%s526 + $0x15a] sm:$0xff]
        %v1690 = vld [vmem:[%s526 + $0x16a] sm:$0xff]
        %v1691 = vld [vmem:[%s526 + $0x172] sm:$0xff]
        %v1692 = vpack.c.bf16 %v1661, %v1660
        %v1693 = vpack.c.bf16 %v1663, %v1662
        %v1694 = vpack.c.bf16 %v1665, %v1664
        %v1695 = vpack.c.bf16 %v1667, %v1666
        %v1696 = vpack.c.bf16 %v1669, %v1668
        %v1697 = vpack.c.bf16 %v1671, %v1670
        %v1698 = vpack.c.bf16 %v1673, %v1672
        %v1699 = vpack.c.bf16 %v1675, %v1674
        %v1700 = vpack.c.bf16 %v1677, %v1676
        %v1701 = vpack.c.bf16 %v1679, %v1678
        %v1702 = vpack.c.bf16 %v1681, %v1680
        %v1703 = vpack.c.bf16 %v1683, %v1682
        %v1704 = vpack.c.bf16 %v1685, %v1684
        %v1705 = vpack.c.bf16 %v1687, %v1686
        %v1706 = vpack.c.bf16 %v1689, %v1688
        %v1707 = vpack.c.bf16 %v1691, %v1690
        %v1708 = vld [vmem:[#allocation3 + $0x140] sm:$0xf]
        %v1709 = vld [vmem:[#allocation3 + $0x144] sm:$0xf]
        %v1710 = vld [vmem:[#allocation3 + $0x148] sm:$0xf]
        %v1711 = vld [vmem:[#allocation3 + $0x14c] sm:$0xf]
        %v1712 = vld [vmem:[#allocation3 + $0x150] sm:$0xf]
        %v1713 = vld [vmem:[#allocation3 + $0x154] sm:$0xf]
        %v1714 = vld [vmem:[#allocation3 + $0x158] sm:$0xf]
        %v1715 = vld [vmem:[#allocation3 + $0x15c] sm:$0xf]
        %v1716 = vld [vmem:[#allocation3 + $0x160] sm:$0xf]
        %v1717 = vld [vmem:[#allocation3 + $0x164] sm:$0xf]
        %v1718 = vld [vmem:[#allocation3 + $0x168] sm:$0xf]
        %v1719 = vld [vmem:[#allocation3 + $0x16c] sm:$0xf]
        %v1720 = vld [vmem:[#allocation3 + $0x170] sm:$0xf]
        %v1721 = vld [vmem:[#allocation3 + $0x174] sm:$0xf]
        %v1722 = vld [vmem:[#allocation3 + $0x178] sm:$0xf]
        %v1723 = vld [vmem:[#allocation3 + $0x17c] sm:$0xf]
        %v1740 = vunpack.c.l.b16 %v1708
        %v1741 = vunpack.c.l.b16 %v1709
        %v1742 = vunpack.c.l.b16 %v1710
        %v1743 = vunpack.c.l.b16 %v1711
        %v1744 = vunpack.c.l.b16 %v1712
        %v1745 = vunpack.c.l.b16 %v1713
        %v1746 = vunpack.c.l.b16 %v1714
        %v1747 = vunpack.c.l.b16 %v1715
        %v1748 = vunpack.c.l.b16 %v1716
        %v1749 = vunpack.c.l.b16 %v1717
        %v1750 = vunpack.c.l.b16 %v1718
        %v1751 = vunpack.c.l.b16 %v1719
        %v1752 = vunpack.c.l.b16 %v1720
        %v1753 = vunpack.c.l.b16 %v1721
        %v1754 = vunpack.c.l.b16 %v1722
        %v1755 = vunpack.c.l.b16 %v1723
        %v1756 = vpack.c.b16 %v1741, %v1740
        %v1757 = vpack.c.b16 %v1743, %v1742
        %v1758 = vpack.c.b16 %v1745, %v1744
        %v1759 = vpack.c.b16 %v1747, %v1746
        %v1760 = vpack.c.b16 %v1749, %v1748
        %v1761 = vpack.c.b16 %v1751, %v1750
        %v1762 = vpack.c.b16 %v1753, %v1752
        %v1763 = vpack.c.b16 %v1755, %v1754
        %1772 = vmatpush.bf16.msra.mxu0 %v1763
        %1773 = vmatpush.bf16.msra.mxu0 %v1762
        %1774 = vmatpush.bf16.msra.mxu0 %v1761
        %1775 = vmatpush.bf16.msra.mxu0 %v1760
        %1776 = vmatpush.bf16.msra.mxu0 %v1759
        %1777 = vmatpush.bf16.msra.mxu0 %v1758
        %1778 = vmatpush.bf16.msra.mxu0 %v1757
        %1779 = vmatpush.bf16.msra.mxu0 %v1756
        %1780 = vmatmul.bf16.gmra.mxu0 %v1692
        %v1781 = vpop.f32.mrf.mxu0
        %v1782 = vadd.f32 0.0, %v1781
        %v1783 = vpop.f32.mrf.mxu0
        %v1784 = vadd.f32 0.0, %v1783
        %1785 = vmatmul.bf16.gmra.mxu0 %v1693
        %v1786 = vpop.f32.mrf.mxu0
        %v1787 = vadd.f32 0.0, %v1786
        %v1788 = vpop.f32.mrf.mxu0
        %v1789 = vadd.f32 0.0, %v1788
        %1790 = vmatmul.bf16.gmra.mxu0 %v1694
        %v1791 = vpop.f32.mrf.mxu0
        %v1792 = vadd.f32 0.0, %v1791
        %v1793 = vpop.f32.mrf.mxu0
        %v1794 = vadd.f32 0.0, %v1793
        %1795 = vmatmul.bf16.gmra.mxu0 %v1695
        %v1796 = vpop.f32.mrf.mxu0
        %v1797 = vadd.f32 0.0, %v1796
        %v1798 = vpop.f32.mrf.mxu0
        %v1799 = vadd.f32 0.0, %v1798
        %1800 = vmatmul.bf16.gmra.mxu0 %v1696
        %v1801 = vpop.f32.mrf.mxu0
        %v1802 = vadd.f32 0.0, %v1801
        %v1803 = vpop.f32.mrf.mxu0
        %v1804 = vadd.f32 0.0, %v1803
        %1805 = vmatmul.bf16.gmra.mxu0 %v1697
        %v1806 = vpop.f32.mrf.mxu0
        %v1807 = vadd.f32 0.0, %v1806
        %v1808 = vpop.f32.mrf.mxu0
        %v1809 = vadd.f32 0.0, %v1808
        %1810 = vmatmul.bf16.gmra.mxu0 %v1698
        %v1811 = vpop.f32.mrf.mxu0
        %v1812 = vadd.f32 0.0, %v1811
        %v1813 = vpop.f32.mrf.mxu0
        %v1814 = vadd.f32 0.0, %v1813
        %1815 = vmatmul.bf16.gmra.mxu0 %v1699
        %v1816 = vpop.f32.mrf.mxu0
        %v1817 = vadd.f32 0.0, %v1816
        %v1818 = vpop.f32.mrf.mxu0
        %v1819 = vadd.f32 0.0, %v1818
        %1820 = vmatmul.bf16.gmra.mxu0 %v1700
        %v1821 = vpop.f32.mrf.mxu0
        %v1822 = vadd.f32 0.0, %v1821
        %v1823 = vpop.f32.mrf.mxu0
        %v1824 = vadd.f32 0.0, %v1823
        %1825 = vmatmul.bf16.gmra.mxu0 %v1701
        %v1826 = vpop.f32.mrf.mxu0
        %v1827 = vadd.f32 0.0, %v1826
        %v1828 = vpop.f32.mrf.mxu0
        %v1829 = vadd.f32 0.0, %v1828
        %1830 = vmatmul.bf16.gmra.mxu0 %v1702
        %v1831 = vpop.f32.mrf.mxu0
        %v1832 = vadd.f32 0.0, %v1831
        %v1833 = vpop.f32.mrf.mxu0
        %v1834 = vadd.f32 0.0, %v1833
        %1835 = vmatmul.bf16.gmra.mxu0 %v1703
        %v1836 = vpop.f32.mrf.mxu0
        %v1837 = vadd.f32 0.0, %v1836
        %v1838 = vpop.f32.mrf.mxu0
        %v1839 = vadd.f32 0.0, %v1838
        %1840 = vmatmul.bf16.gmra.mxu0 %v1704
        %v1841 = vpop.f32.mrf.mxu0
        %v1842 = vadd.f32 0.0, %v1841
        %v1843 = vpop.f32.mrf.mxu0
        %v1844 = vadd.f32 0.0, %v1843
        %1845 = vmatmul.bf16.gmra.mxu0 %v1705
        %v1846 = vpop.f32.mrf.mxu0
        %v1847 = vadd.f32 0.0, %v1846
        %v1848 = vpop.f32.mrf.mxu0
        %v1849 = vadd.f32 0.0, %v1848
        %1850 = vmatmul.bf16.gmra.mxu0 %v1706
        %v1851 = vpop.f32.mrf.mxu0
        %v1852 = vadd.f32 0.0, %v1851
        %v1853 = vpop.f32.mrf.mxu0
        %v1854 = vadd.f32 0.0, %v1853
        %1855 = vmatmul.bf16.gmra.mxu0 %v1707
        %v1856 = vpop.f32.mrf.mxu0
        %v1857 = vadd.f32 0.0, %v1856
        %v1858 = vpop.f32.mrf.mxu0
        %v1859 = vadd.f32 0.0, %v1858
        %1860 = vdwg.mxu0
        %v1861 = vadd.f32 %v1628, %v1782
        %v1862 = vadd.f32 %v1629, %v1784
        %v1863 = vadd.f32 %v1630, %v1787
        %v1864 = vadd.f32 %v1631, %v1789
        %v1865 = vadd.f32 %v1632, %v1792
        %v1866 = vadd.f32 %v1633, %v1794
        %v1867 = vadd.f32 %v1634, %v1797
        %v1868 = vadd.f32 %v1635, %v1799
        %v1869 = vadd.f32 %v1636, %v1802
        %v1870 = vadd.f32 %v1637, %v1804
        %v1871 = vadd.f32 %v1638, %v1807
        %v1872 = vadd.f32 %v1639, %v1809
        %v1873 = vadd.f32 %v1640, %v1812
        %v1874 = vadd.f32 %v1641, %v1814
        %v1875 = vadd.f32 %v1642, %v1817
        %v1876 = vadd.f32 %v1643, %v1819
        %v1877 = vadd.f32 %v1644, %v1822
        %v1878 = vadd.f32 %v1645, %v1824
        %v1879 = vadd.f32 %v1646, %v1827
        %v1880 = vadd.f32 %v1647, %v1829
        %v1881 = vadd.f32 %v1648, %v1832
        %v1882 = vadd.f32 %v1649, %v1834
        %v1883 = vadd.f32 %v1650, %v1837
        %v1884 = vadd.f32 %v1651, %v1839
        %v1885 = vadd.f32 %v1652, %v1842
        %v1886 = vadd.f32 %v1653, %v1844
        %v1887 = vadd.f32 %v1654, %v1847
        %v1888 = vadd.f32 %v1655, %v1849
        %v1889 = vadd.f32 %v1656, %v1852
        %v1890 = vadd.f32 %v1657, %v1854
        %v1891 = vadd.f32 %v1658, %v1857
        %v1892 = vadd.f32 %v1659, %v1859
        %s1893 = scalar_lea.vmem [#allocation2], 48
        %v1894 = vld [vmem:[%s1893] sm:$0xff]
        %v1895 = vld [vmem:[%s1893 + $0x8] sm:$0xff]
        %v1896 = vld [vmem:[%s1893 + $0x18] sm:$0xff]
        %v1897 = vld [vmem:[%s1893 + $0x20] sm:$0xff]
        %v1898 = vld [vmem:[%s1893 + $0x30] sm:$0xff]
        %v1899 = vld [vmem:[%s1893 + $0x38] sm:$0xff]
        %v1900 = vld [vmem:[%s1893 + $0x48] sm:$0xff]
        %v1901 = vld [vmem:[%s1893 + $0x50] sm:$0xff]
        %v1902 = vld [vmem:[%s1893 + $0x60] sm:$0xff]
        %v1903 = vld [vmem:[%s1893 + $0x68] sm:$0xff]
        %v1904 = vld [vmem:[%s1893 + $0x78] sm:$0xff]
        %v1905 = vld [vmem:[%s1893 + $0x80] sm:$0xff]
        %v1906 = vld [vmem:[%s1893 + $0x90] sm:$0xff]
        %v1907 = vld [vmem:[%s1893 + $0x98] sm:$0xff]
        %v1908 = vld [vmem:[%s1893 + $0xa8] sm:$0xff]
        %v1909 = vld [vmem:[%s1893 + $0xb0] sm:$0xff]
        %v1910 = vld [vmem:[%s1893 + $0xc0] sm:$0xff]
        %v1911 = vld [vmem:[%s1893 + $0xc8] sm:$0xff]
        %v1912 = vld [vmem:[%s1893 + $0xd8] sm:$0xff]
        %v1913 = vld [vmem:[%s1893 + $0xe0] sm:$0xff]
        %v1914 = vld [vmem:[%s1893 + $0xf0] sm:$0xff]
        %v1915 = vld [vmem:[%s1893 + $0xf8] sm:$0xff]
        %v1916 = vld [vmem:[%s1893 + $0x108] sm:$0xff]
        %v1917 = vld [vmem:[%s1893 + $0x110] sm:$0xff]
        %v1918 = vld [vmem:[%s1893 + $0x120] sm:$0xff]
        %v1919 = vld [vmem:[%s1893 + $0x128] sm:$0xff]
        %v1920 = vld [vmem:[%s1893 + $0x138] sm:$0xff]
        %v1921 = vld [vmem:[%s1893 + $0x140] sm:$0xff]
        %v1922 = vld [vmem:[%s1893 + $0x150] sm:$0xff]
        %v1923 = vld [vmem:[%s1893 + $0x158] sm:$0xff]
        %v1924 = vld [vmem:[%s1893 + $0x168] sm:$0xff]
        %v1925 = vld [vmem:[%s1893 + $0x170] sm:$0xff]
        %v1926 = vpack.c.bf16 %v1895, %v1894
        %v1927 = vpack.c.bf16 %v1897, %v1896
        %v1928 = vpack.c.bf16 %v1899, %v1898
        %v1929 = vpack.c.bf16 %v1901, %v1900
        %v1930 = vpack.c.bf16 %v1903, %v1902
        %v1931 = vpack.c.bf16 %v1905, %v1904
        %v1932 = vpack.c.bf16 %v1907, %v1906
        %v1933 = vpack.c.bf16 %v1909, %v1908
        %v1934 = vpack.c.bf16 %v1911, %v1910
        %v1935 = vpack.c.bf16 %v1913, %v1912
        %v1936 = vpack.c.bf16 %v1915, %v1914
        %v1937 = vpack.c.bf16 %v1917, %v1916
        %v1938 = vpack.c.bf16 %v1919, %v1918
        %v1939 = vpack.c.bf16 %v1921, %v1920
        %v1940 = vpack.c.bf16 %v1923, %v1922
        %v1941 = vpack.c.bf16 %v1925, %v1924
        %v1942 = vld [vmem:[#allocation3 + $0x180] sm:$0xf]
        %v1943 = vld [vmem:[#allocation3 + $0x184] sm:$0xf]
        %v1944 = vld [vmem:[#allocation3 + $0x188] sm:$0xf]
        %v1945 = vld [vmem:[#allocation3 + $0x18c] sm:$0xf]
        %v1946 = vld [vmem:[#allocation3 + $0x190] sm:$0xf]
        %v1947 = vld [vmem:[#allocation3 + $0x194] sm:$0xf]
        %v1948 = vld [vmem:[#allocation3 + $0x198] sm:$0xf]
        %v1949 = vld [vmem:[#allocation3 + $0x19c] sm:$0xf]
        %v1950 = vld [vmem:[#allocation3 + $0x1a0] sm:$0xf]
        %v1951 = vld [vmem:[#allocation3 + $0x1a4] sm:$0xf]
        %v1952 = vld [vmem:[#allocation3 + $0x1a8] sm:$0xf]
        %v1953 = vld [vmem:[#allocation3 + $0x1ac] sm:$0xf]
        %v1954 = vld [vmem:[#allocation3 + $0x1b0] sm:$0xf]
        %v1955 = vld [vmem:[#allocation3 + $0x1b4] sm:$0xf]
        %v1956 = vld [vmem:[#allocation3 + $0x1b8] sm:$0xf]
        %v1957 = vld [vmem:[#allocation3 + $0x1bc] sm:$0xf]
        %v1974 = vunpack.c.l.b16 %v1942
        %v1975 = vunpack.c.l.b16 %v1943
        %v1976 = vunpack.c.l.b16 %v1944
        %v1977 = vunpack.c.l.b16 %v1945
        %v1978 = vunpack.c.l.b16 %v1946
        %v1979 = vunpack.c.l.b16 %v1947
        %v1980 = vunpack.c.l.b16 %v1948
        %v1981 = vunpack.c.l.b16 %v1949
        %v1982 = vunpack.c.l.b16 %v1950
        %v1983 = vunpack.c.l.b16 %v1951
        %v1984 = vunpack.c.l.b16 %v1952
        %v1985 = vunpack.c.l.b16 %v1953
        %v1986 = vunpack.c.l.b16 %v1954
        %v1987 = vunpack.c.l.b16 %v1955
        %v1988 = vunpack.c.l.b16 %v1956
        %v1989 = vunpack.c.l.b16 %v1957
        %v1990 = vpack.c.b16 %v1975, %v1974
        %v1991 = vpack.c.b16 %v1977, %v1976
        %v1992 = vpack.c.b16 %v1979, %v1978
        %v1993 = vpack.c.b16 %v1981, %v1980
        %v1994 = vpack.c.b16 %v1983, %v1982
        %v1995 = vpack.c.b16 %v1985, %v1984
        %v1996 = vpack.c.b16 %v1987, %v1986
        %v1997 = vpack.c.b16 %v1989, %v1988
        %2006 = vmatpush.bf16.msra.mxu0 %v1997
        %2007 = vmatpush.bf16.msra.mxu0 %v1996
        %2008 = vmatpush.bf16.msra.mxu0 %v1995
        %2009 = vmatpush.bf16.msra.mxu0 %v1994
        %2010 = vmatpush.bf16.msra.mxu0 %v1993
        %2011 = vmatpush.bf16.msra.mxu0 %v1992
        %2012 = vmatpush.bf16.msra.mxu0 %v1991
        %2013 = vmatpush.bf16.msra.mxu0 %v1990
        %2014 = vmatmul.bf16.gmra.mxu0 %v1926
        %v2015 = vpop.f32.mrf.mxu0
        %v2016 = vadd.f32 0.0, %v2015
        %v2017 = vpop.f32.mrf.mxu0
        %v2018 = vadd.f32 0.0, %v2017
        %2019 = vmatmul.bf16.gmra.mxu0 %v1927
        %v2020 = vpop.f32.mrf.mxu0
        %v2021 = vadd.f32 0.0, %v2020
        %v2022 = vpop.f32.mrf.mxu0
        %v2023 = vadd.f32 0.0, %v2022
        %2024 = vmatmul.bf16.gmra.mxu0 %v1928
        %v2025 = vpop.f32.mrf.mxu0
        %v2026 = vadd.f32 0.0, %v2025
        %v2027 = vpop.f32.mrf.mxu0
        %v2028 = vadd.f32 0.0, %v2027
        %2029 = vmatmul.bf16.gmra.mxu0 %v1929
        %v2030 = vpop.f32.mrf.mxu0
        %v2031 = vadd.f32 0.0, %v2030
        %v2032 = vpop.f32.mrf.mxu0
        %v2033 = vadd.f32 0.0, %v2032
        %2034 = vmatmul.bf16.gmra.mxu0 %v1930
        %v2035 = vpop.f32.mrf.mxu0
        %v2036 = vadd.f32 0.0, %v2035
        %v2037 = vpop.f32.mrf.mxu0
        %v2038 = vadd.f32 0.0, %v2037
        %2039 = vmatmul.bf16.gmra.mxu0 %v1931
        %v2040 = vpop.f32.mrf.mxu0
        %v2041 = vadd.f32 0.0, %v2040
        %v2042 = vpop.f32.mrf.mxu0
        %v2043 = vadd.f32 0.0, %v2042
        %2044 = vmatmul.bf16.gmra.mxu0 %v1932
        %v2045 = vpop.f32.mrf.mxu0
        %v2046 = vadd.f32 0.0, %v2045
        %v2047 = vpop.f32.mrf.mxu0
        %v2048 = vadd.f32 0.0, %v2047
        %2049 = vmatmul.bf16.gmra.mxu0 %v1933
        %v2050 = vpop.f32.mrf.mxu0
        %v2051 = vadd.f32 0.0, %v2050
        %v2052 = vpop.f32.mrf.mxu0
        %v2053 = vadd.f32 0.0, %v2052
        %2054 = vmatmul.bf16.gmra.mxu0 %v1934
        %v2055 = vpop.f32.mrf.mxu0
        %v2056 = vadd.f32 0.0, %v2055
        %v2057 = vpop.f32.mrf.mxu0
        %v2058 = vadd.f32 0.0, %v2057
        %2059 = vmatmul.bf16.gmra.mxu0 %v1935
        %v2060 = vpop.f32.mrf.mxu0
        %v2061 = vadd.f32 0.0, %v2060
        %v2062 = vpop.f32.mrf.mxu0
        %v2063 = vadd.f32 0.0, %v2062
        %2064 = vmatmul.bf16.gmra.mxu0 %v1936
        %v2065 = vpop.f32.mrf.mxu0
        %v2066 = vadd.f32 0.0, %v2065
        %v2067 = vpop.f32.mrf.mxu0
        %v2068 = vadd.f32 0.0, %v2067
        %2069 = vmatmul.bf16.gmra.mxu0 %v1937
        %v2070 = vpop.f32.mrf.mxu0
        %v2071 = vadd.f32 0.0, %v2070
        %v2072 = vpop.f32.mrf.mxu0
        %v2073 = vadd.f32 0.0, %v2072
        %2074 = vmatmul.bf16.gmra.mxu0 %v1938
        %v2075 = vpop.f32.mrf.mxu0
        %v2076 = vadd.f32 0.0, %v2075
        %v2077 = vpop.f32.mrf.mxu0
        %v2078 = vadd.f32 0.0, %v2077
        %2079 = vmatmul.bf16.gmra.mxu0 %v1939
        %v2080 = vpop.f32.mrf.mxu0
        %v2081 = vadd.f32 0.0, %v2080
        %v2082 = vpop.f32.mrf.mxu0
        %v2083 = vadd.f32 0.0, %v2082
        %2084 = vmatmul.bf16.gmra.mxu0 %v1940
        %v2085 = vpop.f32.mrf.mxu0
        %v2086 = vadd.f32 0.0, %v2085
        %v2087 = vpop.f32.mrf.mxu0
        %v2088 = vadd.f32 0.0, %v2087
        %2089 = vmatmul.bf16.gmra.mxu0 %v1941
        %v2090 = vpop.f32.mrf.mxu0
        %v2091 = vadd.f32 0.0, %v2090
        %v2092 = vpop.f32.mrf.mxu0
        %v2093 = vadd.f32 0.0, %v2092
        %2094 = vdwg.mxu0
        %v2095 = vadd.f32 %v1861, %v2016
        %v2096 = vadd.f32 %v1862, %v2018
        %v2097 = vadd.f32 %v1863, %v2021
        %v2098 = vadd.f32 %v1864, %v2023
        %v2099 = vadd.f32 %v1865, %v2026
        %v2100 = vadd.f32 %v1866, %v2028
        %v2101 = vadd.f32 %v1867, %v2031
        %v2102 = vadd.f32 %v1868, %v2033
        %v2103 = vadd.f32 %v1869, %v2036
        %v2104 = vadd.f32 %v1870, %v2038
        %v2105 = vadd.f32 %v1871, %v2041
        %v2106 = vadd.f32 %v1872, %v2043
        %v2107 = vadd.f32 %v1873, %v2046
        %v2108 = vadd.f32 %v1874, %v2048
        %v2109 = vadd.f32 %v1875, %v2051
        %v2110 = vadd.f32 %v1876, %v2053
        %v2111 = vadd.f32 %v1877, %v2056
        %v2112 = vadd.f32 %v1878, %v2058
        %v2113 = vadd.f32 %v1879, %v2061
        %v2114 = vadd.f32 %v1880, %v2063
        %v2115 = vadd.f32 %v1881, %v2066
        %v2116 = vadd.f32 %v1882, %v2068
        %v2117 = vadd.f32 %v1883, %v2071
        %v2118 = vadd.f32 %v1884, %v2073
        %v2119 = vadd.f32 %v1885, %v2076
        %v2120 = vadd.f32 %v1886, %v2078
        %v2121 = vadd.f32 %v1887, %v2081
        %v2122 = vadd.f32 %v1888, %v2083
        %v2123 = vadd.f32 %v1889, %v2086
        %v2124 = vadd.f32 %v1890, %v2088
        %v2125 = vadd.f32 %v1891, %v2091
        %v2126 = vadd.f32 %v1892, %v2093
        %v2127 = vld [vmem:[%s1893 + $0x1] sm:$0xff]
        %v2128 = vld [vmem:[%s1893 + $0x9] sm:$0xff]
        %v2129 = vld [vmem:[%s1893 + $0x19] sm:$0xff]
        %v2130 = vld [vmem:[%s1893 + $0x21] sm:$0xff]
        %v2131 = vld [vmem:[%s1893 + $0x31] sm:$0xff]
        %v2132 = vld [vmem:[%s1893 + $0x39] sm:$0xff]
        %v2133 = vld [vmem:[%s1893 + $0x49] sm:$0xff]
        %v2134 = vld [vmem:[%s1893 + $0x51] sm:$0xff]
        %v2135 = vld [vmem:[%s1893 + $0x61] sm:$0xff]
        %v2136 = vld [vmem:[%s1893 + $0x69] sm:$0xff]
        %v2137 = vld [vmem:[%s1893 + $0x79] sm:$0xff]
        %v2138 = vld [vmem:[%s1893 + $0x81] sm:$0xff]
        %v2139 = vld [vmem:[%s1893 + $0x91] sm:$0xff]
        %v2140 = vld [vmem:[%s1893 + $0x99] sm:$0xff]
        %v2141 = vld [vmem:[%s1893 + $0xa9] sm:$0xff]
        %v2142 = vld [vmem:[%s1893 + $0xb1] sm:$0xff]
        %v2143 = vld [vmem:[%s1893 + $0xc1] sm:$0xff]
        %v2144 = vld [vmem:[%s1893 + $0xc9] sm:$0xff]
        %v2145 = vld [vmem:[%s1893 + $0xd9] sm:$0xff]
        %v2146 = vld [vmem:[%s1893 + $0xe1] sm:$0xff]
        %v2147 = vld [vmem:[%s1893 + $0xf1] sm:$0xff]
        %v2148 = vld [vmem:[%s1893 + $0xf9] sm:$0xff]
        %v2149 = vld [vmem:[%s1893 + $0x109] sm:$0xff]
        %v2150 = vld [vmem:[%s1893 + $0x111] sm:$0xff]
        %v2151 = vld [vmem:[%s1893 + $0x121] sm:$0xff]
        %v2152 = vld [vmem:[%s1893 + $0x129] sm:$0xff]
        %v2153 = vld [vmem:[%s1893 + $0x139] sm:$0xff]
        %v2154 = vld [vmem:[%s1893 + $0x141] sm:$0xff]
        %v2155 = vld [vmem:[%s1893 + $0x151] sm:$0xff]
        %v2156 = vld [vmem:[%s1893 + $0x159] sm:$0xff]
        %v2157 = vld [vmem:[%s1893 + $0x169] sm:$0xff]
        %v2158 = vld [vmem:[%s1893 + $0x171] sm:$0xff]
        %v2159 = vpack.c.bf16 %v2128, %v2127
        %v2160 = vpack.c.bf16 %v2130, %v2129
        %v2161 = vpack.c.bf16 %v2132, %v2131
        %v2162 = vpack.c.bf16 %v2134, %v2133
        %v2163 = vpack.c.bf16 %v2136, %v2135
        %v2164 = vpack.c.bf16 %v2138, %v2137
        %v2165 = vpack.c.bf16 %v2140, %v2139
        %v2166 = vpack.c.bf16 %v2142, %v2141
        %v2167 = vpack.c.bf16 %v2144, %v2143
        %v2168 = vpack.c.bf16 %v2146, %v2145
        %v2169 = vpack.c.bf16 %v2148, %v2147
        %v2170 = vpack.c.bf16 %v2150, %v2149
        %v2171 = vpack.c.bf16 %v2152, %v2151
        %v2172 = vpack.c.bf16 %v2154, %v2153
        %v2173 = vpack.c.bf16 %v2156, %v2155
        %v2174 = vpack.c.bf16 %v2158, %v2157
        %v2175 = vld [vmem:[#allocation3 + $0x1c0] sm:$0xf]
        %v2176 = vld [vmem:[#allocation3 + $0x1c4] sm:$0xf]
        %v2177 = vld [vmem:[#allocation3 + $0x1c8] sm:$0xf]
        %v2178 = vld [vmem:[#allocation3 + $0x1cc] sm:$0xf]
        %v2179 = vld [vmem:[#allocation3 + $0x1d0] sm:$0xf]
        %v2180 = vld [vmem:[#allocation3 + $0x1d4] sm:$0xf]
        %v2181 = vld [vmem:[#allocation3 + $0x1d8] sm:$0xf]
        %v2182 = vld [vmem:[#allocation3 + $0x1dc] sm:$0xf]
        %v2183 = vld [vmem:[#allocation3 + $0x1e0] sm:$0xf]
        %v2184 = vld [vmem:[#allocation3 + $0x1e4] sm:$0xf]
        %v2185 = vld [vmem:[#allocation3 + $0x1e8] sm:$0xf]
        %v2186 = vld [vmem:[#allocation3 + $0x1ec] sm:$0xf]
        %v2187 = vld [vmem:[#allocation3 + $0x1f0] sm:$0xf]
        %v2188 = vld [vmem:[#allocation3 + $0x1f4] sm:$0xf]
        %v2189 = vld [vmem:[#allocation3 + $0x1f8] sm:$0xf]
        %v2190 = vld [vmem:[#allocation3 + $0x1fc] sm:$0xf]
        %v2207 = vunpack.c.l.b16 %v2175
        %v2208 = vunpack.c.l.b16 %v2176
        %v2209 = vunpack.c.l.b16 %v2177
        %v2210 = vunpack.c.l.b16 %v2178
        %v2211 = vunpack.c.l.b16 %v2179
        %v2212 = vunpack.c.l.b16 %v2180
        %v2213 = vunpack.c.l.b16 %v2181
        %v2214 = vunpack.c.l.b16 %v2182
        %v2215 = vunpack.c.l.b16 %v2183
        %v2216 = vunpack.c.l.b16 %v2184
        %v2217 = vunpack.c.l.b16 %v2185
        %v2218 = vunpack.c.l.b16 %v2186
        %v2219 = vunpack.c.l.b16 %v2187
        %v2220 = vunpack.c.l.b16 %v2188
        %v2221 = vunpack.c.l.b16 %v2189
        %v2222 = vunpack.c.l.b16 %v2190
        %v2223 = vpack.c.b16 %v2208, %v2207
        %v2224 = vpack.c.b16 %v2210, %v2209
        %v2225 = vpack.c.b16 %v2212, %v2211
        %v2226 = vpack.c.b16 %v2214, %v2213
        %v2227 = vpack.c.b16 %v2216, %v2215
        %v2228 = vpack.c.b16 %v2218, %v2217
        %v2229 = vpack.c.b16 %v2220, %v2219
        %v2230 = vpack.c.b16 %v2222, %v2221
        %2239 = vmatpush.bf16.msra.mxu0 %v2230
        %2240 = vmatpush.bf16.msra.mxu0 %v2229
        %2241 = vmatpush.bf16.msra.mxu0 %v2228
        %2242 = vmatpush.bf16.msra.mxu0 %v2227
        %2243 = vmatpush.bf16.msra.mxu0 %v2226
        %2244 = vmatpush.bf16.msra.mxu0 %v2225
        %2245 = vmatpush.bf16.msra.mxu0 %v2224
        %2246 = vmatpush.bf16.msra.mxu0 %v2223
        %2247 = vmatmul.bf16.gmra.mxu0 %v2159
        %v2248 = vpop.f32.mrf.mxu0
        %v2249 = vadd.f32 0.0, %v2248
        %v2250 = vpop.f32.mrf.mxu0
        %v2251 = vadd.f32 0.0, %v2250
        %2252 = vmatmul.bf16.gmra.mxu0 %v2160
        %v2253 = vpop.f32.mrf.mxu0
        %v2254 = vadd.f32 0.0, %v2253
        %v2255 = vpop.f32.mrf.mxu0
        %v2256 = vadd.f32 0.0, %v2255
        %2257 = vmatmul.bf16.gmra.mxu0 %v2161
        %v2258 = vpop.f32.mrf.mxu0
        %v2259 = vadd.f32 0.0, %v2258
        %v2260 = vpop.f32.mrf.mxu0
        %v2261 = vadd.f32 0.0, %v2260
        %2262 = vmatmul.bf16.gmra.mxu0 %v2162
        %v2263 = vpop.f32.mrf.mxu0
        %v2264 = vadd.f32 0.0, %v2263
        %v2265 = vpop.f32.mrf.mxu0
        %v2266 = vadd.f32 0.0, %v2265
        %2267 = vmatmul.bf16.gmra.mxu0 %v2163
        %v2268 = vpop.f32.mrf.mxu0
        %v2269 = vadd.f32 0.0, %v2268
        %v2270 = vpop.f32.mrf.mxu0
        %v2271 = vadd.f32 0.0, %v2270
        %2272 = vmatmul.bf16.gmra.mxu0 %v2164
        %v2273 = vpop.f32.mrf.mxu0
        %v2274 = vadd.f32 0.0, %v2273
        %v2275 = vpop.f32.mrf.mxu0
        %v2276 = vadd.f32 0.0, %v2275
        %2277 = vmatmul.bf16.gmra.mxu0 %v2165
        %v2278 = vpop.f32.mrf.mxu0
        %v2279 = vadd.f32 0.0, %v2278
        %v2280 = vpop.f32.mrf.mxu0
        %v2281 = vadd.f32 0.0, %v2280
        %2282 = vmatmul.bf16.gmra.mxu0 %v2166
        %v2283 = vpop.f32.mrf.mxu0
        %v2284 = vadd.f32 0.0, %v2283
        %v2285 = vpop.f32.mrf.mxu0
        %v2286 = vadd.f32 0.0, %v2285
        %2287 = vmatmul.bf16.gmra.mxu0 %v2167
        %v2288 = vpop.f32.mrf.mxu0
        %v2289 = vadd.f32 0.0, %v2288
        %v2290 = vpop.f32.mrf.mxu0
        %v2291 = vadd.f32 0.0, %v2290
        %2292 = vmatmul.bf16.gmra.mxu0 %v2168
        %v2293 = vpop.f32.mrf.mxu0
        %v2294 = vadd.f32 0.0, %v2293
        %v2295 = vpop.f32.mrf.mxu0
        %v2296 = vadd.f32 0.0, %v2295
        %2297 = vmatmul.bf16.gmra.mxu0 %v2169
        %v2298 = vpop.f32.mrf.mxu0
        %v2299 = vadd.f32 0.0, %v2298
        %v2300 = vpop.f32.mrf.mxu0
        %v2301 = vadd.f32 0.0, %v2300
        %2302 = vmatmul.bf16.gmra.mxu0 %v2170
        %v2303 = vpop.f32.mrf.mxu0
        %v2304 = vadd.f32 0.0, %v2303
        %v2305 = vpop.f32.mrf.mxu0
        %v2306 = vadd.f32 0.0, %v2305
        %2307 = vmatmul.bf16.gmra.mxu0 %v2171
        %v2308 = vpop.f32.mrf.mxu0
        %v2309 = vadd.f32 0.0, %v2308
        %v2310 = vpop.f32.mrf.mxu0
        %v2311 = vadd.f32 0.0, %v2310
        %2312 = vmatmul.bf16.gmra.mxu0 %v2172
        %v2313 = vpop.f32.mrf.mxu0
        %v2314 = vadd.f32 0.0, %v2313
        %v2315 = vpop.f32.mrf.mxu0
        %v2316 = vadd.f32 0.0, %v2315
        %2317 = vmatmul.bf16.gmra.mxu0 %v2173
        %v2318 = vpop.f32.mrf.mxu0
        %v2319 = vadd.f32 0.0, %v2318
        %v2320 = vpop.f32.mrf.mxu0
        %v2321 = vadd.f32 0.0, %v2320
        %2322 = vmatmul.bf16.gmra.mxu0 %v2174
        %v2323 = vpop.f32.mrf.mxu0
        %v2324 = vadd.f32 0.0, %v2323
        %v2325 = vpop.f32.mrf.mxu0
        %v2326 = vadd.f32 0.0, %v2325
        %2327 = vdwg.mxu0
        %v2328 = vadd.f32 %v2095, %v2249
        %v2329 = vadd.f32 %v2096, %v2251
        %v2330 = vadd.f32 %v2097, %v2254
        %v2331 = vadd.f32 %v2098, %v2256
        %v2332 = vadd.f32 %v2099, %v2259
        %v2333 = vadd.f32 %v2100, %v2261
        %v2334 = vadd.f32 %v2101, %v2264
        %v2335 = vadd.f32 %v2102, %v2266
        %v2336 = vadd.f32 %v2103, %v2269
        %v2337 = vadd.f32 %v2104, %v2271
        %v2338 = vadd.f32 %v2105, %v2274
        %v2339 = vadd.f32 %v2106, %v2276
        %v2340 = vadd.f32 %v2107, %v2279
        %v2341 = vadd.f32 %v2108, %v2281
        %v2342 = vadd.f32 %v2109, %v2284
        %v2343 = vadd.f32 %v2110, %v2286
        %v2344 = vadd.f32 %v2111, %v2289
        %v2345 = vadd.f32 %v2112, %v2291
        %v2346 = vadd.f32 %v2113, %v2294
        %v2347 = vadd.f32 %v2114, %v2296
        %v2348 = vadd.f32 %v2115, %v2299
        %v2349 = vadd.f32 %v2116, %v2301
        %v2350 = vadd.f32 %v2117, %v2304
        %v2351 = vadd.f32 %v2118, %v2306
        %v2352 = vadd.f32 %v2119, %v2309
        %v2353 = vadd.f32 %v2120, %v2311
        %v2354 = vadd.f32 %v2121, %v2314
        %v2355 = vadd.f32 %v2122, %v2316
        %v2356 = vadd.f32 %v2123, %v2319
        %v2357 = vadd.f32 %v2124, %v2321
        %v2358 = vadd.f32 %v2125, %v2324
        %v2359 = vadd.f32 %v2126, %v2326
        %v2360 = vld [vmem:[%s1893 + $0x2] sm:$0xff]
        %v2361 = vld [vmem:[%s1893 + $0xa] sm:$0xff]
        %v2362 = vld [vmem:[%s1893 + $0x1a] sm:$0xff]
        %v2363 = vld [vmem:[%s1893 + $0x22] sm:$0xff]
        %v2364 = vld [vmem:[%s1893 + $0x32] sm:$0xff]
        %v2365 = vld [vmem:[%s1893 + $0x3a] sm:$0xff]
        %v2366 = vld [vmem:[%s1893 + $0x4a] sm:$0xff]
        %v2367 = vld [vmem:[%s1893 + $0x52] sm:$0xff]
        %v2368 = vld [vmem:[%s1893 + $0x62] sm:$0xff]
        %v2369 = vld [vmem:[%s1893 + $0x6a] sm:$0xff]
        %v2370 = vld [vmem:[%s1893 + $0x7a] sm:$0xff]
        %v2371 = vld [vmem:[%s1893 + $0x82] sm:$0xff]
        %v2372 = vld [vmem:[%s1893 + $0x92] sm:$0xff]
        %v2373 = vld [vmem:[%s1893 + $0x9a] sm:$0xff]
        %v2374 = vld [vmem:[%s1893 + $0xaa] sm:$0xff]
        %v2375 = vld [vmem:[%s1893 + $0xb2] sm:$0xff]
        %v2376 = vld [vmem:[%s1893 + $0xc2] sm:$0xff]
        %v2377 = vld [vmem:[%s1893 + $0xca] sm:$0xff]
        %v2378 = vld [vmem:[%s1893 + $0xda] sm:$0xff]
        %v2379 = vld [vmem:[%s1893 + $0xe2] sm:$0xff]
        %v2380 = vld [vmem:[%s1893 + $0xf2] sm:$0xff]
        %v2381 = vld [vmem:[%s1893 + $0xfa] sm:$0xff]
        %v2382 = vld [vmem:[%s1893 + $0x10a] sm:$0xff]
        %v2383 = vld [vmem:[%s1893 + $0x112] sm:$0xff]
        %v2384 = vld [vmem:[%s1893 + $0x122] sm:$0xff]
        %v2385 = vld [vmem:[%s1893 + $0x12a] sm:$0xff]
        %v2386 = vld [vmem:[%s1893 + $0x13a] sm:$0xff]
        %v2387 = vld [vmem:[%s1893 + $0x142] sm:$0xff]
        %v2388 = vld [vmem:[%s1893 + $0x152] sm:$0xff]
        %v2389 = vld [vmem:[%s1893 + $0x15a] sm:$0xff]
        %v2390 = vld [vmem:[%s1893 + $0x16a] sm:$0xff]
        %v2391 = vld [vmem:[%s1893 + $0x172] sm:$0xff]
        %v2392 = vpack.c.bf16 %v2361, %v2360
        %v2393 = vpack.c.bf16 %v2363, %v2362
        %v2394 = vpack.c.bf16 %v2365, %v2364
        %v2395 = vpack.c.bf16 %v2367, %v2366
        %v2396 = vpack.c.bf16 %v2369, %v2368
        %v2397 = vpack.c.bf16 %v2371, %v2370
        %v2398 = vpack.c.bf16 %v2373, %v2372
        %v2399 = vpack.c.bf16 %v2375, %v2374
        %v2400 = vpack.c.bf16 %v2377, %v2376
        %v2401 = vpack.c.bf16 %v2379, %v2378
        %v2402 = vpack.c.bf16 %v2381, %v2380
        %v2403 = vpack.c.bf16 %v2383, %v2382
        %v2404 = vpack.c.bf16 %v2385, %v2384
        %v2405 = vpack.c.bf16 %v2387, %v2386
        %v2406 = vpack.c.bf16 %v2389, %v2388
        %v2407 = vpack.c.bf16 %v2391, %v2390
        %v2408 = vld [vmem:[#allocation3 + $0x200] sm:$0xf]
        %v2409 = vld [vmem:[#allocation3 + $0x204] sm:$0xf]
        %v2410 = vld [vmem:[#allocation3 + $0x208] sm:$0xf]
        %v2411 = vld [vmem:[#allocation3 + $0x20c] sm:$0xf]
        %v2412 = vld [vmem:[#allocation3 + $0x210] sm:$0xf]
        %v2413 = vld [vmem:[#allocation3 + $0x214] sm:$0xf]
        %v2414 = vld [vmem:[#allocation3 + $0x218] sm:$0xf]
        %v2415 = vld [vmem:[#allocation3 + $0x21c] sm:$0xf]
        %v2416 = vld [vmem:[#allocation3 + $0x220] sm:$0xf]
        %v2417 = vld [vmem:[#allocation3 + $0x224] sm:$0xf]
        %v2418 = vld [vmem:[#allocation3 + $0x228] sm:$0xf]
        %v2419 = vld [vmem:[#allocation3 + $0x22c] sm:$0xf]
        %v2420 = vld [vmem:[#allocation3 + $0x230] sm:$0xf]
        %v2421 = vld [vmem:[#allocation3 + $0x234] sm:$0xf]
        %v2422 = vld [vmem:[#allocation3 + $0x238] sm:$0xf]
        %v2423 = vld [vmem:[#allocation3 + $0x23c] sm:$0xf]
        %v2440 = vunpack.c.l.b16 %v2408
        %v2441 = vunpack.c.l.b16 %v2409
        %v2442 = vunpack.c.l.b16 %v2410
        %v2443 = vunpack.c.l.b16 %v2411
        %v2444 = vunpack.c.l.b16 %v2412
        %v2445 = vunpack.c.l.b16 %v2413
        %v2446 = vunpack.c.l.b16 %v2414
        %v2447 = vunpack.c.l.b16 %v2415
        %v2448 = vunpack.c.l.b16 %v2416
        %v2449 = vunpack.c.l.b16 %v2417
        %v2450 = vunpack.c.l.b16 %v2418
        %v2451 = vunpack.c.l.b16 %v2419
        %v2452 = vunpack.c.l.b16 %v2420
        %v2453 = vunpack.c.l.b16 %v2421
        %v2454 = vunpack.c.l.b16 %v2422
        %v2455 = vunpack.c.l.b16 %v2423
        %v2456 = vpack.c.b16 %v2441, %v2440
        %v2457 = vpack.c.b16 %v2443, %v2442
        %v2458 = vpack.c.b16 %v2445, %v2444
        %v2459 = vpack.c.b16 %v2447, %v2446
        %v2460 = vpack.c.b16 %v2449, %v2448
        %v2461 = vpack.c.b16 %v2451, %v2450
        %v2462 = vpack.c.b16 %v2453, %v2452
        %v2463 = vpack.c.b16 %v2455, %v2454
        %2472 = vmatpush.bf16.msra.mxu0 %v2463
        %2473 = vmatpush.bf16.msra.mxu0 %v2462
        %2474 = vmatpush.bf16.msra.mxu0 %v2461
        %2475 = vmatpush.bf16.msra.mxu0 %v2460
        %2476 = vmatpush.bf16.msra.mxu0 %v2459
        %2477 = vmatpush.bf16.msra.mxu0 %v2458
        %2478 = vmatpush.bf16.msra.mxu0 %v2457
        %2479 = vmatpush.bf16.msra.mxu0 %v2456
        %2480 = vmatmul.bf16.gmra.mxu0 %v2392
        %v2481 = vpop.f32.mrf.mxu0
        %v2482 = vadd.f32 0.0, %v2481
        %v2483 = vpop.f32.mrf.mxu0
        %v2484 = vadd.f32 0.0, %v2483
        %2485 = vmatmul.bf16.gmra.mxu0 %v2393
        %v2486 = vpop.f32.mrf.mxu0
        %v2487 = vadd.f32 0.0, %v2486
        %v2488 = vpop.f32.mrf.mxu0
        %v2489 = vadd.f32 0.0, %v2488
        %2490 = vmatmul.bf16.gmra.mxu0 %v2394
        %v2491 = vpop.f32.mrf.mxu0
        %v2492 = vadd.f32 0.0, %v2491
        %v2493 = vpop.f32.mrf.mxu0
        %v2494 = vadd.f32 0.0, %v2493
        %2495 = vmatmul.bf16.gmra.mxu0 %v2395
        %v2496 = vpop.f32.mrf.mxu0
        %v2497 = vadd.f32 0.0, %v2496
        %v2498 = vpop.f32.mrf.mxu0
        %v2499 = vadd.f32 0.0, %v2498
        %2500 = vmatmul.bf16.gmra.mxu0 %v2396
        %v2501 = vpop.f32.mrf.mxu0
        %v2502 = vadd.f32 0.0, %v2501
        %v2503 = vpop.f32.mrf.mxu0
        %v2504 = vadd.f32 0.0, %v2503
        %2505 = vmatmul.bf16.gmra.mxu0 %v2397
        %v2506 = vpop.f32.mrf.mxu0
        %v2507 = vadd.f32 0.0, %v2506
        %v2508 = vpop.f32.mrf.mxu0
        %v2509 = vadd.f32 0.0, %v2508
        %2510 = vmatmul.bf16.gmra.mxu0 %v2398
        %v2511 = vpop.f32.mrf.mxu0
        %v2512 = vadd.f32 0.0, %v2511
        %v2513 = vpop.f32.mrf.mxu0
        %v2514 = vadd.f32 0.0, %v2513
        %2515 = vmatmul.bf16.gmra.mxu0 %v2399
        %v2516 = vpop.f32.mrf.mxu0
        %v2517 = vadd.f32 0.0, %v2516
        %v2518 = vpop.f32.mrf.mxu0
        %v2519 = vadd.f32 0.0, %v2518
        %2520 = vmatmul.bf16.gmra.mxu0 %v2400
        %v2521 = vpop.f32.mrf.mxu0
        %v2522 = vadd.f32 0.0, %v2521
        %v2523 = vpop.f32.mrf.mxu0
        %v2524 = vadd.f32 0.0, %v2523
        %2525 = vmatmul.bf16.gmra.mxu0 %v2401
        %v2526 = vpop.f32.mrf.mxu0
        %v2527 = vadd.f32 0.0, %v2526
        %v2528 = vpop.f32.mrf.mxu0
        %v2529 = vadd.f32 0.0, %v2528
        %2530 = vmatmul.bf16.gmra.mxu0 %v2402
        %v2531 = vpop.f32.mrf.mxu0
        %v2532 = vadd.f32 0.0, %v2531
        %v2533 = vpop.f32.mrf.mxu0
        %v2534 = vadd.f32 0.0, %v2533
        %2535 = vmatmul.bf16.gmra.mxu0 %v2403
        %v2536 = vpop.f32.mrf.mxu0
        %v2537 = vadd.f32 0.0, %v2536
        %v2538 = vpop.f32.mrf.mxu0
        %v2539 = vadd.f32 0.0, %v2538
        %2540 = vmatmul.bf16.gmra.mxu0 %v2404
        %v2541 = vpop.f32.mrf.mxu0
        %v2542 = vadd.f32 0.0, %v2541
        %v2543 = vpop.f32.mrf.mxu0
        %v2544 = vadd.f32 0.0, %v2543
        %2545 = vmatmul.bf16.gmra.mxu0 %v2405
        %v2546 = vpop.f32.mrf.mxu0
        %v2547 = vadd.f32 0.0, %v2546
        %v2548 = vpop.f32.mrf.mxu0
        %v2549 = vadd.f32 0.0, %v2548
        %2550 = vmatmul.bf16.gmra.mxu0 %v2406
        %v2551 = vpop.f32.mrf.mxu0
        %v2552 = vadd.f32 0.0, %v2551
        %v2553 = vpop.f32.mrf.mxu0
        %v2554 = vadd.f32 0.0, %v2553
        %2555 = vmatmul.bf16.gmra.mxu0 %v2407
        %v2556 = vpop.f32.mrf.mxu0
        %v2557 = vadd.f32 0.0, %v2556
        %v2558 = vpop.f32.mrf.mxu0
        %v2559 = vadd.f32 0.0, %v2558
        %2560 = vdwg.mxu0
        %v2561 = vadd.f32 %v2328, %v2482
        %v2562 = vadd.f32 %v2329, %v2484
        %v2563 = vadd.f32 %v2330, %v2487
        %v2564 = vadd.f32 %v2331, %v2489
        %v2565 = vadd.f32 %v2332, %v2492
        %v2566 = vadd.f32 %v2333, %v2494
        %v2567 = vadd.f32 %v2334, %v2497
        %v2568 = vadd.f32 %v2335, %v2499
        %v2569 = vadd.f32 %v2336, %v2502
        %v2570 = vadd.f32 %v2337, %v2504
        %v2571 = vadd.f32 %v2338, %v2507
        %v2572 = vadd.f32 %v2339, %v2509
        %v2573 = vadd.f32 %v2340, %v2512
        %v2574 = vadd.f32 %v2341, %v2514
        %v2575 = vadd.f32 %v2342, %v2517
        %v2576 = vadd.f32 %v2343, %v2519
        %v2577 = vadd.f32 %v2344, %v2522
        %v2578 = vadd.f32 %v2345, %v2524
        %v2579 = vadd.f32 %v2346, %v2527
        %v2580 = vadd.f32 %v2347, %v2529
        %v2581 = vadd.f32 %v2348, %v2532
        %v2582 = vadd.f32 %v2349, %v2534
        %v2583 = vadd.f32 %v2350, %v2537
        %v2584 = vadd.f32 %v2351, %v2539
        %v2585 = vadd.f32 %v2352, %v2542
        %v2586 = vadd.f32 %v2353, %v2544
        %v2587 = vadd.f32 %v2354, %v2547
        %v2588 = vadd.f32 %v2355, %v2549
        %v2589 = vadd.f32 %v2356, %v2552
        %v2590 = vadd.f32 %v2357, %v2554
        %v2591 = vadd.f32 %v2358, %v2557
        %v2592 = vadd.f32 %v2359, %v2559
        %v2593 = vld [vmem:[%s4] sm:$0x1]
        %v2595 = vperm.slane %v2593, 0
        %v2597 = vadd.f32 %v2561, %v2595
        %v2598 = vadd.f32 %v2562, %v2595
        %v2599 = vadd.f32 %v2563, %v2595
        %v2600 = vadd.f32 %v2564, %v2595
        %v2601 = vadd.f32 %v2565, %v2595
        %v2602 = vadd.f32 %v2566, %v2595
        %v2603 = vadd.f32 %v2567, %v2595
        %v2604 = vadd.f32 %v2568, %v2595
        %v2605 = vadd.f32 %v2569, %v2595
        %v2606 = vadd.f32 %v2570, %v2595
        %v2607 = vadd.f32 %v2571, %v2595
        %v2608 = vadd.f32 %v2572, %v2595
        %v2609 = vadd.f32 %v2573, %v2595
        %v2610 = vadd.f32 %v2574, %v2595
        %v2611 = vadd.f32 %v2575, %v2595
        %v2612 = vadd.f32 %v2576, %v2595
        %v2613 = vadd.f32 %v2577, %v2595
        %v2614 = vadd.f32 %v2578, %v2595
        %v2615 = vadd.f32 %v2579, %v2595
        %v2616 = vadd.f32 %v2580, %v2595
        %v2617 = vadd.f32 %v2581, %v2595
        %v2618 = vadd.f32 %v2582, %v2595
        %v2619 = vadd.f32 %v2583, %v2595
        %v2620 = vadd.f32 %v2584, %v2595
        %v2621 = vadd.f32 %v2585, %v2595
        %v2622 = vadd.f32 %v2586, %v2595
        %v2623 = vadd.f32 %v2587, %v2595
        %v2624 = vadd.f32 %v2588, %v2595
        %v2625 = vadd.f32 %v2589, %v2595
        %v2626 = vadd.f32 %v2590, %v2595
        %v2627 = vadd.f32 %v2591, %v2595
        %v2628 = vadd.f32 %v2592, %v2595
        %v2629 = vadd.f32 %v347, %v2597
        %v2630 = vadd.f32 %v348, %v2598
        %v2631 = vadd.f32 %v349, %v2599
        %v2632 = vadd.f32 %v350, %v2600
        %v2633 = vadd.f32 %v351, %v2601
        %v2634 = vadd.f32 %v352, %v2602
        %v2635 = vadd.f32 %v353, %v2603
        %v2636 = vadd.f32 %v354, %v2604
        %v2637 = vadd.f32 %v355, %v2605
        %v2638 = vadd.f32 %v356, %v2606
        %v2639 = vadd.f32 %v357, %v2607
        %v2640 = vadd.f32 %v358, %v2608
        %v2641 = vadd.f32 %v359, %v2609
        %v2642 = vadd.f32 %v360, %v2610
        %v2643 = vadd.f32 %v361, %v2611
        %v2644 = vadd.f32 %v362, %v2612
        %v2645 = vadd.f32 %v363, %v2613
        %v2646 = vadd.f32 %v364, %v2614
        %v2647 = vadd.f32 %v365, %v2615
        %v2648 = vadd.f32 %v366, %v2616
        %v2649 = vadd.f32 %v367, %v2617
        %v2650 = vadd.f32 %v368, %v2618
        %v2651 = vadd.f32 %v369, %v2619
        %v2652 = vadd.f32 %v370, %v2620
        %v2653 = vadd.f32 %v371, %v2621
        %v2654 = vadd.f32 %v372, %v2622
        %v2655 = vadd.f32 %v373, %v2623
        %v2656 = vadd.f32 %v374, %v2624
        %v2657 = vadd.f32 %v375, %v2625
        %v2658 = vadd.f32 %v376, %v2626
        %v2659 = vadd.f32 %v377, %v2627
        %v2660 = vadd.f32 %v378, %v2628
        %v2661 = vpack.c.bf16 %v2629, %v2629
        %v2662 = vpack.c.bf16 %v2630, %v2630
        %v2663 = vpack.c.bf16 %v2631, %v2631
        %v2664 = vpack.c.bf16 %v2632, %v2632
        %v2665 = vpack.c.bf16 %v2633, %v2633
        %v2666 = vpack.c.bf16 %v2634, %v2634
        %v2667 = vpack.c.bf16 %v2635, %v2635
        %v2668 = vpack.c.bf16 %v2636, %v2636
        %v2669 = vpack.c.bf16 %v2637, %v2637
        %v2670 = vpack.c.bf16 %v2638, %v2638
        %v2671 = vpack.c.bf16 %v2639, %v2639
        %v2672 = vpack.c.bf16 %v2640, %v2640
        %v2673 = vpack.c.bf16 %v2641, %v2641
        %v2674 = vpack.c.bf16 %v2642, %v2642
        %v2675 = vpack.c.bf16 %v2643, %v2643
        %v2676 = vpack.c.bf16 %v2644, %v2644
        %v2677 = vpack.c.bf16 %v2645, %v2645
        %v2678 = vpack.c.bf16 %v2646, %v2646
        %v2679 = vpack.c.bf16 %v2647, %v2647
        %v2680 = vpack.c.bf16 %v2648, %v2648
        %v2681 = vpack.c.bf16 %v2649, %v2649
        %v2682 = vpack.c.bf16 %v2650, %v2650
        %v2683 = vpack.c.bf16 %v2651, %v2651
        %v2684 = vpack.c.bf16 %v2652, %v2652
        %v2685 = vpack.c.bf16 %v2653, %v2653
        %v2686 = vpack.c.bf16 %v2654, %v2654
        %v2687 = vpack.c.bf16 %v2655, %v2655
        %v2688 = vpack.c.bf16 %v2656, %v2656
        %v2689 = vpack.c.bf16 %v2657, %v2657
        %v2690 = vpack.c.bf16 %v2658, %v2658
        %v2691 = vpack.c.bf16 %v2659, %v2659
        %v2692 = vpack.c.bf16 %v2660, %v2660
        %2693 = vst [vmem:[%s314] sm:$0xf] %v2661
        %2694 = vst [vmem:[%s314 + $0x4] sm:$0xf] %v2662
        %2695 = vst [vmem:[%s314 + $0x8] sm:$0xf] %v2663
        %2696 = vst [vmem:[%s314 + $0xc] sm:$0xf] %v2664
        %2697 = vst [vmem:[%s314 + $0x10] sm:$0xf] %v2665
        %2698 = vst [vmem:[%s314 + $0x14] sm:$0xf] %v2666
        %2699 = vst [vmem:[%s314 + $0x18] sm:$0xf] %v2667
        %2700 = vst [vmem:[%s314 + $0x1c] sm:$0xf] %v2668
        %2701 = vst [vmem:[%s314 + $0x20] sm:$0xf] %v2669
        %2702 = vst [vmem:[%s314 + $0x24] sm:$0xf] %v2670
        %2703 = vst [vmem:[%s314 + $0x28] sm:$0xf] %v2671
        %2704 = vst [vmem:[%s314 + $0x2c] sm:$0xf] %v2672
        %2705 = vst [vmem:[%s314 + $0x30] sm:$0xf] %v2673
        %2706 = vst [vmem:[%s314 + $0x34] sm:$0xf] %v2674
        %2707 = vst [vmem:[%s314 + $0x38] sm:$0xf] %v2675
        %2708 = vst [vmem:[%s314 + $0x3c] sm:$0xf] %v2676
        %2709 = vst [vmem:[%s314 + $0x40] sm:$0xf] %v2677
        %2710 = vst [vmem:[%s314 + $0x44] sm:$0xf] %v2678
        %2711 = vst [vmem:[%s314 + $0x48] sm:$0xf] %v2679
        %2712 = vst [vmem:[%s314 + $0x4c] sm:$0xf] %v2680
        %2713 = vst [vmem:[%s314 + $0x50] sm:$0xf] %v2681
        %2714 = vst [vmem:[%s314 + $0x54] sm:$0xf] %v2682
        %2715 = vst [vmem:[%s314 + $0x58] sm:$0xf] %v2683
        %2716 = vst [vmem:[%s314 + $0x5c] sm:$0xf] %v2684
        %2717 = vst [vmem:[%s314 + $0x60] sm:$0xf] %v2685
        %2718 = vst [vmem:[%s314 + $0x64] sm:$0xf] %v2686
        %2719 = vst [vmem:[%s314 + $0x68] sm:$0xf] %v2687
        %2720 = vst [vmem:[%s314 + $0x6c] sm:$0xf] %v2688
        %2721 = vst [vmem:[%s314 + $0x70] sm:$0xf] %v2689
        %2722 = vst [vmem:[%s314 + $0x74] sm:$0xf] %v2690
        %2723 = vst [vmem:[%s314 + $0x78] sm:$0xf] %v2691
        %2724 = vst [vmem:[%s314 + $0x7c] sm:$0xf] %v2692
        %v2725 = vunpack.c.l.bf16 %v2661
        %v2726 = vunpack.c.l.bf16 %v2662
        %v2727 = vunpack.c.l.bf16 %v2663
        %v2728 = vunpack.c.l.bf16 %v2664
        %v2729 = vunpack.c.l.bf16 %v2665
        %v2730 = vunpack.c.l.bf16 %v2666
        %v2731 = vunpack.c.l.bf16 %v2667
        %v2732 = vunpack.c.l.bf16 %v2668
        %v2733 = vunpack.c.l.bf16 %v2669
        %v2734 = vunpack.c.l.bf16 %v2670
        %v2735 = vunpack.c.l.bf16 %v2671
        %v2736 = vunpack.c.l.bf16 %v2672
        %v2737 = vunpack.c.l.bf16 %v2673
        %v2738 = vunpack.c.l.bf16 %v2674
        %v2739 = vunpack.c.l.bf16 %v2675
        %v2740 = vunpack.c.l.bf16 %v2676
        %v2741 = vunpack.c.l.bf16 %v2677
        %v2742 = vunpack.c.l.bf16 %v2678
        %v2743 = vunpack.c.l.bf16 %v2679
        %v2744 = vunpack.c.l.bf16 %v2680
        %v2745 = vunpack.c.l.bf16 %v2681
        %v2746 = vunpack.c.l.bf16 %v2682
        %v2747 = vunpack.c.l.bf16 %v2683
        %v2748 = vunpack.c.l.bf16 %v2684
        %v2749 = vunpack.c.l.bf16 %v2685
        %v2750 = vunpack.c.l.bf16 %v2686
        %v2751 = vunpack.c.l.bf16 %v2687
        %v2752 = vunpack.c.l.bf16 %v2688
        %v2753 = vunpack.c.l.bf16 %v2689
        %v2754 = vunpack.c.l.bf16 %v2690
        %v2755 = vunpack.c.l.bf16 %v2691
        %v2756 = vunpack.c.l.bf16 %v2692
        %v2757 = vadd.f32 %v2725, %v2726
        %v2758 = vadd.f32 %v2757, %v2727
        %v2759 = vadd.f32 %v2758, %v2728
        %v2760 = vadd.f32 %v2759, %v2729
        %v2761 = vadd.f32 %v2760, %v2730
        %v2762 = vadd.f32 %v2761, %v2731
        %v2763 = vadd.f32 %v2762, %v2732
        %v2764 = vadd.f32 %v2763, %v2733
        %v2765 = vadd.f32 %v2764, %v2734
        %v2766 = vadd.f32 %v2765, %v2735
        %v2767 = vadd.f32 %v2766, %v2736
        %v2768 = vadd.f32 %v2767, %v2737
        %v2769 = vadd.f32 %v2768, %v2738
        %v2770 = vadd.f32 %v2769, %v2739
        %v2771 = vadd.f32 %v2770, %v2740
        %v2772 = vadd.f32 %v2771, %v2741
        %v2773 = vadd.f32 %v2772, %v2742
        %v2774 = vadd.f32 %v2773, %v2743
        %v2775 = vadd.f32 %v2774, %v2744
        %v2776 = vadd.f32 %v2775, %v2745
        %v2777 = vadd.f32 %v2776, %v2746
        %v2778 = vadd.f32 %v2777, %v2747
        %v2779 = vadd.f32 %v2778, %v2748
        %v2780 = vadd.f32 %v2779, %v2749
        %v2781 = vadd.f32 %v2780, %v2750
        %v2782 = vadd.f32 %v2781, %v2751
        %v2783 = vadd.f32 %v2782, %v2752
        %v2784 = vadd.f32 %v2783, %v2753
        %v2785 = vadd.f32 %v2784, %v2754
        %v2786 = vadd.f32 %v2785, %v2755
        %v2787 = vadd.f32 %v2786, %v2756
        %v2788 = vrot.slane %v2787, 4
        %v2789 = vadd.f32 %v2787, %v2788
        %v2790 = vrot.slane %v2789, 2
        %v2791 = vadd.f32 %v2789, %v2790
        %v2792 = vrot.slane %v2791, 1
        %v2793 = vadd.f32 %v2791, %v2792
        %2794 = vst [vmem:[%s298] sm:$0x1] %v2793
        %v2795 = vmul.f32 %v2725, %v2725
        %v2796 = vmul.f32 %v2726, %v2726
        %v2797 = vmul.f32 %v2727, %v2727
        %v2798 = vmul.f32 %v2728, %v2728
        %v2799 = vmul.f32 %v2729, %v2729
        %v2800 = vmul.f32 %v2730, %v2730
        %v2801 = vmul.f32 %v2731, %v2731
        %v2802 = vmul.f32 %v2732, %v2732
        %v2803 = vmul.f32 %v2733, %v2733
        %v2804 = vmul.f32 %v2734, %v2734
        %v2805 = vmul.f32 %v2735, %v2735
        %v2806 = vmul.f32 %v2736, %v2736
        %v2807 = vmul.f32 %v2737, %v2737
        %v2808 = vmul.f32 %v2738, %v2738
        %v2809 = vmul.f32 %v2739, %v2739
        %v2810 = vmul.f32 %v2740, %v2740
        %v2811 = vmul.f32 %v2741, %v2741
        %v2812 = vmul.f32 %v2742, %v2742
        %v2813 = vmul.f32 %v2743, %v2743
        %v2814 = vmul.f32 %v2744, %v2744
        %v2815 = vmul.f32 %v2745, %v2745
        %v2816 = vmul.f32 %v2746, %v2746
        %v2817 = vmul.f32 %v2747, %v2747
        %v2818 = vmul.f32 %v2748, %v2748
        %v2819 = vmul.f32 %v2749, %v2749
        %v2820 = vmul.f32 %v2750, %v2750
        %v2821 = vmul.f32 %v2751, %v2751
        %v2822 = vmul.f32 %v2752, %v2752
        %v2823 = vmul.f32 %v2753, %v2753
        %v2824 = vmul.f32 %v2754, %v2754
        %v2825 = vmul.f32 %v2755, %v2755
        %v2826 = vmul.f32 %v2756, %v2756
        %v2827 = vadd.f32 %v2795, %v2796
        %v2828 = vadd.f32 %v2827, %v2797
        %v2829 = vadd.f32 %v2828, %v2798
        %v2830 = vadd.f32 %v2829, %v2799
        %v2831 = vadd.f32 %v2830, %v2800
        %v2832 = vadd.f32 %v2831, %v2801
        %v2833 = vadd.f32 %v2832, %v2802
        %v2834 = vadd.f32 %v2833, %v2803
        %v2835 = vadd.f32 %v2834, %v2804
        %v2836 = vadd.f32 %v2835, %v2805
        %v2837 = vadd.f32 %v2836, %v2806
        %v2838 = vadd.f32 %v2837, %v2807
        %v2839 = vadd.f32 %v2838, %v2808
        %v2840 = vadd.f32 %v2839, %v2809
        %v2841 = vadd.f32 %v2840, %v2810
        %v2842 = vadd.f32 %v2841, %v2811
        %v2843 = vadd.f32 %v2842, %v2812
        %v2844 = vadd.f32 %v2843, %v2813
        %v2845 = vadd.f32 %v2844, %v2814
        %v2846 = vadd.f32 %v2845, %v2815
        %v2847 = vadd.f32 %v2846, %v2816
        %v2848 = vadd.f32 %v2847, %v2817
        %v2849 = vadd.f32 %v2848, %v2818
        %v2850 = vadd.f32 %v2849, %v2819
        %v2851 = vadd.f32 %v2850, %v2820
        %v2852 = vadd.f32 %v2851, %v2821
        %v2853 = vadd.f32 %v2852, %v2822
        %v2854 = vadd.f32 %v2853, %v2823
        %v2855 = vadd.f32 %v2854, %v2824
        %v2856 = vadd.f32 %v2855, %v2825
        %v2857 = vadd.f32 %v2856, %v2826
        %v2858 = vrot.slane %v2857, 4
        %v2859 = vadd.f32 %v2857, %v2858
        %v2860 = vrot.slane %v2859, 2
        %v2861 = vadd.f32 %v2859, %v2860
        %v2862 = vrot.slane %v2861, 1
        %v2863 = vadd.f32 %v2861, %v2862
        %2864 = vst [vmem:[%s304] sm:$0x1] %v2863
        %p2865 = scmp.lt.s32.totalorder %s26, 1
        %s2866 = scalar_select %p2865, %s26, 1
        %s2867 = smul.addr %s2866, 32
        %s2868 = smul.addr %s2867, 4
        %s2869 = scalar_lea.vmem %s5, %s2868
        %s2870 = sand.u32 %s170, 1
        %s2871 = scalar_lea.sflag [#allocation5], %s2870
        %s2872 = sand.u32 %s170, 1
        %s2873 = scalar_lea.vmem [#allocation6], %s2872
        %s2874 = sand.u32 %s196, 1
        %s2875 = scalar_lea.sflag [#allocation8], %s2874
        %s2876 = sand.u32 %s196, 1
        %s2877 = scalar_lea.vmem [#allocation7], %s2876
        // Predicated region
        $region45: #{forward.3} parent=39 // pred_check
          %p2878 = pneg %p154
        $region46: #{forward.3} parent=39 // pred_check_branch
          %2880 = sbr.rel (%p2878) target = $region48
        $region47: #{forward.3} parent=39 // pred_region
          _
        $region48: #{forward.3} parent=39 // pred_fallthru
          _
        // Predicated region
        $region49: #{forward.3} parent=39 // pred_check
          %p2881 = pneg %p180
        $region50: #{forward.3} parent=39 // pred_check_branch
          %2883 = sbr.rel (%p2881) target = $region52
        $region51: #{forward.3} parent=39 // pred_region
          %2885 = vsyncadd %s2871, 0
          %s2886 = scalar_lea.hbm %s6, %s26
          %s2888 = sshll.u32 %s2873, 4
          %s2889 = int_to_ptr.vmem [resolvable:$true] %s2888
          %s2890 = sshll.u32 %s2886, 4
          %s2891 = int_to_ptr.hbm [resolvable:$true] %s2890
          %2893 = dma.vmem_to_hbm [thread:$0]  %s2889, 16, %s2891, %s2871
        $region52: #{forward.3} parent=39 // pred_fallthru
          _
        // Predicated region
        $region53: #{forward.3} parent=39 // pred_check
          %p2894 = pneg %p206
        $region54: #{forward.3} parent=39 // pred_check_branch
          %2896 = sbr.rel (%p2894) target = $region56
        $region55: #{forward.3} parent=39 // pred_region
          %2898 = vsyncadd %s2875, 0
          %s2899 = scalar_lea.hbm %s7, %s26
          %s2901 = sshll.u32 %s2877, 4
          %s2902 = int_to_ptr.vmem [resolvable:$true] %s2901
          %s2903 = sshll.u32 %s2899, 4
          %s2904 = int_to_ptr.hbm [resolvable:$true] %s2903
          %2906 = dma.vmem_to_hbm [thread:$0]  %s2902, 16, %s2904, %s2875
        $region56: #{forward.3} parent=39 // pred_fallthru
          _
      $region40: #{forward.3} parent=5 // pred_fallthru
        _
      %p2907 = scmp.le.s32.totalorder 2, %s21
      // Predicated region
      $region57: #{forward.3} parent=5 // pred_check
        %p2908 = pneg %p2907
      $region58: #{forward.3} parent=5 // pred_check_branch
        %2910 = sbr.rel (%p2908) target = $region60
      $region59: #{forward.3} parent=5 // pred_region
        %s2911 = ssub.s32 %s21, 2
        // Predicated region
        $region61: #{forward.3} parent=59 // pred_check
          %p2912 = pneg %p160
        $region62: #{forward.3} parent=59 // pred_check_branch
          %2914 = sbr.rel (%p2912) target = $region64
        $region63: #{forward.3} parent=59 // pred_region
          %p2915 = scmp.lt.s32.totalorder %s27, 1
          %s2916 = scalar_select %p2915, %s27, 1
          %s2917 = smul.addr %s2916, 32
          %s2918 = smul.addr %s2917, 4
          %s2919 = scalar_lea.vmem %s5, %s2918
        $region64: #{forward.3} parent=59 // pred_fallthru
          _
        // Predicated region
        $region65: #{forward.3} parent=59 // pred_check
          %p2920 = pneg %p186
        $region66: #{forward.3} parent=59 // pred_check_branch
          %2922 = sbr.rel (%p2920) target = $region68
        $region67: #{forward.3} parent=59 // pred_region
          %s2923 = sand.u32 %s171, 1
          %s2924 = scalar_lea.sflag [#allocation5], %s2923
          %s2925 = sand.u32 %s171, 1
          %s2926 = scalar_lea.vmem [#allocation6], %s2925
          %2928 = dma.done %s2924, 16
        $region68: #{forward.3} parent=59 // pred_fallthru
          _
        // Predicated region
        $region69: #{forward.3} parent=59 // pred_check
          %p2929 = pneg %p212
        $region70: #{forward.3} parent=59 // pred_check_branch
          %2931 = sbr.rel (%p2929) target = $region72
        $region71: #{forward.3} parent=59 // pred_region
          %s2932 = sand.u32 %s197, 1
          %s2933 = scalar_lea.sflag [#allocation8], %s2932
          %s2934 = sand.u32 %s197, 1
          %s2935 = scalar_lea.vmem [#allocation7], %s2934
          %2937 = dma.done %s2933, 16
        $region72: #{forward.3} parent=59 // pred_fallthru
          _
      $region60: #{forward.3} parent=5 // pred_fallthru
        _
    $region6: #{forward.3} parent=1 // loop_footer
      %s25 = sadd.s32 1, %s21
    $region7: #{forward.3} parent=1 // loop_footer_branch
      %20 = sbr.rel target = $region3
    $region8: #{forward.3} parent=1 // loop_exit
      _
    %2938 = vsyncpa [#allocation4], 1
    %s2939 = scalar_lea.sflag [#allocation4], 1
    %2940 = vsyncpa %s2939, 1
    %2941 = vsyncpa [#allocation5], 1
    %s2942 = scalar_lea.sflag [#allocation5], 1
    %2943 = vsyncpa %s2942, 1
    %2944 = vsyncpa [#allocation8], 1
    %s2945 = scalar_lea.sflag [#allocation8], 1
    %2946 = vsyncpa %s2945, 1

// kernel: forward.2
$region0: #{forward.2}
  #allocation0 [shape = 'u32[]', space=smem, size = 0x4, offset = 0x4, fixed_abs, tag = 'smem constant byte address 0x4 - core index']
  #allocation1 [shape = 'u32[72,128]{1,0:T(1,128)}', space=vmem, size = 0x9000, scoped, tag = 'internal scratch']
  #allocation2 [shape = 'f32[18,18,128]{2,1,0:T(8,128)}', space=vmem, size = 0x36000, scoped, tag = 'scratch operand']
  %s0 = inlined_call_operand.vmem [shape: bf16[2,16,16,128], index: 0, kind: input, shape index: {}, may-alias: {0,5}]
  %s1 = inlined_call_operand.vmem [shape: f32[1,128], index: 1, kind: input, shape index: {}]
  %s2 = inlined_call_operand.vmem [shape: f32[1,128], index: 2, kind: input, shape index: {}]
  %s3 = inlined_call_operand.vmem [shape: bf16[1152,128], index: 3, kind: input, shape index: {}]
  %s4 = inlined_call_operand.vmem [shape: f32[1,128], index: 4, kind: input, shape index: {}]
  %s5 = inlined_call_operand.vmem [shape: bf16[2,16,16,128], index: 5, kind: output, shape index: {0}, may-alias: {0,5}]
  %s6 = inlined_call_operand.vmem [shape: f32[2,1,128], index: 6, kind: output, shape index: {1}]
  %s7 = inlined_call_operand.vmem [shape: f32[2,1,128], index: 7, kind: output, shape index: {2}]
  %8 = xla_tuple %s5, %s6, %s7
  %s9 = sld [smem:[#allocation0]]
  $region69: #{forward.2} parent=0
    _
  %s11 = ssub.s32 1, %s9
  %s12 = scalar_select 0, %s11, %s9
  loop: start=0, step=1, limit=4
  $region2: #{forward.2} parent=0 // loop_pre_header
    _
  $region3: #{forward.2} parent=0 // loop_header
    %s14 = sphi 0, %s18
    %p15 = scmp.ge.s32.totalorder %s14, 4
    %s24 = sphi 0, %s26
    %s27 = sphi 0, %s24
    %s28 = sphi 0, %s27
    %s44 = sphi 0, %s28
    %s48 = sphi 0, %s48
    %s50 = sphi 0, %s48
    %s51 = sphi 0, %s50
    %s65 = sphi 0, %s51
    %s69 = sphi 0, %s69
    %s71 = sphi 0, %s69
    %s72 = sphi 0, %s71
    %s86 = sphi 0, %s72
    %s90 = sphi 0, %s90
    %s92 = sphi 0, %s90
    %s93 = sphi 0, %s92
    %s107 = sphi 0, %s93
    %s111 = sphi 0, %s111
    %s113 = sphi 0, %s111
    %s114 = sphi 0, %s113
    %s128 = sphi 0, %s114
    %s134 = sphi 0, %s136
    %s137 = sphi 0, %s134
    %s138 = sphi 0, %s137
    %s154 = sphi 0, %s138
    %s160 = sphi 0, %s162
    %s163 = sphi 0, %s160
    %s164 = sphi 0, %s163
    %s180 = sphi 0, %s164
    %s186 = sphi 0, %s188
    %s189 = sphi 0, %s186
    %s190 = sphi 0, %s189
    %s206 = sphi 0, %s190
  $region4: #{forward.2} parent=0 // loop_header_branch
    %17 = sbr.rel (%p15) target = $region8
  $region5: #{forward.2} parent=0 // loop_body
    %s19 = ssub.s32 %s14, 1
    %s20 = ssub.s32 %s14, 2
    %s21 = sadd.s32 %s14, 1
    %s22 = ssub.s32 %s14, %s21
    %p23 = scmp.eq.s32.totalorder %s22, 0
    %s25 = sadd.s32 %s24, 1
    %s26 = scalar_select %p23, %s24, %s25
    %p29 = pneg %p23
    %p30 = scmp.eq.s32.totalorder %s14, 1
    %p31 = por %p29, %p30
    %p32 = scmp.ne.s32.totalorder %s24, %s27
    %p33 = scmp.eq.s32.totalorder %s14, 0
    %p34 = por %p32, %p33
    %p35 = scmp.ne.s32.totalorder %s24, %s27
    %p36 = scmp.eq.s32.totalorder %s19, 1
    %p37 = por %p35, %p36
    %p38 = scmp.ne.s32.totalorder %s27, %s28
    %p39 = scmp.eq.s32.totalorder %s19, 0
    %p40 = por %p38, %p39
    %p41 = scmp.ne.s32.totalorder %s27, %s28
    %p42 = scmp.eq.s32.totalorder %s20, 1
    %p43 = por %p41, %p42
    %p45 = scmp.ne.s32.totalorder %s28, %s44
    %p46 = scmp.eq.s32.totalorder %s20, 0
    %p47 = por %p45, %p46
    %s49 = sadd.s32 %s48, 1
    %p52 = scmp.eq.s32.totalorder %s14, 1
    %p53 = scmp.ne.s32.totalorder %s48, %s50
    %p54 = scmp.eq.s32.totalorder %s14, 0
    %p55 = por %p53, %p54
    %p56 = scmp.ne.s32.totalorder %s48, %s50
    %p57 = scmp.eq.s32.totalorder %s19, 1
    %p58 = por %p56, %p57
    %p59 = scmp.ne.s32.totalorder %s50, %s51
    %p60 = scmp.eq.s32.totalorder %s19, 0
    %p61 = por %p59, %p60
    %p62 = scmp.ne.s32.totalorder %s50, %s51
    %p63 = scmp.eq.s32.totalorder %s20, 1
    %p64 = por %p62, %p63
    %p66 = scmp.ne.s32.totalorder %s51, %s65
    %p67 = scmp.eq.s32.totalorder %s20, 0
    %p68 = por %p66, %p67
    %s70 = sadd.s32 %s69, 1
    %p73 = scmp.eq.s32.totalorder %s14, 1
    %p74 = scmp.ne.s32.totalorder %s69, %s71
    %p75 = scmp.eq.s32.totalorder %s14, 0
    %p76 = por %p74, %p75
    %p77 = scmp.ne.s32.totalorder %s69, %s71
    %p78 = scmp.eq.s32.totalorder %s19, 1
    %p79 = por %p77, %p78
    %p80 = scmp.ne.s32.totalorder %s71, %s72
    %p81 = scmp.eq.s32.totalorder %s19, 0
    %p82 = por %p80, %p81
    %p83 = scmp.ne.s32.totalorder %s71, %s72
    %p84 = scmp.eq.s32.totalorder %s20, 1
    %p85 = por %p83, %p84
    %p87 = scmp.ne.s32.totalorder %s72, %s86
    %p88 = scmp.eq.s32.totalorder %s20, 0
    %p89 = por %p87, %p88
    %s91 = sadd.s32 %s90, 1
    %p94 = scmp.eq.s32.totalorder %s14, 1
    %p95 = scmp.ne.s32.totalorder %s90, %s92
    %p96 = scmp.eq.s32.totalorder %s14, 0
    %p97 = por %p95, %p96
    %p98 = scmp.ne.s32.totalorder %s90, %s92
    %p99 = scmp.eq.s32.totalorder %s19, 1
    %p100 = por %p98, %p99
    %p101 = scmp.ne.s32.totalorder %s92, %s93
    %p102 = scmp.eq.s32.totalorder %s19, 0
    %p103 = por %p101, %p102
    %p104 = scmp.ne.s32.totalorder %s92, %s93
    %p105 = scmp.eq.s32.totalorder %s20, 1
    %p106 = por %p104, %p105
    %p108 = scmp.ne.s32.totalorder %s93, %s107
    %p109 = scmp.eq.s32.totalorder %s20, 0
    %p110 = por %p108, %p109
    %s112 = sadd.s32 %s111, 1
    %p115 = scmp.eq.s32.totalorder %s14, 1
    %p116 = scmp.ne.s32.totalorder %s111, %s113
    %p117 = scmp.eq.s32.totalorder %s14, 0
    %p118 = por %p116, %p117
    %p119 = scmp.ne.s32.totalorder %s111, %s113
    %p120 = scmp.eq.s32.totalorder %s19, 1
    %p121 = por %p119, %p120
    %p122 = scmp.ne.s32.totalorder %s113, %s114
    %p123 = scmp.eq.s32.totalorder %s19, 0
    %p124 = por %p122, %p123
    %p125 = scmp.ne.s32.totalorder %s113, %s114
    %p126 = scmp.eq.s32.totalorder %s20, 1
    %p127 = por %p125, %p126
    %p129 = scmp.ne.s32.totalorder %s114, %s128
    %p130 = scmp.eq.s32.totalorder %s20, 0
    %p131 = por %p129, %p130
    %s132 = ssub.s32 %s14, %s21
    %p133 = scmp.eq.s32.totalorder %s132, 0
    %s135 = sadd.s32 %s134, 1
    %s136 = scalar_select %p133, %s134, %s135
    %p139 = pneg %p133
    %p140 = scmp.eq.s32.totalorder %s14, 1
    %p141 = por %p139, %p140
    %p142 = scmp.ne.s32.totalorder %s134, %s137
    %p143 = scmp.eq.s32.totalorder %s14, 0
    %p144 = por %p142, %p143
    %p145 = scmp.ne.s32.totalorder %s134, %s137
    %p146 = scmp.eq.s32.totalorder %s19, 1
    %p147 = por %p145, %p146
    %p148 = scmp.ne.s32.totalorder %s137, %s138
    %p149 = scmp.eq.s32.totalorder %s19, 0
    %p150 = por %p148, %p149
    %p151 = scmp.ne.s32.totalorder %s137, %s138
    %p152 = scmp.eq.s32.totalorder %s20, 1
    %p153 = por %p151, %p152
    %p155 = scmp.ne.s32.totalorder %s138, %s154
    %p156 = scmp.eq.s32.totalorder %s20, 0
    %p157 = por %p155, %p156
    %s158 = ssub.s32 %s14, %s21
    %p159 = scmp.eq.s32.totalorder %s158, 0
    %s161 = sadd.s32 %s160, 1
    %s162 = scalar_select %p159, %s160, %s161
    %p165 = pneg %p159
    %p166 = scmp.eq.s32.totalorder %s14, 1
    %p167 = por %p165, %p166
    %p168 = scmp.ne.s32.totalorder %s160, %s163
    %p169 = scmp.eq.s32.totalorder %s14, 0
    %p170 = por %p168, %p169
    %p171 = scmp.ne.s32.totalorder %s160, %s163
    %p172 = scmp.eq.s32.totalorder %s19, 1
    %p173 = por %p171, %p172
    %p174 = scmp.ne.s32.totalorder %s163, %s164
    %p175 = scmp.eq.s32.totalorder %s19, 0
    %p176 = por %p174, %p175
    %p177 = scmp.ne.s32.totalorder %s163, %s164
    %p178 = scmp.eq.s32.totalorder %s20, 1
    %p179 = por %p177, %p178
    %p181 = scmp.ne.s32.totalorder %s164, %s180
    %p182 = scmp.eq.s32.totalorder %s20, 0
    %p183 = por %p181, %p182
    %s184 = ssub.s32 %s14, %s21
    %p185 = scmp.eq.s32.totalorder %s184, 0
    %s187 = sadd.s32 %s186, 1
    %s188 = scalar_select %p185, %s186, %s187
    %p191 = pneg %p185
    %p192 = scmp.eq.s32.totalorder %s14, 1
    %p193 = por %p191, %p192
    %p194 = scmp.ne.s32.totalorder %s186, %s189
    %p195 = scmp.eq.s32.totalorder %s14, 0
    %p196 = por %p194, %p195
    %p197 = scmp.ne.s32.totalorder %s186, %s189
    %p198 = scmp.eq.s32.totalorder %s19, 1
    %p199 = por %p197, %p198
    %p200 = scmp.ne.s32.totalorder %s189, %s190
    %p201 = scmp.eq.s32.totalorder %s19, 0
    %p202 = por %p200, %p201
    %p203 = scmp.ne.s32.totalorder %s189, %s190
    %p204 = scmp.eq.s32.totalorder %s20, 1
    %p205 = por %p203, %p204
    %p207 = scmp.ne.s32.totalorder %s190, %s206
    %p208 = scmp.eq.s32.totalorder %s20, 0
    %p209 = por %p207, %p208
    %p210 = scmp.le.s32.totalorder 1, %s14
    %p211 = scmp.lt.s32.totalorder %s14, 3
    %p212 = pnand %p210, %p211
    %p213 = pneg %p212
    // Predicated region
    $region9: #{forward.2} parent=5 // pred_check
      _
    $region10: #{forward.2} parent=5 // pred_check_branch
      %215 = sbr.rel (%p212) target = $region12
    $region11: #{forward.2} parent=5 // pred_region
      %s216 = ssub.s32 %s14, 1
      // Predicated region
      $region13: #{forward.2} parent=11 // pred_check
        %p217 = pneg %p61
      $region14: #{forward.2} parent=11 // pred_check_branch
        %219 = sbr.rel (%p217) target = $region16
      $region15: #{forward.2} parent=11 // pred_region
        _
      $region16: #{forward.2} parent=11 // pred_fallthru
        _
      // Predicated region
      $region17: #{forward.2} parent=11 // pred_check
        %p220 = pneg %p82
      $region18: #{forward.2} parent=11 // pred_check_branch
        %222 = sbr.rel (%p220) target = $region20
      $region19: #{forward.2} parent=11 // pred_region
        _
      $region20: #{forward.2} parent=11 // pred_fallthru
        _
      // Predicated region
      $region21: #{forward.2} parent=11 // pred_check
        %p223 = pneg %p103
      $region22: #{forward.2} parent=11 // pred_check_branch
        %225 = sbr.rel (%p223) target = $region24
      $region23: #{forward.2} parent=11 // pred_region
        _
      $region24: #{forward.2} parent=11 // pred_fallthru
        _
      // Predicated region
      $region25: #{forward.2} parent=11 // pred_check
        %p226 = pneg %p124
      $region26: #{forward.2} parent=11 // pred_check_branch
        %228 = sbr.rel (%p226) target = $region28
      $region27: #{forward.2} parent=11 // pred_region
        _
      $region28: #{forward.2} parent=11 // pred_fallthru
        _
    $region12: #{forward.2} parent=5 // pred_fallthru
      _
    %p229 = scmp.lt.s32.totalorder %s14, 2
    // Predicated region
    $region29: #{forward.2} parent=5 // pred_check
      %p230 = pneg %p229
    $region30: #{forward.2} parent=5 // pred_check_branch
      %232 = sbr.rel (%p230) target = $region32
    $region31: #{forward.2} parent=5 // pred_region
      // Predicated region
      $region33: #{forward.2} parent=31 // pred_check
        %p233 = pneg %p34
      $region34: #{forward.2} parent=31 // pred_check_branch
        %235 = sbr.rel (%p233) target = $region36
      $region35: #{forward.2} parent=31 // pred_region
        %p236 = scmp.lt.s32.totalorder %s14, 1
        %s237 = scalar_select %p236, %s14, 1
        %s238 = smul.addr %s237, 32
        %s239 = smul.addr %s238, 4
        %s240 = scalar_lea.vmem %s0, %s239
      $region36: #{forward.2} parent=31 // pred_fallthru
        _
    $region32: #{forward.2} parent=5 // pred_fallthru
      _
    %p241 = scmp.le.s32.totalorder 1, %s14
    %p242 = scmp.lt.s32.totalorder %s14, 3
    %p243 = pnand %p241, %p242
    %p244 = pneg %p243
    // Predicated region
    $region37: #{forward.2} parent=5 // pred_check
      _
    $region38: #{forward.2} parent=5 // pred_check_branch
      %246 = sbr.rel (%p243) target = $region40
    $region39: #{forward.2} parent=5 // pred_region
      %s247 = ssub.s32 %s14, 1
      %p248 = scmp.lt.s32.totalorder %s19, 1
      %s249 = scalar_select %p248, %s19, 1
      %s250 = smul.addr %s249, 32
      %s251 = smul.addr %s250, 4
      %s252 = scalar_lea.vmem %s0, %s251
      %p253 = pneg %p40
      %p254 = pneg %p37
      %p255 = pneg %p61
      %p256 = pneg %p58
      %p257 = pneg %p82
      %p258 = pneg %p79
      %p259 = pneg %p103
      %p260 = pneg %p100
      %p261 = pneg %p124
      %p262 = pneg %p121
      %p263 = pneg %p150
      %p264 = pneg %p147
      %p265 = scmp.lt.s32.totalorder %s19, 1
      %s266 = scalar_select %p265, %s19, 1
      %s267 = smul.addr %s266, 32
      %s268 = smul.addr %s267, 4
      %s269 = scalar_lea.vmem %s5, %s268
      %p270 = pneg %p176
      %p271 = pneg %p173
      %p272 = scmp.lt.s32.totalorder %s19, 1
      %s273 = scalar_select %p272, %s19, 1
      %s274 = scalar_lea.vmem %s6, %s273
      %p275 = pneg %p202
      %p276 = pneg %p199
      %p277 = scmp.lt.s32.totalorder %s19, 1
      %s278 = scalar_select %p277, %s19, 1
      %s279 = scalar_lea.vmem %s7, %s278
      %p280 = scmp.lt.s32.totalorder %s19, 1
      %s281 = scalar_select %p280, %s19, 1
      %s282 = smul.addr %s281, 32
      %s283 = smul.addr %s282, 4
      %s284 = scalar_lea.vmem %s0, %s283
      %p285 = scmp.lt.s32.totalorder %s19, 1
      %s286 = scalar_select %p285, %s19, 1
      %s287 = smul.addr %s286, 32
      %s288 = smul.addr %s287, 4
      %s289 = scalar_lea.vmem %s5, %s288
      %p290 = scmp.lt.s32.totalorder %s19, 1
      %s291 = scalar_select %p290, %s19, 1
      %s292 = scalar_lea.vmem %s6, %s291
      %p293 = scmp.lt.s32.totalorder %s19, 1
      %s294 = scalar_select %p293, %s19, 1
      %s295 = scalar_lea.vmem %s7, %s294
      %v296 = vld [vmem:[%s284] sm:$0xf]
      %v297 = vld [vmem:[%s284 + $0x4] sm:$0xf]
      %v298 = vld [vmem:[%s284 + $0x8] sm:$0xf]
      %v299 = vld [vmem:[%s284 + $0xc] sm:$0xf]
      %v300 = vld [vmem:[%s284 + $0x10] sm:$0xf]
      %v301 = vld [vmem:[%s284 + $0x14] sm:$0xf]
      %v302 = vld [vmem:[%s284 + $0x18] sm:$0xf]
      %v303 = vld [vmem:[%s284 + $0x1c] sm:$0xf]
      %v304 = vld [vmem:[%s284 + $0x20] sm:$0xf]
      %v305 = vld [vmem:[%s284 + $0x24] sm:$0xf]
      %v306 = vld [vmem:[%s284 + $0x28] sm:$0xf]
      %v307 = vld [vmem:[%s284 + $0x2c] sm:$0xf]
      %v308 = vld [vmem:[%s284 + $0x30] sm:$0xf]
      %v309 = vld [vmem:[%s284 + $0x34] sm:$0xf]
      %v310 = vld [vmem:[%s284 + $0x38] sm:$0xf]
      %v311 = vld [vmem:[%s284 + $0x3c] sm:$0xf]
      %v312 = vld [vmem:[%s284 + $0x40] sm:$0xf]
      %v313 = vld [vmem:[%s284 + $0x44] sm:$0xf]
      %v314 = vld [vmem:[%s284 + $0x48] sm:$0xf]
      %v315 = vld [vmem:[%s284 + $0x4c] sm:$0xf]
      %v316 = vld [vmem:[%s284 + $0x50] sm:$0xf]
      %v317 = vld [vmem:[%s284 + $0x54] sm:$0xf]
      %v318 = vld [vmem:[%s284 + $0x58] sm:$0xf]
      %v319 = vld [vmem:[%s284 + $0x5c] sm:$0xf]
      %v320 = vld [vmem:[%s284 + $0x60] sm:$0xf]
      %v321 = vld [vmem:[%s284 + $0x64] sm:$0xf]
      %v322 = vld [vmem:[%s284 + $0x68] sm:$0xf]
      %v323 = vld [vmem:[%s284 + $0x6c] sm:$0xf]
      %v324 = vld [vmem:[%s284 + $0x70] sm:$0xf]
      %v325 = vld [vmem:[%s284 + $0x74] sm:$0xf]
      %v326 = vld [vmem:[%s284 + $0x78] sm:$0xf]
      %v327 = vld [vmem:[%s284 + $0x7c] sm:$0xf]
      %v328 = vunpack.c.l.bf16 %v296
      %v329 = vunpack.c.l.bf16 %v297
      %v330 = vunpack.c.l.bf16 %v298
      %v331 = vunpack.c.l.bf16 %v299
      %v332 = vunpack.c.l.bf16 %v300
      %v333 = vunpack.c.l.bf16 %v301
      %v334 = vunpack.c.l.bf16 %v302
      %v335 = vunpack.c.l.bf16 %v303
      %v336 = vunpack.c.l.bf16 %v304
      %v337 = vunpack.c.l.bf16 %v305
      %v338 = vunpack.c.l.bf16 %v306
      %v339 = vunpack.c.l.bf16 %v307
      %v340 = vunpack.c.l.bf16 %v308
      %v341 = vunpack.c.l.bf16 %v309
      %v342 = vunpack.c.l.bf16 %v310
      %v343 = vunpack.c.l.bf16 %v311
      %v344 = vunpack.c.l.bf16 %v312
      %v345 = vunpack.c.l.bf16 %v313
      %v346 = vunpack.c.l.bf16 %v314
      %v347 = vunpack.c.l.bf16 %v315
      %v348 = vunpack.c.l.bf16 %v316
      %v349 = vunpack.c.l.bf16 %v317
      %v350 = vunpack.c.l.bf16 %v318
      %v351 = vunpack.c.l.bf16 %v319
      %v352 = vunpack.c.l.bf16 %v320
      %v353 = vunpack.c.l.bf16 %v321
      %v354 = vunpack.c.l.bf16 %v322
      %v355 = vunpack.c.l.bf16 %v323
      %v356 = vunpack.c.l.bf16 %v324
      %v357 = vunpack.c.l.bf16 %v325
      %v358 = vunpack.c.l.bf16 %v326
      %v359 = vunpack.c.l.bf16 %v327
      %v360 = vld [vmem:[%s1] sm:$0x1]
      %v362 = vperm.slane %v360, 0
      %v364 = vmul.f32 %v328, %v362
      %v365 = vmul.f32 %v329, %v362
      %v366 = vmul.f32 %v330, %v362
      %v367 = vmul.f32 %v331, %v362
      %v368 = vmul.f32 %v332, %v362
      %v369 = vmul.f32 %v333, %v362
      %v370 = vmul.f32 %v334, %v362
      %v371 = vmul.f32 %v335, %v362
      %v372 = vmul.f32 %v336, %v362
      %v373 = vmul.f32 %v337, %v362
      %v374 = vmul.f32 %v338, %v362
      %v375 = vmul.f32 %v339, %v362
      %v376 = vmul.f32 %v340, %v362
      %v377 = vmul.f32 %v341, %v362
      %v378 = vmul.f32 %v342, %v362
      %v379 = vmul.f32 %v343, %v362
      %v380 = vmul.f32 %v344, %v362
      %v381 = vmul.f32 %v345, %v362
      %v382 = vmul.f32 %v346, %v362
      %v383 = vmul.f32 %v347, %v362
      %v384 = vmul.f32 %v348, %v362
      %v385 = vmul.f32 %v349, %v362
      %v386 = vmul.f32 %v350, %v362
      %v387 = vmul.f32 %v351, %v362
      %v388 = vmul.f32 %v352, %v362
      %v389 = vmul.f32 %v353, %v362
      %v390 = vmul.f32 %v354, %v362
      %v391 = vmul.f32 %v355, %v362
      %v392 = vmul.f32 %v356, %v362
      %v393 = vmul.f32 %v357, %v362
      %v394 = vmul.f32 %v358, %v362
      %v395 = vmul.f32 %v359, %v362
      %v396 = vld [vmem:[%s2] sm:$0x1]
      %v398 = vperm.slane %v396, 0
      %v400 = vadd.f32 %v364, %v398
      %v401 = vadd.f32 %v365, %v398
      %v402 = vadd.f32 %v366, %v398
      %v403 = vadd.f32 %v367, %v398
      %v404 = vadd.f32 %v368, %v398
      %v405 = vadd.f32 %v369, %v398
      %v406 = vadd.f32 %v370, %v398
      %v407 = vadd.f32 %v371, %v398
      %v408 = vadd.f32 %v372, %v398
      %v409 = vadd.f32 %v373, %v398
      %v410 = vadd.f32 %v374, %v398
      %v411 = vadd.f32 %v375, %v398
      %v412 = vadd.f32 %v376, %v398
      %v413 = vadd.f32 %v377, %v398
      %v414 = vadd.f32 %v378, %v398
      %v415 = vadd.f32 %v379, %v398
      %v416 = vadd.f32 %v380, %v398
      %v417 = vadd.f32 %v381, %v398
      %v418 = vadd.f32 %v382, %v398
      %v419 = vadd.f32 %v383, %v398
      %v420 = vadd.f32 %v384, %v398
      %v421 = vadd.f32 %v385, %v398
      %v422 = vadd.f32 %v386, %v398
      %v423 = vadd.f32 %v387, %v398
      %v424 = vadd.f32 %v388, %v398
      %v425 = vadd.f32 %v389, %v398
      %v426 = vadd.f32 %v390, %v398
      %v427 = vadd.f32 %v391, %v398
      %v428 = vadd.f32 %v392, %v398
      %v429 = vadd.f32 %v393, %v398
      %v430 = vadd.f32 %v394, %v398
      %v431 = vadd.f32 %v395, %v398
      %v432 = vmax.f32 %v400, 0.0
      %v433 = vmax.f32 %v401, 0.0
      %v434 = vmax.f32 %v402, 0.0
      %v435 = vmax.f32 %v403, 0.0
      %v436 = vmax.f32 %v404, 0.0
      %v437 = vmax.f32 %v405, 0.0
      %v438 = vmax.f32 %v406, 0.0
      %v439 = vmax.f32 %v407, 0.0
      %v440 = vmax.f32 %v408, 0.0
      %v441 = vmax.f32 %v409, 0.0
      %v442 = vmax.f32 %v410, 0.0
      %v443 = vmax.f32 %v411, 0.0
      %v444 = vmax.f32 %v412, 0.0
      %v445 = vmax.f32 %v413, 0.0
      %v446 = vmax.f32 %v414, 0.0
      %v447 = vmax.f32 %v415, 0.0
      %v448 = vmax.f32 %v416, 0.0
      %v449 = vmax.f32 %v417, 0.0
      %v450 = vmax.f32 %v418, 0.0
      %v451 = vmax.f32 %v419, 0.0
      %v452 = vmax.f32 %v420, 0.0
      %v453 = vmax.f32 %v421, 0.0
      %v454 = vmax.f32 %v422, 0.0
      %v455 = vmax.f32 %v423, 0.0
      %v456 = vmax.f32 %v424, 0.0
      %v457 = vmax.f32 %v425, 0.0
      %v458 = vmax.f32 %v426, 0.0
      %v459 = vmax.f32 %v427, 0.0
      %v460 = vmax.f32 %v428, 0.0
      %v461 = vmax.f32 %v429, 0.0
      %v462 = vmax.f32 %v430, 0.0
      %v463 = vmax.f32 %v431, 0.0
      %464 = vst [vmem:[#allocation2] sm:$0xff] 0.0
      %465 = vst [vmem:[#allocation2 + $0x8] sm:$0xff] 0.0
      %466 = vst [vmem:[#allocation2 + $0x10] sm:$0x3] 0.0
      %s467 = scalar_lea.vmem [#allocation2], 408
      %468 = vst [vmem:[%s467] sm:$0xff] 0.0
      %469 = vst [vmem:[%s467 + $0x8] sm:$0xff] 0.0
      %470 = vst [vmem:[%s467 + $0x10] sm:$0x3] 0.0
      %471 = vst [vmem:[#allocation2] sm:$0x1] 0.0
      %472 = vst [vmem:[#allocation2 + $0x18] sm:$0x1] 0.0
      %473 = vst [vmem:[#allocation2 + $0x30] sm:$0x1] 0.0
      %474 = vst [vmem:[#allocation2 + $0x48] sm:$0x1] 0.0
      %475 = vst [vmem:[#allocation2 + $0x60] sm:$0x1] 0.0
      %476 = vst [vmem:[#allocation2 + $0x78] sm:$0x1] 0.0
      %477 = vst [vmem:[#allocation2 + $0x90] sm:$0x1] 0.0
      %478 = vst [vmem:[#allocation2 + $0xa8] sm:$0x1] 0.0
      %479 = vst [vmem:[#allocation2 + $0xc0] sm:$0x1] 0.0
      %480 = vst [vmem:[#allocation2 + $0xd8] sm:$0x1] 0.0
      %481 = vst [vmem:[#allocation2 + $0xf0] sm:$0x1] 0.0
      %482 = vst [vmem:[#allocation2 + $0x108] sm:$0x1] 0.0
      %483 = vst [vmem:[#allocation2 + $0x120] sm:$0x1] 0.0
      %484 = vst [vmem:[#allocation2 + $0x138] sm:$0x1] 0.0
      %485 = vst [vmem:[#allocation2 + $0x150] sm:$0x1] 0.0
      %486 = vst [vmem:[#allocation2 + $0x168] sm:$0x1] 0.0
      %487 = vst [vmem:[#allocation2 + $0x180] sm:$0x1] 0.0
      %488 = vst [vmem:[#allocation2 + $0x198] sm:$0x1] 0.0
      %489 = vst [vmem:[#allocation2 + $0x11] sm:$0x1] 0.0
      %490 = vst [vmem:[#allocation2 + $0x29] sm:$0x1] 0.0
      %491 = vst [vmem:[#allocation2 + $0x41] sm:$0x1] 0.0
      %492 = vst [vmem:[#allocation2 + $0x59] sm:$0x1] 0.0
      %493 = vst [vmem:[#allocation2 + $0x71] sm:$0x1] 0.0
      %494 = vst [vmem:[#allocation2 + $0x89] sm:$0x1] 0.0
      %495 = vst [vmem:[#allocation2 + $0xa1] sm:$0x1] 0.0
      %496 = vst [vmem:[#allocation2 + $0xb9] sm:$0x1] 0.0
      %497 = vst [vmem:[#allocation2 + $0xd1] sm:$0x1] 0.0
      %498 = vst [vmem:[#allocation2 + $0xe9] sm:$0x1] 0.0
      %499 = vst [vmem:[#allocation2 + $0x101] sm:$0x1] 0.0
      %500 = vst [vmem:[#allocation2 + $0x119] sm:$0x1] 0.0
      %501 = vst [vmem:[#allocation2 + $0x131] sm:$0x1] 0.0
      %502 = vst [vmem:[#allocation2 + $0x149] sm:$0x1] 0.0
      %503 = vst [vmem:[#allocation2 + $0x161] sm:$0x1] 0.0
      %504 = vst [vmem:[#allocation2 + $0x179] sm:$0x1] 0.0
      %505 = vst [vmem:[#allocation2 + $0x191] sm:$0x1] 0.0
      %506 = vst [vmem:[#allocation2 + $0x1a9] sm:$0x1] 0.0
      %s507 = scalar_lea.vmem [#allocation2], 24
      %508 = vst [vmem:[%s507 + $0x1] sm:$0xff] %v432
      %509 = vst [vmem:[%s507 + $0x9] sm:$0xff] %v433
      %510 = vst [vmem:[%s507 + $0x19] sm:$0xff] %v434
      %511 = vst [vmem:[%s507 + $0x21] sm:$0xff] %v435
      %512 = vst [vmem:[%s507 + $0x31] sm:$0xff] %v436
      %513 = vst [vmem:[%s507 + $0x39] sm:$0xff] %v437
      %514 = vst [vmem:[%s507 + $0x49] sm:$0xff] %v438
      %515 = vst [vmem:[%s507 + $0x51] sm:$0xff] %v439
      %516 = vst [vmem:[%s507 + $0x61] sm:$0xff] %v440
      %517 = vst [vmem:[%s507 + $0x69] sm:$0xff] %v441
      %518 = vst [vmem:[%s507 + $0x79] sm:$0xff] %v442
      %519 = vst [vmem:[%s507 + $0x81] sm:$0xff] %v443
      %520 = vst [vmem:[%s507 + $0x91] sm:$0xff] %v444
      %521 = vst [vmem:[%s507 + $0x99] sm:$0xff] %v445
      %522 = vst [vmem:[%s507 + $0xa9] sm:$0xff] %v446
      %523 = vst [vmem:[%s507 + $0xb1] sm:$0xff] %v447
      %524 = vst [vmem:[%s507 + $0xc1] sm:$0xff] %v448
      %525 = vst [vmem:[%s507 + $0xc9] sm:$0xff] %v449
      %526 = vst [vmem:[%s507 + $0xd9] sm:$0xff] %v450
      %527 = vst [vmem:[%s507 + $0xe1] sm:$0xff] %v451
      %528 = vst [vmem:[%s507 + $0xf1] sm:$0xff] %v452
      %529 = vst [vmem:[%s507 + $0xf9] sm:$0xff] %v453
      %530 = vst [vmem:[%s507 + $0x109] sm:$0xff] %v454
      %531 = vst [vmem:[%s507 + $0x111] sm:$0xff] %v455
      %532 = vst [vmem:[%s507 + $0x121] sm:$0xff] %v456
      %533 = vst [vmem:[%s507 + $0x129] sm:$0xff] %v457
      %534 = vst [vmem:[%s507 + $0x139] sm:$0xff] %v458
      %535 = vst [vmem:[%s507 + $0x141] sm:$0xff] %v459
      %536 = vst [vmem:[%s507 + $0x151] sm:$0xff] %v460
      %537 = vst [vmem:[%s507 + $0x159] sm:$0xff] %v461
      %538 = vst [vmem:[%s507 + $0x169] sm:$0xff] %v462
      %539 = vst [vmem:[%s507 + $0x171] sm:$0xff] %v463
      %v540 = vld [vmem:[#allocation2] sm:$0xff]
      %v541 = vld [vmem:[#allocation2 + $0x8] sm:$0xff]
      %v542 = vld [vmem:[#allocation2 + $0x18] sm:$0xff]
      %v543 = vld [vmem:[#allocation2 + $0x20] sm:$0xff]
      %v544 = vld [vmem:[#allocation2 + $0x30] sm:$0xff]
      %v545 = vld [vmem:[#allocation2 + $0x38] sm:$0xff]
      %v546 = vld [vmem:[#allocation2 + $0x48] sm:$0xff]
      %v547 = vld [vmem:[#allocation2 + $0x50] sm:$0xff]
      %v548 = vld [vmem:[#allocation2 + $0x60] sm:$0xff]
      %v549 = vld [vmem:[#allocation2 + $0x68] sm:$0xff]
      %v550 = vld [vmem:[#allocation2 + $0x78] sm:$0xff]
      %v551 = vld [vmem:[#allocation2 + $0x80] sm:$0xff]
      %v552 = vld [vmem:[#allocation2 + $0x90] sm:$0xff]
      %v553 = vld [vmem:[#allocation2 + $0x98] sm:$0xff]
      %v554 = vld [vmem:[#allocation2 + $0xa8] sm:$0xff]
      %v555 = vld [vmem:[#allocation2 + $0xb0] sm:$0xff]
      %v556 = vld [vmem:[#allocation2 + $0xc0] sm:$0xff]
      %v557 = vld [vmem:[#allocation2 + $0xc8] sm:$0xff]
      %v558 = vld [vmem:[#allocation2 + $0xd8] sm:$0xff]
      %v559 = vld [vmem:[#allocation2 + $0xe0] sm:$0xff]
      %v560 = vld [vmem:[#allocation2 + $0xf0] sm:$0xff]
      %v561 = vld [vmem:[#allocation2 + $0xf8] sm:$0xff]
      %v562 = vld [vmem:[#allocation2 + $0x108] sm:$0xff]
      %v563 = vld [vmem:[#allocation2 + $0x110] sm:$0xff]
      %v564 = vld [vmem:[#allocation2 + $0x120] sm:$0xff]
      %v565 = vld [vmem:[#allocation2 + $0x128] sm:$0xff]
      %v566 = vld [vmem:[#allocation2 + $0x138] sm:$0xff]
      %v567 = vld [vmem:[#allocation2 + $0x140] sm:$0xff]
      %v568 = vld [vmem:[#allocation2 + $0x150] sm:$0xff]
      %v569 = vld [vmem:[#allocation2 + $0x158] sm:$0xff]
      %v570 = vld [vmem:[#allocation2 + $0x168] sm:$0xff]
      %v571 = vld [vmem:[#allocation2 + $0x170] sm:$0xff]
      %v572 = vpack.c.bf16 %v541, %v540
      %v573 = vpack.c.bf16 %v543, %v542
      %v574 = vpack.c.bf16 %v545, %v544
      %v575 = vpack.c.bf16 %v547, %v546
      %v576 = vpack.c.bf16 %v549, %v548
      %v577 = vpack.c.bf16 %v551, %v550
      %v578 = vpack.c.bf16 %v553, %v552
      %v579 = vpack.c.bf16 %v555, %v554
      %v580 = vpack.c.bf16 %v557, %v556
      %v581 = vpack.c.bf16 %v559, %v558
      %v582 = vpack.c.bf16 %v561, %v560
      %v583 = vpack.c.bf16 %v563, %v562
      %v584 = vpack.c.bf16 %v565, %v564
      %v585 = vpack.c.bf16 %v567, %v566
      %v586 = vpack.c.bf16 %v569, %v568
      %v587 = vpack.c.bf16 %v571, %v570
      %v588 = vld [vmem:[%s3] sm:$0xf]
      %v589 = vld [vmem:[%s3 + $0x4] sm:$0xf]
      %v590 = vld [vmem:[%s3 + $0x8] sm:$0xf]
      %v591 = vld [vmem:[%s3 + $0xc] sm:$0xf]
      %v592 = vld [vmem:[%s3 + $0x10] sm:$0xf]
      %v593 = vld [vmem:[%s3 + $0x14] sm:$0xf]
      %v594 = vld [vmem:[%s3 + $0x18] sm:$0xf]
      %v595 = vld [vmem:[%s3 + $0x1c] sm:$0xf]
      %v596 = vld [vmem:[%s3 + $0x20] sm:$0xf]
      %v597 = vld [vmem:[%s3 + $0x24] sm:$0xf]
      %v598 = vld [vmem:[%s3 + $0x28] sm:$0xf]
      %v599 = vld [vmem:[%s3 + $0x2c] sm:$0xf]
      %v600 = vld [vmem:[%s3 + $0x30] sm:$0xf]
      %v601 = vld [vmem:[%s3 + $0x34] sm:$0xf]
      %v602 = vld [vmem:[%s3 + $0x38] sm:$0xf]
      %v603 = vld [vmem:[%s3 + $0x3c] sm:$0xf]
      %v604 = vld [vmem:[#allocation2 + $0x1] sm:$0xff]
      %v605 = vld [vmem:[#allocation2 + $0x9] sm:$0xff]
      %v606 = vld [vmem:[#allocation2 + $0x19] sm:$0xff]
      %v607 = vld [vmem:[#allocation2 + $0x21] sm:$0xff]
      %v608 = vld [vmem:[#allocation2 + $0x31] sm:$0xff]
      %v609 = vld [vmem:[#allocation2 + $0x39] sm:$0xff]
      %v610 = vld [vmem:[#allocation2 + $0x49] sm:$0xff]
      %v611 = vld [vmem:[#allocation2 + $0x51] sm:$0xff]
      %v612 = vld [vmem:[#allocation2 + $0x61] sm:$0xff]
      %v613 = vld [vmem:[#allocation2 + $0x69] sm:$0xff]
      %v614 = vld [vmem:[#allocation2 + $0x79] sm:$0xff]
      %v615 = vld [vmem:[#allocation2 + $0x81] sm:$0xff]
      %v616 = vld [vmem:[#allocation2 + $0x91] sm:$0xff]
      %v617 = vld [vmem:[#allocation2 + $0x99] sm:$0xff]
      %v618 = vld [vmem:[#allocation2 + $0xa9] sm:$0xff]
      %v619 = vld [vmem:[#allocation2 + $0xb1] sm:$0xff]
      %v620 = vld [vmem:[#allocation2 + $0xc1] sm:$0xff]
      %v621 = vld [vmem:[#allocation2 + $0xc9] sm:$0xff]
      %v622 = vld [vmem:[#allocation2 + $0xd9] sm:$0xff]
      %v623 = vld [vmem:[#allocation2 + $0xe1] sm:$0xff]
      %v624 = vld [vmem:[#allocation2 + $0xf1] sm:$0xff]
      %v625 = vld [vmem:[#allocation2 + $0xf9] sm:$0xff]
      %v626 = vld [vmem:[#allocation2 + $0x109] sm:$0xff]
      %v627 = vld [vmem:[#allocation2 + $0x111] sm:$0xff]
      %v628 = vld [vmem:[#allocation2 + $0x121] sm:$0xff]
      %v629 = vld [vmem:[#allocation2 + $0x129] sm:$0xff]
      %v630 = vld [vmem:[#allocation2 + $0x139] sm:$0xff]
      %v631 = vld [vmem:[#allocation2 + $0x141] sm:$0xff]
      %v632 = vld [vmem:[#allocation2 + $0x151] sm:$0xff]
      %v633 = vld [vmem:[#allocation2 + $0x159] sm:$0xff]
      %v634 = vld [vmem:[#allocation2 + $0x169] sm:$0xff]
      %v635 = vld [vmem:[#allocation2 + $0x171] sm:$0xff]
      %v636 = vpack.c.bf16 %v605, %v604
      %v637 = vpack.c.bf16 %v607, %v606
      %v638 = vpack.c.bf16 %v609, %v608
      %v639 = vpack.c.bf16 %v611, %v610
      %v640 = vpack.c.bf16 %v613, %v612
      %v641 = vpack.c.bf16 %v615, %v614
      %v642 = vpack.c.bf16 %v617, %v616
      %v643 = vpack.c.bf16 %v619, %v618
      %v644 = vpack.c.bf16 %v621, %v620
      %v645 = vpack.c.bf16 %v623, %v622
      %v646 = vpack.c.bf16 %v625, %v624
      %v647 = vpack.c.bf16 %v627, %v626
      %v648 = vpack.c.bf16 %v629, %v628
      %v649 = vpack.c.bf16 %v631, %v630
      %v650 = vpack.c.bf16 %v633, %v632
      %v651 = vpack.c.bf16 %v635, %v634
      %v652 = vld [vmem:[%s3 + $0x40] sm:$0xf]
      %v653 = vld [vmem:[%s3 + $0x44] sm:$0xf]
      %v654 = vld [vmem:[%s3 + $0x48] sm:$0xf]
      %v655 = vld [vmem:[%s3 + $0x4c] sm:$0xf]
      %v656 = vld [vmem:[%s3 + $0x50] sm:$0xf]
      %v657 = vld [vmem:[%s3 + $0x54] sm:$0xf]
      %v658 = vld [vmem:[%s3 + $0x58] sm:$0xf]
      %v659 = vld [vmem:[%s3 + $0x5c] sm:$0xf]
      %v660 = vld [vmem:[%s3 + $0x60] sm:$0xf]
      %v661 = vld [vmem:[%s3 + $0x64] sm:$0xf]
      %v662 = vld [vmem:[%s3 + $0x68] sm:$0xf]
      %v663 = vld [vmem:[%s3 + $0x6c] sm:$0xf]
      %v664 = vld [vmem:[%s3 + $0x70] sm:$0xf]
      %v665 = vld [vmem:[%s3 + $0x74] sm:$0xf]
      %v666 = vld [vmem:[%s3 + $0x78] sm:$0xf]
      %v667 = vld [vmem:[%s3 + $0x7c] sm:$0xf]
      %v684 = vunpack.c.l.b16 %v652
      %v685 = vunpack.c.l.b16 %v653
      %v686 = vunpack.c.l.b16 %v654
      %v687 = vunpack.c.l.b16 %v655
      %v688 = vunpack.c.l.b16 %v656
      %v689 = vunpack.c.l.b16 %v657
      %v690 = vunpack.c.l.b16 %v658
      %v691 = vunpack.c.l.b16 %v659
      %v692 = vunpack.c.l.b16 %v660
      %v693 = vunpack.c.l.b16 %v661
      %v694 = vunpack.c.l.b16 %v662
      %v695 = vunpack.c.l.b16 %v663
      %v696 = vunpack.c.l.b16 %v664
      %v697 = vunpack.c.l.b16 %v665
      %v698 = vunpack.c.l.b16 %v666
      %v699 = vunpack.c.l.b16 %v667
      %v700 = vpack.c.b16 %v685, %v684
      %v701 = vpack.c.b16 %v687, %v686
      %v702 = vpack.c.b16 %v689, %v688
      %v703 = vpack.c.b16 %v691, %v690
      %v704 = vpack.c.b16 %v693, %v692
      %v705 = vpack.c.b16 %v695, %v694
      %v706 = vpack.c.b16 %v697, %v696
      %v707 = vpack.c.b16 %v699, %v698
      %716 = vmatpush.bf16.msra.mxu0 %v707
      %717 = vmatpush.bf16.msra.mxu0 %v706
      %718 = vmatpush.bf16.msra.mxu0 %v705
      %719 = vmatpush.bf16.msra.mxu0 %v704
      %720 = vmatpush.bf16.msra.mxu0 %v703
      %721 = vmatpush.bf16.msra.mxu0 %v702
      %722 = vmatpush.bf16.msra.mxu0 %v701
      %723 = vmatpush.bf16.msra.mxu0 %v700
      %724 = vmatmul.bf16.gmra.mxu0 %v636
      %v725 = vpop.f32.mrf.mxu0
      %v726 = vadd.f32 0.0, %v725
      %v727 = vpop.f32.mrf.mxu0
      %v728 = vadd.f32 0.0, %v727
      %729 = vmatmul.bf16.gmra.mxu0 %v637
      %v730 = vpop.f32.mrf.mxu0
      %v731 = vadd.f32 0.0, %v730
      %v732 = vpop.f32.mrf.mxu0
      %v733 = vadd.f32 0.0, %v732
      %734 = vmatmul.bf16.gmra.mxu0 %v638
      %v735 = vpop.f32.mrf.mxu0
      %v736 = vadd.f32 0.0, %v735
      %v737 = vpop.f32.mrf.mxu0
      %v738 = vadd.f32 0.0, %v737
      %739 = vmatmul.bf16.gmra.mxu0 %v639
      %v740 = vpop.f32.mrf.mxu0
      %v741 = vadd.f32 0.0, %v740
      %v742 = vpop.f32.mrf.mxu0
      %v743 = vadd.f32 0.0, %v742
      %744 = vmatmul.bf16.gmra.mxu0 %v640
      %v745 = vpop.f32.mrf.mxu0
      %v746 = vadd.f32 0.0, %v745
      %v747 = vpop.f32.mrf.mxu0
      %v748 = vadd.f32 0.0, %v747
      %749 = vmatmul.bf16.gmra.mxu0 %v641
      %v750 = vpop.f32.mrf.mxu0
      %v751 = vadd.f32 0.0, %v750
      %v752 = vpop.f32.mrf.mxu0
      %v753 = vadd.f32 0.0, %v752
      %754 = vmatmul.bf16.gmra.mxu0 %v642
      %v755 = vpop.f32.mrf.mxu0
      %v756 = vadd.f32 0.0, %v755
      %v757 = vpop.f32.mrf.mxu0
      %v758 = vadd.f32 0.0, %v757
      %759 = vmatmul.bf16.gmra.mxu0 %v643
      %v760 = vpop.f32.mrf.mxu0
      %v761 = vadd.f32 0.0, %v760
      %v762 = vpop.f32.mrf.mxu0
      %v763 = vadd.f32 0.0, %v762
      %764 = vmatmul.bf16.gmra.mxu0 %v644
      %v765 = vpop.f32.mrf.mxu0
      %v766 = vadd.f32 0.0, %v765
      %v767 = vpop.f32.mrf.mxu0
      %v768 = vadd.f32 0.0, %v767
      %769 = vmatmul.bf16.gmra.mxu0 %v645
      %v770 = vpop.f32.mrf.mxu0
      %v771 = vadd.f32 0.0, %v770
      %v772 = vpop.f32.mrf.mxu0
      %v773 = vadd.f32 0.0, %v772
      %774 = vmatmul.bf16.gmra.mxu0 %v646
      %v775 = vpop.f32.mrf.mxu0
      %v776 = vadd.f32 0.0, %v775
      %v777 = vpop.f32.mrf.mxu0
      %v778 = vadd.f32 0.0, %v777
      %779 = vmatmul.bf16.gmra.mxu0 %v647
      %v780 = vpop.f32.mrf.mxu0
      %v781 = vadd.f32 0.0, %v780
      %v782 = vpop.f32.mrf.mxu0
      %v783 = vadd.f32 0.0, %v782
      %784 = vmatmul.bf16.gmra.mxu0 %v648
      %v785 = vpop.f32.mrf.mxu0
      %v786 = vadd.f32 0.0, %v785
      %v787 = vpop.f32.mrf.mxu0
      %v788 = vadd.f32 0.0, %v787
      %789 = vmatmul.bf16.gmra.mxu0 %v649
      %v790 = vpop.f32.mrf.mxu0
      %v791 = vadd.f32 0.0, %v790
      %v792 = vpop.f32.mrf.mxu0
      %v793 = vadd.f32 0.0, %v792
      %794 = vmatmul.bf16.gmra.mxu0 %v650
      %v795 = vpop.f32.mrf.mxu0
      %v796 = vadd.f32 0.0, %v795
      %v797 = vpop.f32.mrf.mxu0
      %v798 = vadd.f32 0.0, %v797
      %799 = vmatmul.bf16.gmra.mxu0 %v651
      %v800 = vpop.f32.mrf.mxu0
      %v801 = vadd.f32 0.0, %v800
      %v802 = vpop.f32.mrf.mxu0
      %v803 = vadd.f32 0.0, %v802
      %804 = vdwg.mxu0
      %v821 = vunpack.c.l.b16 %v588
      %v822 = vunpack.c.l.b16 %v589
      %v823 = vunpack.c.l.b16 %v590
      %v824 = vunpack.c.l.b16 %v591
      %v825 = vunpack.c.l.b16 %v592
      %v826 = vunpack.c.l.b16 %v593
      %v827 = vunpack.c.l.b16 %v594
      %v828 = vunpack.c.l.b16 %v595
      %v829 = vunpack.c.l.b16 %v596
      %v830 = vunpack.c.l.b16 %v597
      %v831 = vunpack.c.l.b16 %v598
      %v832 = vunpack.c.l.b16 %v599
      %v833 = vunpack.c.l.b16 %v600
      %v834 = vunpack.c.l.b16 %v601
      %v835 = vunpack.c.l.b16 %v602
      %v836 = vunpack.c.l.b16 %v603
      %v837 = vpack.c.b16 %v822, %v821
      %v838 = vpack.c.b16 %v824, %v823
      %v839 = vpack.c.b16 %v826, %v825
      %v840 = vpack.c.b16 %v828, %v827
      %v841 = vpack.c.b16 %v830, %v829
      %v842 = vpack.c.b16 %v832, %v831
      %v843 = vpack.c.b16 %v834, %v833
      %v844 = vpack.c.b16 %v836, %v835
      %853 = vmatpush.bf16.msra.mxu0 %v844
      %854 = vmatpush.bf16.msra.mxu0 %v843
      %855 = vmatpush.bf16.msra.mxu0 %v842
      %856 = vmatpush.bf16.msra.mxu0 %v841
      %857 = vmatpush.bf16.msra.mxu0 %v840
      %858 = vmatpush.bf16.msra.mxu0 %v839
      %859 = vmatpush.bf16.msra.mxu0 %v838
      %860 = vmatpush.bf16.msra.mxu0 %v837
      %861 = vmatmul.bf16.gmra.mxu0 %v572
      %v862 = vpop.f32.mrf.mxu0
      %v863 = vadd.f32 %v726, %v862
      %v864 = vpop.f32.mrf.mxu0
      %v865 = vadd.f32 %v728, %v864
      %866 = vmatmul.bf16.gmra.mxu0 %v573
      %v867 = vpop.f32.mrf.mxu0
      %v868 = vadd.f32 %v731, %v867
      %v869 = vpop.f32.mrf.mxu0
      %v870 = vadd.f32 %v733, %v869
      %871 = vmatmul.bf16.gmra.mxu0 %v574
      %v872 = vpop.f32.mrf.mxu0
      %v873 = vadd.f32 %v736, %v872
      %v874 = vpop.f32.mrf.mxu0
      %v875 = vadd.f32 %v738, %v874
      %876 = vmatmul.bf16.gmra.mxu0 %v575
      %v877 = vpop.f32.mrf.mxu0
      %v878 = vadd.f32 %v741, %v877
      %v879 = vpop.f32.mrf.mxu0
      %v880 = vadd.f32 %v743, %v879
      %881 = vmatmul.bf16.gmra.mxu0 %v576
      %v882 = vpop.f32.mrf.mxu0
      %v883 = vadd.f32 %v746, %v882
      %v884 = vpop.f32.mrf.mxu0
      %v885 = vadd.f32 %v748, %v884
      %886 = vmatmul.bf16.gmra.mxu0 %v577
      %v887 = vpop.f32.mrf.mxu0
      %v888 = vadd.f32 %v751, %v887
      %v889 = vpop.f32.mrf.mxu0
      %v890 = vadd.f32 %v753, %v889
      %891 = vmatmul.bf16.gmra.mxu0 %v578
      %v892 = vpop.f32.mrf.mxu0
      %v893 = vadd.f32 %v756, %v892
      %v894 = vpop.f32.mrf.mxu0
      %v895 = vadd.f32 %v758, %v894
      %896 = vmatmul.bf16.gmra.mxu0 %v579
      %v897 = vpop.f32.mrf.mxu0
      %v898 = vadd.f32 %v761, %v897
      %v899 = vpop.f32.mrf.mxu0
      %v900 = vadd.f32 %v763, %v899
      %901 = vmatmul.bf16.gmra.mxu0 %v580
      %v902 = vpop.f32.mrf.mxu0
      %v903 = vadd.f32 %v766, %v902
      %v904 = vpop.f32.mrf.mxu0
      %v905 = vadd.f32 %v768, %v904
      %906 = vmatmul.bf16.gmra.mxu0 %v581
      %v907 = vpop.f32.mrf.mxu0
      %v908 = vadd.f32 %v771, %v907
      %v909 = vpop.f32.mrf.mxu0
      %v910 = vadd.f32 %v773, %v909
      %911 = vmatmul.bf16.gmra.mxu0 %v582
      %v912 = vpop.f32.mrf.mxu0
      %v913 = vadd.f32 %v776, %v912
      %v914 = vpop.f32.mrf.mxu0
      %v915 = vadd.f32 %v778, %v914
      %916 = vmatmul.bf16.gmra.mxu0 %v583
      %v917 = vpop.f32.mrf.mxu0
      %v918 = vadd.f32 %v781, %v917
      %v919 = vpop.f32.mrf.mxu0
      %v920 = vadd.f32 %v783, %v919
      %921 = vmatmul.bf16.gmra.mxu0 %v584
      %v922 = vpop.f32.mrf.mxu0
      %v923 = vadd.f32 %v786, %v922
      %v924 = vpop.f32.mrf.mxu0
      %v925 = vadd.f32 %v788, %v924
      %926 = vmatmul.bf16.gmra.mxu0 %v585
      %v927 = vpop.f32.mrf.mxu0
      %v928 = vadd.f32 %v791, %v927
      %v929 = vpop.f32.mrf.mxu0
      %v930 = vadd.f32 %v793, %v929
      %931 = vmatmul.bf16.gmra.mxu0 %v586
      %v932 = vpop.f32.mrf.mxu0
      %v933 = vadd.f32 %v796, %v932
      %v934 = vpop.f32.mrf.mxu0
      %v935 = vadd.f32 %v798, %v934
      %936 = vmatmul.bf16.gmra.mxu0 %v587
      %v937 = vpop.f32.mrf.mxu0
      %v938 = vadd.f32 %v801, %v937
      %v939 = vpop.f32.mrf.mxu0
      %v940 = vadd.f32 %v803, %v939
      %941 = vdwg.mxu0
      %v942 = vld [vmem:[#allocation2 + $0x2] sm:$0xff]
      %v943 = vld [vmem:[#allocation2 + $0xa] sm:$0xff]
      %v944 = vld [vmem:[#allocation2 + $0x1a] sm:$0xff]
      %v945 = vld [vmem:[#allocation2 + $0x22] sm:$0xff]
      %v946 = vld [vmem:[#allocation2 + $0x32] sm:$0xff]
      %v947 = vld [vmem:[#allocation2 + $0x3a] sm:$0xff]
      %v948 = vld [vmem:[#allocation2 + $0x4a] sm:$0xff]
      %v949 = vld [vmem:[#allocation2 + $0x52] sm:$0xff]
      %v950 = vld [vmem:[#allocation2 + $0x62] sm:$0xff]
      %v951 = vld [vmem:[#allocation2 + $0x6a] sm:$0xff]
      %v952 = vld [vmem:[#allocation2 + $0x7a] sm:$0xff]
      %v953 = vld [vmem:[#allocation2 + $0x82] sm:$0xff]
      %v954 = vld [vmem:[#allocation2 + $0x92] sm:$0xff]
      %v955 = vld [vmem:[#allocation2 + $0x9a] sm:$0xff]
      %v956 = vld [vmem:[#allocation2 + $0xaa] sm:$0xff]
      %v957 = vld [vmem:[#allocation2 + $0xb2] sm:$0xff]
      %v958 = vld [vmem:[#allocation2 + $0xc2] sm:$0xff]
      %v959 = vld [vmem:[#allocation2 + $0xca] sm:$0xff]
      %v960 = vld [vmem:[#allocation2 + $0xda] sm:$0xff]
      %v961 = vld [vmem:[#allocation2 + $0xe2] sm:$0xff]
      %v962 = vld [vmem:[#allocation2 + $0xf2] sm:$0xff]
      %v963 = vld [vmem:[#allocation2 + $0xfa] sm:$0xff]
      %v964 = vld [vmem:[#allocation2 + $0x10a] sm:$0xff]
      %v965 = vld [vmem:[#allocation2 + $0x112] sm:$0xff]
      %v966 = vld [vmem:[#allocation2 + $0x122] sm:$0xff]
      %v967 = vld [vmem:[#allocation2 + $0x12a] sm:$0xff]
      %v968 = vld [vmem:[#allocation2 + $0x13a] sm:$0xff]
      %v969 = vld [vmem:[#allocation2 + $0x142] sm:$0xff]
      %v970 = vld [vmem:[#allocation2 + $0x152] sm:$0xff]
      %v971 = vld [vmem:[#allocation2 + $0x15a] sm:$0xff]
      %v972 = vld [vmem:[#allocation2 + $0x16a] sm:$0xff]
      %v973 = vld [vmem:[#allocation2 + $0x172] sm:$0xff]
      %v974 = vpack.c.bf16 %v943, %v942
      %v975 = vpack.c.bf16 %v945, %v944
      %v976 = vpack.c.bf16 %v947, %v946
      %v977 = vpack.c.bf16 %v949, %v948
      %v978 = vpack.c.bf16 %v951, %v950
      %v979 = vpack.c.bf16 %v953, %v952
      %v980 = vpack.c.bf16 %v955, %v954
      %v981 = vpack.c.bf16 %v957, %v956
      %v982 = vpack.c.bf16 %v959, %v958
      %v983 = vpack.c.bf16 %v961, %v960
      %v984 = vpack.c.bf16 %v963, %v962
      %v985 = vpack.c.bf16 %v965, %v964
      %v986 = vpack.c.bf16 %v967, %v966
      %v987 = vpack.c.bf16 %v969, %v968
      %v988 = vpack.c.bf16 %v971, %v970
      %v989 = vpack.c.bf16 %v973, %v972
      %v990 = vld [vmem:[%s3 + $0x80] sm:$0xf]
      %v991 = vld [vmem:[%s3 + $0x84] sm:$0xf]
      %v992 = vld [vmem:[%s3 + $0x88] sm:$0xf]
      %v993 = vld [vmem:[%s3 + $0x8c] sm:$0xf]
      %v994 = vld [vmem:[%s3 + $0x90] sm:$0xf]
      %v995 = vld [vmem:[%s3 + $0x94] sm:$0xf]
      %v996 = vld [vmem:[%s3 + $0x98] sm:$0xf]
      %v997 = vld [vmem:[%s3 + $0x9c] sm:$0xf]
      %v998 = vld [vmem:[%s3 + $0xa0] sm:$0xf]
      %v999 = vld [vmem:[%s3 + $0xa4] sm:$0xf]
      %v1000 = vld [vmem:[%s3 + $0xa8] sm:$0xf]
      %v1001 = vld [vmem:[%s3 + $0xac] sm:$0xf]
      %v1002 = vld [vmem:[%s3 + $0xb0] sm:$0xf]
      %v1003 = vld [vmem:[%s3 + $0xb4] sm:$0xf]
      %v1004 = vld [vmem:[%s3 + $0xb8] sm:$0xf]
      %v1005 = vld [vmem:[%s3 + $0xbc] sm:$0xf]
      %v1022 = vunpack.c.l.b16 %v990
      %v1023 = vunpack.c.l.b16 %v991
      %v1024 = vunpack.c.l.b16 %v992
      %v1025 = vunpack.c.l.b16 %v993
      %v1026 = vunpack.c.l.b16 %v994
      %v1027 = vunpack.c.l.b16 %v995
      %v1028 = vunpack.c.l.b16 %v996
      %v1029 = vunpack.c.l.b16 %v997
      %v1030 = vunpack.c.l.b16 %v998
      %v1031 = vunpack.c.l.b16 %v999
      %v1032 = vunpack.c.l.b16 %v1000
      %v1033 = vunpack.c.l.b16 %v1001
      %v1034 = vunpack.c.l.b16 %v1002
      %v1035 = vunpack.c.l.b16 %v1003
      %v1036 = vunpack.c.l.b16 %v1004
      %v1037 = vunpack.c.l.b16 %v1005
      %v1038 = vpack.c.b16 %v1023, %v1022
      %v1039 = vpack.c.b16 %v1025, %v1024
      %v1040 = vpack.c.b16 %v1027, %v1026
      %v1041 = vpack.c.b16 %v1029, %v1028
      %v1042 = vpack.c.b16 %v1031, %v1030
      %v1043 = vpack.c.b16 %v1033, %v1032
      %v1044 = vpack.c.b16 %v1035, %v1034
      %v1045 = vpack.c.b16 %v1037, %v1036
      %1054 = vmatpush.bf16.msra.mxu0 %v1045
      %1055 = vmatpush.bf16.msra.mxu0 %v1044
      %1056 = vmatpush.bf16.msra.mxu0 %v1043
      %1057 = vmatpush.bf16.msra.mxu0 %v1042
      %1058 = vmatpush.bf16.msra.mxu0 %v1041
      %1059 = vmatpush.bf16.msra.mxu0 %v1040
      %1060 = vmatpush.bf16.msra.mxu0 %v1039
      %1061 = vmatpush.bf16.msra.mxu0 %v1038
      %1062 = vmatmul.bf16.gmra.mxu0 %v974
      %v1063 = vpop.f32.mrf.mxu0
      %v1064 = vadd.f32 0.0, %v1063
      %v1065 = vpop.f32.mrf.mxu0
      %v1066 = vadd.f32 0.0, %v1065
      %1067 = vmatmul.bf16.gmra.mxu0 %v975
      %v1068 = vpop.f32.mrf.mxu0
      %v1069 = vadd.f32 0.0, %v1068
      %v1070 = vpop.f32.mrf.mxu0
      %v1071 = vadd.f32 0.0, %v1070
      %1072 = vmatmul.bf16.gmra.mxu0 %v976
      %v1073 = vpop.f32.mrf.mxu0
      %v1074 = vadd.f32 0.0, %v1073
      %v1075 = vpop.f32.mrf.mxu0
      %v1076 = vadd.f32 0.0, %v1075
      %1077 = vmatmul.bf16.gmra.mxu0 %v977
      %v1078 = vpop.f32.mrf.mxu0
      %v1079 = vadd.f32 0.0, %v1078
      %v1080 = vpop.f32.mrf.mxu0
      %v1081 = vadd.f32 0.0, %v1080
      %1082 = vmatmul.bf16.gmra.mxu0 %v978
      %v1083 = vpop.f32.mrf.mxu0
      %v1084 = vadd.f32 0.0, %v1083
      %v1085 = vpop.f32.mrf.mxu0
      %v1086 = vadd.f32 0.0, %v1085
      %1087 = vmatmul.bf16.gmra.mxu0 %v979
      %v1088 = vpop.f32.mrf.mxu0
      %v1089 = vadd.f32 0.0, %v1088
      %v1090 = vpop.f32.mrf.mxu0
      %v1091 = vadd.f32 0.0, %v1090
      %1092 = vmatmul.bf16.gmra.mxu0 %v980
      %v1093 = vpop.f32.mrf.mxu0
      %v1094 = vadd.f32 0.0, %v1093
      %v1095 = vpop.f32.mrf.mxu0
      %v1096 = vadd.f32 0.0, %v1095
      %1097 = vmatmul.bf16.gmra.mxu0 %v981
      %v1098 = vpop.f32.mrf.mxu0
      %v1099 = vadd.f32 0.0, %v1098
      %v1100 = vpop.f32.mrf.mxu0
      %v1101 = vadd.f32 0.0, %v1100
      %1102 = vmatmul.bf16.gmra.mxu0 %v982
      %v1103 = vpop.f32.mrf.mxu0
      %v1104 = vadd.f32 0.0, %v1103
      %v1105 = vpop.f32.mrf.mxu0
      %v1106 = vadd.f32 0.0, %v1105
      %1107 = vmatmul.bf16.gmra.mxu0 %v983
      %v1108 = vpop.f32.mrf.mxu0
      %v1109 = vadd.f32 0.0, %v1108
      %v1110 = vpop.f32.mrf.mxu0
      %v1111 = vadd.f32 0.0, %v1110
      %1112 = vmatmul.bf16.gmra.mxu0 %v984
      %v1113 = vpop.f32.mrf.mxu0
      %v1114 = vadd.f32 0.0, %v1113
      %v1115 = vpop.f32.mrf.mxu0
      %v1116 = vadd.f32 0.0, %v1115
      %1117 = vmatmul.bf16.gmra.mxu0 %v985
      %v1118 = vpop.f32.mrf.mxu0
      %v1119 = vadd.f32 0.0, %v1118
      %v1120 = vpop.f32.mrf.mxu0
      %v1121 = vadd.f32 0.0, %v1120
      %1122 = vmatmul.bf16.gmra.mxu0 %v986
      %v1123 = vpop.f32.mrf.mxu0
      %v1124 = vadd.f32 0.0, %v1123
      %v1125 = vpop.f32.mrf.mxu0
      %v1126 = vadd.f32 0.0, %v1125
      %1127 = vmatmul.bf16.gmra.mxu0 %v987
      %v1128 = vpop.f32.mrf.mxu0
      %v1129 = vadd.f32 0.0, %v1128
      %v1130 = vpop.f32.mrf.mxu0
      %v1131 = vadd.f32 0.0, %v1130
      %1132 = vmatmul.bf16.gmra.mxu0 %v988
      %v1133 = vpop.f32.mrf.mxu0
      %v1134 = vadd.f32 0.0, %v1133
      %v1135 = vpop.f32.mrf.mxu0
      %v1136 = vadd.f32 0.0, %v1135
      %1137 = vmatmul.bf16.gmra.mxu0 %v989
      %v1138 = vpop.f32.mrf.mxu0
      %v1139 = vadd.f32 0.0, %v1138
      %v1140 = vpop.f32.mrf.mxu0
      %v1141 = vadd.f32 0.0, %v1140
      %1142 = vdwg.mxu0
      %v1143 = vadd.f32 %v863, %v1064
      %v1144 = vadd.f32 %v865, %v1066
      %v1145 = vadd.f32 %v868, %v1069
      %v1146 = vadd.f32 %v870, %v1071
      %v1147 = vadd.f32 %v873, %v1074
      %v1148 = vadd.f32 %v875, %v1076
      %v1149 = vadd.f32 %v878, %v1079
      %v1150 = vadd.f32 %v880, %v1081
      %v1151 = vadd.f32 %v883, %v1084
      %v1152 = vadd.f32 %v885, %v1086
      %v1153 = vadd.f32 %v888, %v1089
      %v1154 = vadd.f32 %v890, %v1091
      %v1155 = vadd.f32 %v893, %v1094
      %v1156 = vadd.f32 %v895, %v1096
      %v1157 = vadd.f32 %v898, %v1099
      %v1158 = vadd.f32 %v900, %v1101
      %v1159 = vadd.f32 %v903, %v1104
      %v1160 = vadd.f32 %v905, %v1106
      %v1161 = vadd.f32 %v908, %v1109
      %v1162 = vadd.f32 %v910, %v1111
      %v1163 = vadd.f32 %v913, %v1114
      %v1164 = vadd.f32 %v915, %v1116
      %v1165 = vadd.f32 %v918, %v1119
      %v1166 = vadd.f32 %v920, %v1121
      %v1167 = vadd.f32 %v923, %v1124
      %v1168 = vadd.f32 %v925, %v1126
      %v1169 = vadd.f32 %v928, %v1129
      %v1170 = vadd.f32 %v930, %v1131
      %v1171 = vadd.f32 %v933, %v1134
      %v1172 = vadd.f32 %v935, %v1136
      %v1173 = vadd.f32 %v938, %v1139
      %v1174 = vadd.f32 %v940, %v1141
      %v1175 = vld [vmem:[%s507] sm:$0xff]
      %v1176 = vld [vmem:[%s507 + $0x8] sm:$0xff]
      %v1177 = vld [vmem:[%s507 + $0x18] sm:$0xff]
      %v1178 = vld [vmem:[%s507 + $0x20] sm:$0xff]
      %v1179 = vld [vmem:[%s507 + $0x30] sm:$0xff]
      %v1180 = vld [vmem:[%s507 + $0x38] sm:$0xff]
      %v1181 = vld [vmem:[%s507 + $0x48] sm:$0xff]
      %v1182 = vld [vmem:[%s507 + $0x50] sm:$0xff]
      %v1183 = vld [vmem:[%s507 + $0x60] sm:$0xff]
      %v1184 = vld [vmem:[%s507 + $0x68] sm:$0xff]
      %v1185 = vld [vmem:[%s507 + $0x78] sm:$0xff]
      %v1186 = vld [vmem:[%s507 + $0x80] sm:$0xff]
      %v1187 = vld [vmem:[%s507 + $0x90] sm:$0xff]
      %v1188 = vld [vmem:[%s507 + $0x98] sm:$0xff]
      %v1189 = vld [vmem:[%s507 + $0xa8] sm:$0xff]
      %v1190 = vld [vmem:[%s507 + $0xb0] sm:$0xff]
      %v1191 = vld [vmem:[%s507 + $0xc0] sm:$0xff]
      %v1192 = vld [vmem:[%s507 + $0xc8] sm:$0xff]
      %v1193 = vld [vmem:[%s507 + $0xd8] sm:$0xff]
      %v1194 = vld [vmem:[%s507 + $0xe0] sm:$0xff]
      %v1195 = vld [vmem:[%s507 + $0xf0] sm:$0xff]
      %v1196 = vld [vmem:[%s507 + $0xf8] sm:$0xff]
      %v1197 = vld [vmem:[%s507 + $0x108] sm:$0xff]
      %v1198 = vld [vmem:[%s507 + $0x110] sm:$0xff]
      %v1199 = vld [vmem:[%s507 + $0x120] sm:$0xff]
      %v1200 = vld [vmem:[%s507 + $0x128] sm:$0xff]
      %v1201 = vld [vmem:[%s507 + $0x138] sm:$0xff]
      %v1202 = vld [vmem:[%s507 + $0x140] sm:$0xff]
      %v1203 = vld [vmem:[%s507 + $0x150] sm:$0xff]
      %v1204 = vld [vmem:[%s507 + $0x158] sm:$0xff]
      %v1205 = vld [vmem:[%s507 + $0x168] sm:$0xff]
      %v1206 = vld [vmem:[%s507 + $0x170] sm:$0xff]
      %v1207 = vpack.c.bf16 %v1176, %v1175
      %v1208 = vpack.c.bf16 %v1178, %v1177
      %v1209 = vpack.c.bf16 %v1180, %v1179
      %v1210 = vpack.c.bf16 %v1182, %v1181
      %v1211 = vpack.c.bf16 %v1184, %v1183
      %v1212 = vpack.c.bf16 %v1186, %v1185
      %v1213 = vpack.c.bf16 %v1188, %v1187
      %v1214 = vpack.c.bf16 %v1190, %v1189
      %v1215 = vpack.c.bf16 %v1192, %v1191
      %v1216 = vpack.c.bf16 %v1194, %v1193
      %v1217 = vpack.c.bf16 %v1196, %v1195
      %v1218 = vpack.c.bf16 %v1198, %v1197
      %v1219 = vpack.c.bf16 %v1200, %v1199
      %v1220 = vpack.c.bf16 %v1202, %v1201
      %v1221 = vpack.c.bf16 %v1204, %v1203
      %v1222 = vpack.c.bf16 %v1206, %v1205
      %v1223 = vld [vmem:[%s3 + $0xc0] sm:$0xf]
      %v1224 = vld [vmem:[%s3 + $0xc4] sm:$0xf]
      %v1225 = vld [vmem:[%s3 + $0xc8] sm:$0xf]
      %v1226 = vld [vmem:[%s3 + $0xcc] sm:$0xf]
      %v1227 = vld [vmem:[%s3 + $0xd0] sm:$0xf]
      %v1228 = vld [vmem:[%s3 + $0xd4] sm:$0xf]
      %v1229 = vld [vmem:[%s3 + $0xd8] sm:$0xf]
      %v1230 = vld [vmem:[%s3 + $0xdc] sm:$0xf]
      %v1231 = vld [vmem:[%s3 + $0xe0] sm:$0xf]
      %v1232 = vld [vmem:[%s3 + $0xe4] sm:$0xf]
      %v1233 = vld [vmem:[%s3 + $0xe8] sm:$0xf]
      %v1234 = vld [vmem:[%s3 + $0xec] sm:$0xf]
      %v1235 = vld [vmem:[%s3 + $0xf0] sm:$0xf]
      %v1236 = vld [vmem:[%s3 + $0xf4] sm:$0xf]
      %v1237 = vld [vmem:[%s3 + $0xf8] sm:$0xf]
      %v1238 = vld [vmem:[%s3 + $0xfc] sm:$0xf]
      %v1255 = vunpack.c.l.b16 %v1223
      %v1256 = vunpack.c.l.b16 %v1224
      %v1257 = vunpack.c.l.b16 %v1225
      %v1258 = vunpack.c.l.b16 %v1226
      %v1259 = vunpack.c.l.b16 %v1227
      %v1260 = vunpack.c.l.b16 %v1228
      %v1261 = vunpack.c.l.b16 %v1229
      %v1262 = vunpack.c.l.b16 %v1230
      %v1263 = vunpack.c.l.b16 %v1231
      %v1264 = vunpack.c.l.b16 %v1232
      %v1265 = vunpack.c.l.b16 %v1233
      %v1266 = vunpack.c.l.b16 %v1234
      %v1267 = vunpack.c.l.b16 %v1235
      %v1268 = vunpack.c.l.b16 %v1236
      %v1269 = vunpack.c.l.b16 %v1237
      %v1270 = vunpack.c.l.b16 %v1238
      %v1271 = vpack.c.b16 %v1256, %v1255
      %v1272 = vpack.c.b16 %v1258, %v1257
      %v1273 = vpack.c.b16 %v1260, %v1259
      %v1274 = vpack.c.b16 %v1262, %v1261
      %v1275 = vpack.c.b16 %v1264, %v1263
      %v1276 = vpack.c.b16 %v1266, %v1265
      %v1277 = vpack.c.b16 %v1268, %v1267
      %v1278 = vpack.c.b16 %v1270, %v1269
      %1287 = vmatpush.bf16.msra.mxu0 %v1278
      %1288 = vmatpush.bf16.msra.mxu0 %v1277
      %1289 = vmatpush.bf16.msra.mxu0 %v1276
      %1290 = vmatpush.bf16.msra.mxu0 %v1275
      %1291 = vmatpush.bf16.msra.mxu0 %v1274
      %1292 = vmatpush.bf16.msra.mxu0 %v1273
      %1293 = vmatpush.bf16.msra.mxu0 %v1272
      %1294 = vmatpush.bf16.msra.mxu0 %v1271
      %1295 = vmatmul.bf16.gmra.mxu0 %v1207
      %v1296 = vpop.f32.mrf.mxu0
      %v1297 = vadd.f32 0.0, %v1296
      %v1298 = vpop.f32.mrf.mxu0
      %v1299 = vadd.f32 0.0, %v1298
      %1300 = vmatmul.bf16.gmra.mxu0 %v1208
      %v1301 = vpop.f32.mrf.mxu0
      %v1302 = vadd.f32 0.0, %v1301
      %v1303 = vpop.f32.mrf.mxu0
      %v1304 = vadd.f32 0.0, %v1303
      %1305 = vmatmul.bf16.gmra.mxu0 %v1209
      %v1306 = vpop.f32.mrf.mxu0
      %v1307 = vadd.f32 0.0, %v1306
      %v1308 = vpop.f32.mrf.mxu0
      %v1309 = vadd.f32 0.0, %v1308
      %1310 = vmatmul.bf16.gmra.mxu0 %v1210
      %v1311 = vpop.f32.mrf.mxu0
      %v1312 = vadd.f32 0.0, %v1311
      %v1313 = vpop.f32.mrf.mxu0
      %v1314 = vadd.f32 0.0, %v1313
      %1315 = vmatmul.bf16.gmra.mxu0 %v1211
      %v1316 = vpop.f32.mrf.mxu0
      %v1317 = vadd.f32 0.0, %v1316
      %v1318 = vpop.f32.mrf.mxu0
      %v1319 = vadd.f32 0.0, %v1318
      %1320 = vmatmul.bf16.gmra.mxu0 %v1212
      %v1321 = vpop.f32.mrf.mxu0
      %v1322 = vadd.f32 0.0, %v1321
      %v1323 = vpop.f32.mrf.mxu0
      %v1324 = vadd.f32 0.0, %v1323
      %1325 = vmatmul.bf16.gmra.mxu0 %v1213
      %v1326 = vpop.f32.mrf.mxu0
      %v1327 = vadd.f32 0.0, %v1326
      %v1328 = vpop.f32.mrf.mxu0
      %v1329 = vadd.f32 0.0, %v1328
      %1330 = vmatmul.bf16.gmra.mxu0 %v1214
      %v1331 = vpop.f32.mrf.mxu0
      %v1332 = vadd.f32 0.0, %v1331
      %v1333 = vpop.f32.mrf.mxu0
      %v1334 = vadd.f32 0.0, %v1333
      %1335 = vmatmul.bf16.gmra.mxu0 %v1215
      %v1336 = vpop.f32.mrf.mxu0
      %v1337 = vadd.f32 0.0, %v1336
      %v1338 = vpop.f32.mrf.mxu0
      %v1339 = vadd.f32 0.0, %v1338
      %1340 = vmatmul.bf16.gmra.mxu0 %v1216
      %v1341 = vpop.f32.mrf.mxu0
      %v1342 = vadd.f32 0.0, %v1341
      %v1343 = vpop.f32.mrf.mxu0
      %v1344 = vadd.f32 0.0, %v1343
      %1345 = vmatmul.bf16.gmra.mxu0 %v1217
      %v1346 = vpop.f32.mrf.mxu0
      %v1347 = vadd.f32 0.0, %v1346
      %v1348 = vpop.f32.mrf.mxu0
      %v1349 = vadd.f32 0.0, %v1348
      %1350 = vmatmul.bf16.gmra.mxu0 %v1218
      %v1351 = vpop.f32.mrf.mxu0
      %v1352 = vadd.f32 0.0, %v1351
      %v1353 = vpop.f32.mrf.mxu0
      %v1354 = vadd.f32 0.0, %v1353
      %1355 = vmatmul.bf16.gmra.mxu0 %v1219
      %v1356 = vpop.f32.mrf.mxu0
      %v1357 = vadd.f32 0.0, %v1356
      %v1358 = vpop.f32.mrf.mxu0
      %v1359 = vadd.f32 0.0, %v1358
      %1360 = vmatmul.bf16.gmra.mxu0 %v1220
      %v1361 = vpop.f32.mrf.mxu0
      %v1362 = vadd.f32 0.0, %v1361
      %v1363 = vpop.f32.mrf.mxu0
      %v1364 = vadd.f32 0.0, %v1363
      %1365 = vmatmul.bf16.gmra.mxu0 %v1221
      %v1366 = vpop.f32.mrf.mxu0
      %v1367 = vadd.f32 0.0, %v1366
      %v1368 = vpop.f32.mrf.mxu0
      %v1369 = vadd.f32 0.0, %v1368
      %1370 = vmatmul.bf16.gmra.mxu0 %v1222
      %v1371 = vpop.f32.mrf.mxu0
      %v1372 = vadd.f32 0.0, %v1371
      %v1373 = vpop.f32.mrf.mxu0
      %v1374 = vadd.f32 0.0, %v1373
      %1375 = vdwg.mxu0
      %v1376 = vadd.f32 %v1143, %v1297
      %v1377 = vadd.f32 %v1144, %v1299
      %v1378 = vadd.f32 %v1145, %v1302
      %v1379 = vadd.f32 %v1146, %v1304
      %v1380 = vadd.f32 %v1147, %v1307
      %v1381 = vadd.f32 %v1148, %v1309
      %v1382 = vadd.f32 %v1149, %v1312
      %v1383 = vadd.f32 %v1150, %v1314
      %v1384 = vadd.f32 %v1151, %v1317
      %v1385 = vadd.f32 %v1152, %v1319
      %v1386 = vadd.f32 %v1153, %v1322
      %v1387 = vadd.f32 %v1154, %v1324
      %v1388 = vadd.f32 %v1155, %v1327
      %v1389 = vadd.f32 %v1156, %v1329
      %v1390 = vadd.f32 %v1157, %v1332
      %v1391 = vadd.f32 %v1158, %v1334
      %v1392 = vadd.f32 %v1159, %v1337
      %v1393 = vadd.f32 %v1160, %v1339
      %v1394 = vadd.f32 %v1161, %v1342
      %v1395 = vadd.f32 %v1162, %v1344
      %v1396 = vadd.f32 %v1163, %v1347
      %v1397 = vadd.f32 %v1164, %v1349
      %v1398 = vadd.f32 %v1165, %v1352
      %v1399 = vadd.f32 %v1166, %v1354
      %v1400 = vadd.f32 %v1167, %v1357
      %v1401 = vadd.f32 %v1168, %v1359
      %v1402 = vadd.f32 %v1169, %v1362
      %v1403 = vadd.f32 %v1170, %v1364
      %v1404 = vadd.f32 %v1171, %v1367
      %v1405 = vadd.f32 %v1172, %v1369
      %v1406 = vadd.f32 %v1173, %v1372
      %v1407 = vadd.f32 %v1174, %v1374
      %v1408 = vld [vmem:[%s507 + $0x1] sm:$0xff]
      %v1409 = vld [vmem:[%s507 + $0x9] sm:$0xff]
      %v1410 = vld [vmem:[%s507 + $0x19] sm:$0xff]
      %v1411 = vld [vmem:[%s507 + $0x21] sm:$0xff]
      %v1412 = vld [vmem:[%s507 + $0x31] sm:$0xff]
      %v1413 = vld [vmem:[%s507 + $0x39] sm:$0xff]
      %v1414 = vld [vmem:[%s507 + $0x49] sm:$0xff]
      %v1415 = vld [vmem:[%s507 + $0x51] sm:$0xff]
      %v1416 = vld [vmem:[%s507 + $0x61] sm:$0xff]
      %v1417 = vld [vmem:[%s507 + $0x69] sm:$0xff]
      %v1418 = vld [vmem:[%s507 + $0x79] sm:$0xff]
      %v1419 = vld [vmem:[%s507 + $0x81] sm:$0xff]
      %v1420 = vld [vmem:[%s507 + $0x91] sm:$0xff]
      %v1421 = vld [vmem:[%s507 + $0x99] sm:$0xff]
      %v1422 = vld [vmem:[%s507 + $0xa9] sm:$0xff]
      %v1423 = vld [vmem:[%s507 + $0xb1] sm:$0xff]
      %v1424 = vld [vmem:[%s507 + $0xc1] sm:$0xff]
      %v1425 = vld [vmem:[%s507 + $0xc9] sm:$0xff]
      %v1426 = vld [vmem:[%s507 + $0xd9] sm:$0xff]
      %v1427 = vld [vmem:[%s507 + $0xe1] sm:$0xff]
      %v1428 = vld [vmem:[%s507 + $0xf1] sm:$0xff]
      %v1429 = vld [vmem:[%s507 + $0xf9] sm:$0xff]
      %v1430 = vld [vmem:[%s507 + $0x109] sm:$0xff]
      %v1431 = vld [vmem:[%s507 + $0x111] sm:$0xff]
      %v1432 = vld [vmem:[%s507 + $0x121] sm:$0xff]
      %v1433 = vld [vmem:[%s507 + $0x129] sm:$0xff]
      %v1434 = vld [vmem:[%s507 + $0x139] sm:$0xff]
      %v1435 = vld [vmem:[%s507 + $0x141] sm:$0xff]
      %v1436 = vld [vmem:[%s507 + $0x151] sm:$0xff]
      %v1437 = vld [vmem:[%s507 + $0x159] sm:$0xff]
      %v1438 = vld [vmem:[%s507 + $0x169] sm:$0xff]
      %v1439 = vld [vmem:[%s507 + $0x171] sm:$0xff]
      %v1440 = vpack.c.bf16 %v1409, %v1408
      %v1441 = vpack.c.bf16 %v1411, %v1410
      %v1442 = vpack.c.bf16 %v1413, %v1412
      %v1443 = vpack.c.bf16 %v1415, %v1414
      %v1444 = vpack.c.bf16 %v1417, %v1416
      %v1445 = vpack.c.bf16 %v1419, %v1418
      %v1446 = vpack.c.bf16 %v1421, %v1420
      %v1447 = vpack.c.bf16 %v1423, %v1422
      %v1448 = vpack.c.bf16 %v1425, %v1424
      %v1449 = vpack.c.bf16 %v1427, %v1426
      %v1450 = vpack.c.bf16 %v1429, %v1428
      %v1451 = vpack.c.bf16 %v1431, %v1430
      %v1452 = vpack.c.bf16 %v1433, %v1432
      %v1453 = vpack.c.bf16 %v1435, %v1434
      %v1454 = vpack.c.bf16 %v1437, %v1436
      %v1455 = vpack.c.bf16 %v1439, %v1438
      %v1456 = vld [vmem:[%s3 + $0x100] sm:$0xf]
      %v1457 = vld [vmem:[%s3 + $0x104] sm:$0xf]
      %v1458 = vld [vmem:[%s3 + $0x108] sm:$0xf]
      %v1459 = vld [vmem:[%s3 + $0x10c] sm:$0xf]
      %v1460 = vld [vmem:[%s3 + $0x110] sm:$0xf]
      %v1461 = vld [vmem:[%s3 + $0x114] sm:$0xf]
      %v1462 = vld [vmem:[%s3 + $0x118] sm:$0xf]
      %v1463 = vld [vmem:[%s3 + $0x11c] sm:$0xf]
      %v1464 = vld [vmem:[%s3 + $0x120] sm:$0xf]
      %v1465 = vld [vmem:[%s3 + $0x124] sm:$0xf]
      %v1466 = vld [vmem:[%s3 + $0x128] sm:$0xf]
      %v1467 = vld [vmem:[%s3 + $0x12c] sm:$0xf]
      %v1468 = vld [vmem:[%s3 + $0x130] sm:$0xf]
      %v1469 = vld [vmem:[%s3 + $0x134] sm:$0xf]
      %v1470 = vld [vmem:[%s3 + $0x138] sm:$0xf]
      %v1471 = vld [vmem:[%s3 + $0x13c] sm:$0xf]
      %v1488 = vunpack.c.l.b16 %v1456
      %v1489 = vunpack.c.l.b16 %v1457
      %v1490 = vunpack.c.l.b16 %v1458
      %v1491 = vunpack.c.l.b16 %v1459
      %v1492 = vunpack.c.l.b16 %v1460
      %v1493 = vunpack.c.l.b16 %v1461
      %v1494 = vunpack.c.l.b16 %v1462
      %v1495 = vunpack.c.l.b16 %v1463
      %v1496 = vunpack.c.l.b16 %v1464
      %v1497 = vunpack.c.l.b16 %v1465
      %v1498 = vunpack.c.l.b16 %v1466
      %v1499 = vunpack.c.l.b16 %v1467
      %v1500 = vunpack.c.l.b16 %v1468
      %v1501 = vunpack.c.l.b16 %v1469
      %v1502 = vunpack.c.l.b16 %v1470
      %v1503 = vunpack.c.l.b16 %v1471
      %v1504 = vpack.c.b16 %v1489, %v1488
      %v1505 = vpack.c.b16 %v1491, %v1490
      %v1506 = vpack.c.b16 %v1493, %v1492
      %v1507 = vpack.c.b16 %v1495, %v1494
      %v1508 = vpack.c.b16 %v1497, %v1496
      %v1509 = vpack.c.b16 %v1499, %v1498
      %v1510 = vpack.c.b16 %v1501, %v1500
      %v1511 = vpack.c.b16 %v1503, %v1502
      %1520 = vmatpush.bf16.msra.mxu0 %v1511
      %1521 = vmatpush.bf16.msra.mxu0 %v1510
      %1522 = vmatpush.bf16.msra.mxu0 %v1509
      %1523 = vmatpush.bf16.msra.mxu0 %v1508
      %1524 = vmatpush.bf16.msra.mxu0 %v1507
      %1525 = vmatpush.bf16.msra.mxu0 %v1506
      %1526 = vmatpush.bf16.msra.mxu0 %v1505
      %1527 = vmatpush.bf16.msra.mxu0 %v1504
      %1528 = vmatmul.bf16.gmra.mxu0 %v1440
      %v1529 = vpop.f32.mrf.mxu0
      %v1530 = vadd.f32 0.0, %v1529
      %v1531 = vpop.f32.mrf.mxu0
      %v1532 = vadd.f32 0.0, %v1531
      %1533 = vmatmul.bf16.gmra.mxu0 %v1441
      %v1534 = vpop.f32.mrf.mxu0
      %v1535 = vadd.f32 0.0, %v1534
      %v1536 = vpop.f32.mrf.mxu0
      %v1537 = vadd.f32 0.0, %v1536
      %1538 = vmatmul.bf16.gmra.mxu0 %v1442
      %v1539 = vpop.f32.mrf.mxu0
      %v1540 = vadd.f32 0.0, %v1539
      %v1541 = vpop.f32.mrf.mxu0
      %v1542 = vadd.f32 0.0, %v1541
      %1543 = vmatmul.bf16.gmra.mxu0 %v1443
      %v1544 = vpop.f32.mrf.mxu0
      %v1545 = vadd.f32 0.0, %v1544
      %v1546 = vpop.f32.mrf.mxu0
      %v1547 = vadd.f32 0.0, %v1546
      %1548 = vmatmul.bf16.gmra.mxu0 %v1444
      %v1549 = vpop.f32.mrf.mxu0
      %v1550 = vadd.f32 0.0, %v1549
      %v1551 = vpop.f32.mrf.mxu0
      %v1552 = vadd.f32 0.0, %v1551
      %1553 = vmatmul.bf16.gmra.mxu0 %v1445
      %v1554 = vpop.f32.mrf.mxu0
      %v1555 = vadd.f32 0.0, %v1554
      %v1556 = vpop.f32.mrf.mxu0
      %v1557 = vadd.f32 0.0, %v1556
      %1558 = vmatmul.bf16.gmra.mxu0 %v1446
      %v1559 = vpop.f32.mrf.mxu0
      %v1560 = vadd.f32 0.0, %v1559
      %v1561 = vpop.f32.mrf.mxu0
      %v1562 = vadd.f32 0.0, %v1561
      %1563 = vmatmul.bf16.gmra.mxu0 %v1447
      %v1564 = vpop.f32.mrf.mxu0
      %v1565 = vadd.f32 0.0, %v1564
      %v1566 = vpop.f32.mrf.mxu0
      %v1567 = vadd.f32 0.0, %v1566
      %1568 = vmatmul.bf16.gmra.mxu0 %v1448
      %v1569 = vpop.f32.mrf.mxu0
      %v1570 = vadd.f32 0.0, %v1569
      %v1571 = vpop.f32.mrf.mxu0
      %v1572 = vadd.f32 0.0, %v1571
      %1573 = vmatmul.bf16.gmra.mxu0 %v1449
      %v1574 = vpop.f32.mrf.mxu0
      %v1575 = vadd.f32 0.0, %v1574
      %v1576 = vpop.f32.mrf.mxu0
      %v1577 = vadd.f32 0.0, %v1576
      %1578 = vmatmul.bf16.gmra.mxu0 %v1450
      %v1579 = vpop.f32.mrf.mxu0
      %v1580 = vadd.f32 0.0, %v1579
      %v1581 = vpop.f32.mrf.mxu0
      %v1582 = vadd.f32 0.0, %v1581
      %1583 = vmatmul.bf16.gmra.mxu0 %v1451
      %v1584 = vpop.f32.mrf.mxu0
      %v1585 = vadd.f32 0.0, %v1584
      %v1586 = vpop.f32.mrf.mxu0
      %v1587 = vadd.f32 0.0, %v1586
      %1588 = vmatmul.bf16.gmra.mxu0 %v1452
      %v1589 = vpop.f32.mrf.mxu0
      %v1590 = vadd.f32 0.0, %v1589
      %v1591 = vpop.f32.mrf.mxu0
      %v1592 = vadd.f32 0.0, %v1591
      %1593 = vmatmul.bf16.gmra.mxu0 %v1453
      %v1594 = vpop.f32.mrf.mxu0
      %v1595 = vadd.f32 0.0, %v1594
      %v1596 = vpop.f32.mrf.mxu0
      %v1597 = vadd.f32 0.0, %v1596
      %1598 = vmatmul.bf16.gmra.mxu0 %v1454
      %v1599 = vpop.f32.mrf.mxu0
      %v1600 = vadd.f32 0.0, %v1599
      %v1601 = vpop.f32.mrf.mxu0
      %v1602 = vadd.f32 0.0, %v1601
      %1603 = vmatmul.bf16.gmra.mxu0 %v1455
      %v1604 = vpop.f32.mrf.mxu0
      %v1605 = vadd.f32 0.0, %v1604
      %v1606 = vpop.f32.mrf.mxu0
      %v1607 = vadd.f32 0.0, %v1606
      %1608 = vdwg.mxu0
      %v1609 = vadd.f32 %v1376, %v1530
      %v1610 = vadd.f32 %v1377, %v1532
      %v1611 = vadd.f32 %v1378, %v1535
      %v1612 = vadd.f32 %v1379, %v1537
      %v1613 = vadd.f32 %v1380, %v1540
      %v1614 = vadd.f32 %v1381, %v1542
      %v1615 = vadd.f32 %v1382, %v1545
      %v1616 = vadd.f32 %v1383, %v1547
      %v1617 = vadd.f32 %v1384, %v1550
      %v1618 = vadd.f32 %v1385, %v1552
      %v1619 = vadd.f32 %v1386, %v1555
      %v1620 = vadd.f32 %v1387, %v1557
      %v1621 = vadd.f32 %v1388, %v1560
      %v1622 = vadd.f32 %v1389, %v1562
      %v1623 = vadd.f32 %v1390, %v1565
      %v1624 = vadd.f32 %v1391, %v1567
      %v1625 = vadd.f32 %v1392, %v1570
      %v1626 = vadd.f32 %v1393, %v1572
      %v1627 = vadd.f32 %v1394, %v1575
      %v1628 = vadd.f32 %v1395, %v1577
      %v1629 = vadd.f32 %v1396, %v1580
      %v1630 = vadd.f32 %v1397, %v1582
      %v1631 = vadd.f32 %v1398, %v1585
      %v1632 = vadd.f32 %v1399, %v1587
      %v1633 = vadd.f32 %v1400, %v1590
      %v1634 = vadd.f32 %v1401, %v1592
      %v1635 = vadd.f32 %v1402, %v1595
      %v1636 = vadd.f32 %v1403, %v1597
      %v1637 = vadd.f32 %v1404, %v1600
      %v1638 = vadd.f32 %v1405, %v1602
      %v1639 = vadd.f32 %v1406, %v1605
      %v1640 = vadd.f32 %v1407, %v1607
      %v1641 = vld [vmem:[%s507 + $0x2] sm:$0xff]
      %v1642 = vld [vmem:[%s507 + $0xa] sm:$0xff]
      %v1643 = vld [vmem:[%s507 + $0x1a] sm:$0xff]
      %v1644 = vld [vmem:[%s507 + $0x22] sm:$0xff]
      %v1645 = vld [vmem:[%s507 + $0x32] sm:$0xff]
      %v1646 = vld [vmem:[%s507 + $0x3a] sm:$0xff]
      %v1647 = vld [vmem:[%s507 + $0x4a] sm:$0xff]
      %v1648 = vld [vmem:[%s507 + $0x52] sm:$0xff]
      %v1649 = vld [vmem:[%s507 + $0x62] sm:$0xff]
      %v1650 = vld [vmem:[%s507 + $0x6a] sm:$0xff]
      %v1651 = vld [vmem:[%s507 + $0x7a] sm:$0xff]
      %v1652 = vld [vmem:[%s507 + $0x82] sm:$0xff]
      %v1653 = vld [vmem:[%s507 + $0x92] sm:$0xff]
      %v1654 = vld [vmem:[%s507 + $0x9a] sm:$0xff]
      %v1655 = vld [vmem:[%s507 + $0xaa] sm:$0xff]
      %v1656 = vld [vmem:[%s507 + $0xb2] sm:$0xff]
      %v1657 = vld [vmem:[%s507 + $0xc2] sm:$0xff]
      %v1658 = vld [vmem:[%s507 + $0xca] sm:$0xff]
      %v1659 = vld [vmem:[%s507 + $0xda] sm:$0xff]
      %v1660 = vld [vmem:[%s507 + $0xe2] sm:$0xff]
      %v1661 = vld [vmem:[%s507 + $0xf2] sm:$0xff]
      %v1662 = vld [vmem:[%s507 + $0xfa] sm:$0xff]
      %v1663 = vld [vmem:[%s507 + $0x10a] sm:$0xff]
      %v1664 = vld [vmem:[%s507 + $0x112] sm:$0xff]
      %v1665 = vld [vmem:[%s507 + $0x122] sm:$0xff]
      %v1666 = vld [vmem:[%s507 + $0x12a] sm:$0xff]
      %v1667 = vld [vmem:[%s507 + $0x13a] sm:$0xff]
      %v1668 = vld [vmem:[%s507 + $0x142] sm:$0xff]
      %v1669 = vld [vmem:[%s507 + $0x152] sm:$0xff]
      %v1670 = vld [vmem:[%s507 + $0x15a] sm:$0xff]
      %v1671 = vld [vmem:[%s507 + $0x16a] sm:$0xff]
      %v1672 = vld [vmem:[%s507 + $0x172] sm:$0xff]
      %v1673 = vpack.c.bf16 %v1642, %v1641
      %v1674 = vpack.c.bf16 %v1644, %v1643
      %v1675 = vpack.c.bf16 %v1646, %v1645
      %v1676 = vpack.c.bf16 %v1648, %v1647
      %v1677 = vpack.c.bf16 %v1650, %v1649
      %v1678 = vpack.c.bf16 %v1652, %v1651
      %v1679 = vpack.c.bf16 %v1654, %v1653
      %v1680 = vpack.c.bf16 %v1656, %v1655
      %v1681 = vpack.c.bf16 %v1658, %v1657
      %v1682 = vpack.c.bf16 %v1660, %v1659
      %v1683 = vpack.c.bf16 %v1662, %v1661
      %v1684 = vpack.c.bf16 %v1664, %v1663
      %v1685 = vpack.c.bf16 %v1666, %v1665
      %v1686 = vpack.c.bf16 %v1668, %v1667
      %v1687 = vpack.c.bf16 %v1670, %v1669
      %v1688 = vpack.c.bf16 %v1672, %v1671
      %v1689 = vld [vmem:[%s3 + $0x140] sm:$0xf]
      %v1690 = vld [vmem:[%s3 + $0x144] sm:$0xf]
      %v1691 = vld [vmem:[%s3 + $0x148] sm:$0xf]
      %v1692 = vld [vmem:[%s3 + $0x14c] sm:$0xf]
      %v1693 = vld [vmem:[%s3 + $0x150] sm:$0xf]
      %v1694 = vld [vmem:[%s3 + $0x154] sm:$0xf]
      %v1695 = vld [vmem:[%s3 + $0x158] sm:$0xf]
      %v1696 = vld [vmem:[%s3 + $0x15c] sm:$0xf]
      %v1697 = vld [vmem:[%s3 + $0x160] sm:$0xf]
      %v1698 = vld [vmem:[%s3 + $0x164] sm:$0xf]
      %v1699 = vld [vmem:[%s3 + $0x168] sm:$0xf]
      %v1700 = vld [vmem:[%s3 + $0x16c] sm:$0xf]
      %v1701 = vld [vmem:[%s3 + $0x170] sm:$0xf]
      %v1702 = vld [vmem:[%s3 + $0x174] sm:$0xf]
      %v1703 = vld [vmem:[%s3 + $0x178] sm:$0xf]
      %v1704 = vld [vmem:[%s3 + $0x17c] sm:$0xf]
      %v1721 = vunpack.c.l.b16 %v1689
      %v1722 = vunpack.c.l.b16 %v1690
      %v1723 = vunpack.c.l.b16 %v1691
      %v1724 = vunpack.c.l.b16 %v1692
      %v1725 = vunpack.c.l.b16 %v1693
      %v1726 = vunpack.c.l.b16 %v1694
      %v1727 = vunpack.c.l.b16 %v1695
      %v1728 = vunpack.c.l.b16 %v1696
      %v1729 = vunpack.c.l.b16 %v1697
      %v1730 = vunpack.c.l.b16 %v1698
      %v1731 = vunpack.c.l.b16 %v1699
      %v1732 = vunpack.c.l.b16 %v1700
      %v1733 = vunpack.c.l.b16 %v1701
      %v1734 = vunpack.c.l.b16 %v1702
      %v1735 = vunpack.c.l.b16 %v1703
      %v1736 = vunpack.c.l.b16 %v1704
      %v1737 = vpack.c.b16 %v1722, %v1721
      %v1738 = vpack.c.b16 %v1724, %v1723
      %v1739 = vpack.c.b16 %v1726, %v1725
      %v1740 = vpack.c.b16 %v1728, %v1727
      %v1741 = vpack.c.b16 %v1730, %v1729
      %v1742 = vpack.c.b16 %v1732, %v1731
      %v1743 = vpack.c.b16 %v1734, %v1733
      %v1744 = vpack.c.b16 %v1736, %v1735
      %1753 = vmatpush.bf16.msra.mxu0 %v1744
      %1754 = vmatpush.bf16.msra.mxu0 %v1743
      %1755 = vmatpush.bf16.msra.mxu0 %v1742
      %1756 = vmatpush.bf16.msra.mxu0 %v1741
      %1757 = vmatpush.bf16.msra.mxu0 %v1740
      %1758 = vmatpush.bf16.msra.mxu0 %v1739
      %1759 = vmatpush.bf16.msra.mxu0 %v1738
      %1760 = vmatpush.bf16.msra.mxu0 %v1737
      %1761 = vmatmul.bf16.gmra.mxu0 %v1673
      %v1762 = vpop.f32.mrf.mxu0
      %v1763 = vadd.f32 0.0, %v1762
      %v1764 = vpop.f32.mrf.mxu0
      %v1765 = vadd.f32 0.0, %v1764
      %1766 = vmatmul.bf16.gmra.mxu0 %v1674
      %v1767 = vpop.f32.mrf.mxu0
      %v1768 = vadd.f32 0.0, %v1767
      %v1769 = vpop.f32.mrf.mxu0
      %v1770 = vadd.f32 0.0, %v1769
      %1771 = vmatmul.bf16.gmra.mxu0 %v1675
      %v1772 = vpop.f32.mrf.mxu0
      %v1773 = vadd.f32 0.0, %v1772
      %v1774 = vpop.f32.mrf.mxu0
      %v1775 = vadd.f32 0.0, %v1774
      %1776 = vmatmul.bf16.gmra.mxu0 %v1676
      %v1777 = vpop.f32.mrf.mxu0
      %v1778 = vadd.f32 0.0, %v1777
      %v1779 = vpop.f32.mrf.mxu0
      %v1780 = vadd.f32 0.0, %v1779
      %1781 = vmatmul.bf16.gmra.mxu0 %v1677
      %v1782 = vpop.f32.mrf.mxu0
      %v1783 = vadd.f32 0.0, %v1782
      %v1784 = vpop.f32.mrf.mxu0
      %v1785 = vadd.f32 0.0, %v1784
      %1786 = vmatmul.bf16.gmra.mxu0 %v1678
      %v1787 = vpop.f32.mrf.mxu0
      %v1788 = vadd.f32 0.0, %v1787
      %v1789 = vpop.f32.mrf.mxu0
      %v1790 = vadd.f32 0.0, %v1789
      %1791 = vmatmul.bf16.gmra.mxu0 %v1679
      %v1792 = vpop.f32.mrf.mxu0
      %v1793 = vadd.f32 0.0, %v1792
      %v1794 = vpop.f32.mrf.mxu0
      %v1795 = vadd.f32 0.0, %v1794
      %1796 = vmatmul.bf16.gmra.mxu0 %v1680
      %v1797 = vpop.f32.mrf.mxu0
      %v1798 = vadd.f32 0.0, %v1797
      %v1799 = vpop.f32.mrf.mxu0
      %v1800 = vadd.f32 0.0, %v1799
      %1801 = vmatmul.bf16.gmra.mxu0 %v1681
      %v1802 = vpop.f32.mrf.mxu0
      %v1803 = vadd.f32 0.0, %v1802
      %v1804 = vpop.f32.mrf.mxu0
      %v1805 = vadd.f32 0.0, %v1804
      %1806 = vmatmul.bf16.gmra.mxu0 %v1682
      %v1807 = vpop.f32.mrf.mxu0
      %v1808 = vadd.f32 0.0, %v1807
      %v1809 = vpop.f32.mrf.mxu0
      %v1810 = vadd.f32 0.0, %v1809
      %1811 = vmatmul.bf16.gmra.mxu0 %v1683
      %v1812 = vpop.f32.mrf.mxu0
      %v1813 = vadd.f32 0.0, %v1812
      %v1814 = vpop.f32.mrf.mxu0
      %v1815 = vadd.f32 0.0, %v1814
      %1816 = vmatmul.bf16.gmra.mxu0 %v1684
      %v1817 = vpop.f32.mrf.mxu0
      %v1818 = vadd.f32 0.0, %v1817
      %v1819 = vpop.f32.mrf.mxu0
      %v1820 = vadd.f32 0.0, %v1819
      %1821 = vmatmul.bf16.gmra.mxu0 %v1685
      %v1822 = vpop.f32.mrf.mxu0
      %v1823 = vadd.f32 0.0, %v1822
      %v1824 = vpop.f32.mrf.mxu0
      %v1825 = vadd.f32 0.0, %v1824
      %1826 = vmatmul.bf16.gmra.mxu0 %v1686
      %v1827 = vpop.f32.mrf.mxu0
      %v1828 = vadd.f32 0.0, %v1827
      %v1829 = vpop.f32.mrf.mxu0
      %v1830 = vadd.f32 0.0, %v1829
      %1831 = vmatmul.bf16.gmra.mxu0 %v1687
      %v1832 = vpop.f32.mrf.mxu0
      %v1833 = vadd.f32 0.0, %v1832
      %v1834 = vpop.f32.mrf.mxu0
      %v1835 = vadd.f32 0.0, %v1834
      %1836 = vmatmul.bf16.gmra.mxu0 %v1688
      %v1837 = vpop.f32.mrf.mxu0
      %v1838 = vadd.f32 0.0, %v1837
      %v1839 = vpop.f32.mrf.mxu0
      %v1840 = vadd.f32 0.0, %v1839
      %1841 = vdwg.mxu0
      %v1842 = vadd.f32 %v1609, %v1763
      %v1843 = vadd.f32 %v1610, %v1765
      %v1844 = vadd.f32 %v1611, %v1768
      %v1845 = vadd.f32 %v1612, %v1770
      %v1846 = vadd.f32 %v1613, %v1773
      %v1847 = vadd.f32 %v1614, %v1775
      %v1848 = vadd.f32 %v1615, %v1778
      %v1849 = vadd.f32 %v1616, %v1780
      %v1850 = vadd.f32 %v1617, %v1783
      %v1851 = vadd.f32 %v1618, %v1785
      %v1852 = vadd.f32 %v1619, %v1788
      %v1853 = vadd.f32 %v1620, %v1790
      %v1854 = vadd.f32 %v1621, %v1793
      %v1855 = vadd.f32 %v1622, %v1795
      %v1856 = vadd.f32 %v1623, %v1798
      %v1857 = vadd.f32 %v1624, %v1800
      %v1858 = vadd.f32 %v1625, %v1803
      %v1859 = vadd.f32 %v1626, %v1805
      %v1860 = vadd.f32 %v1627, %v1808
      %v1861 = vadd.f32 %v1628, %v1810
      %v1862 = vadd.f32 %v1629, %v1813
      %v1863 = vadd.f32 %v1630, %v1815
      %v1864 = vadd.f32 %v1631, %v1818
      %v1865 = vadd.f32 %v1632, %v1820
      %v1866 = vadd.f32 %v1633, %v1823
      %v1867 = vadd.f32 %v1634, %v1825
      %v1868 = vadd.f32 %v1635, %v1828
      %v1869 = vadd.f32 %v1636, %v1830
      %v1870 = vadd.f32 %v1637, %v1833
      %v1871 = vadd.f32 %v1638, %v1835
      %v1872 = vadd.f32 %v1639, %v1838
      %v1873 = vadd.f32 %v1640, %v1840
      %s1874 = scalar_lea.vmem [#allocation2], 48
      %v1875 = vld [vmem:[%s1874] sm:$0xff]
      %v1876 = vld [vmem:[%s1874 + $0x8] sm:$0xff]
      %v1877 = vld [vmem:[%s1874 + $0x18] sm:$0xff]
      %v1878 = vld [vmem:[%s1874 + $0x20] sm:$0xff]
      %v1879 = vld [vmem:[%s1874 + $0x30] sm:$0xff]
      %v1880 = vld [vmem:[%s1874 + $0x38] sm:$0xff]
      %v1881 = vld [vmem:[%s1874 + $0x48] sm:$0xff]
      %v1882 = vld [vmem:[%s1874 + $0x50] sm:$0xff]
      %v1883 = vld [vmem:[%s1874 + $0x60] sm:$0xff]
      %v1884 = vld [vmem:[%s1874 + $0x68] sm:$0xff]
      %v1885 = vld [vmem:[%s1874 + $0x78] sm:$0xff]
      %v1886 = vld [vmem:[%s1874 + $0x80] sm:$0xff]
      %v1887 = vld [vmem:[%s1874 + $0x90] sm:$0xff]
      %v1888 = vld [vmem:[%s1874 + $0x98] sm:$0xff]
      %v1889 = vld [vmem:[%s1874 + $0xa8] sm:$0xff]
      %v1890 = vld [vmem:[%s1874 + $0xb0] sm:$0xff]
      %v1891 = vld [vmem:[%s1874 + $0xc0] sm:$0xff]
      %v1892 = vld [vmem:[%s1874 + $0xc8] sm:$0xff]
      %v1893 = vld [vmem:[%s1874 + $0xd8] sm:$0xff]
      %v1894 = vld [vmem:[%s1874 + $0xe0] sm:$0xff]
      %v1895 = vld [vmem:[%s1874 + $0xf0] sm:$0xff]
      %v1896 = vld [vmem:[%s1874 + $0xf8] sm:$0xff]
      %v1897 = vld [vmem:[%s1874 + $0x108] sm:$0xff]
      %v1898 = vld [vmem:[%s1874 + $0x110] sm:$0xff]
      %v1899 = vld [vmem:[%s1874 + $0x120] sm:$0xff]
      %v1900 = vld [vmem:[%s1874 + $0x128] sm:$0xff]
      %v1901 = vld [vmem:[%s1874 + $0x138] sm:$0xff]
      %v1902 = vld [vmem:[%s1874 + $0x140] sm:$0xff]
      %v1903 = vld [vmem:[%s1874 + $0x150] sm:$0xff]
      %v1904 = vld [vmem:[%s1874 + $0x158] sm:$0xff]
      %v1905 = vld [vmem:[%s1874 + $0x168] sm:$0xff]
      %v1906 = vld [vmem:[%s1874 + $0x170] sm:$0xff]
      %v1907 = vpack.c.bf16 %v1876, %v1875
      %v1908 = vpack.c.bf16 %v1878, %v1877
      %v1909 = vpack.c.bf16 %v1880, %v1879
      %v1910 = vpack.c.bf16 %v1882, %v1881
      %v1911 = vpack.c.bf16 %v1884, %v1883
      %v1912 = vpack.c.bf16 %v1886, %v1885
      %v1913 = vpack.c.bf16 %v1888, %v1887
      %v1914 = vpack.c.bf16 %v1890, %v1889
      %v1915 = vpack.c.bf16 %v1892, %v1891
      %v1916 = vpack.c.bf16 %v1894, %v1893
      %v1917 = vpack.c.bf16 %v1896, %v1895
      %v1918 = vpack.c.bf16 %v1898, %v1897
      %v1919 = vpack.c.bf16 %v1900, %v1899
      %v1920 = vpack.c.bf16 %v1902, %v1901
      %v1921 = vpack.c.bf16 %v1904, %v1903
      %v1922 = vpack.c.bf16 %v1906, %v1905
      %v1923 = vld [vmem:[%s3 + $0x180] sm:$0xf]
      %v1924 = vld [vmem:[%s3 + $0x184] sm:$0xf]
      %v1925 = vld [vmem:[%s3 + $0x188] sm:$0xf]
      %v1926 = vld [vmem:[%s3 + $0x18c] sm:$0xf]
      %v1927 = vld [vmem:[%s3 + $0x190] sm:$0xf]
      %v1928 = vld [vmem:[%s3 + $0x194] sm:$0xf]
      %v1929 = vld [vmem:[%s3 + $0x198] sm:$0xf]
      %v1930 = vld [vmem:[%s3 + $0x19c] sm:$0xf]
      %v1931 = vld [vmem:[%s3 + $0x1a0] sm:$0xf]
      %v1932 = vld [vmem:[%s3 + $0x1a4] sm:$0xf]
      %v1933 = vld [vmem:[%s3 + $0x1a8] sm:$0xf]
      %v1934 = vld [vmem:[%s3 + $0x1ac] sm:$0xf]
      %v1935 = vld [vmem:[%s3 + $0x1b0] sm:$0xf]
      %v1936 = vld [vmem:[%s3 + $0x1b4] sm:$0xf]
      %v1937 = vld [vmem:[%s3 + $0x1b8] sm:$0xf]
      %v1938 = vld [vmem:[%s3 + $0x1bc] sm:$0xf]
      %v1955 = vunpack.c.l.b16 %v1923
      %v1956 = vunpack.c.l.b16 %v1924
      %v1957 = vunpack.c.l.b16 %v1925
      %v1958 = vunpack.c.l.b16 %v1926
      %v1959 = vunpack.c.l.b16 %v1927
      %v1960 = vunpack.c.l.b16 %v1928
      %v1961 = vunpack.c.l.b16 %v1929
      %v1962 = vunpack.c.l.b16 %v1930
      %v1963 = vunpack.c.l.b16 %v1931
      %v1964 = vunpack.c.l.b16 %v1932
      %v1965 = vunpack.c.l.b16 %v1933
      %v1966 = vunpack.c.l.b16 %v1934
      %v1967 = vunpack.c.l.b16 %v1935
      %v1968 = vunpack.c.l.b16 %v1936
      %v1969 = vunpack.c.l.b16 %v1937
      %v1970 = vunpack.c.l.b16 %v1938
      %v1971 = vpack.c.b16 %v1956, %v1955
      %v1972 = vpack.c.b16 %v1958, %v1957
      %v1973 = vpack.c.b16 %v1960, %v1959
      %v1974 = vpack.c.b16 %v1962, %v1961
      %v1975 = vpack.c.b16 %v1964, %v1963
      %v1976 = vpack.c.b16 %v1966, %v1965
      %v1977 = vpack.c.b16 %v1968, %v1967
      %v1978 = vpack.c.b16 %v1970, %v1969
      %1987 = vmatpush.bf16.msra.mxu0 %v1978
      %1988 = vmatpush.bf16.msra.mxu0 %v1977
      %1989 = vmatpush.bf16.msra.mxu0 %v1976
      %1990 = vmatpush.bf16.msra.mxu0 %v1975
      %1991 = vmatpush.bf16.msra.mxu0 %v1974
      %1992 = vmatpush.bf16.msra.mxu0 %v1973
      %1993 = vmatpush.bf16.msra.mxu0 %v1972
      %1994 = vmatpush.bf16.msra.mxu0 %v1971
      %1995 = vmatmul.bf16.gmra.mxu0 %v1907
      %v1996 = vpop.f32.mrf.mxu0
      %v1997 = vadd.f32 0.0, %v1996
      %v1998 = vpop.f32.mrf.mxu0
      %v1999 = vadd.f32 0.0, %v1998
      %2000 = vmatmul.bf16.gmra.mxu0 %v1908
      %v2001 = vpop.f32.mrf.mxu0
      %v2002 = vadd.f32 0.0, %v2001
      %v2003 = vpop.f32.mrf.mxu0
      %v2004 = vadd.f32 0.0, %v2003
      %2005 = vmatmul.bf16.gmra.mxu0 %v1909
      %v2006 = vpop.f32.mrf.mxu0
      %v2007 = vadd.f32 0.0, %v2006
      %v2008 = vpop.f32.mrf.mxu0
      %v2009 = vadd.f32 0.0, %v2008
      %2010 = vmatmul.bf16.gmra.mxu0 %v1910
      %v2011 = vpop.f32.mrf.mxu0
      %v2012 = vadd.f32 0.0, %v2011
      %v2013 = vpop.f32.mrf.mxu0
      %v2014 = vadd.f32 0.0, %v2013
      %2015 = vmatmul.bf16.gmra.mxu0 %v1911
      %v2016 = vpop.f32.mrf.mxu0
      %v2017 = vadd.f32 0.0, %v2016
      %v2018 = vpop.f32.mrf.mxu0
      %v2019 = vadd.f32 0.0, %v2018
      %2020 = vmatmul.bf16.gmra.mxu0 %v1912
      %v2021 = vpop.f32.mrf.mxu0
      %v2022 = vadd.f32 0.0, %v2021
      %v2023 = vpop.f32.mrf.mxu0
      %v2024 = vadd.f32 0.0, %v2023
      %2025 = vmatmul.bf16.gmra.mxu0 %v1913
      %v2026 = vpop.f32.mrf.mxu0
      %v2027 = vadd.f32 0.0, %v2026
      %v2028 = vpop.f32.mrf.mxu0
      %v2029 = vadd.f32 0.0, %v2028
      %2030 = vmatmul.bf16.gmra.mxu0 %v1914
      %v2031 = vpop.f32.mrf.mxu0
      %v2032 = vadd.f32 0.0, %v2031
      %v2033 = vpop.f32.mrf.mxu0
      %v2034 = vadd.f32 0.0, %v2033
      %2035 = vmatmul.bf16.gmra.mxu0 %v1915
      %v2036 = vpop.f32.mrf.mxu0
      %v2037 = vadd.f32 0.0, %v2036
      %v2038 = vpop.f32.mrf.mxu0
      %v2039 = vadd.f32 0.0, %v2038
      %2040 = vmatmul.bf16.gmra.mxu0 %v1916
      %v2041 = vpop.f32.mrf.mxu0
      %v2042 = vadd.f32 0.0, %v2041
      %v2043 = vpop.f32.mrf.mxu0
      %v2044 = vadd.f32 0.0, %v2043
      %2045 = vmatmul.bf16.gmra.mxu0 %v1917
      %v2046 = vpop.f32.mrf.mxu0
      %v2047 = vadd.f32 0.0, %v2046
      %v2048 = vpop.f32.mrf.mxu0
      %v2049 = vadd.f32 0.0, %v2048
      %2050 = vmatmul.bf16.gmra.mxu0 %v1918
      %v2051 = vpop.f32.mrf.mxu0
      %v2052 = vadd.f32 0.0, %v2051
      %v2053 = vpop.f32.mrf.mxu0
      %v2054 = vadd.f32 0.0, %v2053
      %2055 = vmatmul.bf16.gmra.mxu0 %v1919
      %v2056 = vpop.f32.mrf.mxu0
      %v2057 = vadd.f32 0.0, %v2056
      %v2058 = vpop.f32.mrf.mxu0
      %v2059 = vadd.f32 0.0, %v2058
      %2060 = vmatmul.bf16.gmra.mxu0 %v1920
      %v2061 = vpop.f32.mrf.mxu0
      %v2062 = vadd.f32 0.0, %v2061
      %v2063 = vpop.f32.mrf.mxu0
      %v2064 = vadd.f32 0.0, %v2063
      %2065 = vmatmul.bf16.gmra.mxu0 %v1921
      %v2066 = vpop.f32.mrf.mxu0
      %v2067 = vadd.f32 0.0, %v2066
      %v2068 = vpop.f32.mrf.mxu0
      %v2069 = vadd.f32 0.0, %v2068
      %2070 = vmatmul.bf16.gmra.mxu0 %v1922
      %v2071 = vpop.f32.mrf.mxu0
      %v2072 = vadd.f32 0.0, %v2071
      %v2073 = vpop.f32.mrf.mxu0
      %v2074 = vadd.f32 0.0, %v2073
      %2075 = vdwg.mxu0
      %v2076 = vadd.f32 %v1842, %v1997
      %v2077 = vadd.f32 %v1843, %v1999
      %v2078 = vadd.f32 %v1844, %v2002
      %v2079 = vadd.f32 %v1845, %v2004
      %v2080 = vadd.f32 %v1846, %v2007
      %v2081 = vadd.f32 %v1847, %v2009
      %v2082 = vadd.f32 %v1848, %v2012
      %v2083 = vadd.f32 %v1849, %v2014
      %v2084 = vadd.f32 %v1850, %v2017
      %v2085 = vadd.f32 %v1851, %v2019
      %v2086 = vadd.f32 %v1852, %v2022
      %v2087 = vadd.f32 %v1853, %v2024
      %v2088 = vadd.f32 %v1854, %v2027
      %v2089 = vadd.f32 %v1855, %v2029
      %v2090 = vadd.f32 %v1856, %v2032
      %v2091 = vadd.f32 %v1857, %v2034
      %v2092 = vadd.f32 %v1858, %v2037
      %v2093 = vadd.f32 %v1859, %v2039
      %v2094 = vadd.f32 %v1860, %v2042
      %v2095 = vadd.f32 %v1861, %v2044
      %v2096 = vadd.f32 %v1862, %v2047
      %v2097 = vadd.f32 %v1863, %v2049
      %v2098 = vadd.f32 %v1864, %v2052
      %v2099 = vadd.f32 %v1865, %v2054
      %v2100 = vadd.f32 %v1866, %v2057
      %v2101 = vadd.f32 %v1867, %v2059
      %v2102 = vadd.f32 %v1868, %v2062
      %v2103 = vadd.f32 %v1869, %v2064
      %v2104 = vadd.f32 %v1870, %v2067
      %v2105 = vadd.f32 %v1871, %v2069
      %v2106 = vadd.f32 %v1872, %v2072
      %v2107 = vadd.f32 %v1873, %v2074
      %v2108 = vld [vmem:[%s1874 + $0x1] sm:$0xff]
      %v2109 = vld [vmem:[%s1874 + $0x9] sm:$0xff]
      %v2110 = vld [vmem:[%s1874 + $0x19] sm:$0xff]
      %v2111 = vld [vmem:[%s1874 + $0x21] sm:$0xff]
      %v2112 = vld [vmem:[%s1874 + $0x31] sm:$0xff]
      %v2113 = vld [vmem:[%s1874 + $0x39] sm:$0xff]
      %v2114 = vld [vmem:[%s1874 + $0x49] sm:$0xff]
      %v2115 = vld [vmem:[%s1874 + $0x51] sm:$0xff]
      %v2116 = vld [vmem:[%s1874 + $0x61] sm:$0xff]
      %v2117 = vld [vmem:[%s1874 + $0x69] sm:$0xff]
      %v2118 = vld [vmem:[%s1874 + $0x79] sm:$0xff]
      %v2119 = vld [vmem:[%s1874 + $0x81] sm:$0xff]
      %v2120 = vld [vmem:[%s1874 + $0x91] sm:$0xff]
      %v2121 = vld [vmem:[%s1874 + $0x99] sm:$0xff]
      %v2122 = vld [vmem:[%s1874 + $0xa9] sm:$0xff]
      %v2123 = vld [vmem:[%s1874 + $0xb1] sm:$0xff]
      %v2124 = vld [vmem:[%s1874 + $0xc1] sm:$0xff]
      %v2125 = vld [vmem:[%s1874 + $0xc9] sm:$0xff]
      %v2126 = vld [vmem:[%s1874 + $0xd9] sm:$0xff]
      %v2127 = vld [vmem:[%s1874 + $0xe1] sm:$0xff]
      %v2128 = vld [vmem:[%s1874 + $0xf1] sm:$0xff]
      %v2129 = vld [vmem:[%s1874 + $0xf9] sm:$0xff]
      %v2130 = vld [vmem:[%s1874 + $0x109] sm:$0xff]
      %v2131 = vld [vmem:[%s1874 + $0x111] sm:$0xff]
      %v2132 = vld [vmem:[%s1874 + $0x121] sm:$0xff]
      %v2133 = vld [vmem:[%s1874 + $0x129] sm:$0xff]
      %v2134 = vld [vmem:[%s1874 + $0x139] sm:$0xff]
      %v2135 = vld [vmem:[%s1874 + $0x141] sm:$0xff]
      %v2136 = vld [vmem:[%s1874 + $0x151] sm:$0xff]
      %v2137 = vld [vmem:[%s1874 + $0x159] sm:$0xff]
      %v2138 = vld [vmem:[%s1874 + $0x169] sm:$0xff]
      %v2139 = vld [vmem:[%s1874 + $0x171] sm:$0xff]
      %v2140 = vpack.c.bf16 %v2109, %v2108
      %v2141 = vpack.c.bf16 %v2111, %v2110
      %v2142 = vpack.c.bf16 %v2113, %v2112
      %v2143 = vpack.c.bf16 %v2115, %v2114
      %v2144 = vpack.c.bf16 %v2117, %v2116
      %v2145 = vpack.c.bf16 %v2119, %v2118
      %v2146 = vpack.c.bf16 %v2121, %v2120
      %v2147 = vpack.c.bf16 %v2123, %v2122
      %v2148 = vpack.c.bf16 %v2125, %v2124
      %v2149 = vpack.c.bf16 %v2127, %v2126
      %v2150 = vpack.c.bf16 %v2129, %v2128
      %v2151 = vpack.c.bf16 %v2131, %v2130
      %v2152 = vpack.c.bf16 %v2133, %v2132
      %v2153 = vpack.c.bf16 %v2135, %v2134
      %v2154 = vpack.c.bf16 %v2137, %v2136
      %v2155 = vpack.c.bf16 %v2139, %v2138
      %v2156 = vld [vmem:[%s3 + $0x1c0] sm:$0xf]
      %v2157 = vld [vmem:[%s3 + $0x1c4] sm:$0xf]
      %v2158 = vld [vmem:[%s3 + $0x1c8] sm:$0xf]
      %v2159 = vld [vmem:[%s3 + $0x1cc] sm:$0xf]
      %v2160 = vld [vmem:[%s3 + $0x1d0] sm:$0xf]
      %v2161 = vld [vmem:[%s3 + $0x1d4] sm:$0xf]
      %v2162 = vld [vmem:[%s3 + $0x1d8] sm:$0xf]
      %v2163 = vld [vmem:[%s3 + $0x1dc] sm:$0xf]
      %v2164 = vld [vmem:[%s3 + $0x1e0] sm:$0xf]
      %v2165 = vld [vmem:[%s3 + $0x1e4] sm:$0xf]
      %v2166 = vld [vmem:[%s3 + $0x1e8] sm:$0xf]
      %v2167 = vld [vmem:[%s3 + $0x1ec] sm:$0xf]
      %v2168 = vld [vmem:[%s3 + $0x1f0] sm:$0xf]
      %v2169 = vld [vmem:[%s3 + $0x1f4] sm:$0xf]
      %v2170 = vld [vmem:[%s3 + $0x1f8] sm:$0xf]
      %v2171 = vld [vmem:[%s3 + $0x1fc] sm:$0xf]
      %v2188 = vunpack.c.l.b16 %v2156
      %v2189 = vunpack.c.l.b16 %v2157
      %v2190 = vunpack.c.l.b16 %v2158
      %v2191 = vunpack.c.l.b16 %v2159
      %v2192 = vunpack.c.l.b16 %v2160
      %v2193 = vunpack.c.l.b16 %v2161
      %v2194 = vunpack.c.l.b16 %v2162
      %v2195 = vunpack.c.l.b16 %v2163
      %v2196 = vunpack.c.l.b16 %v2164
      %v2197 = vunpack.c.l.b16 %v2165
      %v2198 = vunpack.c.l.b16 %v2166
      %v2199 = vunpack.c.l.b16 %v2167
      %v2200 = vunpack.c.l.b16 %v2168
      %v2201 = vunpack.c.l.b16 %v2169
      %v2202 = vunpack.c.l.b16 %v2170
      %v2203 = vunpack.c.l.b16 %v2171
      %v2204 = vpack.c.b16 %v2189, %v2188
      %v2205 = vpack.c.b16 %v2191, %v2190
      %v2206 = vpack.c.b16 %v2193, %v2192
      %v2207 = vpack.c.b16 %v2195, %v2194
      %v2208 = vpack.c.b16 %v2197, %v2196
      %v2209 = vpack.c.b16 %v2199, %v2198
      %v2210 = vpack.c.b16 %v2201, %v2200
      %v2211 = vpack.c.b16 %v2203, %v2202
      %2220 = vmatpush.bf16.msra.mxu0 %v2211
      %2221 = vmatpush.bf16.msra.mxu0 %v2210
      %2222 = vmatpush.bf16.msra.mxu0 %v2209
      %2223 = vmatpush.bf16.msra.mxu0 %v2208
      %2224 = vmatpush.bf16.msra.mxu0 %v2207
      %2225 = vmatpush.bf16.msra.mxu0 %v2206
      %2226 = vmatpush.bf16.msra.mxu0 %v2205
      %2227 = vmatpush.bf16.msra.mxu0 %v2204
      %2228 = vmatmul.bf16.gmra.mxu0 %v2140
      %v2229 = vpop.f32.mrf.mxu0
      %v2230 = vadd.f32 0.0, %v2229
      %v2231 = vpop.f32.mrf.mxu0
      %v2232 = vadd.f32 0.0, %v2231
      %2233 = vmatmul.bf16.gmra.mxu0 %v2141
      %v2234 = vpop.f32.mrf.mxu0
      %v2235 = vadd.f32 0.0, %v2234
      %v2236 = vpop.f32.mrf.mxu0
      %v2237 = vadd.f32 0.0, %v2236
      %2238 = vmatmul.bf16.gmra.mxu0 %v2142
      %v2239 = vpop.f32.mrf.mxu0
      %v2240 = vadd.f32 0.0, %v2239
      %v2241 = vpop.f32.mrf.mxu0
      %v2242 = vadd.f32 0.0, %v2241
      %2243 = vmatmul.bf16.gmra.mxu0 %v2143
      %v2244 = vpop.f32.mrf.mxu0
      %v2245 = vadd.f32 0.0, %v2244
      %v2246 = vpop.f32.mrf.mxu0
      %v2247 = vadd.f32 0.0, %v2246
      %2248 = vmatmul.bf16.gmra.mxu0 %v2144
      %v2249 = vpop.f32.mrf.mxu0
      %v2250 = vadd.f32 0.0, %v2249
      %v2251 = vpop.f32.mrf.mxu0
      %v2252 = vadd.f32 0.0, %v2251
      %2253 = vmatmul.bf16.gmra.mxu0 %v2145
      %v2254 = vpop.f32.mrf.mxu0
      %v2255 = vadd.f32 0.0, %v2254
      %v2256 = vpop.f32.mrf.mxu0
      %v2257 = vadd.f32 0.0, %v2256
      %2258 = vmatmul.bf16.gmra.mxu0 %v2146
      %v2259 = vpop.f32.mrf.mxu0
      %v2260 = vadd.f32 0.0, %v2259
      %v2261 = vpop.f32.mrf.mxu0
      %v2262 = vadd.f32 0.0, %v2261
      %2263 = vmatmul.bf16.gmra.mxu0 %v2147
      %v2264 = vpop.f32.mrf.mxu0
      %v2265 = vadd.f32 0.0, %v2264
      %v2266 = vpop.f32.mrf.mxu0
      %v2267 = vadd.f32 0.0, %v2266
      %2268 = vmatmul.bf16.gmra.mxu0 %v2148
      %v2269 = vpop.f32.mrf.mxu0
      %v2270 = vadd.f32 0.0, %v2269
      %v2271 = vpop.f32.mrf.mxu0
      %v2272 = vadd.f32 0.0, %v2271
      %2273 = vmatmul.bf16.gmra.mxu0 %v2149
      %v2274 = vpop.f32.mrf.mxu0
      %v2275 = vadd.f32 0.0, %v2274
      %v2276 = vpop.f32.mrf.mxu0
      %v2277 = vadd.f32 0.0, %v2276
      %2278 = vmatmul.bf16.gmra.mxu0 %v2150
      %v2279 = vpop.f32.mrf.mxu0
      %v2280 = vadd.f32 0.0, %v2279
      %v2281 = vpop.f32.mrf.mxu0
      %v2282 = vadd.f32 0.0, %v2281
      %2283 = vmatmul.bf16.gmra.mxu0 %v2151
      %v2284 = vpop.f32.mrf.mxu0
      %v2285 = vadd.f32 0.0, %v2284
      %v2286 = vpop.f32.mrf.mxu0
      %v2287 = vadd.f32 0.0, %v2286
      %2288 = vmatmul.bf16.gmra.mxu0 %v2152
      %v2289 = vpop.f32.mrf.mxu0
      %v2290 = vadd.f32 0.0, %v2289
      %v2291 = vpop.f32.mrf.mxu0
      %v2292 = vadd.f32 0.0, %v2291
      %2293 = vmatmul.bf16.gmra.mxu0 %v2153
      %v2294 = vpop.f32.mrf.mxu0
      %v2295 = vadd.f32 0.0, %v2294
      %v2296 = vpop.f32.mrf.mxu0
      %v2297 = vadd.f32 0.0, %v2296
      %2298 = vmatmul.bf16.gmra.mxu0 %v2154
      %v2299 = vpop.f32.mrf.mxu0
      %v2300 = vadd.f32 0.0, %v2299
      %v2301 = vpop.f32.mrf.mxu0
      %v2302 = vadd.f32 0.0, %v2301
      %2303 = vmatmul.bf16.gmra.mxu0 %v2155
      %v2304 = vpop.f32.mrf.mxu0
      %v2305 = vadd.f32 0.0, %v2304
      %v2306 = vpop.f32.mrf.mxu0
      %v2307 = vadd.f32 0.0, %v2306
      %2308 = vdwg.mxu0
      %v2309 = vadd.f32 %v2076, %v2230
      %v2310 = vadd.f32 %v2077, %v2232
      %v2311 = vadd.f32 %v2078, %v2235
      %v2312 = vadd.f32 %v2079, %v2237
      %v2313 = vadd.f32 %v2080, %v2240
      %v2314 = vadd.f32 %v2081, %v2242
      %v2315 = vadd.f32 %v2082, %v2245
      %v2316 = vadd.f32 %v2083, %v2247
      %v2317 = vadd.f32 %v2084, %v2250
      %v2318 = vadd.f32 %v2085, %v2252
      %v2319 = vadd.f32 %v2086, %v2255
      %v2320 = vadd.f32 %v2087, %v2257
      %v2321 = vadd.f32 %v2088, %v2260
      %v2322 = vadd.f32 %v2089, %v2262
      %v2323 = vadd.f32 %v2090, %v2265
      %v2324 = vadd.f32 %v2091, %v2267
      %v2325 = vadd.f32 %v2092, %v2270
      %v2326 = vadd.f32 %v2093, %v2272
      %v2327 = vadd.f32 %v2094, %v2275
      %v2328 = vadd.f32 %v2095, %v2277
      %v2329 = vadd.f32 %v2096, %v2280
      %v2330 = vadd.f32 %v2097, %v2282
      %v2331 = vadd.f32 %v2098, %v2285
      %v2332 = vadd.f32 %v2099, %v2287
      %v2333 = vadd.f32 %v2100, %v2290
      %v2334 = vadd.f32 %v2101, %v2292
      %v2335 = vadd.f32 %v2102, %v2295
      %v2336 = vadd.f32 %v2103, %v2297
      %v2337 = vadd.f32 %v2104, %v2300
      %v2338 = vadd.f32 %v2105, %v2302
      %v2339 = vadd.f32 %v2106, %v2305
      %v2340 = vadd.f32 %v2107, %v2307
      %v2341 = vld [vmem:[%s1874 + $0x2] sm:$0xff]
      %v2342 = vld [vmem:[%s1874 + $0xa] sm:$0xff]
      %v2343 = vld [vmem:[%s1874 + $0x1a] sm:$0xff]
      %v2344 = vld [vmem:[%s1874 + $0x22] sm:$0xff]
      %v2345 = vld [vmem:[%s1874 + $0x32] sm:$0xff]
      %v2346 = vld [vmem:[%s1874 + $0x3a] sm:$0xff]
      %v2347 = vld [vmem:[%s1874 + $0x4a] sm:$0xff]
      %v2348 = vld [vmem:[%s1874 + $0x52] sm:$0xff]
      %v2349 = vld [vmem:[%s1874 + $0x62] sm:$0xff]
      %v2350 = vld [vmem:[%s1874 + $0x6a] sm:$0xff]
      %v2351 = vld [vmem:[%s1874 + $0x7a] sm:$0xff]
      %v2352 = vld [vmem:[%s1874 + $0x82] sm:$0xff]
      %v2353 = vld [vmem:[%s1874 + $0x92] sm:$0xff]
      %v2354 = vld [vmem:[%s1874 + $0x9a] sm:$0xff]
      %v2355 = vld [vmem:[%s1874 + $0xaa] sm:$0xff]
      %v2356 = vld [vmem:[%s1874 + $0xb2] sm:$0xff]
      %v2357 = vld [vmem:[%s1874 + $0xc2] sm:$0xff]
      %v2358 = vld [vmem:[%s1874 + $0xca] sm:$0xff]
      %v2359 = vld [vmem:[%s1874 + $0xda] sm:$0xff]
      %v2360 = vld [vmem:[%s1874 + $0xe2] sm:$0xff]
      %v2361 = vld [vmem:[%s1874 + $0xf2] sm:$0xff]
      %v2362 = vld [vmem:[%s1874 + $0xfa] sm:$0xff]
      %v2363 = vld [vmem:[%s1874 + $0x10a] sm:$0xff]
      %v2364 = vld [vmem:[%s1874 + $0x112] sm:$0xff]
      %v2365 = vld [vmem:[%s1874 + $0x122] sm:$0xff]
      %v2366 = vld [vmem:[%s1874 + $0x12a] sm:$0xff]
      %v2367 = vld [vmem:[%s1874 + $0x13a] sm:$0xff]
      %v2368 = vld [vmem:[%s1874 + $0x142] sm:$0xff]
      %v2369 = vld [vmem:[%s1874 + $0x152] sm:$0xff]
      %v2370 = vld [vmem:[%s1874 + $0x15a] sm:$0xff]
      %v2371 = vld [vmem:[%s1874 + $0x16a] sm:$0xff]
      %v2372 = vld [vmem:[%s1874 + $0x172] sm:$0xff]
      %v2373 = vpack.c.bf16 %v2342, %v2341
      %v2374 = vpack.c.bf16 %v2344, %v2343
      %v2375 = vpack.c.bf16 %v2346, %v2345
      %v2376 = vpack.c.bf16 %v2348, %v2347
      %v2377 = vpack.c.bf16 %v2350, %v2349
      %v2378 = vpack.c.bf16 %v2352, %v2351
      %v2379 = vpack.c.bf16 %v2354, %v2353
      %v2380 = vpack.c.bf16 %v2356, %v2355
      %v2381 = vpack.c.bf16 %v2358, %v2357
      %v2382 = vpack.c.bf16 %v2360, %v2359
      %v2383 = vpack.c.bf16 %v2362, %v2361
      %v2384 = vpack.c.bf16 %v2364, %v2363
      %v2385 = vpack.c.bf16 %v2366, %v2365
      %v2386 = vpack.c.bf16 %v2368, %v2367
      %v2387 = vpack.c.bf16 %v2370, %v2369
      %v2388 = vpack.c.bf16 %v2372, %v2371
      %v2389 = vld [vmem:[%s3 + $0x200] sm:$0xf]
      %v2390 = vld [vmem:[%s3 + $0x204] sm:$0xf]
      %v2391 = vld [vmem:[%s3 + $0x208] sm:$0xf]
      %v2392 = vld [vmem:[%s3 + $0x20c] sm:$0xf]
      %v2393 = vld [vmem:[%s3 + $0x210] sm:$0xf]
      %v2394 = vld [vmem:[%s3 + $0x214] sm:$0xf]
      %v2395 = vld [vmem:[%s3 + $0x218] sm:$0xf]
      %v2396 = vld [vmem:[%s3 + $0x21c] sm:$0xf]
      %v2397 = vld [vmem:[%s3 + $0x220] sm:$0xf]
      %v2398 = vld [vmem:[%s3 + $0x224] sm:$0xf]
      %v2399 = vld [vmem:[%s3 + $0x228] sm:$0xf]
      %v2400 = vld [vmem:[%s3 + $0x22c] sm:$0xf]
      %v2401 = vld [vmem:[%s3 + $0x230] sm:$0xf]
      %v2402 = vld [vmem:[%s3 + $0x234] sm:$0xf]
      %v2403 = vld [vmem:[%s3 + $0x238] sm:$0xf]
      %v2404 = vld [vmem:[%s3 + $0x23c] sm:$0xf]
      %v2421 = vunpack.c.l.b16 %v2389
      %v2422 = vunpack.c.l.b16 %v2390
      %v2423 = vunpack.c.l.b16 %v2391
      %v2424 = vunpack.c.l.b16 %v2392
      %v2425 = vunpack.c.l.b16 %v2393
      %v2426 = vunpack.c.l.b16 %v2394
      %v2427 = vunpack.c.l.b16 %v2395
      %v2428 = vunpack.c.l.b16 %v2396
      %v2429 = vunpack.c.l.b16 %v2397
      %v2430 = vunpack.c.l.b16 %v2398
      %v2431 = vunpack.c.l.b16 %v2399
      %v2432 = vunpack.c.l.b16 %v2400
      %v2433 = vunpack.c.l.b16 %v2401
      %v2434 = vunpack.c.l.b16 %v2402
      %v2435 = vunpack.c.l.b16 %v2403
      %v2436 = vunpack.c.l.b16 %v2404
      %v2437 = vpack.c.b16 %v2422, %v2421
      %v2438 = vpack.c.b16 %v2424, %v2423
      %v2439 = vpack.c.b16 %v2426, %v2425
      %v2440 = vpack.c.b16 %v2428, %v2427
      %v2441 = vpack.c.b16 %v2430, %v2429
      %v2442 = vpack.c.b16 %v2432, %v2431
      %v2443 = vpack.c.b16 %v2434, %v2433
      %v2444 = vpack.c.b16 %v2436, %v2435
      %2453 = vmatpush.bf16.msra.mxu0 %v2444
      %2454 = vmatpush.bf16.msra.mxu0 %v2443
      %2455 = vmatpush.bf16.msra.mxu0 %v2442
      %2456 = vmatpush.bf16.msra.mxu0 %v2441
      %2457 = vmatpush.bf16.msra.mxu0 %v2440
      %2458 = vmatpush.bf16.msra.mxu0 %v2439
      %2459 = vmatpush.bf16.msra.mxu0 %v2438
      %2460 = vmatpush.bf16.msra.mxu0 %v2437
      %2461 = vmatmul.bf16.gmra.mxu0 %v2373
      %v2462 = vpop.f32.mrf.mxu0
      %v2463 = vadd.f32 0.0, %v2462
      %v2464 = vpop.f32.mrf.mxu0
      %v2465 = vadd.f32 0.0, %v2464
      %2466 = vmatmul.bf16.gmra.mxu0 %v2374
      %v2467 = vpop.f32.mrf.mxu0
      %v2468 = vadd.f32 0.0, %v2467
      %v2469 = vpop.f32.mrf.mxu0
      %v2470 = vadd.f32 0.0, %v2469
      %2471 = vmatmul.bf16.gmra.mxu0 %v2375
      %v2472 = vpop.f32.mrf.mxu0
      %v2473 = vadd.f32 0.0, %v2472
      %v2474 = vpop.f32.mrf.mxu0
      %v2475 = vadd.f32 0.0, %v2474
      %2476 = vmatmul.bf16.gmra.mxu0 %v2376
      %v2477 = vpop.f32.mrf.mxu0
      %v2478 = vadd.f32 0.0, %v2477
      %v2479 = vpop.f32.mrf.mxu0
      %v2480 = vadd.f32 0.0, %v2479
      %2481 = vmatmul.bf16.gmra.mxu0 %v2377
      %v2482 = vpop.f32.mrf.mxu0
      %v2483 = vadd.f32 0.0, %v2482
      %v2484 = vpop.f32.mrf.mxu0
      %v2485 = vadd.f32 0.0, %v2484
      %2486 = vmatmul.bf16.gmra.mxu0 %v2378
      %v2487 = vpop.f32.mrf.mxu0
      %v2488 = vadd.f32 0.0, %v2487
      %v2489 = vpop.f32.mrf.mxu0
      %v2490 = vadd.f32 0.0, %v2489
      %2491 = vmatmul.bf16.gmra.mxu0 %v2379
      %v2492 = vpop.f32.mrf.mxu0
      %v2493 = vadd.f32 0.0, %v2492
      %v2494 = vpop.f32.mrf.mxu0
      %v2495 = vadd.f32 0.0, %v2494
      %2496 = vmatmul.bf16.gmra.mxu0 %v2380
      %v2497 = vpop.f32.mrf.mxu0
      %v2498 = vadd.f32 0.0, %v2497
      %v2499 = vpop.f32.mrf.mxu0
      %v2500 = vadd.f32 0.0, %v2499
      %2501 = vmatmul.bf16.gmra.mxu0 %v2381
      %v2502 = vpop.f32.mrf.mxu0
      %v2503 = vadd.f32 0.0, %v2502
      %v2504 = vpop.f32.mrf.mxu0
      %v2505 = vadd.f32 0.0, %v2504
      %2506 = vmatmul.bf16.gmra.mxu0 %v2382
      %v2507 = vpop.f32.mrf.mxu0
      %v2508 = vadd.f32 0.0, %v2507
      %v2509 = vpop.f32.mrf.mxu0
      %v2510 = vadd.f32 0.0, %v2509
      %2511 = vmatmul.bf16.gmra.mxu0 %v2383
      %v2512 = vpop.f32.mrf.mxu0
      %v2513 = vadd.f32 0.0, %v2512
      %v2514 = vpop.f32.mrf.mxu0
      %v2515 = vadd.f32 0.0, %v2514
      %2516 = vmatmul.bf16.gmra.mxu0 %v2384
      %v2517 = vpop.f32.mrf.mxu0
      %v2518 = vadd.f32 0.0, %v2517
      %v2519 = vpop.f32.mrf.mxu0
      %v2520 = vadd.f32 0.0, %v2519
      %2521 = vmatmul.bf16.gmra.mxu0 %v2385
      %v2522 = vpop.f32.mrf.mxu0
      %v2523 = vadd.f32 0.0, %v2522
      %v2524 = vpop.f32.mrf.mxu0
      %v2525 = vadd.f32 0.0, %v2524
      %2526 = vmatmul.bf16.gmra.mxu0 %v2386
      %v2527 = vpop.f32.mrf.mxu0
      %v2528 = vadd.f32 0.0, %v2527
      %v2529 = vpop.f32.mrf.mxu0
      %v2530 = vadd.f32 0.0, %v2529
      %2531 = vmatmul.bf16.gmra.mxu0 %v2387
      %v2532 = vpop.f32.mrf.mxu0
      %v2533 = vadd.f32 0.0, %v2532
      %v2534 = vpop.f32.mrf.mxu0
      %v2535 = vadd.f32 0.0, %v2534
      %2536 = vmatmul.bf16.gmra.mxu0 %v2388
      %v2537 = vpop.f32.mrf.mxu0
      %v2538 = vadd.f32 0.0, %v2537
      %v2539 = vpop.f32.mrf.mxu0
      %v2540 = vadd.f32 0.0, %v2539
      %2541 = vdwg.mxu0
      %v2542 = vadd.f32 %v2309, %v2463
      %v2543 = vadd.f32 %v2310, %v2465
      %v2544 = vadd.f32 %v2311, %v2468
      %v2545 = vadd.f32 %v2312, %v2470
      %v2546 = vadd.f32 %v2313, %v2473
      %v2547 = vadd.f32 %v2314, %v2475
      %v2548 = vadd.f32 %v2315, %v2478
      %v2549 = vadd.f32 %v2316, %v2480
      %v2550 = vadd.f32 %v2317, %v2483
      %v2551 = vadd.f32 %v2318, %v2485
      %v2552 = vadd.f32 %v2319, %v2488
      %v2553 = vadd.f32 %v2320, %v2490
      %v2554 = vadd.f32 %v2321, %v2493
      %v2555 = vadd.f32 %v2322, %v2495
      %v2556 = vadd.f32 %v2323, %v2498
      %v2557 = vadd.f32 %v2324, %v2500
      %v2558 = vadd.f32 %v2325, %v2503
      %v2559 = vadd.f32 %v2326, %v2505
      %v2560 = vadd.f32 %v2327, %v2508
      %v2561 = vadd.f32 %v2328, %v2510
      %v2562 = vadd.f32 %v2329, %v2513
      %v2563 = vadd.f32 %v2330, %v2515
      %v2564 = vadd.f32 %v2331, %v2518
      %v2565 = vadd.f32 %v2332, %v2520
      %v2566 = vadd.f32 %v2333, %v2523
      %v2567 = vadd.f32 %v2334, %v2525
      %v2568 = vadd.f32 %v2335, %v2528
      %v2569 = vadd.f32 %v2336, %v2530
      %v2570 = vadd.f32 %v2337, %v2533
      %v2571 = vadd.f32 %v2338, %v2535
      %v2572 = vadd.f32 %v2339, %v2538
      %v2573 = vadd.f32 %v2340, %v2540
      %v2574 = vld [vmem:[%s4] sm:$0x1]
      %v2576 = vperm.slane %v2574, 0
      %v2578 = vadd.f32 %v2542, %v2576
      %v2579 = vadd.f32 %v2543, %v2576
      %v2580 = vadd.f32 %v2544, %v2576
      %v2581 = vadd.f32 %v2545, %v2576
      %v2582 = vadd.f32 %v2546, %v2576
      %v2583 = vadd.f32 %v2547, %v2576
      %v2584 = vadd.f32 %v2548, %v2576
      %v2585 = vadd.f32 %v2549, %v2576
      %v2586 = vadd.f32 %v2550, %v2576
      %v2587 = vadd.f32 %v2551, %v2576
      %v2588 = vadd.f32 %v2552, %v2576
      %v2589 = vadd.f32 %v2553, %v2576
      %v2590 = vadd.f32 %v2554, %v2576
      %v2591 = vadd.f32 %v2555, %v2576
      %v2592 = vadd.f32 %v2556, %v2576
      %v2593 = vadd.f32 %v2557, %v2576
      %v2594 = vadd.f32 %v2558, %v2576
      %v2595 = vadd.f32 %v2559, %v2576
      %v2596 = vadd.f32 %v2560, %v2576
      %v2597 = vadd.f32 %v2561, %v2576
      %v2598 = vadd.f32 %v2562, %v2576
      %v2599 = vadd.f32 %v2563, %v2576
      %v2600 = vadd.f32 %v2564, %v2576
      %v2601 = vadd.f32 %v2565, %v2576
      %v2602 = vadd.f32 %v2566, %v2576
      %v2603 = vadd.f32 %v2567, %v2576
      %v2604 = vadd.f32 %v2568, %v2576
      %v2605 = vadd.f32 %v2569, %v2576
      %v2606 = vadd.f32 %v2570, %v2576
      %v2607 = vadd.f32 %v2571, %v2576
      %v2608 = vadd.f32 %v2572, %v2576
      %v2609 = vadd.f32 %v2573, %v2576
      %v2610 = vadd.f32 %v328, %v2578
      %v2611 = vadd.f32 %v329, %v2579
      %v2612 = vadd.f32 %v330, %v2580
      %v2613 = vadd.f32 %v331, %v2581
      %v2614 = vadd.f32 %v332, %v2582
      %v2615 = vadd.f32 %v333, %v2583
      %v2616 = vadd.f32 %v334, %v2584
      %v2617 = vadd.f32 %v335, %v2585
      %v2618 = vadd.f32 %v336, %v2586
      %v2619 = vadd.f32 %v337, %v2587
      %v2620 = vadd.f32 %v338, %v2588
      %v2621 = vadd.f32 %v339, %v2589
      %v2622 = vadd.f32 %v340, %v2590
      %v2623 = vadd.f32 %v341, %v2591
      %v2624 = vadd.f32 %v342, %v2592
      %v2625 = vadd.f32 %v343, %v2593
      %v2626 = vadd.f32 %v344, %v2594
      %v2627 = vadd.f32 %v345, %v2595
      %v2628 = vadd.f32 %v346, %v2596
      %v2629 = vadd.f32 %v347, %v2597
      %v2630 = vadd.f32 %v348, %v2598
      %v2631 = vadd.f32 %v349, %v2599
      %v2632 = vadd.f32 %v350, %v2600
      %v2633 = vadd.f32 %v351, %v2601
      %v2634 = vadd.f32 %v352, %v2602
      %v2635 = vadd.f32 %v353, %v2603
      %v2636 = vadd.f32 %v354, %v2604
      %v2637 = vadd.f32 %v355, %v2605
      %v2638 = vadd.f32 %v356, %v2606
      %v2639 = vadd.f32 %v357, %v2607
      %v2640 = vadd.f32 %v358, %v2608
      %v2641 = vadd.f32 %v359, %v2609
      %v2642 = vpack.c.bf16 %v2610, %v2610
      %v2643 = vpack.c.bf16 %v2611, %v2611
      %v2644 = vpack.c.bf16 %v2612, %v2612
      %v2645 = vpack.c.bf16 %v2613, %v2613
      %v2646 = vpack.c.bf16 %v2614, %v2614
      %v2647 = vpack.c.bf16 %v2615, %v2615
      %v2648 = vpack.c.bf16 %v2616, %v2616
      %v2649 = vpack.c.bf16 %v2617, %v2617
      %v2650 = vpack.c.bf16 %v2618, %v2618
      %v2651 = vpack.c.bf16 %v2619, %v2619
      %v2652 = vpack.c.bf16 %v2620, %v2620
      %v2653 = vpack.c.bf16 %v2621, %v2621
      %v2654 = vpack.c.bf16 %v2622, %v2622
      %v2655 = vpack.c.bf16 %v2623, %v2623
      %v2656 = vpack.c.bf16 %v2624, %v2624
      %v2657 = vpack.c.bf16 %v2625, %v2625
      %v2658 = vpack.c.bf16 %v2626, %v2626
      %v2659 = vpack.c.bf16 %v2627, %v2627
      %v2660 = vpack.c.bf16 %v2628, %v2628
      %v2661 = vpack.c.bf16 %v2629, %v2629
      %v2662 = vpack.c.bf16 %v2630, %v2630
      %v2663 = vpack.c.bf16 %v2631, %v2631
      %v2664 = vpack.c.bf16 %v2632, %v2632
      %v2665 = vpack.c.bf16 %v2633, %v2633
      %v2666 = vpack.c.bf16 %v2634, %v2634
      %v2667 = vpack.c.bf16 %v2635, %v2635
      %v2668 = vpack.c.bf16 %v2636, %v2636
      %v2669 = vpack.c.bf16 %v2637, %v2637
      %v2670 = vpack.c.bf16 %v2638, %v2638
      %v2671 = vpack.c.bf16 %v2639, %v2639
      %v2672 = vpack.c.bf16 %v2640, %v2640
      %v2673 = vpack.c.bf16 %v2641, %v2641
      %2674 = vst [vmem:[%s289] sm:$0xf] %v2642
      %2675 = vst [vmem:[%s289 + $0x4] sm:$0xf] %v2643
      %2676 = vst [vmem:[%s289 + $0x8] sm:$0xf] %v2644
      %2677 = vst [vmem:[%s289 + $0xc] sm:$0xf] %v2645
      %2678 = vst [vmem:[%s289 + $0x10] sm:$0xf] %v2646
      %2679 = vst [vmem:[%s289 + $0x14] sm:$0xf] %v2647
      %2680 = vst [vmem:[%s289 + $0x18] sm:$0xf] %v2648
      %2681 = vst [vmem:[%s289 + $0x1c] sm:$0xf] %v2649
      %2682 = vst [vmem:[%s289 + $0x20] sm:$0xf] %v2650
      %2683 = vst [vmem:[%s289 + $0x24] sm:$0xf] %v2651
      %2684 = vst [vmem:[%s289 + $0x28] sm:$0xf] %v2652
      %2685 = vst [vmem:[%s289 + $0x2c] sm:$0xf] %v2653
      %2686 = vst [vmem:[%s289 + $0x30] sm:$0xf] %v2654
      %2687 = vst [vmem:[%s289 + $0x34] sm:$0xf] %v2655
      %2688 = vst [vmem:[%s289 + $0x38] sm:$0xf] %v2656
      %2689 = vst [vmem:[%s289 + $0x3c] sm:$0xf] %v2657
      %2690 = vst [vmem:[%s289 + $0x40] sm:$0xf] %v2658
      %2691 = vst [vmem:[%s289 + $0x44] sm:$0xf] %v2659
      %2692 = vst [vmem:[%s289 + $0x48] sm:$0xf] %v2660
      %2693 = vst [vmem:[%s289 + $0x4c] sm:$0xf] %v2661
      %2694 = vst [vmem:[%s289 + $0x50] sm:$0xf] %v2662
      %2695 = vst [vmem:[%s289 + $0x54] sm:$0xf] %v2663
      %2696 = vst [vmem:[%s289 + $0x58] sm:$0xf] %v2664
      %2697 = vst [vmem:[%s289 + $0x5c] sm:$0xf] %v2665
      %2698 = vst [vmem:[%s289 + $0x60] sm:$0xf] %v2666
      %2699 = vst [vmem:[%s289 + $0x64] sm:$0xf] %v2667
      %2700 = vst [vmem:[%s289 + $0x68] sm:$0xf] %v2668
      %2701 = vst [vmem:[%s289 + $0x6c] sm:$0xf] %v2669
      %2702 = vst [vmem:[%s289 + $0x70] sm:$0xf] %v2670
      %2703 = vst [vmem:[%s289 + $0x74] sm:$0xf] %v2671
      %2704 = vst [vmem:[%s289 + $0x78] sm:$0xf] %v2672
      %2705 = vst [vmem:[%s289 + $0x7c] sm:$0xf] %v2673
      %v2706 = vunpack.c.l.bf16 %v2642
      %v2707 = vunpack.c.l.bf16 %v2643
      %v2708 = vunpack.c.l.bf16 %v2644
      %v2709 = vunpack.c.l.bf16 %v2645
      %v2710 = vunpack.c.l.bf16 %v2646
      %v2711 = vunpack.c.l.bf16 %v2647
      %v2712 = vunpack.c.l.bf16 %v2648
      %v2713 = vunpack.c.l.bf16 %v2649
      %v2714 = vunpack.c.l.bf16 %v2650
      %v2715 = vunpack.c.l.bf16 %v2651
      %v2716 = vunpack.c.l.bf16 %v2652
      %v2717 = vunpack.c.l.bf16 %v2653
      %v2718 = vunpack.c.l.bf16 %v2654
      %v2719 = vunpack.c.l.bf16 %v2655
      %v2720 = vunpack.c.l.bf16 %v2656
      %v2721 = vunpack.c.l.bf16 %v2657
      %v2722 = vunpack.c.l.bf16 %v2658
      %v2723 = vunpack.c.l.bf16 %v2659
      %v2724 = vunpack.c.l.bf16 %v2660
      %v2725 = vunpack.c.l.bf16 %v2661
      %v2726 = vunpack.c.l.bf16 %v2662
      %v2727 = vunpack.c.l.bf16 %v2663
      %v2728 = vunpack.c.l.bf16 %v2664
      %v2729 = vunpack.c.l.bf16 %v2665
      %v2730 = vunpack.c.l.bf16 %v2666
      %v2731 = vunpack.c.l.bf16 %v2667
      %v2732 = vunpack.c.l.bf16 %v2668
      %v2733 = vunpack.c.l.bf16 %v2669
      %v2734 = vunpack.c.l.bf16 %v2670
      %v2735 = vunpack.c.l.bf16 %v2671
      %v2736 = vunpack.c.l.bf16 %v2672
      %v2737 = vunpack.c.l.bf16 %v2673
      %v2738 = vadd.f32 %v2706, %v2707
      %v2739 = vadd.f32 %v2738, %v2708
      %v2740 = vadd.f32 %v2739, %v2709
      %v2741 = vadd.f32 %v2740, %v2710
      %v2742 = vadd.f32 %v2741, %v2711
      %v2743 = vadd.f32 %v2742, %v2712
      %v2744 = vadd.f32 %v2743, %v2713
      %v2745 = vadd.f32 %v2744, %v2714
      %v2746 = vadd.f32 %v2745, %v2715
      %v2747 = vadd.f32 %v2746, %v2716
      %v2748 = vadd.f32 %v2747, %v2717
      %v2749 = vadd.f32 %v2748, %v2718
      %v2750 = vadd.f32 %v2749, %v2719
      %v2751 = vadd.f32 %v2750, %v2720
      %v2752 = vadd.f32 %v2751, %v2721
      %v2753 = vadd.f32 %v2752, %v2722
      %v2754 = vadd.f32 %v2753, %v2723
      %v2755 = vadd.f32 %v2754, %v2724
      %v2756 = vadd.f32 %v2755, %v2725
      %v2757 = vadd.f32 %v2756, %v2726
      %v2758 = vadd.f32 %v2757, %v2727
      %v2759 = vadd.f32 %v2758, %v2728
      %v2760 = vadd.f32 %v2759, %v2729
      %v2761 = vadd.f32 %v2760, %v2730
      %v2762 = vadd.f32 %v2761, %v2731
      %v2763 = vadd.f32 %v2762, %v2732
      %v2764 = vadd.f32 %v2763, %v2733
      %v2765 = vadd.f32 %v2764, %v2734
      %v2766 = vadd.f32 %v2765, %v2735
      %v2767 = vadd.f32 %v2766, %v2736
      %v2768 = vadd.f32 %v2767, %v2737
      %v2769 = vrot.slane %v2768, 4
      %v2770 = vadd.f32 %v2768, %v2769
      %v2771 = vrot.slane %v2770, 2
      %v2772 = vadd.f32 %v2770, %v2771
      %v2773 = vrot.slane %v2772, 1
      %v2774 = vadd.f32 %v2772, %v2773
      %2775 = vst [vmem:[%s292] sm:$0x1] %v2774
      %v2776 = vmul.f32 %v2706, %v2706
      %v2777 = vmul.f32 %v2707, %v2707
      %v2778 = vmul.f32 %v2708, %v2708
      %v2779 = vmul.f32 %v2709, %v2709
      %v2780 = vmul.f32 %v2710, %v2710
      %v2781 = vmul.f32 %v2711, %v2711
      %v2782 = vmul.f32 %v2712, %v2712
      %v2783 = vmul.f32 %v2713, %v2713
      %v2784 = vmul.f32 %v2714, %v2714
      %v2785 = vmul.f32 %v2715, %v2715
      %v2786 = vmul.f32 %v2716, %v2716
      %v2787 = vmul.f32 %v2717, %v2717
      %v2788 = vmul.f32 %v2718, %v2718
      %v2789 = vmul.f32 %v2719, %v2719
      %v2790 = vmul.f32 %v2720, %v2720
      %v2791 = vmul.f32 %v2721, %v2721
      %v2792 = vmul.f32 %v2722, %v2722
      %v2793 = vmul.f32 %v2723, %v2723
      %v2794 = vmul.f32 %v2724, %v2724
      %v2795 = vmul.f32 %v2725, %v2725
      %v2796 = vmul.f32 %v2726, %v2726
      %v2797 = vmul.f32 %v2727, %v2727
      %v2798 = vmul.f32 %v2728, %v2728
      %v2799 = vmul.f32 %v2729, %v2729
      %v2800 = vmul.f32 %v2730, %v2730
      %v2801 = vmul.f32 %v2731, %v2731
      %v2802 = vmul.f32 %v2732, %v2732
      %v2803 = vmul.f32 %v2733, %v2733
      %v2804 = vmul.f32 %v2734, %v2734
      %v2805 = vmul.f32 %v2735, %v2735
      %v2806 = vmul.f32 %v2736, %v2736
      %v2807 = vmul.f32 %v2737, %v2737
      %v2808 = vadd.f32 %v2776, %v2777
      %v2809 = vadd.f32 %v2808, %v2778
      %v2810 = vadd.f32 %v2809, %v2779
      %v2811 = vadd.f32 %v2810, %v2780
      %v2812 = vadd.f32 %v2811, %v2781
      %v2813 = vadd.f32 %v2812, %v2782
      %v2814 = vadd.f32 %v2813, %v2783
      %v2815 = vadd.f32 %v2814, %v2784
      %v2816 = vadd.f32 %v2815, %v2785
      %v2817 = vadd.f32 %v2816, %v2786
      %v2818 = vadd.f32 %v2817, %v2787
      %v2819 = vadd.f32 %v2818, %v2788
      %v2820 = vadd.f32 %v2819, %v2789
      %v2821 = vadd.f32 %v2820, %v2790
      %v2822 = vadd.f32 %v2821, %v2791
      %v2823 = vadd.f32 %v2822, %v2792
      %v2824 = vadd.f32 %v2823, %v2793
      %v2825 = vadd.f32 %v2824, %v2794
      %v2826 = vadd.f32 %v2825, %v2795
      %v2827 = vadd.f32 %v2826, %v2796
      %v2828 = vadd.f32 %v2827, %v2797
      %v2829 = vadd.f32 %v2828, %v2798
      %v2830 = vadd.f32 %v2829, %v2799
      %v2831 = vadd.f32 %v2830, %v2800
      %v2832 = vadd.f32 %v2831, %v2801
      %v2833 = vadd.f32 %v2832, %v2802
      %v2834 = vadd.f32 %v2833, %v2803
      %v2835 = vadd.f32 %v2834, %v2804
      %v2836 = vadd.f32 %v2835, %v2805
      %v2837 = vadd.f32 %v2836, %v2806
      %v2838 = vadd.f32 %v2837, %v2807
      %v2839 = vrot.slane %v2838, 4
      %v2840 = vadd.f32 %v2838, %v2839
      %v2841 = vrot.slane %v2840, 2
      %v2842 = vadd.f32 %v2840, %v2841
      %v2843 = vrot.slane %v2842, 1
      %v2844 = vadd.f32 %v2842, %v2843
      %2845 = vst [vmem:[%s295] sm:$0x1] %v2844
      %p2846 = scmp.lt.s32.totalorder %s19, 1
      %s2847 = scalar_select %p2846, %s19, 1
      %s2848 = smul.addr %s2847, 32
      %s2849 = smul.addr %s2848, 4
      %s2850 = scalar_lea.vmem %s5, %s2849
      %p2851 = scmp.lt.s32.totalorder %s19, 1
      %s2852 = scalar_select %p2851, %s19, 1
      %s2853 = scalar_lea.vmem %s6, %s2852
      %p2854 = scmp.lt.s32.totalorder %s19, 1
      %s2855 = scalar_select %p2854, %s19, 1
      %s2856 = scalar_lea.vmem %s7, %s2855
      // Predicated region
      $region41: #{forward.2} parent=39 // pred_check
        %p2857 = pneg %p147
      $region42: #{forward.2} parent=39 // pred_check_branch
        %2859 = sbr.rel (%p2857) target = $region44
      $region43: #{forward.2} parent=39 // pred_region
        _
      $region44: #{forward.2} parent=39 // pred_fallthru
        _
      // Predicated region
      $region45: #{forward.2} parent=39 // pred_check
        %p2860 = pneg %p173
      $region46: #{forward.2} parent=39 // pred_check_branch
        %2862 = sbr.rel (%p2860) target = $region48
      $region47: #{forward.2} parent=39 // pred_region
        _
      $region48: #{forward.2} parent=39 // pred_fallthru
        _
      // Predicated region
      $region49: #{forward.2} parent=39 // pred_check
        %p2863 = pneg %p199
      $region50: #{forward.2} parent=39 // pred_check_branch
        %2865 = sbr.rel (%p2863) target = $region52
      $region51: #{forward.2} parent=39 // pred_region
        _
      $region52: #{forward.2} parent=39 // pred_fallthru
        _
    $region40: #{forward.2} parent=5 // pred_fallthru
      _
    %p2866 = scmp.le.s32.totalorder 2, %s14
    // Predicated region
    $region53: #{forward.2} parent=5 // pred_check
      %p2867 = pneg %p2866
    $region54: #{forward.2} parent=5 // pred_check_branch
      %2869 = sbr.rel (%p2867) target = $region56
    $region55: #{forward.2} parent=5 // pred_region
      %s2870 = ssub.s32 %s14, 2
      // Predicated region
      $region57: #{forward.2} parent=55 // pred_check
        %p2871 = pneg %p153
      $region58: #{forward.2} parent=55 // pred_check_branch
        %2873 = sbr.rel (%p2871) target = $region60
      $region59: #{forward.2} parent=55 // pred_region
        %p2874 = scmp.lt.s32.totalorder %s20, 1
        %s2875 = scalar_select %p2874, %s20, 1
        %s2876 = smul.addr %s2875, 32
        %s2877 = smul.addr %s2876, 4
        %s2878 = scalar_lea.vmem %s5, %s2877
      $region60: #{forward.2} parent=55 // pred_fallthru
        _
      // Predicated region
      $region61: #{forward.2} parent=55 // pred_check
        %p2879 = pneg %p179
      $region62: #{forward.2} parent=55 // pred_check_branch
        %2881 = sbr.rel (%p2879) target = $region64
      $region63: #{forward.2} parent=55 // pred_region
        %p2882 = scmp.lt.s32.totalorder %s20, 1
        %s2883 = scalar_select %p2882, %s20, 1
        %s2884 = scalar_lea.vmem %s6, %s2883
      $region64: #{forward.2} parent=55 // pred_fallthru
        _
      // Predicated region
      $region65: #{forward.2} parent=55 // pred_check
        %p2885 = pneg %p205
      $region66: #{forward.2} parent=55 // pred_check_branch
        %2887 = sbr.rel (%p2885) target = $region68
      $region67: #{forward.2} parent=55 // pred_region
        %p2888 = scmp.lt.s32.totalorder %s20, 1
        %s2889 = scalar_select %p2888, %s20, 1
        %s2890 = scalar_lea.vmem %s7, %s2889
      $region68: #{forward.2} parent=55 // pred_fallthru
        _
    $region56: #{forward.2} parent=5 // pred_fallthru
      _
  $region6: #{forward.2} parent=0 // loop_footer
    %s18 = sadd.s32 1, %s14
  $region7: #{forward.2} parent=0 // loop_footer_branch
    %13 = sbr.rel target = $region3
  $region8: #{forward.2} parent=0 // loop_exit
    _

</llo_original>
